<compile_context>
chip_gen: v7x
topology: tpu7x:2x2x1
jax: 0.10.0
libtpu: 0.0.40
codegen_flags: <defaults>
</compile_context>

<pallas_src>
import numpy as np
import jax
import jax.numpy as jnp
from jax import lax
from jax.experimental import pallas as pl
from jax.experimental.pallas import tpu as pltpu

KERNEL = 5          # Conv1d kernel size
PAD = KERNEL // 2   # 'same' padding = 2


def token_learner_kernel(x_ref, w0_ref, wl_ref, o_ref):
    # x_ref : (Bb, T, C)       Bb batch elements per grid step
    # w0_ref: (K*C, S)         first conv as an im2col weight matrix
    # wl_ref: (L, K*S, S)      later convs as im2col weight matrices
    # o_ref : (1, Bb, S*C)     lane-dense output block
    Bb, T, C = x_ref.shape
    S = w0_ref.shape[-1]
    L = wl_ref.shape[0]
    N = Bb * T

    x = x_ref[...].astype(jnp.float32)                 # (Bb, T, C)
    x_flat = x.reshape(N, C)                           # batch folded into the M dim

    # Per-k edge masks: row r of the flattened slab is token t = r mod T of its
    # batch element; kernel tap k reads token t + (k - PAD), which must stay in
    # [0, T).  (The rows that violate this are exactly the rolled rows that
    # wrapped around / crossed a batch boundary.)  Computed once, reused by all
    # L+1 convs.
    t_idx = lax.broadcasted_iota(jnp.int32, (N, 1), 0) % T
    shifts, masks = [], []
    for k in range(KERNEL):
        s = PAD - k                                    # jnp.roll-style shift amount
        shifts.append(s)
        if s == 0:
            masks.append(None)
        else:
            masks.append((t_idx >= max(s, 0)) & (t_idx < T + min(s, 0)))

    def conv1d_same(inp, w_mat):
        # inp: (N, Cin); w_mat: (K*Cin, Cout).  One im2col matmul on the MXU.
        cols = []
        for k in range(KERNEL):
            s = shifts[k]
            if s == 0:
                cols.append(inp)
            else:
                rolled = pltpu.roll(inp, shift=s % N, axis=0)   # out[r] = inp[r - s]
                cols.append(jnp.where(masks[k], rolled, 0.0))
        im2col = jnp.concatenate(cols, axis=-1)        # (N, K*Cin)
        return jnp.dot(im2col, w_mat, preferred_element_type=jnp.float32)

    # attention = Conv1d(C->S) -> [SiLU -> Conv1d(S->S)] * layers -> Sigmoid
    h = conv1d_same(x_flat, w0_ref[...])               # (N, S)
    for l in range(L):
        a = h * jax.nn.sigmoid(h)                      # SiLU (EUP sigmoid + VPU mul)
        h = conv1d_same(a, wl_ref[l])
    attn = jax.nn.sigmoid(h)                           # (N, S)

    # out[b, s, c] = mean_t attn[b, t, s] * x[b, t, c]
    out = jnp.einsum('bts,btc->bsc', attn.reshape(Bb, T, S), x,
                     preferred_element_type=jnp.float32) * (1.0 / T)
    o_ref[0] = out.reshape(Bb, S * C).astype(o_ref.dtype)


def _pick_block_b(B, T, target_rows=1024, min_steps=2):
    """Batch elements per grid step.

    Fold enough batch into the matmul M dimension to amortize the ~0.35us
    per-grid-step overhead and fill the MXU (~`target_rows` rows per step), but
    keep at least `min_steps` grid steps so the "parallel" grid axis can still be
    sharded across TensorCores (v7x megacore).  Requires block_b | B.
    """
    bb = max(1, min(B, target_rows // max(T, 1)))
    if B >= min_steps:
        bb = min(bb, max(1, B // min_steps))
    while B % bb:
        bb -= 1
    return bb


def token_learner_1d(x, w0, wls, *, block_b=None):
    """x: (B, T, C) f32; w0: (S, C, K); wls: (L, S, S, K).  Returns (B, S, C)."""
    B, T, C = x.shape
    S, _, K = w0.shape
    L = wls.shape[0]
    assert K == KERNEL and wls.shape[1:] == (S, S, K)

    # Pre-reshape conv weights into im2col matrices in the wrapper (never in-kernel):
    #   w0_mat[k*C + i, o] = w0[o, i, k];   wl_mat[l, k*S + i, o] = wls[l, o, i, k]
    w0_mat = jnp.transpose(w0, (2, 1, 0)).reshape(K * C, S)
    wl_mat = jnp.transpose(wls, (0, 3, 2, 1)).reshape(L, K * S, S)

    if block_b is None:
        block_b = _pick_block_b(B, T)
    assert B % block_b == 0
    nb = B // block_b

    out_flat = pl.pallas_call(
        token_learner_kernel,
        out_shape=jax.ShapeDtypeStruct((nb, block_b, S * C), x.dtype),
        grid_spec=pltpu.PrefetchScalarGridSpec(
            num_scalar_prefetch=0,
            grid=(nb,),
            in_specs=[
                pl.BlockSpec((block_b, T, C), lambda b: (b, 0, 0)),
                pl.BlockSpec((K * C, S), lambda b: (0, 0)),        # resident weights
                pl.BlockSpec((L, K * S, S), lambda b: (0, 0, 0)),  # resident weights
            ],
            out_specs=pl.BlockSpec((1, block_b, S * C), lambda b: (b, 0, 0)),
        ),
        compiler_params=pltpu.CompilerParams(
            dimension_semantics=("parallel",)),
    )(x, w0_mat, wl_mat)
    return out_flat.reshape(B, S, C)


def reference_forward(x, w0, wls):
    """Pure-JAX reference matching PyTorch TokenLearner1D semantics exactly."""
    h = jnp.transpose(x, (0, 2, 1))                    # (B, C, T)  == PyTorch NCL
    h = lax.conv_general_dilated(h, w0, (1,), ((PAD, PAD),),
                                 dimension_numbers=("NCH", "OIH", "NCH"))
    for l in range(wls.shape[0]):
        h = jax.nn.silu(h)
        h = lax.conv_general_dilated(h, wls[l], (1,), ((PAD, PAD),),
                                     dimension_numbers=("NCH", "OIH", "NCH"))
    attn = jax.nn.sigmoid(h)                           # (B, S, T)
    return jnp.einsum("bst,btc->bsc", attn, x) / x.shape[1]


if __name__ == "__main__":
    B, T, C, S, L = 8, 64, 16, 8, 3                    # in_channels=C=16, S=8, layers=3

    key = jax.random.PRNGKey(0)
    kx, k0, *kls = jax.random.split(key, 2 + L)
    x = jax.random.normal(kx, (B, T, C), jnp.float32)

    def xavier_conv1d(k, out_c, in_c, ks):
        fan_in, fan_out = in_c * ks, out_c * ks
        bound = float(np.sqrt(6.0 / (fan_in + fan_out)))
        return jax.random.uniform(k, (out_c, in_c, ks), jnp.float32, -bound, bound)

    w0 = xavier_conv1d(k0, S, C, KERNEL)                              # (S, C, 5)
    wls = jnp.stack([xavier_conv1d(kl, S, S, KERNEL) for kl in kls])  # (L, S, S, 5)

    out = jax.jit(token_learner_1d)(x, w0, wls)
    out = jax.block_until_ready(out)

    expected = reference_forward(x, w0, wls)
    assert out.shape == (B, S, C), out.shape
    np.testing.assert_allclose(np.asarray(out), np.asarray(expected),
                               rtol=1e-4, atol=1e-5)
    print("KERNEL_OK")
</pallas_src>

<mosaic_0001>
module attributes {stable_mosaic.version = 11 : i64} {
  func.func @token_learner_kernel(%arg0: i32, %arg1: memref<4x64x16xf32, #tpu.memory_space<vmem>>, %arg2: memref<80x8xf32, #tpu.memory_space<vmem>>, %arg3: memref<3x40x8xf32, #tpu.memory_space<vmem>>, %arg4: memref<1x4x128xf32, #tpu.memory_space<vmem>>) attributes {dimension_semantics = [#tpu.dimension_semantics<parallel>], iteration_bounds = array<i64: 2>, scalar_prefetch = 0 : i64, scratch_operands = 0 : i64, tpu.core_type = #tpu.core_type<tc>, window_params = [{transform_indices = @transform_0, window_bounds = array<i64: 4, 64, 16>}, {pipeline_mode = #tpu.pipeline_mode<synchronous>, transform_indices = @transform_1, window_bounds = array<i64: 80, 8>}, {pipeline_mode = #tpu.pipeline_mode<synchronous>, transform_indices = @transform_2, window_bounds = array<i64: 3, 40, 8>}, {transform_indices = @transform_3, window_bounds = array<i64: 1, 4, 128>}]} {
    %c0 = arith.constant 0 : index
    %c0_0 = arith.constant 0 : index
    %c0_1 = arith.constant 0 : index
    %0 = vector.load %arg1[%c0, %c0_0, %c0_1] : memref<4x64x16xf32, #tpu.memory_space<vmem>>, vector<4x64x16xf32>
    %1 = vector.shape_cast %0 : vector<4x64x16xf32> to vector<256x16xf32>
    %2 = tpu.iota {dimensions = array<i32: 0>} : vector<256x1xi32>
    %c64_i32 = arith.constant 64 : i32
    %c0_i32 = arith.constant 0 : i32
    %3 = arith.cmpi eq, %c64_i32, %c0_i32 : i32
    %c1_i32 = arith.constant 1 : i32
    %4 = arith.select %3, %c1_i32, %c64_i32 : i32
    %5 = vector.broadcast %4 : i32 to vector<256x1xi32>
    %6 = arith.remsi %2, %5 : vector<256x1xi32>
    %c0_i32_2 = arith.constant 0 : i32
    %7 = vector.broadcast %c0_i32_2 : i32 to vector<256x1xi32>
    %8 = arith.cmpi ne, %6, %7 : vector<256x1xi32>
    %c0_i32_3 = arith.constant 0 : i32
    %9 = vector.broadcast %c0_i32_3 : i32 to vector<256x1xi32>
    %10 = arith.cmpi slt, %6, %9 : vector<256x1xi32>
    %c0_i32_4 = arith.constant 0 : i32
    %11 = arith.cmpi slt, %4, %c0_i32_4 : i32
    %12 = vector.broadcast %11 : i1 to vector<256x1xi1>
    %13 = vector.broadcast %12 : vector<256x1xi1> to vector<256x1xi1>
    %14 = arith.xori %10, %13 : vector<256x1xi1>
    %15 = arith.andi %14, %8 : vector<256x1xi1>
    %16 = vector.broadcast %4 : i32 to vector<256x1xi32>
    %17 = arith.addi %6, %16 : vector<256x1xi32>
    %18 = arith.select %15, %17, %6 : vector<256x1xi1>, vector<256x1xi32>
    %c2_i32 = arith.constant 2 : i32
    %19 = vector.broadcast %c2_i32 : i32 to vector<256x1xi32>
    %20 = arith.cmpi sge, %18, %19 : vector<256x1xi32>
    %c64_i32_5 = arith.constant 64 : i32
    %21 = vector.broadcast %c64_i32_5 : i32 to vector<256x1xi32>
    %22 = arith.cmpi slt, %18, %21 : vector<256x1xi32>
    %23 = arith.andi %20, %22 : vector<256x1xi1>
    %c1_i32_6 = arith.constant 1 : i32
    %24 = vector.broadcast %c1_i32_6 : i32 to vector<256x1xi32>
    %25 = arith.cmpi sge, %18, %24 : vector<256x1xi32>
    %c64_i32_7 = arith.constant 64 : i32
    %26 = vector.broadcast %c64_i32_7 : i32 to vector<256x1xi32>
    %27 = arith.cmpi slt, %18, %26 : vector<256x1xi32>
    %28 = arith.andi %25, %27 : vector<256x1xi1>
    %c0_i32_8 = arith.constant 0 : i32
    %29 = vector.broadcast %c0_i32_8 : i32 to vector<256x1xi32>
    %30 = arith.cmpi sge, %18, %29 : vector<256x1xi32>
    %c63_i32 = arith.constant 63 : i32
    %31 = vector.broadcast %c63_i32 : i32 to vector<256x1xi32>
    %32 = arith.cmpi slt, %18, %31 : vector<256x1xi32>
    %33 = arith.andi %30, %32 : vector<256x1xi1>
    %c0_i32_9 = arith.constant 0 : i32
    %34 = vector.broadcast %c0_i32_9 : i32 to vector<256x1xi32>
    %35 = arith.cmpi sge, %18, %34 : vector<256x1xi32>
    %c62_i32 = arith.constant 62 : i32
    %36 = vector.broadcast %c62_i32 : i32 to vector<256x1xi32>
    %37 = arith.cmpi slt, %18, %36 : vector<256x1xi32>
    %38 = arith.andi %35, %37 : vector<256x1xi1>
    %c0_10 = arith.constant 0 : index
    %c0_11 = arith.constant 0 : index
    %39 = vector.load %arg2[%c0_10, %c0_11] : memref<80x8xf32, #tpu.memory_space<vmem>>, vector<80x8xf32>
    %c2_i32_12 = arith.constant 2 : i32
    %40 = tpu.dynamic_rotate %1 by %c2_i32_12 dim 0 : vector<256x16xf32>, i32 -> vector<256x16xf32>
    %cst = arith.constant 0.000000e+00 : f32
    %41 = vector.shape_cast %23 : vector<256x1xi1> to vector<256x1xi1>
    %42 = vector.broadcast %41 : vector<256x1xi1> to vector<256x16xi1>
    %43 = vector.broadcast %cst : f32 to vector<256x16xf32>
    %44 = arith.select %42, %40, %43 : vector<256x16xi1>, vector<256x16xf32>
    %c1_i32_13 = arith.constant 1 : i32
    %45 = tpu.dynamic_rotate %1 by %c1_i32_13 dim 0 : vector<256x16xf32>, i32 -> vector<256x16xf32>
    %cst_14 = arith.constant 0.000000e+00 : f32
    %46 = vector.shape_cast %28 : vector<256x1xi1> to vector<256x1xi1>
    %47 = vector.broadcast %46 : vector<256x1xi1> to vector<256x16xi1>
    %48 = vector.broadcast %cst_14 : f32 to vector<256x16xf32>
    %49 = arith.select %47, %45, %48 : vector<256x16xi1>, vector<256x16xf32>
    %c255_i32 = arith.constant 255 : i32
    %50 = tpu.dynamic_rotate %1 by %c255_i32 dim 0 : vector<256x16xf32>, i32 -> vector<256x16xf32>
    %cst_15 = arith.constant 0.000000e+00 : f32
    %51 = vector.shape_cast %33 : vector<256x1xi1> to vector<256x1xi1>
    %52 = vector.broadcast %51 : vector<256x1xi1> to vector<256x16xi1>
    %53 = vector.broadcast %cst_15 : f32 to vector<256x16xf32>
    %54 = arith.select %52, %50, %53 : vector<256x16xi1>, vector<256x16xf32>
    %c254_i32 = arith.constant 254 : i32
    %55 = tpu.dynamic_rotate %1 by %c254_i32 dim 0 : vector<256x16xf32>, i32 -> vector<256x16xf32>
    %cst_16 = arith.constant 0.000000e+00 : f32
    %56 = vector.shape_cast %38 : vector<256x1xi1> to vector<256x1xi1>
    %57 = vector.broadcast %56 : vector<256x1xi1> to vector<256x16xi1>
    %58 = vector.broadcast %cst_16 : f32 to vector<256x16xf32>
    %59 = arith.select %57, %55, %58 : vector<256x16xi1>, vector<256x16xf32>
    %60 = tpu.concatenate %44, %49, %1, %54, %59 in 1 : vector<256x16xf32>, vector<256x16xf32>, vector<256x16xf32>, vector<256x16xf32>, vector<256x16xf32> -> vector<256x80xf32>
    %cst_17 = arith.constant dense<0.000000e+00> : vector<256x8xf32>
    %61 = tpu.matmul %60, %39, %cst_17 {dimension_numbers = #tpu.dot_dimension_numbers<[1], [0], [0], [1], [0, 0, 1, 1], [], []>} : vector<256x80xf32>, vector<80x8xf32>, vector<256x8xf32> -> vector<256x8xf32>
    %62 = arith.negf %61 : vector<256x8xf32>
    %63 = math.exp %62 : vector<256x8xf32>
    %cst_18 = arith.constant 1.000000e+00 : f32
    %64 = vector.broadcast %cst_18 : f32 to vector<256x8xf32>
    %65 = arith.addf %64, %63 : vector<256x8xf32>
    %66 = arith.divf %64, %65 : vector<256x8xf32>
    %67 = arith.mulf %61, %66 : vector<256x8xf32>
    %c0_19 = arith.constant 0 : index
    %c0_20 = arith.constant 0 : index
    %c0_21 = arith.constant 0 : index
    %68 = vector.load %arg3[%c0_19, %c0_20, %c0_21] : memref<3x40x8xf32, #tpu.memory_space<vmem>>, vector<1x40x8xf32>
    %69 = vector.shape_cast %68 : vector<1x40x8xf32> to vector<40x8xf32>
    %c2_i32_22 = arith.constant 2 : i32
    %70 = tpu.dynamic_rotate %67 by %c2_i32_22 dim 0 : vector<256x8xf32>, i32 -> vector<256x8xf32>
    %cst_23 = arith.constant 0.000000e+00 : f32
    %71 = vector.shape_cast %23 : vector<256x1xi1> to vector<256x1xi1>
    %72 = vector.broadcast %71 : vector<256x1xi1> to vector<256x8xi1>
    %73 = vector.broadcast %cst_23 : f32 to vector<256x8xf32>
    %74 = arith.select %72, %70, %73 : vector<256x8xi1>, vector<256x8xf32>
    %c1_i32_24 = arith.constant 1 : i32
    %75 = tpu.dynamic_rotate %67 by %c1_i32_24 dim 0 : vector<256x8xf32>, i32 -> vector<256x8xf32>
    %cst_25 = arith.constant 0.000000e+00 : f32
    %76 = vector.shape_cast %28 : vector<256x1xi1> to vector<256x1xi1>
    %77 = vector.broadcast %76 : vector<256x1xi1> to vector<256x8xi1>
    %78 = vector.broadcast %cst_25 : f32 to vector<256x8xf32>
    %79 = arith.select %77, %75, %78 : vector<256x8xi1>, vector<256x8xf32>
    %c255_i32_26 = arith.constant 255 : i32
    %80 = tpu.dynamic_rotate %67 by %c255_i32_26 dim 0 : vector<256x8xf32>, i32 -> vector<256x8xf32>
    %cst_27 = arith.constant 0.000000e+00 : f32
    %81 = vector.shape_cast %33 : vector<256x1xi1> to vector<256x1xi1>
    %82 = vector.broadcast %81 : vector<256x1xi1> to vector<256x8xi1>
    %83 = vector.broadcast %cst_27 : f32 to vector<256x8xf32>
    %84 = arith.select %82, %80, %83 : vector<256x8xi1>, vector<256x8xf32>
    %c254_i32_28 = arith.constant 254 : i32
    %85 = tpu.dynamic_rotate %67 by %c254_i32_28 dim 0 : vector<256x8xf32>, i32 -> vector<256x8xf32>
    %cst_29 = arith.constant 0.000000e+00 : f32
    %86 = vector.shape_cast %38 : vector<256x1xi1> to vector<256x1xi1>
    %87 = vector.broadcast %86 : vector<256x1xi1> to vector<256x8xi1>
    %88 = vector.broadcast %cst_29 : f32 to vector<256x8xf32>
    %89 = arith.select %87, %85, %88 : vector<256x8xi1>, vector<256x8xf32>
    %90 = tpu.concatenate %74, %79, %67, %84, %89 in 1 : vector<256x8xf32>, vector<256x8xf32>, vector<256x8xf32>, vector<256x8xf32>, vector<256x8xf32> -> vector<256x40xf32>
    %cst_30 = arith.constant dense<0.000000e+00> : vector<256x8xf32>
    %91 = tpu.matmul %90, %69, %cst_30 {dimension_numbers = #tpu.dot_dimension_numbers<[1], [0], [0], [1], [0, 0, 1, 1], [], []>} : vector<256x40xf32>, vector<40x8xf32>, vector<256x8xf32> -> vector<256x8xf32>
    %92 = arith.negf %91 : vector<256x8xf32>
    %93 = math.exp %92 : vector<256x8xf32>
    %cst_31 = arith.constant 1.000000e+00 : f32
    %94 = vector.broadcast %cst_31 : f32 to vector<256x8xf32>
    %95 = arith.addf %94, %93 : vector<256x8xf32>
    %96 = arith.divf %94, %95 : vector<256x8xf32>
    %97 = arith.mulf %91, %96 : vector<256x8xf32>
    %c1 = arith.constant 1 : index
    %c0_32 = arith.constant 0 : index
    %c0_33 = arith.constant 0 : index
    %98 = vector.load %arg3[%c1, %c0_32, %c0_33] : memref<3x40x8xf32, #tpu.memory_space<vmem>>, vector<1x40x8xf32>
    %99 = vector.shape_cast %98 : vector<1x40x8xf32> to vector<40x8xf32>
    %c2_i32_34 = arith.constant 2 : i32
    %100 = tpu.dynamic_rotate %97 by %c2_i32_34 dim 0 : vector<256x8xf32>, i32 -> vector<256x8xf32>
    %cst_35 = arith.constant 0.000000e+00 : f32
    %101 = vector.shape_cast %23 : vector<256x1xi1> to vector<256x1xi1>
    %102 = vector.broadcast %101 : vector<256x1xi1> to vector<256x8xi1>
    %103 = vector.broadcast %cst_35 : f32 to vector<256x8xf32>
    %104 = arith.select %102, %100, %103 : vector<256x8xi1>, vector<256x8xf32>
    %c1_i32_36 = arith.constant 1 : i32
    %105 = tpu.dynamic_rotate %97 by %c1_i32_36 dim 0 : vector<256x8xf32>, i32 -> vector<256x8xf32>
    %cst_37 = arith.constant 0.000000e+00 : f32
    %106 = vector.shape_cast %28 : vector<256x1xi1> to vector<256x1xi1>
    %107 = vector.broadcast %106 : vector<256x1xi1> to vector<256x8xi1>
    %108 = vector.broadcast %cst_37 : f32 to vector<256x8xf32>
    %109 = arith.select %107, %105, %108 : vector<256x8xi1>, vector<256x8xf32>
    %c255_i32_38 = arith.constant 255 : i32
    %110 = tpu.dynamic_rotate %97 by %c255_i32_38 dim 0 : vector<256x8xf32>, i32 -> vector<256x8xf32>
    %cst_39 = arith.constant 0.000000e+00 : f32
    %111 = vector.shape_cast %33 : vector<256x1xi1> to vector<256x1xi1>
    %112 = vector.broadcast %111 : vector<256x1xi1> to vector<256x8xi1>
    %113 = vector.broadcast %cst_39 : f32 to vector<256x8xf32>
    %114 = arith.select %112, %110, %113 : vector<256x8xi1>, vector<256x8xf32>
    %c254_i32_40 = arith.constant 254 : i32
    %115 = tpu.dynamic_rotate %97 by %c254_i32_40 dim 0 : vector<256x8xf32>, i32 -> vector<256x8xf32>
    %cst_41 = arith.constant 0.000000e+00 : f32
    %116 = vector.shape_cast %38 : vector<256x1xi1> to vector<256x1xi1>
    %117 = vector.broadcast %116 : vector<256x1xi1> to vector<256x8xi1>
    %118 = vector.broadcast %cst_41 : f32 to vector<256x8xf32>
    %119 = arith.select %117, %115, %118 : vector<256x8xi1>, vector<256x8xf32>
    %120 = tpu.concatenate %104, %109, %97, %114, %119 in 1 : vector<256x8xf32>, vector<256x8xf32>, vector<256x8xf32>, vector<256x8xf32>, vector<256x8xf32> -> vector<256x40xf32>
    %cst_42 = arith.constant dense<0.000000e+00> : vector<256x8xf32>
    %121 = tpu.matmul %120, %99, %cst_42 {dimension_numbers = #tpu.dot_dimension_numbers<[1], [0], [0], [1], [0, 0, 1, 1], [], []>} : vector<256x40xf32>, vector<40x8xf32>, vector<256x8xf32> -> vector<256x8xf32>
    %122 = arith.negf %121 : vector<256x8xf32>
    %123 = math.exp %122 : vector<256x8xf32>
    %cst_43 = arith.constant 1.000000e+00 : f32
    %124 = vector.broadcast %cst_43 : f32 to vector<256x8xf32>
    %125 = arith.addf %124, %123 : vector<256x8xf32>
    %126 = arith.divf %124, %125 : vector<256x8xf32>
    %127 = arith.mulf %121, %126 : vector<256x8xf32>
    %c2 = arith.constant 2 : index
    %c0_44 = arith.constant 0 : index
    %c0_45 = arith.constant 0 : index
    %128 = vector.load %arg3[%c2, %c0_44, %c0_45] : memref<3x40x8xf32, #tpu.memory_space<vmem>>, vector<1x40x8xf32>
    %129 = vector.shape_cast %128 : vector<1x40x8xf32> to vector<40x8xf32>
    %c2_i32_46 = arith.constant 2 : i32
    %130 = tpu.dynamic_rotate %127 by %c2_i32_46 dim 0 : vector<256x8xf32>, i32 -> vector<256x8xf32>
    %cst_47 = arith.constant 0.000000e+00 : f32
    %131 = vector.shape_cast %23 : vector<256x1xi1> to vector<256x1xi1>
    %132 = vector.broadcast %131 : vector<256x1xi1> to vector<256x8xi1>
    %133 = vector.broadcast %cst_47 : f32 to vector<256x8xf32>
    %134 = arith.select %132, %130, %133 : vector<256x8xi1>, vector<256x8xf32>
    %c1_i32_48 = arith.constant 1 : i32
    %135 = tpu.dynamic_rotate %127 by %c1_i32_48 dim 0 : vector<256x8xf32>, i32 -> vector<256x8xf32>
    %cst_49 = arith.constant 0.000000e+00 : f32
    %136 = vector.shape_cast %28 : vector<256x1xi1> to vector<256x1xi1>
    %137 = vector.broadcast %136 : vector<256x1xi1> to vector<256x8xi1>
    %138 = vector.broadcast %cst_49 : f32 to vector<256x8xf32>
    %139 = arith.select %137, %135, %138 : vector<256x8xi1>, vector<256x8xf32>
    %c255_i32_50 = arith.constant 255 : i32
    %140 = tpu.dynamic_rotate %127 by %c255_i32_50 dim 0 : vector<256x8xf32>, i32 -> vector<256x8xf32>
    %cst_51 = arith.constant 0.000000e+00 : f32
    %141 = vector.shape_cast %33 : vector<256x1xi1> to vector<256x1xi1>
    %142 = vector.broadcast %141 : vector<256x1xi1> to vector<256x8xi1>
    %143 = vector.broadcast %cst_51 : f32 to vector<256x8xf32>
    %144 = arith.select %142, %140, %143 : vector<256x8xi1>, vector<256x8xf32>
    %c254_i32_52 = arith.constant 254 : i32
    %145 = tpu.dynamic_rotate %127 by %c254_i32_52 dim 0 : vector<256x8xf32>, i32 -> vector<256x8xf32>
    %cst_53 = arith.constant 0.000000e+00 : f32
    %146 = vector.shape_cast %38 : vector<256x1xi1> to vector<256x1xi1>
    %147 = vector.broadcast %146 : vector<256x1xi1> to vector<256x8xi1>
    %148 = vector.broadcast %cst_53 : f32 to vector<256x8xf32>
    %149 = arith.select %147, %145, %148 : vector<256x8xi1>, vector<256x8xf32>
    %150 = tpu.concatenate %134, %139, %127, %144, %149 in 1 : vector<256x8xf32>, vector<256x8xf32>, vector<256x8xf32>, vector<256x8xf32>, vector<256x8xf32> -> vector<256x40xf32>
    %cst_54 = arith.constant dense<0.000000e+00> : vector<256x8xf32>
    %151 = tpu.matmul %150, %129, %cst_54 {dimension_numbers = #tpu.dot_dimension_numbers<[1], [0], [0], [1], [0, 0, 1, 1], [], []>} : vector<256x40xf32>, vector<40x8xf32>, vector<256x8xf32> -> vector<256x8xf32>
    %152 = arith.negf %151 : vector<256x8xf32>
    %153 = math.exp %152 : vector<256x8xf32>
    %cst_55 = arith.constant 1.000000e+00 : f32
    %154 = vector.broadcast %cst_55 : f32 to vector<256x8xf32>
    %155 = arith.addf %154, %153 : vector<256x8xf32>
    %156 = arith.divf %154, %155 : vector<256x8xf32>
    %157 = vector.shape_cast %156 : vector<256x8xf32> to vector<4x64x8xf32>
    "tpu.trace_start"() <{level = 10 : i32, message = "bts,btc->bsc"}> : () -> ()
    %cst_56 = arith.constant dense<0.000000e+00> : vector<4x8x16xf32>
    %158 = tpu.matmul %157, %0, %cst_56 {dimension_numbers = #tpu.dot_dimension_numbers<[1], [1], [2], [2], [0, 0, 0, 2, 1, 2], [0], [0]>} : vector<4x64x8xf32>, vector<4x64x16xf32>, vector<4x8x16xf32> -> vector<4x8x16xf32>
    "tpu.trace_stop"() : () -> ()
    %cst_57 = arith.constant 1.562500e-02 : f32
    %159 = vector.broadcast %cst_57 : f32 to vector<4x8x16xf32>
    %160 = arith.mulf %158, %159 : vector<4x8x16xf32>
    %161 = vector.shape_cast %160 : vector<4x8x16xf32> to vector<4x128xf32>
    %c0_58 = arith.constant 0 : index
    %c0_59 = arith.constant 0 : index
    %c0_60 = arith.constant 0 : index
    %162 = vector.load %arg4[%c0_58, %c0_59, %c0_60] : memref<1x4x128xf32, #tpu.memory_space<vmem>>, vector<1x4x128xf32>
    %163 = vector.shape_cast %162 : vector<1x4x128xf32> to vector<4x128xf32>
    %164 = vector.shape_cast %161 : vector<4x128xf32> to vector<1x4x128xf32>
    tpu.vector_store %arg4[%c0_58, %c0_59, %c0_60], %164 {strides = array<i32>} : memref<1x4x128xf32, #tpu.memory_space<vmem>>, vector<1x4x128xf32>,
    return
  }
  func.func @transform_0(%arg0: i32) -> (i32, i32, i32) {
    %c0_i32 = arith.constant 0 : i32
    %c0_i32_0 = arith.constant 0 : i32
    %c0_i32_1 = arith.constant 0 : i32
    return %arg0, %c0_i32, %c0_i32_0 : i32, i32, i32
  }
  func.func @transform_1(%arg0: i32) -> (i32, i32) {
    %c0_i32 = arith.constant 0 : i32
    %c0_i32_0 = arith.constant 0 : i32
    %c0_i32_1 = arith.constant 0 : i32
    return %c0_i32, %c0_i32_0 : i32, i32
  }
  func.func @transform_2(%arg0: i32) -> (i32, i32, i32) {
    %c0_i32 = arith.constant 0 : i32
    %c0_i32_0 = arith.constant 0 : i32
    %c0_i32_1 = arith.constant 0 : i32
    %c0_i32_2 = arith.constant 0 : i32
    return %c0_i32, %c0_i32_0, %c0_i32_1 : i32, i32, i32
  }
  func.func @transform_3(%arg0: i32) -> (i32, i32, i32) {
    %c0_i32 = arith.constant 0 : i32
    %c0_i32_0 = arith.constant 0 : i32
    %c0_i32_1 = arith.constant 0 : i32
    return %arg0, %c0_i32, %c0_i32_0 : i32, i32, i32
  }
}

</mosaic_0001>

<llo_original>
// kernel: token_learner_1d.1
$region0: #{token_learner_1d.1}
  #allocation0 [shape = 'u32[]', space=smem, size = 0x4, offset = 0x4, fixed_abs, tag = 'smem constant byte address 0x4 - core index']
  #allocation1 [shape = 'u32[144,128]{1,0:T(1,128)}', space=vmem, size = 0x12000, scoped, tag = 'internal scratch']
  %s0 = inlined_call_operand.vmem [shape: f32[8,64,16], index: 0, kind: input, shape index: {}]
  %s1 = inlined_call_operand.vmem [shape: f32[80,8], index: 1, kind: input, shape index: {}]
  %s2 = inlined_call_operand.vmem [shape: f32[3,40,8], index: 2, kind: input, shape index: {}]
  %s3 = inlined_call_operand.vmem [shape: f32[2,4,128], index: 3, kind: output, shape index: {}]
  %s4 = sld [smem:[#allocation0]]
  $region45: #{token_learner_1d.1} parent=0
    _
  %s6 = ssub.s32 1, %s4
  %s7 = scalar_select 0, %s6, %s4
  loop: start=0, step=1, limit=4
  $region2: #{token_learner_1d.1} parent=0 // loop_pre_header
    _
  $region3: #{token_learner_1d.1} parent=0 // loop_header
    %s9 = sphi 0, %s13
    %p10 = scmp.ge.s32.totalorder %s9, 4
    %s19 = sphi 0, %s21
    %s22 = sphi 0, %s19
    %s23 = sphi 0, %s22
    %s39 = sphi 0, %s23
    %s43 = sphi 0, %s43
    %s45 = sphi 0, %s43
    %s46 = sphi 0, %s45
    %s60 = sphi 0, %s46
    %s64 = sphi 0, %s64
    %s66 = sphi 0, %s64
    %s67 = sphi 0, %s66
    %s81 = sphi 0, %s67
    %s87 = sphi 0, %s89
    %s90 = sphi 0, %s87
    %s91 = sphi 0, %s90
    %s107 = sphi 0, %s91
  $region4: #{token_learner_1d.1} parent=0 // loop_header_branch
    %12 = sbr.rel (%p10) target = $region8
  $region5: #{token_learner_1d.1} parent=0 // loop_body
    %s14 = ssub.s32 %s9, 1
    %s15 = ssub.s32 %s9, 2
    %s16 = sadd.s32 %s9, 1
    %s17 = ssub.s32 %s9, %s16
    %p18 = scmp.eq.s32.totalorder %s17, 0
    %s20 = sadd.s32 %s19, 1
    %s21 = scalar_select %p18, %s19, %s20
    %p24 = pneg %p18
    %p25 = scmp.eq.s32.totalorder %s9, 1
    %p26 = por %p24, %p25
    %p27 = scmp.ne.s32.totalorder %s19, %s22
    %p28 = scmp.eq.s32.totalorder %s9, 0
    %p29 = por %p27, %p28
    %p30 = scmp.ne.s32.totalorder %s19, %s22
    %p31 = scmp.eq.s32.totalorder %s14, 1
    %p32 = por %p30, %p31
    %p33 = scmp.ne.s32.totalorder %s22, %s23
    %p34 = scmp.eq.s32.totalorder %s14, 0
    %p35 = por %p33, %p34
    %p36 = scmp.ne.s32.totalorder %s22, %s23
    %p37 = scmp.eq.s32.totalorder %s15, 1
    %p38 = por %p36, %p37
    %p40 = scmp.ne.s32.totalorder %s23, %s39
    %p41 = scmp.eq.s32.totalorder %s15, 0
    %p42 = por %p40, %p41
    %s44 = sadd.s32 %s43, 1
    %p47 = scmp.eq.s32.totalorder %s9, 1
    %p48 = scmp.ne.s32.totalorder %s43, %s45
    %p49 = scmp.eq.s32.totalorder %s9, 0
    %p50 = por %p48, %p49
    %p51 = scmp.ne.s32.totalorder %s43, %s45
    %p52 = scmp.eq.s32.totalorder %s14, 1
    %p53 = por %p51, %p52
    %p54 = scmp.ne.s32.totalorder %s45, %s46
    %p55 = scmp.eq.s32.totalorder %s14, 0
    %p56 = por %p54, %p55
    %p57 = scmp.ne.s32.totalorder %s45, %s46
    %p58 = scmp.eq.s32.totalorder %s15, 1
    %p59 = por %p57, %p58
    %p61 = scmp.ne.s32.totalorder %s46, %s60
    %p62 = scmp.eq.s32.totalorder %s15, 0
    %p63 = por %p61, %p62
    %s65 = sadd.s32 %s64, 1
    %p68 = scmp.eq.s32.totalorder %s9, 1
    %p69 = scmp.ne.s32.totalorder %s64, %s66
    %p70 = scmp.eq.s32.totalorder %s9, 0
    %p71 = por %p69, %p70
    %p72 = scmp.ne.s32.totalorder %s64, %s66
    %p73 = scmp.eq.s32.totalorder %s14, 1
    %p74 = por %p72, %p73
    %p75 = scmp.ne.s32.totalorder %s66, %s67
    %p76 = scmp.eq.s32.totalorder %s14, 0
    %p77 = por %p75, %p76
    %p78 = scmp.ne.s32.totalorder %s66, %s67
    %p79 = scmp.eq.s32.totalorder %s15, 1
    %p80 = por %p78, %p79
    %p82 = scmp.ne.s32.totalorder %s67, %s81
    %p83 = scmp.eq.s32.totalorder %s15, 0
    %p84 = por %p82, %p83
    %s85 = ssub.s32 %s9, %s16
    %p86 = scmp.eq.s32.totalorder %s85, 0
    %s88 = sadd.s32 %s87, 1
    %s89 = scalar_select %p86, %s87, %s88
    %p92 = pneg %p86
    %p93 = scmp.eq.s32.totalorder %s9, 1
    %p94 = por %p92, %p93
    %p95 = scmp.ne.s32.totalorder %s87, %s90
    %p96 = scmp.eq.s32.totalorder %s9, 0
    %p97 = por %p95, %p96
    %p98 = scmp.ne.s32.totalorder %s87, %s90
    %p99 = scmp.eq.s32.totalorder %s14, 1
    %p100 = por %p98, %p99
    %p101 = scmp.ne.s32.totalorder %s90, %s91
    %p102 = scmp.eq.s32.totalorder %s14, 0
    %p103 = por %p101, %p102
    %p104 = scmp.ne.s32.totalorder %s90, %s91
    %p105 = scmp.eq.s32.totalorder %s15, 1
    %p106 = por %p104, %p105
    %p108 = scmp.ne.s32.totalorder %s91, %s107
    %p109 = scmp.eq.s32.totalorder %s15, 0
    %p110 = por %p108, %p109
    %p111 = scmp.le.s32.totalorder 1, %s9
    %p112 = scmp.lt.s32.totalorder %s9, 3
    %p113 = pnand %p111, %p112
    %p114 = pneg %p113
    // Predicated region
    $region9: #{token_learner_1d.1} parent=5 // pred_check
      _
    $region10: #{token_learner_1d.1} parent=5 // pred_check_branch
      %116 = sbr.rel (%p113) target = $region12
    $region11: #{token_learner_1d.1} parent=5 // pred_region
      %s117 = ssub.s32 %s9, 1
      // Predicated region
      $region13: #{token_learner_1d.1} parent=11 // pred_check
        %p118 = pneg %p56
      $region14: #{token_learner_1d.1} parent=11 // pred_check_branch
        %120 = sbr.rel (%p118) target = $region16
      $region15: #{token_learner_1d.1} parent=11 // pred_region
        _
      $region16: #{token_learner_1d.1} parent=11 // pred_fallthru
        _
      // Predicated region
      $region17: #{token_learner_1d.1} parent=11 // pred_check
        %p121 = pneg %p77
      $region18: #{token_learner_1d.1} parent=11 // pred_check_branch
        %123 = sbr.rel (%p121) target = $region20
      $region19: #{token_learner_1d.1} parent=11 // pred_region
        _
      $region20: #{token_learner_1d.1} parent=11 // pred_fallthru
        _
    $region12: #{token_learner_1d.1} parent=5 // pred_fallthru
      _
    %p124 = scmp.lt.s32.totalorder %s9, 2
    // Predicated region
    $region21: #{token_learner_1d.1} parent=5 // pred_check
      %p125 = pneg %p124
    $region22: #{token_learner_1d.1} parent=5 // pred_check_branch
      %127 = sbr.rel (%p125) target = $region24
    $region23: #{token_learner_1d.1} parent=5 // pred_region
      // Predicated region
      $region25: #{token_learner_1d.1} parent=23 // pred_check
        %p128 = pneg %p29
      $region26: #{token_learner_1d.1} parent=23 // pred_check_branch
        %130 = sbr.rel (%p128) target = $region28
      $region27: #{token_learner_1d.1} parent=23 // pred_region
        %s131 = smul.u32 4, %s9
        %p132 = scmp.lt.s32.totalorder %s131, 7
        %s133 = scalar_select %p132, %s131, 7
        %s134 = smul.addr %s133, 8
        %s135 = smul.addr %s134, 8
        %s136 = scalar_lea.vmem %s0, %s135
        %s137 = smul.u32 4, %s9
      $region28: #{token_learner_1d.1} parent=23 // pred_fallthru
        _
    $region24: #{token_learner_1d.1} parent=5 // pred_fallthru
      _
    %p138 = scmp.le.s32.totalorder 1, %s9
    %p139 = scmp.lt.s32.totalorder %s9, 3
    %p140 = pnand %p138, %p139
    %p141 = pneg %p140
    // Predicated region
    $region29: #{token_learner_1d.1} parent=5 // pred_check
      _
    $region30: #{token_learner_1d.1} parent=5 // pred_check_branch
      %143 = sbr.rel (%p140) target = $region32
    $region31: #{token_learner_1d.1} parent=5 // pred_region
      %s144 = ssub.s32 %s9, 1
      %s145 = smul.u32 4, %s14
      %p146 = scmp.lt.s32.totalorder %s145, 7
      %s147 = scalar_select %p146, %s145, 7
      %s148 = smul.addr %s147, 8
      %s149 = smul.addr %s148, 8
      %s150 = scalar_lea.vmem %s0, %s149
      %p151 = pneg %p35
      %p152 = pneg %p32
      %p153 = pneg %p56
      %p154 = pneg %p53
      %p155 = pneg %p77
      %p156 = pneg %p74
      %p157 = pneg %p103
      %p158 = pneg %p100
      %p159 = scmp.lt.s32.totalorder %s14, 1
      %s160 = scalar_select %p159, %s14, 1
      %s161 = smul.addr %s160, 4
      %s162 = scalar_lea.vmem %s3, %s161
      %s163 = smul.u32 4, %s14
      %p164 = scmp.lt.s32.totalorder %s163, 7
      %s165 = scalar_select %p164, %s163, 7
      %s166 = smul.addr %s165, 8
      %s167 = smul.addr %s166, 8
      %s168 = scalar_lea.vmem %s0, %s167
      %s169 = smul.u32 4, %s14
      %p170 = scmp.lt.s32.totalorder %s14, 1
      %s171 = scalar_select %p170, %s14, 1
      %s172 = smul.addr %s171, 4
      %s173 = scalar_lea.vmem %s3, %s172
      %v174 = vld [vmem:[%s168] sm:$0xff]
      %v175 = vld [vmem:[%s168 + $0x8] sm:$0xff]
      %v176 = vld [vmem:[%s168 + $0x10] sm:$0xff]
      %v177 = vld [vmem:[%s168 + $0x18] sm:$0xff]
      %v178 = vld [vmem:[%s168 + $0x20] sm:$0xff]
      %v179 = vld [vmem:[%s168 + $0x28] sm:$0xff]
      %v180 = vld [vmem:[%s168 + $0x30] sm:$0xff]
      %v181 = vld [vmem:[%s168 + $0x38] sm:$0xff]
      %v182 = vld [vmem:[%s168 + $0x40] sm:$0xff]
      %v183 = vld [vmem:[%s168 + $0x48] sm:$0xff]
      %v184 = vld [vmem:[%s168 + $0x50] sm:$0xff]
      %v185 = vld [vmem:[%s168 + $0x58] sm:$0xff]
      %v186 = vld [vmem:[%s168 + $0x60] sm:$0xff]
      %v187 = vld [vmem:[%s168 + $0x68] sm:$0xff]
      %v188 = vld [vmem:[%s168 + $0x70] sm:$0xff]
      %v189 = vld [vmem:[%s168 + $0x78] sm:$0xff]
      %v190 = vld [vmem:[%s168 + $0x80] sm:$0xff]
      %v191 = vld [vmem:[%s168 + $0x88] sm:$0xff]
      %v192 = vld [vmem:[%s168 + $0x90] sm:$0xff]
      %v193 = vld [vmem:[%s168 + $0x98] sm:$0xff]
      %v194 = vld [vmem:[%s168 + $0xa0] sm:$0xff]
      %v195 = vld [vmem:[%s168 + $0xa8] sm:$0xff]
      %v196 = vld [vmem:[%s168 + $0xb0] sm:$0xff]
      %v197 = vld [vmem:[%s168 + $0xb8] sm:$0xff]
      %v198 = vld [vmem:[%s168 + $0xc0] sm:$0xff]
      %v199 = vld [vmem:[%s168 + $0xc8] sm:$0xff]
      %v200 = vld [vmem:[%s168 + $0xd0] sm:$0xff]
      %v201 = vld [vmem:[%s168 + $0xd8] sm:$0xff]
      %v202 = vld [vmem:[%s168 + $0xe0] sm:$0xff]
      %v203 = vld [vmem:[%s168 + $0xe8] sm:$0xff]
      %v204 = vld [vmem:[%s168 + $0xf0] sm:$0xff]
      %v205 = vld [vmem:[%s168 + $0xf8] sm:$0xff]
      %v206 = vlaneseq
      %v207 = vshrl.u32 %v206, 7
      %v208 = vadd.s32 %v207, 8
      %v209 = vadd.s32 %v207, 16
      %v210 = vadd.s32 %v207, 24
      %v211 = vadd.s32 %v207, 32
      %v212 = vadd.s32 %v207, 40
      %v213 = vadd.s32 %v207, 48
      %v214 = vadd.s32 %v207, 56
      %v215 = vadd.s32 %v207, 64
      %v216 = vadd.s32 %v207, 72
      %v217 = vadd.s32 %v207, 80
      %v218 = vadd.s32 %v207, 88
      %v219 = vadd.s32 %v207, 96
      %v220 = vadd.s32 %v207, 104
      %v221 = vadd.s32 %v207, 112
      %v222 = vadd.s32 %v207, 120
      %v223 = vadd.s32 %v207, 128
      %v224 = vadd.s32 %v207, 136
      %v225 = vadd.s32 %v207, 144
      %v226 = vadd.s32 %v207, 152
      %v227 = vadd.s32 %v207, 160
      %v228 = vadd.s32 %v207, 168
      %v229 = vadd.s32 %v207, 176
      %v230 = vadd.s32 %v207, 184
      %v231 = vadd.s32 %v207, 192
      %v232 = vadd.s32 %v207, 200
      %v233 = vadd.s32 %v207, 208
      %v234 = vadd.s32 %v207, 216
      %v235 = vadd.s32 %v207, 224
      %v236 = vadd.s32 %v207, 232
      %v237 = vadd.s32 %v207, 240
      %v238 = vadd.s32 %v207, 248
      %vm239 = vcmp.lt.s32.totalorder %v207, 0
      %v240 = vsub.s32 0, %v207
      %v241 = vsel %vm239, %v240, %v207
      %v242 = vshrl.u32 %v241, 6
      %v243 = vand.u32 %v241, 63
      %v244 = vsub.s32 0, %v243
      %v245 = vsel %vm239, %v244, %v243
      %vm246 = vcmp.lt.s32.totalorder %v208, 0
      %v247 = vsub.s32 0, %v208
      %v248 = vsel %vm246, %v247, %v208
      %v249 = vshrl.u32 %v248, 6
      %v250 = vand.u32 %v248, 63
      %v251 = vsub.s32 0, %v250
      %v252 = vsel %vm246, %v251, %v250
      %vm253 = vcmp.lt.s32.totalorder %v209, 0
      %v254 = vsub.s32 0, %v209
      %v255 = vsel %vm253, %v254, %v209
      %v256 = vshrl.u32 %v255, 6
      %v257 = vand.u32 %v255, 63
      %v258 = vsub.s32 0, %v257
      %v259 = vsel %vm253, %v258, %v257
      %vm260 = vcmp.lt.s32.totalorder %v210, 0
      %v261 = vsub.s32 0, %v210
      %v262 = vsel %vm260, %v261, %v210
      %v263 = vshrl.u32 %v262, 6
      %v264 = vand.u32 %v262, 63
      %v265 = vsub.s32 0, %v264
      %v266 = vsel %vm260, %v265, %v264
      %vm267 = vcmp.lt.s32.totalorder %v211, 0
      %v268 = vsub.s32 0, %v211
      %v269 = vsel %vm267, %v268, %v211
      %v270 = vshrl.u32 %v269, 6
      %v271 = vand.u32 %v269, 63
      %v272 = vsub.s32 0, %v271
      %v273 = vsel %vm267, %v272, %v271
      %vm274 = vcmp.lt.s32.totalorder %v212, 0
      %v275 = vsub.s32 0, %v212
      %v276 = vsel %vm274, %v275, %v212
      %v277 = vshrl.u32 %v276, 6
      %v278 = vand.u32 %v276, 63
      %v279 = vsub.s32 0, %v278
      %v280 = vsel %vm274, %v279, %v278
      %vm281 = vcmp.lt.s32.totalorder %v213, 0
      %v282 = vsub.s32 0, %v213
      %v283 = vsel %vm281, %v282, %v213
      %v284 = vshrl.u32 %v283, 6
      %v285 = vand.u32 %v283, 63
      %v286 = vsub.s32 0, %v285
      %v287 = vsel %vm281, %v286, %v285
      %vm288 = vcmp.lt.s32.totalorder %v214, 0
      %v289 = vsub.s32 0, %v214
      %v290 = vsel %vm288, %v289, %v214
      %v291 = vshrl.u32 %v290, 6
      %v292 = vand.u32 %v290, 63
      %v293 = vsub.s32 0, %v292
      %v294 = vsel %vm288, %v293, %v292
      %vm295 = vcmp.lt.s32.totalorder %v215, 0
      %v296 = vsub.s32 0, %v215
      %v297 = vsel %vm295, %v296, %v215
      %v298 = vshrl.u32 %v297, 6
      %v299 = vand.u32 %v297, 63
      %v300 = vsub.s32 0, %v299
      %v301 = vsel %vm295, %v300, %v299
      %vm302 = vcmp.lt.s32.totalorder %v216, 0
      %v303 = vsub.s32 0, %v216
      %v304 = vsel %vm302, %v303, %v216
      %v305 = vshrl.u32 %v304, 6
      %v306 = vand.u32 %v304, 63
      %v307 = vsub.s32 0, %v306
      %v308 = vsel %vm302, %v307, %v306
      %vm309 = vcmp.lt.s32.totalorder %v217, 0
      %v310 = vsub.s32 0, %v217
      %v311 = vsel %vm309, %v310, %v217
      %v312 = vshrl.u32 %v311, 6
      %v313 = vand.u32 %v311, 63
      %v314 = vsub.s32 0, %v313
      %v315 = vsel %vm309, %v314, %v313
      %vm316 = vcmp.lt.s32.totalorder %v218, 0
      %v317 = vsub.s32 0, %v218
      %v318 = vsel %vm316, %v317, %v218
      %v319 = vshrl.u32 %v318, 6
      %v320 = vand.u32 %v318, 63
      %v321 = vsub.s32 0, %v320
      %v322 = vsel %vm316, %v321, %v320
      %vm323 = vcmp.lt.s32.totalorder %v219, 0
      %v324 = vsub.s32 0, %v219
      %v325 = vsel %vm323, %v324, %v219
      %v326 = vshrl.u32 %v325, 6
      %v327 = vand.u32 %v325, 63
      %v328 = vsub.s32 0, %v327
      %v329 = vsel %vm323, %v328, %v327
      %vm330 = vcmp.lt.s32.totalorder %v220, 0
      %v331 = vsub.s32 0, %v220
      %v332 = vsel %vm330, %v331, %v220
      %v333 = vshrl.u32 %v332, 6
      %v334 = vand.u32 %v332, 63
      %v335 = vsub.s32 0, %v334
      %v336 = vsel %vm330, %v335, %v334
      %vm337 = vcmp.lt.s32.totalorder %v221, 0
      %v338 = vsub.s32 0, %v221
      %v339 = vsel %vm337, %v338, %v221
      %v340 = vshrl.u32 %v339, 6
      %v341 = vand.u32 %v339, 63
      %v342 = vsub.s32 0, %v341
      %v343 = vsel %vm337, %v342, %v341
      %vm344 = vcmp.lt.s32.totalorder %v222, 0
      %v345 = vsub.s32 0, %v222
      %v346 = vsel %vm344, %v345, %v222
      %v347 = vshrl.u32 %v346, 6
      %v348 = vand.u32 %v346, 63
      %v349 = vsub.s32 0, %v348
      %v350 = vsel %vm344, %v349, %v348
      %vm351 = vcmp.lt.s32.totalorder %v223, 0
      %v352 = vsub.s32 0, %v223
      %v353 = vsel %vm351, %v352, %v223
      %v354 = vshrl.u32 %v353, 6
      %v355 = vand.u32 %v353, 63
      %v356 = vsub.s32 0, %v355
      %v357 = vsel %vm351, %v356, %v355
      %vm358 = vcmp.lt.s32.totalorder %v224, 0
      %v359 = vsub.s32 0, %v224
      %v360 = vsel %vm358, %v359, %v224
      %v361 = vshrl.u32 %v360, 6
      %v362 = vand.u32 %v360, 63
      %v363 = vsub.s32 0, %v362
      %v364 = vsel %vm358, %v363, %v362
      %vm365 = vcmp.lt.s32.totalorder %v225, 0
      %v366 = vsub.s32 0, %v225
      %v367 = vsel %vm365, %v366, %v225
      %v368 = vshrl.u32 %v367, 6
      %v369 = vand.u32 %v367, 63
      %v370 = vsub.s32 0, %v369
      %v371 = vsel %vm365, %v370, %v369
      %vm372 = vcmp.lt.s32.totalorder %v226, 0
      %v373 = vsub.s32 0, %v226
      %v374 = vsel %vm372, %v373, %v226
      %v375 = vshrl.u32 %v374, 6
      %v376 = vand.u32 %v374, 63
      %v377 = vsub.s32 0, %v376
      %v378 = vsel %vm372, %v377, %v376
      %vm379 = vcmp.lt.s32.totalorder %v227, 0
      %v380 = vsub.s32 0, %v227
      %v381 = vsel %vm379, %v380, %v227
      %v382 = vshrl.u32 %v381, 6
      %v383 = vand.u32 %v381, 63
      %v384 = vsub.s32 0, %v383
      %v385 = vsel %vm379, %v384, %v383
      %vm386 = vcmp.lt.s32.totalorder %v228, 0
      %v387 = vsub.s32 0, %v228
      %v388 = vsel %vm386, %v387, %v228
      %v389 = vshrl.u32 %v388, 6
      %v390 = vand.u32 %v388, 63
      %v391 = vsub.s32 0, %v390
      %v392 = vsel %vm386, %v391, %v390
      %vm393 = vcmp.lt.s32.totalorder %v229, 0
      %v394 = vsub.s32 0, %v229
      %v395 = vsel %vm393, %v394, %v229
      %v396 = vshrl.u32 %v395, 6
      %v397 = vand.u32 %v395, 63
      %v398 = vsub.s32 0, %v397
      %v399 = vsel %vm393, %v398, %v397
      %vm400 = vcmp.lt.s32.totalorder %v230, 0
      %v401 = vsub.s32 0, %v230
      %v402 = vsel %vm400, %v401, %v230
      %v403 = vshrl.u32 %v402, 6
      %v404 = vand.u32 %v402, 63
      %v405 = vsub.s32 0, %v404
      %v406 = vsel %vm400, %v405, %v404
      %vm407 = vcmp.lt.s32.totalorder %v231, 0
      %v408 = vsub.s32 0, %v231
      %v409 = vsel %vm407, %v408, %v231
      %v410 = vshrl.u32 %v409, 6
      %v411 = vand.u32 %v409, 63
      %v412 = vsub.s32 0, %v411
      %v413 = vsel %vm407, %v412, %v411
      %vm414 = vcmp.lt.s32.totalorder %v232, 0
      %v415 = vsub.s32 0, %v232
      %v416 = vsel %vm414, %v415, %v232
      %v417 = vshrl.u32 %v416, 6
      %v418 = vand.u32 %v416, 63
      %v419 = vsub.s32 0, %v418
      %v420 = vsel %vm414, %v419, %v418
      %vm421 = vcmp.lt.s32.totalorder %v233, 0
      %v422 = vsub.s32 0, %v233
      %v423 = vsel %vm421, %v422, %v233
      %v424 = vshrl.u32 %v423, 6
      %v425 = vand.u32 %v423, 63
      %v426 = vsub.s32 0, %v425
      %v427 = vsel %vm421, %v426, %v425
      %vm428 = vcmp.lt.s32.totalorder %v234, 0
      %v429 = vsub.s32 0, %v234
      %v430 = vsel %vm428, %v429, %v234
      %v431 = vshrl.u32 %v430, 6
      %v432 = vand.u32 %v430, 63
      %v433 = vsub.s32 0, %v432
      %v434 = vsel %vm428, %v433, %v432
      %vm435 = vcmp.lt.s32.totalorder %v235, 0
      %v436 = vsub.s32 0, %v235
      %v437 = vsel %vm435, %v436, %v235
      %v438 = vshrl.u32 %v437, 6
      %v439 = vand.u32 %v437, 63
      %v440 = vsub.s32 0, %v439
      %v441 = vsel %vm435, %v440, %v439
      %vm442 = vcmp.lt.s32.totalorder %v236, 0
      %v443 = vsub.s32 0, %v236
      %v444 = vsel %vm442, %v443, %v236
      %v445 = vshrl.u32 %v444, 6
      %v446 = vand.u32 %v444, 63
      %v447 = vsub.s32 0, %v446
      %v448 = vsel %vm442, %v447, %v446
      %vm449 = vcmp.lt.s32.totalorder %v237, 0
      %v450 = vsub.s32 0, %v237
      %v451 = vsel %vm449, %v450, %v237
      %v452 = vshrl.u32 %v451, 6
      %v453 = vand.u32 %v451, 63
      %v454 = vsub.s32 0, %v453
      %v455 = vsel %vm449, %v454, %v453
      %vm456 = vcmp.lt.s32.totalorder %v238, 0
      %v457 = vsub.s32 0, %v238
      %v458 = vsel %vm456, %v457, %v238
      %v459 = vshrl.u32 %v458, 6
      %v460 = vand.u32 %v458, 63
      %v461 = vsub.s32 0, %v460
      %v462 = vsel %vm456, %v461, %v460
      %vm463 = vcmp.ne.s32.totalorder %v245, 0
      %vm464 = vcmp.ne.s32.totalorder %v252, 0
      %vm465 = vcmp.ne.s32.totalorder %v259, 0
      %vm466 = vcmp.ne.s32.totalorder %v266, 0
      %vm467 = vcmp.ne.s32.totalorder %v273, 0
      %vm468 = vcmp.ne.s32.totalorder %v280, 0
      %vm469 = vcmp.ne.s32.totalorder %v287, 0
      %vm470 = vcmp.ne.s32.totalorder %v294, 0
      %vm471 = vcmp.ne.s32.totalorder %v301, 0
      %vm472 = vcmp.ne.s32.totalorder %v308, 0
      %vm473 = vcmp.ne.s32.totalorder %v315, 0
      %vm474 = vcmp.ne.s32.totalorder %v322, 0
      %vm475 = vcmp.ne.s32.totalorder %v329, 0
      %vm476 = vcmp.ne.s32.totalorder %v336, 0
      %vm477 = vcmp.ne.s32.totalorder %v343, 0
      %vm478 = vcmp.ne.s32.totalorder %v350, 0
      %vm479 = vcmp.ne.s32.totalorder %v357, 0
      %vm480 = vcmp.ne.s32.totalorder %v364, 0
      %vm481 = vcmp.ne.s32.totalorder %v371, 0
      %vm482 = vcmp.ne.s32.totalorder %v378, 0
      %vm483 = vcmp.ne.s32.totalorder %v385, 0
      %vm484 = vcmp.ne.s32.totalorder %v392, 0
      %vm485 = vcmp.ne.s32.totalorder %v399, 0
      %vm486 = vcmp.ne.s32.totalorder %v406, 0
      %vm487 = vcmp.ne.s32.totalorder %v413, 0
      %vm488 = vcmp.ne.s32.totalorder %v420, 0
      %vm489 = vcmp.ne.s32.totalorder %v427, 0
      %vm490 = vcmp.ne.s32.totalorder %v434, 0
      %vm491 = vcmp.ne.s32.totalorder %v441, 0
      %vm492 = vcmp.ne.s32.totalorder %v448, 0
      %vm493 = vcmp.ne.s32.totalorder %v455, 0
      %vm494 = vcmp.ne.s32.totalorder %v462, 0
      %vm495 = vcmp.lt.s32.totalorder %v245, 0
      %vm496 = vcmp.lt.s32.totalorder %v252, 0
      %vm497 = vcmp.lt.s32.totalorder %v259, 0
      %vm498 = vcmp.lt.s32.totalorder %v266, 0
      %vm499 = vcmp.lt.s32.totalorder %v273, 0
      %vm500 = vcmp.lt.s32.totalorder %v280, 0
      %vm501 = vcmp.lt.s32.totalorder %v287, 0
      %vm502 = vcmp.lt.s32.totalorder %v294, 0
      %vm503 = vcmp.lt.s32.totalorder %v301, 0
      %vm504 = vcmp.lt.s32.totalorder %v308, 0
      %vm505 = vcmp.lt.s32.totalorder %v315, 0
      %vm506 = vcmp.lt.s32.totalorder %v322, 0
      %vm507 = vcmp.lt.s32.totalorder %v329, 0
      %vm508 = vcmp.lt.s32.totalorder %v336, 0
      %vm509 = vcmp.lt.s32.totalorder %v343, 0
      %vm510 = vcmp.lt.s32.totalorder %v350, 0
      %vm511 = vcmp.lt.s32.totalorder %v357, 0
      %vm512 = vcmp.lt.s32.totalorder %v364, 0
      %vm513 = vcmp.lt.s32.totalorder %v371, 0
      %vm514 = vcmp.lt.s32.totalorder %v378, 0
      %vm515 = vcmp.lt.s32.totalorder %v385, 0
      %vm516 = vcmp.lt.s32.totalorder %v392, 0
      %vm517 = vcmp.lt.s32.totalorder %v399, 0
      %vm518 = vcmp.lt.s32.totalorder %v406, 0
      %vm519 = vcmp.lt.s32.totalorder %v413, 0
      %vm520 = vcmp.lt.s32.totalorder %v420, 0
      %vm521 = vcmp.lt.s32.totalorder %v427, 0
      %vm522 = vcmp.lt.s32.totalorder %v434, 0
      %vm523 = vcmp.lt.s32.totalorder %v441, 0
      %vm524 = vcmp.lt.s32.totalorder %v448, 0
      %vm525 = vcmp.lt.s32.totalorder %v455, 0
      %vm526 = vcmp.lt.s32.totalorder %v462, 0
      %vm527 = vmand %vm495, %vm463
      %vm528 = vmand %vm496, %vm464
      %vm529 = vmand %vm497, %vm465
      %vm530 = vmand %vm498, %vm466
      %vm531 = vmand %vm499, %vm467
      %vm532 = vmand %vm500, %vm468
      %vm533 = vmand %vm501, %vm469
      %vm534 = vmand %vm502, %vm470
      %vm535 = vmand %vm503, %vm471
      %vm536 = vmand %vm504, %vm472
      %vm537 = vmand %vm505, %vm473
      %vm538 = vmand %vm506, %vm474
      %vm539 = vmand %vm507, %vm475
      %vm540 = vmand %vm508, %vm476
      %vm541 = vmand %vm509, %vm477
      %vm542 = vmand %vm510, %vm478
      %vm543 = vmand %vm511, %vm479
      %vm544 = vmand %vm512, %vm480
      %vm545 = vmand %vm513, %vm481
      %vm546 = vmand %vm514, %vm482
      %vm547 = vmand %vm515, %vm483
      %vm548 = vmand %vm516, %vm484
      %vm549 = vmand %vm517, %vm485
      %vm550 = vmand %vm518, %vm486
      %vm551 = vmand %vm519, %vm487
      %vm552 = vmand %vm520, %vm488
      %vm553 = vmand %vm521, %vm489
      %vm554 = vmand %vm522, %vm490
      %vm555 = vmand %vm523, %vm491
      %vm556 = vmand %vm524, %vm492
      %vm557 = vmand %vm525, %vm493
      %vm558 = vmand %vm526, %vm494
      %v559 = vadd.s32 %v245, 64
      %v560 = vadd.s32 %v252, 64
      %v561 = vadd.s32 %v259, 64
      %v562 = vadd.s32 %v266, 64
      %v563 = vadd.s32 %v273, 64
      %v564 = vadd.s32 %v280, 64
      %v565 = vadd.s32 %v287, 64
      %v566 = vadd.s32 %v294, 64
      %v567 = vadd.s32 %v301, 64
      %v568 = vadd.s32 %v308, 64
      %v569 = vadd.s32 %v315, 64
      %v570 = vadd.s32 %v322, 64
      %v571 = vadd.s32 %v329, 64
      %v572 = vadd.s32 %v336, 64
      %v573 = vadd.s32 %v343, 64
      %v574 = vadd.s32 %v350, 64
      %v575 = vadd.s32 %v357, 64
      %v576 = vadd.s32 %v364, 64
      %v577 = vadd.s32 %v371, 64
      %v578 = vadd.s32 %v378, 64
      %v579 = vadd.s32 %v385, 64
      %v580 = vadd.s32 %v392, 64
      %v581 = vadd.s32 %v399, 64
      %v582 = vadd.s32 %v406, 64
      %v583 = vadd.s32 %v413, 64
      %v584 = vadd.s32 %v420, 64
      %v585 = vadd.s32 %v427, 64
      %v586 = vadd.s32 %v434, 64
      %v587 = vadd.s32 %v441, 64
      %v588 = vadd.s32 %v448, 64
      %v589 = vadd.s32 %v455, 64
      %v590 = vadd.s32 %v462, 64
      %v591 = vsel %vm527, %v559, %v245
      %v592 = vsel %vm528, %v560, %v252
      %v593 = vsel %vm529, %v561, %v259
      %v594 = vsel %vm530, %v562, %v266
      %v595 = vsel %vm531, %v563, %v273
      %v596 = vsel %vm532, %v564, %v280
      %v597 = vsel %vm533, %v565, %v287
      %v598 = vsel %vm534, %v566, %v294
      %v599 = vsel %vm535, %v567, %v301
      %v600 = vsel %vm536, %v568, %v308
      %v601 = vsel %vm537, %v569, %v315
      %v602 = vsel %vm538, %v570, %v322
      %v603 = vsel %vm539, %v571, %v329
      %v604 = vsel %vm540, %v572, %v336
      %v605 = vsel %vm541, %v573, %v343
      %v606 = vsel %vm542, %v574, %v350
      %v607 = vsel %vm543, %v575, %v357
      %v608 = vsel %vm544, %v576, %v364
      %v609 = vsel %vm545, %v577, %v371
      %v610 = vsel %vm546, %v578, %v378
      %v611 = vsel %vm547, %v579, %v385
      %v612 = vsel %vm548, %v580, %v392
      %v613 = vsel %vm549, %v581, %v399
      %v614 = vsel %vm550, %v582, %v406
      %v615 = vsel %vm551, %v583, %v413
      %v616 = vsel %vm552, %v584, %v420
      %v617 = vsel %vm553, %v585, %v427
      %v618 = vsel %vm554, %v586, %v434
      %v619 = vsel %vm555, %v587, %v441
      %v620 = vsel %vm556, %v588, %v448
      %v621 = vsel %vm557, %v589, %v455
      %v622 = vsel %vm558, %v590, %v462
      %vm623 = vcmp.ge.s32.totalorder %v591, 2
      %vm624 = vcmp.ge.s32.totalorder %v592, 2
      %vm625 = vcmp.ge.s32.totalorder %v593, 2
      %vm626 = vcmp.ge.s32.totalorder %v594, 2
      %vm627 = vcmp.ge.s32.totalorder %v595, 2
      %vm628 = vcmp.ge.s32.totalorder %v596, 2
      %vm629 = vcmp.ge.s32.totalorder %v597, 2
      %vm630 = vcmp.ge.s32.totalorder %v598, 2
      %vm631 = vcmp.ge.s32.totalorder %v599, 2
      %vm632 = vcmp.ge.s32.totalorder %v600, 2
      %vm633 = vcmp.ge.s32.totalorder %v601, 2
      %vm634 = vcmp.ge.s32.totalorder %v602, 2
      %vm635 = vcmp.ge.s32.totalorder %v603, 2
      %vm636 = vcmp.ge.s32.totalorder %v604, 2
      %vm637 = vcmp.ge.s32.totalorder %v605, 2
      %vm638 = vcmp.ge.s32.totalorder %v606, 2
      %vm639 = vcmp.ge.s32.totalorder %v607, 2
      %vm640 = vcmp.ge.s32.totalorder %v608, 2
      %vm641 = vcmp.ge.s32.totalorder %v609, 2
      %vm642 = vcmp.ge.s32.totalorder %v610, 2
      %vm643 = vcmp.ge.s32.totalorder %v611, 2
      %vm644 = vcmp.ge.s32.totalorder %v612, 2
      %vm645 = vcmp.ge.s32.totalorder %v613, 2
      %vm646 = vcmp.ge.s32.totalorder %v614, 2
      %vm647 = vcmp.ge.s32.totalorder %v615, 2
      %vm648 = vcmp.ge.s32.totalorder %v616, 2
      %vm649 = vcmp.ge.s32.totalorder %v617, 2
      %vm650 = vcmp.ge.s32.totalorder %v618, 2
      %vm651 = vcmp.ge.s32.totalorder %v619, 2
      %vm652 = vcmp.ge.s32.totalorder %v620, 2
      %vm653 = vcmp.ge.s32.totalorder %v621, 2
      %vm654 = vcmp.ge.s32.totalorder %v622, 2
      %vm655 = vcmp.lt.s32.totalorder %v591, 64
      %vm656 = vcmp.lt.s32.totalorder %v592, 64
      %vm657 = vcmp.lt.s32.totalorder %v593, 64
      %vm658 = vcmp.lt.s32.totalorder %v594, 64
      %vm659 = vcmp.lt.s32.totalorder %v595, 64
      %vm660 = vcmp.lt.s32.totalorder %v596, 64
      %vm661 = vcmp.lt.s32.totalorder %v597, 64
      %vm662 = vcmp.lt.s32.totalorder %v598, 64
      %vm663 = vcmp.lt.s32.totalorder %v599, 64
      %vm664 = vcmp.lt.s32.totalorder %v600, 64
      %vm665 = vcmp.lt.s32.totalorder %v601, 64
      %vm666 = vcmp.lt.s32.totalorder %v602, 64
      %vm667 = vcmp.lt.s32.totalorder %v603, 64
      %vm668 = vcmp.lt.s32.totalorder %v604, 64
      %vm669 = vcmp.lt.s32.totalorder %v605, 64
      %vm670 = vcmp.lt.s32.totalorder %v606, 64
      %vm671 = vcmp.lt.s32.totalorder %v607, 64
      %vm672 = vcmp.lt.s32.totalorder %v608, 64
      %vm673 = vcmp.lt.s32.totalorder %v609, 64
      %vm674 = vcmp.lt.s32.totalorder %v610, 64
      %vm675 = vcmp.lt.s32.totalorder %v611, 64
      %vm676 = vcmp.lt.s32.totalorder %v612, 64
      %vm677 = vcmp.lt.s32.totalorder %v613, 64
      %vm678 = vcmp.lt.s32.totalorder %v614, 64
      %vm679 = vcmp.lt.s32.totalorder %v615, 64
      %vm680 = vcmp.lt.s32.totalorder %v616, 64
      %vm681 = vcmp.lt.s32.totalorder %v617, 64
      %vm682 = vcmp.lt.s32.totalorder %v618, 64
      %vm683 = vcmp.lt.s32.totalorder %v619, 64
      %vm684 = vcmp.lt.s32.totalorder %v620, 64
      %vm685 = vcmp.lt.s32.totalorder %v621, 64
      %vm686 = vcmp.lt.s32.totalorder %v622, 64
      %vm687 = vmand %vm623, %vm655
      %vm688 = vmand %vm624, %vm656
      %vm689 = vmand %vm625, %vm657
      %vm690 = vmand %vm626, %vm658
      %vm691 = vmand %vm627, %vm659
      %vm692 = vmand %vm628, %vm660
      %vm693 = vmand %vm629, %vm661
      %vm694 = vmand %vm630, %vm662
      %vm695 = vmand %vm631, %vm663
      %vm696 = vmand %vm632, %vm664
      %vm697 = vmand %vm633, %vm665
      %vm698 = vmand %vm634, %vm666
      %vm699 = vmand %vm635, %vm667
      %vm700 = vmand %vm636, %vm668
      %vm701 = vmand %vm637, %vm669
      %vm702 = vmand %vm638, %vm670
      %vm703 = vmand %vm639, %vm671
      %vm704 = vmand %vm640, %vm672
      %vm705 = vmand %vm641, %vm673
      %vm706 = vmand %vm642, %vm674
      %vm707 = vmand %vm643, %vm675
      %vm708 = vmand %vm644, %vm676
      %vm709 = vmand %vm645, %vm677
      %vm710 = vmand %vm646, %vm678
      %vm711 = vmand %vm647, %vm679
      %vm712 = vmand %vm648, %vm680
      %vm713 = vmand %vm649, %vm681
      %vm714 = vmand %vm650, %vm682
      %vm715 = vmand %vm651, %vm683
      %vm716 = vmand %vm652, %vm684
      %vm717 = vmand %vm653, %vm685
      %vm718 = vmand %vm654, %vm686
      %vm719 = vcmp.ge.s32.totalorder %v591, 1
      %vm720 = vcmp.ge.s32.totalorder %v592, 1
      %vm721 = vcmp.ge.s32.totalorder %v593, 1
      %vm722 = vcmp.ge.s32.totalorder %v594, 1
      %vm723 = vcmp.ge.s32.totalorder %v595, 1
      %vm724 = vcmp.ge.s32.totalorder %v596, 1
      %vm725 = vcmp.ge.s32.totalorder %v597, 1
      %vm726 = vcmp.ge.s32.totalorder %v598, 1
      %vm727 = vcmp.ge.s32.totalorder %v599, 1
      %vm728 = vcmp.ge.s32.totalorder %v600, 1
      %vm729 = vcmp.ge.s32.totalorder %v601, 1
      %vm730 = vcmp.ge.s32.totalorder %v602, 1
      %vm731 = vcmp.ge.s32.totalorder %v603, 1
      %vm732 = vcmp.ge.s32.totalorder %v604, 1
      %vm733 = vcmp.ge.s32.totalorder %v605, 1
      %vm734 = vcmp.ge.s32.totalorder %v606, 1
      %vm735 = vcmp.ge.s32.totalorder %v607, 1
      %vm736 = vcmp.ge.s32.totalorder %v608, 1
      %vm737 = vcmp.ge.s32.totalorder %v609, 1
      %vm738 = vcmp.ge.s32.totalorder %v610, 1
      %vm739 = vcmp.ge.s32.totalorder %v611, 1
      %vm740 = vcmp.ge.s32.totalorder %v612, 1
      %vm741 = vcmp.ge.s32.totalorder %v613, 1
      %vm742 = vcmp.ge.s32.totalorder %v614, 1
      %vm743 = vcmp.ge.s32.totalorder %v615, 1
      %vm744 = vcmp.ge.s32.totalorder %v616, 1
      %vm745 = vcmp.ge.s32.totalorder %v617, 1
      %vm746 = vcmp.ge.s32.totalorder %v618, 1
      %vm747 = vcmp.ge.s32.totalorder %v619, 1
      %vm748 = vcmp.ge.s32.totalorder %v620, 1
      %vm749 = vcmp.ge.s32.totalorder %v621, 1
      %vm750 = vcmp.ge.s32.totalorder %v622, 1
      %vm751 = vmand %vm719, %vm655
      %vm752 = vmand %vm720, %vm656
      %vm753 = vmand %vm721, %vm657
      %vm754 = vmand %vm722, %vm658
      %vm755 = vmand %vm723, %vm659
      %vm756 = vmand %vm724, %vm660
      %vm757 = vmand %vm725, %vm661
      %vm758 = vmand %vm726, %vm662
      %vm759 = vmand %vm727, %vm663
      %vm760 = vmand %vm728, %vm664
      %vm761 = vmand %vm729, %vm665
      %vm762 = vmand %vm730, %vm666
      %vm763 = vmand %vm731, %vm667
      %vm764 = vmand %vm732, %vm668
      %vm765 = vmand %vm733, %vm669
      %vm766 = vmand %vm734, %vm670
      %vm767 = vmand %vm735, %vm671
      %vm768 = vmand %vm736, %vm672
      %vm769 = vmand %vm737, %vm673
      %vm770 = vmand %vm738, %vm674
      %vm771 = vmand %vm739, %vm675
      %vm772 = vmand %vm740, %vm676
      %vm773 = vmand %vm741, %vm677
      %vm774 = vmand %vm742, %vm678
      %vm775 = vmand %vm743, %vm679
      %vm776 = vmand %vm744, %vm680
      %vm777 = vmand %vm745, %vm681
      %vm778 = vmand %vm746, %vm682
      %vm779 = vmand %vm747, %vm683
      %vm780 = vmand %vm748, %vm684
      %vm781 = vmand %vm749, %vm685
      %vm782 = vmand %vm750, %vm686
      %vm783 = vcmp.ge.s32.totalorder %v591, 0
      %vm784 = vcmp.ge.s32.totalorder %v592, 0
      %vm785 = vcmp.ge.s32.totalorder %v593, 0
      %vm786 = vcmp.ge.s32.totalorder %v594, 0
      %vm787 = vcmp.ge.s32.totalorder %v595, 0
      %vm788 = vcmp.ge.s32.totalorder %v596, 0
      %vm789 = vcmp.ge.s32.totalorder %v597, 0
      %vm790 = vcmp.ge.s32.totalorder %v598, 0
      %vm791 = vcmp.ge.s32.totalorder %v599, 0
      %vm792 = vcmp.ge.s32.totalorder %v600, 0
      %vm793 = vcmp.ge.s32.totalorder %v601, 0
      %vm794 = vcmp.ge.s32.totalorder %v602, 0
      %vm795 = vcmp.ge.s32.totalorder %v603, 0
      %vm796 = vcmp.ge.s32.totalorder %v604, 0
      %vm797 = vcmp.ge.s32.totalorder %v605, 0
      %vm798 = vcmp.ge.s32.totalorder %v606, 0
      %vm799 = vcmp.ge.s32.totalorder %v607, 0
      %vm800 = vcmp.ge.s32.totalorder %v608, 0
      %vm801 = vcmp.ge.s32.totalorder %v609, 0
      %vm802 = vcmp.ge.s32.totalorder %v610, 0
      %vm803 = vcmp.ge.s32.totalorder %v611, 0
      %vm804 = vcmp.ge.s32.totalorder %v612, 0
      %vm805 = vcmp.ge.s32.totalorder %v613, 0
      %vm806 = vcmp.ge.s32.totalorder %v614, 0
      %vm807 = vcmp.ge.s32.totalorder %v615, 0
      %vm808 = vcmp.ge.s32.totalorder %v616, 0
      %vm809 = vcmp.ge.s32.totalorder %v617, 0
      %vm810 = vcmp.ge.s32.totalorder %v618, 0
      %vm811 = vcmp.ge.s32.totalorder %v619, 0
      %vm812 = vcmp.ge.s32.totalorder %v620, 0
      %vm813 = vcmp.ge.s32.totalorder %v621, 0
      %vm814 = vcmp.ge.s32.totalorder %v622, 0
      %vm815 = vcmp.lt.s32.totalorder %v591, 63
      %vm816 = vcmp.lt.s32.totalorder %v592, 63
      %vm817 = vcmp.lt.s32.totalorder %v593, 63
      %vm818 = vcmp.lt.s32.totalorder %v594, 63
      %vm819 = vcmp.lt.s32.totalorder %v595, 63
      %vm820 = vcmp.lt.s32.totalorder %v596, 63
      %vm821 = vcmp.lt.s32.totalorder %v597, 63
      %vm822 = vcmp.lt.s32.totalorder %v598, 63
      %vm823 = vcmp.lt.s32.totalorder %v599, 63
      %vm824 = vcmp.lt.s32.totalorder %v600, 63
      %vm825 = vcmp.lt.s32.totalorder %v601, 63
      %vm826 = vcmp.lt.s32.totalorder %v602, 63
      %vm827 = vcmp.lt.s32.totalorder %v603, 63
      %vm828 = vcmp.lt.s32.totalorder %v604, 63
      %vm829 = vcmp.lt.s32.totalorder %v605, 63
      %vm830 = vcmp.lt.s32.totalorder %v606, 63
      %vm831 = vcmp.lt.s32.totalorder %v607, 63
      %vm832 = vcmp.lt.s32.totalorder %v608, 63
      %vm833 = vcmp.lt.s32.totalorder %v609, 63
      %vm834 = vcmp.lt.s32.totalorder %v610, 63
      %vm835 = vcmp.lt.s32.totalorder %v611, 63
      %vm836 = vcmp.lt.s32.totalorder %v612, 63
      %vm837 = vcmp.lt.s32.totalorder %v613, 63
      %vm838 = vcmp.lt.s32.totalorder %v614, 63
      %vm839 = vcmp.lt.s32.totalorder %v615, 63
      %vm840 = vcmp.lt.s32.totalorder %v616, 63
      %vm841 = vcmp.lt.s32.totalorder %v617, 63
      %vm842 = vcmp.lt.s32.totalorder %v618, 63
      %vm843 = vcmp.lt.s32.totalorder %v619, 63
      %vm844 = vcmp.lt.s32.totalorder %v620, 63
      %vm845 = vcmp.lt.s32.totalorder %v621, 63
      %vm846 = vcmp.lt.s32.totalorder %v622, 63
      %vm847 = vmand %vm783, %vm815
      %vm848 = vmand %vm784, %vm816
      %vm849 = vmand %vm785, %vm817
      %vm850 = vmand %vm786, %vm818
      %vm851 = vmand %vm787, %vm819
      %vm852 = vmand %vm788, %vm820
      %vm853 = vmand %vm789, %vm821
      %vm854 = vmand %vm790, %vm822
      %vm855 = vmand %vm791, %vm823
      %vm856 = vmand %vm792, %vm824
      %vm857 = vmand %vm793, %vm825
      %vm858 = vmand %vm794, %vm826
      %vm859 = vmand %vm795, %vm827
      %vm860 = vmand %vm796, %vm828
      %vm861 = vmand %vm797, %vm829
      %vm862 = vmand %vm798, %vm830
      %vm863 = vmand %vm799, %vm831
      %vm864 = vmand %vm800, %vm832
      %vm865 = vmand %vm801, %vm833
      %vm866 = vmand %vm802, %vm834
      %vm867 = vmand %vm803, %vm835
      %vm868 = vmand %vm804, %vm836
      %vm869 = vmand %vm805, %vm837
      %vm870 = vmand %vm806, %vm838
      %vm871 = vmand %vm807, %vm839
      %vm872 = vmand %vm808, %vm840
      %vm873 = vmand %vm809, %vm841
      %vm874 = vmand %vm810, %vm842
      %vm875 = vmand %vm811, %vm843
      %vm876 = vmand %vm812, %vm844
      %vm877 = vmand %vm813, %vm845
      %vm878 = vmand %vm814, %vm846
      %vm879 = vcmp.lt.s32.totalorder %v591, 62
      %vm880 = vcmp.lt.s32.totalorder %v592, 62
      %vm881 = vcmp.lt.s32.totalorder %v593, 62
      %vm882 = vcmp.lt.s32.totalorder %v594, 62
      %vm883 = vcmp.lt.s32.totalorder %v595, 62
      %vm884 = vcmp.lt.s32.totalorder %v596, 62
      %vm885 = vcmp.lt.s32.totalorder %v597, 62
      %vm886 = vcmp.lt.s32.totalorder %v598, 62
      %vm887 = vcmp.lt.s32.totalorder %v599, 62
      %vm888 = vcmp.lt.s32.totalorder %v600, 62
      %vm889 = vcmp.lt.s32.totalorder %v601, 62
      %vm890 = vcmp.lt.s32.totalorder %v602, 62
      %vm891 = vcmp.lt.s32.totalorder %v603, 62
      %vm892 = vcmp.lt.s32.totalorder %v604, 62
      %vm893 = vcmp.lt.s32.totalorder %v605, 62
      %vm894 = vcmp.lt.s32.totalorder %v606, 62
      %vm895 = vcmp.lt.s32.totalorder %v607, 62
      %vm896 = vcmp.lt.s32.totalorder %v608, 62
      %vm897 = vcmp.lt.s32.totalorder %v609, 62
      %vm898 = vcmp.lt.s32.totalorder %v610, 62
      %vm899 = vcmp.lt.s32.totalorder %v611, 62
      %vm900 = vcmp.lt.s32.totalorder %v612, 62
      %vm901 = vcmp.lt.s32.totalorder %v613, 62
      %vm902 = vcmp.lt.s32.totalorder %v614, 62
      %vm903 = vcmp.lt.s32.totalorder %v615, 62
      %vm904 = vcmp.lt.s32.totalorder %v616, 62
      %vm905 = vcmp.lt.s32.totalorder %v617, 62
      %vm906 = vcmp.lt.s32.totalorder %v618, 62
      %vm907 = vcmp.lt.s32.totalorder %v619, 62
      %vm908 = vcmp.lt.s32.totalorder %v620, 62
      %vm909 = vcmp.lt.s32.totalorder %v621, 62
      %vm910 = vcmp.lt.s32.totalorder %v622, 62
      %vm911 = vmand %vm783, %vm879
      %vm912 = vmand %vm784, %vm880
      %vm913 = vmand %vm785, %vm881
      %vm914 = vmand %vm786, %vm882
      %vm915 = vmand %vm787, %vm883
      %vm916 = vmand %vm788, %vm884
      %vm917 = vmand %vm789, %vm885
      %vm918 = vmand %vm790, %vm886
      %vm919 = vmand %vm791, %vm887
      %vm920 = vmand %vm792, %vm888
      %vm921 = vmand %vm793, %vm889
      %vm922 = vmand %vm794, %vm890
      %vm923 = vmand %vm795, %vm891
      %vm924 = vmand %vm796, %vm892
      %vm925 = vmand %vm797, %vm893
      %vm926 = vmand %vm798, %vm894
      %vm927 = vmand %vm799, %vm895
      %vm928 = vmand %vm800, %vm896
      %vm929 = vmand %vm801, %vm897
      %vm930 = vmand %vm802, %vm898
      %vm931 = vmand %vm803, %vm899
      %vm932 = vmand %vm804, %vm900
      %vm933 = vmand %vm805, %vm901
      %vm934 = vmand %vm806, %vm902
      %vm935 = vmand %vm807, %vm903
      %vm936 = vmand %vm808, %vm904
      %vm937 = vmand %vm809, %vm905
      %vm938 = vmand %vm810, %vm906
      %vm939 = vmand %vm811, %vm907
      %vm940 = vmand %vm812, %vm908
      %vm941 = vmand %vm813, %vm909
      %vm942 = vmand %vm814, %vm910
      %v943 = vld [vmem:[%s1] sm:$0xff]
      %v944 = vld [vmem:[%s1 + $0x8] sm:$0xff]
      %v945 = vld [vmem:[%s1 + $0x10] sm:$0xff]
      %v946 = vld [vmem:[%s1 + $0x18] sm:$0xff]
      %v947 = vld [vmem:[%s1 + $0x20] sm:$0xff]
      %v948 = vld [vmem:[%s1 + $0x28] sm:$0xff]
      %v949 = vld [vmem:[%s1 + $0x30] sm:$0xff]
      %v950 = vld [vmem:[%s1 + $0x38] sm:$0xff]
      %v951 = vld [vmem:[%s1 + $0x40] sm:$0xff]
      %v952 = vld [vmem:[%s1 + $0x48] sm:$0xff]
      %v953 = vrot.slane %v174, 6
      %v954 = vrot.slane %v175, 6
      %v955 = vrot.slane %v176, 6
      %v956 = vrot.slane %v177, 6
      %v957 = vrot.slane %v178, 6
      %v958 = vrot.slane %v179, 6
      %v959 = vrot.slane %v180, 6
      %v960 = vrot.slane %v181, 6
      %v961 = vrot.slane %v182, 6
      %v962 = vrot.slane %v183, 6
      %v963 = vrot.slane %v184, 6
      %v964 = vrot.slane %v185, 6
      %v965 = vrot.slane %v186, 6
      %v966 = vrot.slane %v187, 6
      %v967 = vrot.slane %v188, 6
      %v968 = vrot.slane %v189, 6
      %v969 = vrot.slane %v190, 6
      %v970 = vrot.slane %v191, 6
      %v971 = vrot.slane %v192, 6
      %v972 = vrot.slane %v193, 6
      %v973 = vrot.slane %v194, 6
      %v974 = vrot.slane %v195, 6
      %v975 = vrot.slane %v196, 6
      %v976 = vrot.slane %v197, 6
      %v977 = vrot.slane %v198, 6
      %v978 = vrot.slane %v199, 6
      %v979 = vrot.slane %v200, 6
      %v980 = vrot.slane %v201, 6
      %v981 = vrot.slane %v202, 6
      %v982 = vrot.slane %v203, 6
      %v983 = vrot.slane %v204, 6
      %v984 = vrot.slane %v205, 6
      %vm985 = vcmp.lt.s32.totalorder %v207, 2
      %v986 = vsel %vm985, %v983, %v984
      %v987 = vsel %vm985, %v982, %v983
      %v988 = vsel %vm985, %v981, %v982
      %v989 = vsel %vm985, %v980, %v981
      %v990 = vsel %vm985, %v979, %v980
      %v991 = vsel %vm985, %v978, %v979
      %v992 = vsel %vm985, %v977, %v978
      %v993 = vsel %vm985, %v976, %v977
      %v994 = vsel %vm985, %v975, %v976
      %v995 = vsel %vm985, %v974, %v975
      %v996 = vsel %vm985, %v973, %v974
      %v997 = vsel %vm985, %v972, %v973
      %v998 = vsel %vm985, %v971, %v972
      %v999 = vsel %vm985, %v970, %v971
      %v1000 = vsel %vm985, %v969, %v970
      %v1001 = vsel %vm985, %v968, %v969
      %v1002 = vsel %vm985, %v967, %v968
      %v1003 = vsel %vm985, %v966, %v967
      %v1004 = vsel %vm985, %v965, %v966
      %v1005 = vsel %vm985, %v964, %v965
      %v1006 = vsel %vm985, %v963, %v964
      %v1007 = vsel %vm985, %v962, %v963
      %v1008 = vsel %vm985, %v961, %v962
      %v1009 = vsel %vm985, %v960, %v961
      %v1010 = vsel %vm985, %v959, %v960
      %v1011 = vsel %vm985, %v958, %v959
      %v1012 = vsel %vm985, %v957, %v958
      %v1013 = vsel %vm985, %v956, %v957
      %v1014 = vsel %vm985, %v955, %v956
      %v1015 = vsel %vm985, %v954, %v955
      %v1016 = vsel %vm985, %v953, %v954
      %v1017 = vsel %vm985, %v984, %v953
      %v1018 = vsel %vm687, 1, 0
      %v1019 = vsel %vm688, 1, 0
      %v1020 = vsel %vm689, 1, 0
      %v1021 = vsel %vm690, 1, 0
      %v1022 = vsel %vm691, 1, 0
      %v1023 = vsel %vm692, 1, 0
      %v1024 = vsel %vm693, 1, 0
      %v1025 = vsel %vm694, 1, 0
      %v1026 = vsel %vm695, 1, 0
      %v1027 = vsel %vm696, 1, 0
      %v1028 = vsel %vm697, 1, 0
      %v1029 = vsel %vm698, 1, 0
      %v1030 = vsel %vm699, 1, 0
      %v1031 = vsel %vm700, 1, 0
      %v1032 = vsel %vm701, 1, 0
      %v1033 = vsel %vm702, 1, 0
      %v1034 = vsel %vm703, 1, 0
      %v1035 = vsel %vm704, 1, 0
      %v1036 = vsel %vm705, 1, 0
      %v1037 = vsel %vm706, 1, 0
      %v1038 = vsel %vm707, 1, 0
      %v1039 = vsel %vm708, 1, 0
      %v1040 = vsel %vm709, 1, 0
      %v1041 = vsel %vm710, 1, 0
      %v1042 = vsel %vm711, 1, 0
      %v1043 = vsel %vm712, 1, 0
      %v1044 = vsel %vm713, 1, 0
      %v1045 = vsel %vm714, 1, 0
      %v1046 = vsel %vm715, 1, 0
      %v1047 = vsel %vm716, 1, 0
      %v1048 = vsel %vm717, 1, 0
      %v1049 = vsel %vm718, 1, 0
      %vm1050 = vcmp.eq.s32.totalorder %v1018, 1
      %vm1051 = vcmp.eq.s32.totalorder %v1019, 1
      %vm1052 = vcmp.eq.s32.totalorder %v1020, 1
      %vm1053 = vcmp.eq.s32.totalorder %v1021, 1
      %vm1054 = vcmp.eq.s32.totalorder %v1022, 1
      %vm1055 = vcmp.eq.s32.totalorder %v1023, 1
      %vm1056 = vcmp.eq.s32.totalorder %v1024, 1
      %vm1057 = vcmp.eq.s32.totalorder %v1025, 1
      %vm1058 = vcmp.eq.s32.totalorder %v1026, 1
      %vm1059 = vcmp.eq.s32.totalorder %v1027, 1
      %vm1060 = vcmp.eq.s32.totalorder %v1028, 1
      %vm1061 = vcmp.eq.s32.totalorder %v1029, 1
      %vm1062 = vcmp.eq.s32.totalorder %v1030, 1
      %vm1063 = vcmp.eq.s32.totalorder %v1031, 1
      %vm1064 = vcmp.eq.s32.totalorder %v1032, 1
      %vm1065 = vcmp.eq.s32.totalorder %v1033, 1
      %vm1066 = vcmp.eq.s32.totalorder %v1034, 1
      %vm1067 = vcmp.eq.s32.totalorder %v1035, 1
      %vm1068 = vcmp.eq.s32.totalorder %v1036, 1
      %vm1069 = vcmp.eq.s32.totalorder %v1037, 1
      %vm1070 = vcmp.eq.s32.totalorder %v1038, 1
      %vm1071 = vcmp.eq.s32.totalorder %v1039, 1
      %vm1072 = vcmp.eq.s32.totalorder %v1040, 1
      %vm1073 = vcmp.eq.s32.totalorder %v1041, 1
      %vm1074 = vcmp.eq.s32.totalorder %v1042, 1
      %vm1075 = vcmp.eq.s32.totalorder %v1043, 1
      %vm1076 = vcmp.eq.s32.totalorder %v1044, 1
      %vm1077 = vcmp.eq.s32.totalorder %v1045, 1
      %vm1078 = vcmp.eq.s32.totalorder %v1046, 1
      %vm1079 = vcmp.eq.s32.totalorder %v1047, 1
      %vm1080 = vcmp.eq.s32.totalorder %v1048, 1
      %vm1081 = vcmp.eq.s32.totalorder %v1049, 1
      %v1082 = vsel %vm1050, %v1017, 0.0
      %v1083 = vsel %vm1051, %v1016, 0.0
      %v1084 = vsel %vm1052, %v1015, 0.0
      %v1085 = vsel %vm1053, %v1014, 0.0
      %v1086 = vsel %vm1054, %v1013, 0.0
      %v1087 = vsel %vm1055, %v1012, 0.0
      %v1088 = vsel %vm1056, %v1011, 0.0
      %v1089 = vsel %vm1057, %v1010, 0.0
      %v1090 = vsel %vm1058, %v1009, 0.0
      %v1091 = vsel %vm1059, %v1008, 0.0
      %v1092 = vsel %vm1060, %v1007, 0.0
      %v1093 = vsel %vm1061, %v1006, 0.0
      %v1094 = vsel %vm1062, %v1005, 0.0
      %v1095 = vsel %vm1063, %v1004, 0.0
      %v1096 = vsel %vm1064, %v1003, 0.0
      %v1097 = vsel %vm1065, %v1002, 0.0
      %v1098 = vsel %vm1066, %v1001, 0.0
      %v1099 = vsel %vm1067, %v1000, 0.0
      %v1100 = vsel %vm1068, %v999, 0.0
      %v1101 = vsel %vm1069, %v998, 0.0
      %v1102 = vsel %vm1070, %v997, 0.0
      %v1103 = vsel %vm1071, %v996, 0.0
      %v1104 = vsel %vm1072, %v995, 0.0
      %v1105 = vsel %vm1073, %v994, 0.0
      %v1106 = vsel %vm1074, %v993, 0.0
      %v1107 = vsel %vm1075, %v992, 0.0
      %v1108 = vsel %vm1076, %v991, 0.0
      %v1109 = vsel %vm1077, %v990, 0.0
      %v1110 = vsel %vm1078, %v989, 0.0
      %v1111 = vsel %vm1079, %v988, 0.0
      %v1112 = vsel %vm1080, %v987, 0.0
      %v1113 = vsel %vm1081, %v986, 0.0
      %v1114 = vrot.slane %v174, 7
      %v1115 = vrot.slane %v175, 7
      %v1116 = vrot.slane %v176, 7
      %v1117 = vrot.slane %v177, 7
      %v1118 = vrot.slane %v178, 7
      %v1119 = vrot.slane %v179, 7
      %v1120 = vrot.slane %v180, 7
      %v1121 = vrot.slane %v181, 7
      %v1122 = vrot.slane %v182, 7
      %v1123 = vrot.slane %v183, 7
      %v1124 = vrot.slane %v184, 7
      %v1125 = vrot.slane %v185, 7
      %v1126 = vrot.slane %v186, 7
      %v1127 = vrot.slane %v187, 7
      %v1128 = vrot.slane %v188, 7
      %v1129 = vrot.slane %v189, 7
      %v1130 = vrot.slane %v190, 7
      %v1131 = vrot.slane %v191, 7
      %v1132 = vrot.slane %v192, 7
      %v1133 = vrot.slane %v193, 7
      %v1134 = vrot.slane %v194, 7
      %v1135 = vrot.slane %v195, 7
      %v1136 = vrot.slane %v196, 7
      %v1137 = vrot.slane %v197, 7
      %v1138 = vrot.slane %v198, 7
      %v1139 = vrot.slane %v199, 7
      %v1140 = vrot.slane %v200, 7
      %v1141 = vrot.slane %v201, 7
      %v1142 = vrot.slane %v202, 7
      %v1143 = vrot.slane %v203, 7
      %v1144 = vrot.slane %v204, 7
      %v1145 = vrot.slane %v205, 7
      %vm1146 = vcmp.lt.s32.totalorder %v207, 1
      %v1147 = vsel %vm1146, %v1144, %v1145
      %v1148 = vsel %vm1146, %v1143, %v1144
      %v1149 = vsel %vm1146, %v1142, %v1143
      %v1150 = vsel %vm1146, %v1141, %v1142
      %v1151 = vsel %vm1146, %v1140, %v1141
      %v1152 = vsel %vm1146, %v1139, %v1140
      %v1153 = vsel %vm1146, %v1138, %v1139
      %v1154 = vsel %vm1146, %v1137, %v1138
      %v1155 = vsel %vm1146, %v1136, %v1137
      %v1156 = vsel %vm1146, %v1135, %v1136
      %v1157 = vsel %vm1146, %v1134, %v1135
      %v1158 = vsel %vm1146, %v1133, %v1134
      %v1159 = vsel %vm1146, %v1132, %v1133
      %v1160 = vsel %vm1146, %v1131, %v1132
      %v1161 = vsel %vm1146, %v1130, %v1131
      %v1162 = vsel %vm1146, %v1129, %v1130
      %v1163 = vsel %vm1146, %v1128, %v1129
      %v1164 = vsel %vm1146, %v1127, %v1128
      %v1165 = vsel %vm1146, %v1126, %v1127
      %v1166 = vsel %vm1146, %v1125, %v1126
      %v1167 = vsel %vm1146, %v1124, %v1125
      %v1168 = vsel %vm1146, %v1123, %v1124
      %v1169 = vsel %vm1146, %v1122, %v1123
      %v1170 = vsel %vm1146, %v1121, %v1122
      %v1171 = vsel %vm1146, %v1120, %v1121
      %v1172 = vsel %vm1146, %v1119, %v1120
      %v1173 = vsel %vm1146, %v1118, %v1119
      %v1174 = vsel %vm1146, %v1117, %v1118
      %v1175 = vsel %vm1146, %v1116, %v1117
      %v1176 = vsel %vm1146, %v1115, %v1116
      %v1177 = vsel %vm1146, %v1114, %v1115
      %v1178 = vsel %vm1146, %v1145, %v1114
      %v1179 = vsel %vm751, 1, 0
      %v1180 = vsel %vm752, 1, 0
      %v1181 = vsel %vm753, 1, 0
      %v1182 = vsel %vm754, 1, 0
      %v1183 = vsel %vm755, 1, 0
      %v1184 = vsel %vm756, 1, 0
      %v1185 = vsel %vm757, 1, 0
      %v1186 = vsel %vm758, 1, 0
      %v1187 = vsel %vm759, 1, 0
      %v1188 = vsel %vm760, 1, 0
      %v1189 = vsel %vm761, 1, 0
      %v1190 = vsel %vm762, 1, 0
      %v1191 = vsel %vm763, 1, 0
      %v1192 = vsel %vm764, 1, 0
      %v1193 = vsel %vm765, 1, 0
      %v1194 = vsel %vm766, 1, 0
      %v1195 = vsel %vm767, 1, 0
      %v1196 = vsel %vm768, 1, 0
      %v1197 = vsel %vm769, 1, 0
      %v1198 = vsel %vm770, 1, 0
      %v1199 = vsel %vm771, 1, 0
      %v1200 = vsel %vm772, 1, 0
      %v1201 = vsel %vm773, 1, 0
      %v1202 = vsel %vm774, 1, 0
      %v1203 = vsel %vm775, 1, 0
      %v1204 = vsel %vm776, 1, 0
      %v1205 = vsel %vm777, 1, 0
      %v1206 = vsel %vm778, 1, 0
      %v1207 = vsel %vm779, 1, 0
      %v1208 = vsel %vm780, 1, 0
      %v1209 = vsel %vm781, 1, 0
      %v1210 = vsel %vm782, 1, 0
      %vm1211 = vcmp.eq.s32.totalorder %v1179, 1
      %vm1212 = vcmp.eq.s32.totalorder %v1180, 1
      %vm1213 = vcmp.eq.s32.totalorder %v1181, 1
      %vm1214 = vcmp.eq.s32.totalorder %v1182, 1
      %vm1215 = vcmp.eq.s32.totalorder %v1183, 1
      %vm1216 = vcmp.eq.s32.totalorder %v1184, 1
      %vm1217 = vcmp.eq.s32.totalorder %v1185, 1
      %vm1218 = vcmp.eq.s32.totalorder %v1186, 1
      %vm1219 = vcmp.eq.s32.totalorder %v1187, 1
      %vm1220 = vcmp.eq.s32.totalorder %v1188, 1
      %vm1221 = vcmp.eq.s32.totalorder %v1189, 1
      %vm1222 = vcmp.eq.s32.totalorder %v1190, 1
      %vm1223 = vcmp.eq.s32.totalorder %v1191, 1
      %vm1224 = vcmp.eq.s32.totalorder %v1192, 1
      %vm1225 = vcmp.eq.s32.totalorder %v1193, 1
      %vm1226 = vcmp.eq.s32.totalorder %v1194, 1
      %vm1227 = vcmp.eq.s32.totalorder %v1195, 1
      %vm1228 = vcmp.eq.s32.totalorder %v1196, 1
      %vm1229 = vcmp.eq.s32.totalorder %v1197, 1
      %vm1230 = vcmp.eq.s32.totalorder %v1198, 1
      %vm1231 = vcmp.eq.s32.totalorder %v1199, 1
      %vm1232 = vcmp.eq.s32.totalorder %v1200, 1
      %vm1233 = vcmp.eq.s32.totalorder %v1201, 1
      %vm1234 = vcmp.eq.s32.totalorder %v1202, 1
      %vm1235 = vcmp.eq.s32.totalorder %v1203, 1
      %vm1236 = vcmp.eq.s32.totalorder %v1204, 1
      %vm1237 = vcmp.eq.s32.totalorder %v1205, 1
      %vm1238 = vcmp.eq.s32.totalorder %v1206, 1
      %vm1239 = vcmp.eq.s32.totalorder %v1207, 1
      %vm1240 = vcmp.eq.s32.totalorder %v1208, 1
      %vm1241 = vcmp.eq.s32.totalorder %v1209, 1
      %vm1242 = vcmp.eq.s32.totalorder %v1210, 1
      %v1243 = vsel %vm1211, %v1178, 0.0
      %v1244 = vsel %vm1212, %v1177, 0.0
      %v1245 = vsel %vm1213, %v1176, 0.0
      %v1246 = vsel %vm1214, %v1175, 0.0
      %v1247 = vsel %vm1215, %v1174, 0.0
      %v1248 = vsel %vm1216, %v1173, 0.0
      %v1249 = vsel %vm1217, %v1172, 0.0
      %v1250 = vsel %vm1218, %v1171, 0.0
      %v1251 = vsel %vm1219, %v1170, 0.0
      %v1252 = vsel %vm1220, %v1169, 0.0
      %v1253 = vsel %vm1221, %v1168, 0.0
      %v1254 = vsel %vm1222, %v1167, 0.0
      %v1255 = vsel %vm1223, %v1166, 0.0
      %v1256 = vsel %vm1224, %v1165, 0.0
      %v1257 = vsel %vm1225, %v1164, 0.0
      %v1258 = vsel %vm1226, %v1163, 0.0
      %v1259 = vsel %vm1227, %v1162, 0.0
      %v1260 = vsel %vm1228, %v1161, 0.0
      %v1261 = vsel %vm1229, %v1160, 0.0
      %v1262 = vsel %vm1230, %v1159, 0.0
      %v1263 = vsel %vm1231, %v1158, 0.0
      %v1264 = vsel %vm1232, %v1157, 0.0
      %v1265 = vsel %vm1233, %v1156, 0.0
      %v1266 = vsel %vm1234, %v1155, 0.0
      %v1267 = vsel %vm1235, %v1154, 0.0
      %v1268 = vsel %vm1236, %v1153, 0.0
      %v1269 = vsel %vm1237, %v1152, 0.0
      %v1270 = vsel %vm1238, %v1151, 0.0
      %v1271 = vsel %vm1239, %v1150, 0.0
      %v1272 = vsel %vm1240, %v1149, 0.0
      %v1273 = vsel %vm1241, %v1148, 0.0
      %v1274 = vsel %vm1242, %v1147, 0.0
      %v1275 = vrot.slane %v174, 1
      %v1276 = vrot.slane %v175, 1
      %v1277 = vrot.slane %v176, 1
      %v1278 = vrot.slane %v177, 1
      %v1279 = vrot.slane %v178, 1
      %v1280 = vrot.slane %v179, 1
      %v1281 = vrot.slane %v180, 1
      %v1282 = vrot.slane %v181, 1
      %v1283 = vrot.slane %v182, 1
      %v1284 = vrot.slane %v183, 1
      %v1285 = vrot.slane %v184, 1
      %v1286 = vrot.slane %v185, 1
      %v1287 = vrot.slane %v186, 1
      %v1288 = vrot.slane %v187, 1
      %v1289 = vrot.slane %v188, 1
      %v1290 = vrot.slane %v189, 1
      %v1291 = vrot.slane %v190, 1
      %v1292 = vrot.slane %v191, 1
      %v1293 = vrot.slane %v192, 1
      %v1294 = vrot.slane %v193, 1
      %v1295 = vrot.slane %v194, 1
      %v1296 = vrot.slane %v195, 1
      %v1297 = vrot.slane %v196, 1
      %v1298 = vrot.slane %v197, 1
      %v1299 = vrot.slane %v198, 1
      %v1300 = vrot.slane %v199, 1
      %v1301 = vrot.slane %v200, 1
      %v1302 = vrot.slane %v201, 1
      %v1303 = vrot.slane %v202, 1
      %v1304 = vrot.slane %v203, 1
      %v1305 = vrot.slane %v204, 1
      %v1306 = vrot.slane %v205, 1
      %vm1307 = vcmp.lt.s32.totalorder %v207, 7
      %v1308 = vsel %vm1307, %v1305, %v1306
      %v1309 = vsel %vm1307, %v1304, %v1305
      %v1310 = vsel %vm1307, %v1303, %v1304
      %v1311 = vsel %vm1307, %v1302, %v1303
      %v1312 = vsel %vm1307, %v1301, %v1302
      %v1313 = vsel %vm1307, %v1300, %v1301
      %v1314 = vsel %vm1307, %v1299, %v1300
      %v1315 = vsel %vm1307, %v1298, %v1299
      %v1316 = vsel %vm1307, %v1297, %v1298
      %v1317 = vsel %vm1307, %v1296, %v1297
      %v1318 = vsel %vm1307, %v1295, %v1296
      %v1319 = vsel %vm1307, %v1294, %v1295
      %v1320 = vsel %vm1307, %v1293, %v1294
      %v1321 = vsel %vm1307, %v1292, %v1293
      %v1322 = vsel %vm1307, %v1291, %v1292
      %v1323 = vsel %vm1307, %v1290, %v1291
      %v1324 = vsel %vm1307, %v1289, %v1290
      %v1325 = vsel %vm1307, %v1288, %v1289
      %v1326 = vsel %vm1307, %v1287, %v1288
      %v1327 = vsel %vm1307, %v1286, %v1287
      %v1328 = vsel %vm1307, %v1285, %v1286
      %v1329 = vsel %vm1307, %v1284, %v1285
      %v1330 = vsel %vm1307, %v1283, %v1284
      %v1331 = vsel %vm1307, %v1282, %v1283
      %v1332 = vsel %vm1307, %v1281, %v1282
      %v1333 = vsel %vm1307, %v1280, %v1281
      %v1334 = vsel %vm1307, %v1279, %v1280
      %v1335 = vsel %vm1307, %v1278, %v1279
      %v1336 = vsel %vm1307, %v1277, %v1278
      %v1337 = vsel %vm1307, %v1276, %v1277
      %v1338 = vsel %vm1307, %v1275, %v1276
      %v1339 = vsel %vm1307, %v1306, %v1275
      %v1340 = vsel %vm847, 1, 0
      %v1341 = vsel %vm848, 1, 0
      %v1342 = vsel %vm849, 1, 0
      %v1343 = vsel %vm850, 1, 0
      %v1344 = vsel %vm851, 1, 0
      %v1345 = vsel %vm852, 1, 0
      %v1346 = vsel %vm853, 1, 0
      %v1347 = vsel %vm854, 1, 0
      %v1348 = vsel %vm855, 1, 0
      %v1349 = vsel %vm856, 1, 0
      %v1350 = vsel %vm857, 1, 0
      %v1351 = vsel %vm858, 1, 0
      %v1352 = vsel %vm859, 1, 0
      %v1353 = vsel %vm860, 1, 0
      %v1354 = vsel %vm861, 1, 0
      %v1355 = vsel %vm862, 1, 0
      %v1356 = vsel %vm863, 1, 0
      %v1357 = vsel %vm864, 1, 0
      %v1358 = vsel %vm865, 1, 0
      %v1359 = vsel %vm866, 1, 0
      %v1360 = vsel %vm867, 1, 0
      %v1361 = vsel %vm868, 1, 0
      %v1362 = vsel %vm869, 1, 0
      %v1363 = vsel %vm870, 1, 0
      %v1364 = vsel %vm871, 1, 0
      %v1365 = vsel %vm872, 1, 0
      %v1366 = vsel %vm873, 1, 0
      %v1367 = vsel %vm874, 1, 0
      %v1368 = vsel %vm875, 1, 0
      %v1369 = vsel %vm876, 1, 0
      %v1370 = vsel %vm877, 1, 0
      %v1371 = vsel %vm878, 1, 0
      %vm1372 = vcmp.eq.s32.totalorder %v1340, 1
      %vm1373 = vcmp.eq.s32.totalorder %v1341, 1
      %vm1374 = vcmp.eq.s32.totalorder %v1342, 1
      %vm1375 = vcmp.eq.s32.totalorder %v1343, 1
      %vm1376 = vcmp.eq.s32.totalorder %v1344, 1
      %vm1377 = vcmp.eq.s32.totalorder %v1345, 1
      %vm1378 = vcmp.eq.s32.totalorder %v1346, 1
      %vm1379 = vcmp.eq.s32.totalorder %v1347, 1
      %vm1380 = vcmp.eq.s32.totalorder %v1348, 1
      %vm1381 = vcmp.eq.s32.totalorder %v1349, 1
      %vm1382 = vcmp.eq.s32.totalorder %v1350, 1
      %vm1383 = vcmp.eq.s32.totalorder %v1351, 1
      %vm1384 = vcmp.eq.s32.totalorder %v1352, 1
      %vm1385 = vcmp.eq.s32.totalorder %v1353, 1
      %vm1386 = vcmp.eq.s32.totalorder %v1354, 1
      %vm1387 = vcmp.eq.s32.totalorder %v1355, 1
      %vm1388 = vcmp.eq.s32.totalorder %v1356, 1
      %vm1389 = vcmp.eq.s32.totalorder %v1357, 1
      %vm1390 = vcmp.eq.s32.totalorder %v1358, 1
      %vm1391 = vcmp.eq.s32.totalorder %v1359, 1
      %vm1392 = vcmp.eq.s32.totalorder %v1360, 1
      %vm1393 = vcmp.eq.s32.totalorder %v1361, 1
      %vm1394 = vcmp.eq.s32.totalorder %v1362, 1
      %vm1395 = vcmp.eq.s32.totalorder %v1363, 1
      %vm1396 = vcmp.eq.s32.totalorder %v1364, 1
      %vm1397 = vcmp.eq.s32.totalorder %v1365, 1
      %vm1398 = vcmp.eq.s32.totalorder %v1366, 1
      %vm1399 = vcmp.eq.s32.totalorder %v1367, 1
      %vm1400 = vcmp.eq.s32.totalorder %v1368, 1
      %vm1401 = vcmp.eq.s32.totalorder %v1369, 1
      %vm1402 = vcmp.eq.s32.totalorder %v1370, 1
      %vm1403 = vcmp.eq.s32.totalorder %v1371, 1
      %v1404 = vsel %vm1372, %v1338, 0.0
      %v1405 = vsel %vm1373, %v1337, 0.0
      %v1406 = vsel %vm1374, %v1336, 0.0
      %v1407 = vsel %vm1375, %v1335, 0.0
      %v1408 = vsel %vm1376, %v1334, 0.0
      %v1409 = vsel %vm1377, %v1333, 0.0
      %v1410 = vsel %vm1378, %v1332, 0.0
      %v1411 = vsel %vm1379, %v1331, 0.0
      %v1412 = vsel %vm1380, %v1330, 0.0
      %v1413 = vsel %vm1381, %v1329, 0.0
      %v1414 = vsel %vm1382, %v1328, 0.0
      %v1415 = vsel %vm1383, %v1327, 0.0
      %v1416 = vsel %vm1384, %v1326, 0.0
      %v1417 = vsel %vm1385, %v1325, 0.0
      %v1418 = vsel %vm1386, %v1324, 0.0
      %v1419 = vsel %vm1387, %v1323, 0.0
      %v1420 = vsel %vm1388, %v1322, 0.0
      %v1421 = vsel %vm1389, %v1321, 0.0
      %v1422 = vsel %vm1390, %v1320, 0.0
      %v1423 = vsel %vm1391, %v1319, 0.0
      %v1424 = vsel %vm1392, %v1318, 0.0
      %v1425 = vsel %vm1393, %v1317, 0.0
      %v1426 = vsel %vm1394, %v1316, 0.0
      %v1427 = vsel %vm1395, %v1315, 0.0
      %v1428 = vsel %vm1396, %v1314, 0.0
      %v1429 = vsel %vm1397, %v1313, 0.0
      %v1430 = vsel %vm1398, %v1312, 0.0
      %v1431 = vsel %vm1399, %v1311, 0.0
      %v1432 = vsel %vm1400, %v1310, 0.0
      %v1433 = vsel %vm1401, %v1309, 0.0
      %v1434 = vsel %vm1402, %v1308, 0.0
      %v1435 = vsel %vm1403, %v1339, 0.0
      %v1436 = vrot.slane %v174, 2
      %v1437 = vrot.slane %v175, 2
      %v1438 = vrot.slane %v176, 2
      %v1439 = vrot.slane %v177, 2
      %v1440 = vrot.slane %v178, 2
      %v1441 = vrot.slane %v179, 2
      %v1442 = vrot.slane %v180, 2
      %v1443 = vrot.slane %v181, 2
      %v1444 = vrot.slane %v182, 2
      %v1445 = vrot.slane %v183, 2
      %v1446 = vrot.slane %v184, 2
      %v1447 = vrot.slane %v185, 2
      %v1448 = vrot.slane %v186, 2
      %v1449 = vrot.slane %v187, 2
      %v1450 = vrot.slane %v188, 2
      %v1451 = vrot.slane %v189, 2
      %v1452 = vrot.slane %v190, 2
      %v1453 = vrot.slane %v191, 2
      %v1454 = vrot.slane %v192, 2
      %v1455 = vrot.slane %v193, 2
      %v1456 = vrot.slane %v194, 2
      %v1457 = vrot.slane %v195, 2
      %v1458 = vrot.slane %v196, 2
      %v1459 = vrot.slane %v197, 2
      %v1460 = vrot.slane %v198, 2
      %v1461 = vrot.slane %v199, 2
      %v1462 = vrot.slane %v200, 2
      %v1463 = vrot.slane %v201, 2
      %v1464 = vrot.slane %v202, 2
      %v1465 = vrot.slane %v203, 2
      %v1466 = vrot.slane %v204, 2
      %v1467 = vrot.slane %v205, 2
      %vm1468 = vcmp.lt.s32.totalorder %v207, 6
      %v1469 = vsel %vm1468, %v1466, %v1467
      %v1470 = vsel %vm1468, %v1465, %v1466
      %v1471 = vsel %vm1468, %v1464, %v1465
      %v1472 = vsel %vm1468, %v1463, %v1464
      %v1473 = vsel %vm1468, %v1462, %v1463
      %v1474 = vsel %vm1468, %v1461, %v1462
      %v1475 = vsel %vm1468, %v1460, %v1461
      %v1476 = vsel %vm1468, %v1459, %v1460
      %v1477 = vsel %vm1468, %v1458, %v1459
      %v1478 = vsel %vm1468, %v1457, %v1458
      %v1479 = vsel %vm1468, %v1456, %v1457
      %v1480 = vsel %vm1468, %v1455, %v1456
      %v1481 = vsel %vm1468, %v1454, %v1455
      %v1482 = vsel %vm1468, %v1453, %v1454
      %v1483 = vsel %vm1468, %v1452, %v1453
      %v1484 = vsel %vm1468, %v1451, %v1452
      %v1485 = vsel %vm1468, %v1450, %v1451
      %v1486 = vsel %vm1468, %v1449, %v1450
      %v1487 = vsel %vm1468, %v1448, %v1449
      %v1488 = vsel %vm1468, %v1447, %v1448
      %v1489 = vsel %vm1468, %v1446, %v1447
      %v1490 = vsel %vm1468, %v1445, %v1446
      %v1491 = vsel %vm1468, %v1444, %v1445
      %v1492 = vsel %vm1468, %v1443, %v1444
      %v1493 = vsel %vm1468, %v1442, %v1443
      %v1494 = vsel %vm1468, %v1441, %v1442
      %v1495 = vsel %vm1468, %v1440, %v1441
      %v1496 = vsel %vm1468, %v1439, %v1440
      %v1497 = vsel %vm1468, %v1438, %v1439
      %v1498 = vsel %vm1468, %v1437, %v1438
      %v1499 = vsel %vm1468, %v1436, %v1437
      %v1500 = vsel %vm1468, %v1467, %v1436
      %v1501 = vsel %vm911, 1, 0
      %v1502 = vsel %vm912, 1, 0
      %v1503 = vsel %vm913, 1, 0
      %v1504 = vsel %vm914, 1, 0
      %v1505 = vsel %vm915, 1, 0
      %v1506 = vsel %vm916, 1, 0
      %v1507 = vsel %vm917, 1, 0
      %v1508 = vsel %vm918, 1, 0
      %v1509 = vsel %vm919, 1, 0
      %v1510 = vsel %vm920, 1, 0
      %v1511 = vsel %vm921, 1, 0
      %v1512 = vsel %vm922, 1, 0
      %v1513 = vsel %vm923, 1, 0
      %v1514 = vsel %vm924, 1, 0
      %v1515 = vsel %vm925, 1, 0
      %v1516 = vsel %vm926, 1, 0
      %v1517 = vsel %vm927, 1, 0
      %v1518 = vsel %vm928, 1, 0
      %v1519 = vsel %vm929, 1, 0
      %v1520 = vsel %vm930, 1, 0
      %v1521 = vsel %vm931, 1, 0
      %v1522 = vsel %vm932, 1, 0
      %v1523 = vsel %vm933, 1, 0
      %v1524 = vsel %vm934, 1, 0
      %v1525 = vsel %vm935, 1, 0
      %v1526 = vsel %vm936, 1, 0
      %v1527 = vsel %vm937, 1, 0
      %v1528 = vsel %vm938, 1, 0
      %v1529 = vsel %vm939, 1, 0
      %v1530 = vsel %vm940, 1, 0
      %v1531 = vsel %vm941, 1, 0
      %v1532 = vsel %vm942, 1, 0
      %vm1533 = vcmp.eq.s32.totalorder %v1501, 1
      %vm1534 = vcmp.eq.s32.totalorder %v1502, 1
      %vm1535 = vcmp.eq.s32.totalorder %v1503, 1
      %vm1536 = vcmp.eq.s32.totalorder %v1504, 1
      %vm1537 = vcmp.eq.s32.totalorder %v1505, 1
      %vm1538 = vcmp.eq.s32.totalorder %v1506, 1
      %vm1539 = vcmp.eq.s32.totalorder %v1507, 1
      %vm1540 = vcmp.eq.s32.totalorder %v1508, 1
      %vm1541 = vcmp.eq.s32.totalorder %v1509, 1
      %vm1542 = vcmp.eq.s32.totalorder %v1510, 1
      %vm1543 = vcmp.eq.s32.totalorder %v1511, 1
      %vm1544 = vcmp.eq.s32.totalorder %v1512, 1
      %vm1545 = vcmp.eq.s32.totalorder %v1513, 1
      %vm1546 = vcmp.eq.s32.totalorder %v1514, 1
      %vm1547 = vcmp.eq.s32.totalorder %v1515, 1
      %vm1548 = vcmp.eq.s32.totalorder %v1516, 1
      %vm1549 = vcmp.eq.s32.totalorder %v1517, 1
      %vm1550 = vcmp.eq.s32.totalorder %v1518, 1
      %vm1551 = vcmp.eq.s32.totalorder %v1519, 1
      %vm1552 = vcmp.eq.s32.totalorder %v1520, 1
      %vm1553 = vcmp.eq.s32.totalorder %v1521, 1
      %vm1554 = vcmp.eq.s32.totalorder %v1522, 1
      %vm1555 = vcmp.eq.s32.totalorder %v1523, 1
      %vm1556 = vcmp.eq.s32.totalorder %v1524, 1
      %vm1557 = vcmp.eq.s32.totalorder %v1525, 1
      %vm1558 = vcmp.eq.s32.totalorder %v1526, 1
      %vm1559 = vcmp.eq.s32.totalorder %v1527, 1
      %vm1560 = vcmp.eq.s32.totalorder %v1528, 1
      %vm1561 = vcmp.eq.s32.totalorder %v1529, 1
      %vm1562 = vcmp.eq.s32.totalorder %v1530, 1
      %vm1563 = vcmp.eq.s32.totalorder %v1531, 1
      %vm1564 = vcmp.eq.s32.totalorder %v1532, 1
      %v1565 = vsel %vm1533, %v1499, 0.0
      %v1566 = vsel %vm1534, %v1498, 0.0
      %v1567 = vsel %vm1535, %v1497, 0.0
      %v1568 = vsel %vm1536, %v1496, 0.0
      %v1569 = vsel %vm1537, %v1495, 0.0
      %v1570 = vsel %vm1538, %v1494, 0.0
      %v1571 = vsel %vm1539, %v1493, 0.0
      %v1572 = vsel %vm1540, %v1492, 0.0
      %v1573 = vsel %vm1541, %v1491, 0.0
      %v1574 = vsel %vm1542, %v1490, 0.0
      %v1575 = vsel %vm1543, %v1489, 0.0
      %v1576 = vsel %vm1544, %v1488, 0.0
      %v1577 = vsel %vm1545, %v1487, 0.0
      %v1578 = vsel %vm1546, %v1486, 0.0
      %v1579 = vsel %vm1547, %v1485, 0.0
      %v1580 = vsel %vm1548, %v1484, 0.0
      %v1581 = vsel %vm1549, %v1483, 0.0
      %v1582 = vsel %vm1550, %v1482, 0.0
      %v1583 = vsel %vm1551, %v1481, 0.0
      %v1584 = vsel %vm1552, %v1480, 0.0
      %v1585 = vsel %vm1553, %v1479, 0.0
      %v1586 = vsel %vm1554, %v1478, 0.0
      %v1587 = vsel %vm1555, %v1477, 0.0
      %v1588 = vsel %vm1556, %v1476, 0.0
      %v1589 = vsel %vm1557, %v1475, 0.0
      %v1590 = vsel %vm1558, %v1474, 0.0
      %v1591 = vsel %vm1559, %v1473, 0.0
      %v1592 = vsel %vm1560, %v1472, 0.0
      %v1593 = vsel %vm1561, %v1471, 0.0
      %v1594 = vsel %vm1562, %v1470, 0.0
      %v1595 = vsel %vm1563, %v1469, 0.0
      %v1596 = vsel %vm1564, %v1500, 0.0
      %1629 = vrot.lane.b32.xlu0 %v1243, 16
      %v1630 = vpop.permute.xlu0 %1629
      %1631 = vrot.lane.b32.xlu0 %v1244, 16
      %v1632 = vpop.permute.xlu0 %1631
      %1633 = vrot.lane.b32.xlu0 %v1245, 16
      %v1634 = vpop.permute.xlu0 %1633
      %1635 = vrot.lane.b32.xlu0 %v1246, 16
      %v1636 = vpop.permute.xlu0 %1635
      %1637 = vrot.lane.b32.xlu0 %v1247, 16
      %v1638 = vpop.permute.xlu0 %1637
      %1639 = vrot.lane.b32.xlu0 %v1248, 16
      %v1640 = vpop.permute.xlu0 %1639
      %1641 = vrot.lane.b32.xlu0 %v1249, 16
      %v1642 = vpop.permute.xlu0 %1641
      %1643 = vrot.lane.b32.xlu0 %v1250, 16
      %v1644 = vpop.permute.xlu0 %1643
      %1645 = vrot.lane.b32.xlu0 %v1251, 16
      %v1646 = vpop.permute.xlu0 %1645
      %1647 = vrot.lane.b32.xlu0 %v1252, 16
      %v1648 = vpop.permute.xlu0 %1647
      %1649 = vrot.lane.b32.xlu0 %v1253, 16
      %v1650 = vpop.permute.xlu0 %1649
      %1651 = vrot.lane.b32.xlu0 %v1254, 16
      %v1652 = vpop.permute.xlu0 %1651
      %1653 = vrot.lane.b32.xlu0 %v1255, 16
      %v1654 = vpop.permute.xlu0 %1653
      %1655 = vrot.lane.b32.xlu0 %v1256, 16
      %v1656 = vpop.permute.xlu0 %1655
      %1657 = vrot.lane.b32.xlu0 %v1257, 16
      %v1658 = vpop.permute.xlu0 %1657
      %1659 = vrot.lane.b32.xlu0 %v1258, 16
      %v1660 = vpop.permute.xlu0 %1659
      %1661 = vrot.lane.b32.xlu0 %v1259, 16
      %v1662 = vpop.permute.xlu0 %1661
      %1663 = vrot.lane.b32.xlu0 %v1260, 16
      %v1664 = vpop.permute.xlu0 %1663
      %1665 = vrot.lane.b32.xlu0 %v1261, 16
      %v1666 = vpop.permute.xlu0 %1665
      %1667 = vrot.lane.b32.xlu0 %v1262, 16
      %v1668 = vpop.permute.xlu0 %1667
      %1669 = vrot.lane.b32.xlu0 %v1263, 16
      %v1670 = vpop.permute.xlu0 %1669
      %1671 = vrot.lane.b32.xlu0 %v1264, 16
      %v1672 = vpop.permute.xlu0 %1671
      %1673 = vrot.lane.b32.xlu0 %v1265, 16
      %v1674 = vpop.permute.xlu0 %1673
      %1675 = vrot.lane.b32.xlu0 %v1266, 16
      %v1676 = vpop.permute.xlu0 %1675
      %1677 = vrot.lane.b32.xlu0 %v1267, 16
      %v1678 = vpop.permute.xlu0 %1677
      %1679 = vrot.lane.b32.xlu0 %v1268, 16
      %v1680 = vpop.permute.xlu0 %1679
      %1681 = vrot.lane.b32.xlu0 %v1269, 16
      %v1682 = vpop.permute.xlu0 %1681
      %1683 = vrot.lane.b32.xlu0 %v1270, 16
      %v1684 = vpop.permute.xlu0 %1683
      %1685 = vrot.lane.b32.xlu0 %v1271, 16
      %v1686 = vpop.permute.xlu0 %1685
      %1687 = vrot.lane.b32.xlu0 %v1272, 16
      %v1688 = vpop.permute.xlu0 %1687
      %1689 = vrot.lane.b32.xlu0 %v1273, 16
      %v1690 = vpop.permute.xlu0 %1689
      %1691 = vrot.lane.b32.xlu0 %v1274, 16
      %v1692 = vpop.permute.xlu0 %1691
      %1757 = vrot.lane.b32.xlu0 %v174, 32
      %v1758 = vpop.permute.xlu0 %1757
      %1759 = vrot.lane.b32.xlu0 %v175, 32
      %v1760 = vpop.permute.xlu0 %1759
      %1761 = vrot.lane.b32.xlu0 %v176, 32
      %v1762 = vpop.permute.xlu0 %1761
      %1763 = vrot.lane.b32.xlu0 %v177, 32
      %v1764 = vpop.permute.xlu0 %1763
      %1765 = vrot.lane.b32.xlu0 %v178, 32
      %v1766 = vpop.permute.xlu0 %1765
      %1767 = vrot.lane.b32.xlu0 %v179, 32
      %v1768 = vpop.permute.xlu0 %1767
      %1769 = vrot.lane.b32.xlu0 %v180, 32
      %v1770 = vpop.permute.xlu0 %1769
      %1771 = vrot.lane.b32.xlu0 %v181, 32
      %v1772 = vpop.permute.xlu0 %1771
      %1773 = vrot.lane.b32.xlu0 %v182, 32
      %v1774 = vpop.permute.xlu0 %1773
      %1775 = vrot.lane.b32.xlu0 %v183, 32
      %v1776 = vpop.permute.xlu0 %1775
      %1777 = vrot.lane.b32.xlu0 %v184, 32
      %v1778 = vpop.permute.xlu0 %1777
      %1779 = vrot.lane.b32.xlu0 %v185, 32
      %v1780 = vpop.permute.xlu0 %1779
      %1781 = vrot.lane.b32.xlu0 %v186, 32
      %v1782 = vpop.permute.xlu0 %1781
      %1783 = vrot.lane.b32.xlu0 %v187, 32
      %v1784 = vpop.permute.xlu0 %1783
      %1785 = vrot.lane.b32.xlu0 %v188, 32
      %v1786 = vpop.permute.xlu0 %1785
      %1787 = vrot.lane.b32.xlu0 %v189, 32
      %v1788 = vpop.permute.xlu0 %1787
      %1789 = vrot.lane.b32.xlu0 %v190, 32
      %v1790 = vpop.permute.xlu0 %1789
      %1791 = vrot.lane.b32.xlu0 %v191, 32
      %v1792 = vpop.permute.xlu0 %1791
      %1793 = vrot.lane.b32.xlu0 %v192, 32
      %v1794 = vpop.permute.xlu0 %1793
      %1795 = vrot.lane.b32.xlu0 %v193, 32
      %v1796 = vpop.permute.xlu0 %1795
      %1797 = vrot.lane.b32.xlu0 %v194, 32
      %v1798 = vpop.permute.xlu0 %1797
      %1799 = vrot.lane.b32.xlu0 %v195, 32
      %v1800 = vpop.permute.xlu0 %1799
      %1801 = vrot.lane.b32.xlu0 %v196, 32
      %v1802 = vpop.permute.xlu0 %1801
      %1803 = vrot.lane.b32.xlu0 %v197, 32
      %v1804 = vpop.permute.xlu0 %1803
      %1805 = vrot.lane.b32.xlu0 %v198, 32
      %v1806 = vpop.permute.xlu0 %1805
      %1807 = vrot.lane.b32.xlu0 %v199, 32
      %v1808 = vpop.permute.xlu0 %1807
      %1809 = vrot.lane.b32.xlu0 %v200, 32
      %v1810 = vpop.permute.xlu0 %1809
      %1811 = vrot.lane.b32.xlu0 %v201, 32
      %v1812 = vpop.permute.xlu0 %1811
      %1813 = vrot.lane.b32.xlu0 %v202, 32
      %v1814 = vpop.permute.xlu0 %1813
      %1815 = vrot.lane.b32.xlu0 %v203, 32
      %v1816 = vpop.permute.xlu0 %1815
      %1817 = vrot.lane.b32.xlu0 %v204, 32
      %v1818 = vpop.permute.xlu0 %1817
      %1819 = vrot.lane.b32.xlu0 %v205, 32
      %v1820 = vpop.permute.xlu0 %1819
      %1885 = vrot.lane.b32.xlu0 %v1404, 48
      %v1886 = vpop.permute.xlu0 %1885
      %1887 = vrot.lane.b32.xlu0 %v1405, 48
      %v1888 = vpop.permute.xlu0 %1887
      %1889 = vrot.lane.b32.xlu0 %v1406, 48
      %v1890 = vpop.permute.xlu0 %1889
      %1891 = vrot.lane.b32.xlu0 %v1407, 48
      %v1892 = vpop.permute.xlu0 %1891
      %1893 = vrot.lane.b32.xlu0 %v1408, 48
      %v1894 = vpop.permute.xlu0 %1893
      %1895 = vrot.lane.b32.xlu0 %v1409, 48
      %v1896 = vpop.permute.xlu0 %1895
      %1897 = vrot.lane.b32.xlu0 %v1410, 48
      %v1898 = vpop.permute.xlu0 %1897
      %1899 = vrot.lane.b32.xlu0 %v1411, 48
      %v1900 = vpop.permute.xlu0 %1899
      %1901 = vrot.lane.b32.xlu0 %v1412, 48
      %v1902 = vpop.permute.xlu0 %1901
      %1903 = vrot.lane.b32.xlu0 %v1413, 48
      %v1904 = vpop.permute.xlu0 %1903
      %1905 = vrot.lane.b32.xlu0 %v1414, 48
      %v1906 = vpop.permute.xlu0 %1905
      %1907 = vrot.lane.b32.xlu0 %v1415, 48
      %v1908 = vpop.permute.xlu0 %1907
      %1909 = vrot.lane.b32.xlu0 %v1416, 48
      %v1910 = vpop.permute.xlu0 %1909
      %1911 = vrot.lane.b32.xlu0 %v1417, 48
      %v1912 = vpop.permute.xlu0 %1911
      %1913 = vrot.lane.b32.xlu0 %v1418, 48
      %v1914 = vpop.permute.xlu0 %1913
      %1915 = vrot.lane.b32.xlu0 %v1419, 48
      %v1916 = vpop.permute.xlu0 %1915
      %1917 = vrot.lane.b32.xlu0 %v1420, 48
      %v1918 = vpop.permute.xlu0 %1917
      %1919 = vrot.lane.b32.xlu0 %v1421, 48
      %v1920 = vpop.permute.xlu0 %1919
      %1921 = vrot.lane.b32.xlu0 %v1422, 48
      %v1922 = vpop.permute.xlu0 %1921
      %1923 = vrot.lane.b32.xlu0 %v1423, 48
      %v1924 = vpop.permute.xlu0 %1923
      %1925 = vrot.lane.b32.xlu0 %v1424, 48
      %v1926 = vpop.permute.xlu0 %1925
      %1927 = vrot.lane.b32.xlu0 %v1425, 48
      %v1928 = vpop.permute.xlu0 %1927
      %1929 = vrot.lane.b32.xlu0 %v1426, 48
      %v1930 = vpop.permute.xlu0 %1929
      %1931 = vrot.lane.b32.xlu0 %v1427, 48
      %v1932 = vpop.permute.xlu0 %1931
      %1933 = vrot.lane.b32.xlu0 %v1428, 48
      %v1934 = vpop.permute.xlu0 %1933
      %1935 = vrot.lane.b32.xlu0 %v1429, 48
      %v1936 = vpop.permute.xlu0 %1935
      %1937 = vrot.lane.b32.xlu0 %v1430, 48
      %v1938 = vpop.permute.xlu0 %1937
      %1939 = vrot.lane.b32.xlu0 %v1431, 48
      %v1940 = vpop.permute.xlu0 %1939
      %1941 = vrot.lane.b32.xlu0 %v1432, 48
      %v1942 = vpop.permute.xlu0 %1941
      %1943 = vrot.lane.b32.xlu0 %v1433, 48
      %v1944 = vpop.permute.xlu0 %1943
      %1945 = vrot.lane.b32.xlu0 %v1434, 48
      %v1946 = vpop.permute.xlu0 %1945
      %1947 = vrot.lane.b32.xlu0 %v1435, 48
      %v1948 = vpop.permute.xlu0 %1947
      %2013 = vrot.lane.b32.xlu0 %v1565, 64
      %v2014 = vpop.permute.xlu0 %2013
      %2015 = vrot.lane.b32.xlu0 %v1566, 64
      %v2016 = vpop.permute.xlu0 %2015
      %2017 = vrot.lane.b32.xlu0 %v1567, 64
      %v2018 = vpop.permute.xlu0 %2017
      %2019 = vrot.lane.b32.xlu0 %v1568, 64
      %v2020 = vpop.permute.xlu0 %2019
      %2021 = vrot.lane.b32.xlu0 %v1569, 64
      %v2022 = vpop.permute.xlu0 %2021
      %2023 = vrot.lane.b32.xlu0 %v1570, 64
      %v2024 = vpop.permute.xlu0 %2023
      %2025 = vrot.lane.b32.xlu0 %v1571, 64
      %v2026 = vpop.permute.xlu0 %2025
      %2027 = vrot.lane.b32.xlu0 %v1572, 64
      %v2028 = vpop.permute.xlu0 %2027
      %2029 = vrot.lane.b32.xlu0 %v1573, 64
      %v2030 = vpop.permute.xlu0 %2029
      %2031 = vrot.lane.b32.xlu0 %v1574, 64
      %v2032 = vpop.permute.xlu0 %2031
      %2033 = vrot.lane.b32.xlu0 %v1575, 64
      %v2034 = vpop.permute.xlu0 %2033
      %2035 = vrot.lane.b32.xlu0 %v1576, 64
      %v2036 = vpop.permute.xlu0 %2035
      %2037 = vrot.lane.b32.xlu0 %v1577, 64
      %v2038 = vpop.permute.xlu0 %2037
      %2039 = vrot.lane.b32.xlu0 %v1578, 64
      %v2040 = vpop.permute.xlu0 %2039
      %2041 = vrot.lane.b32.xlu0 %v1579, 64
      %v2042 = vpop.permute.xlu0 %2041
      %2043 = vrot.lane.b32.xlu0 %v1580, 64
      %v2044 = vpop.permute.xlu0 %2043
      %2045 = vrot.lane.b32.xlu0 %v1581, 64
      %v2046 = vpop.permute.xlu0 %2045
      %2047 = vrot.lane.b32.xlu0 %v1582, 64
      %v2048 = vpop.permute.xlu0 %2047
      %2049 = vrot.lane.b32.xlu0 %v1583, 64
      %v2050 = vpop.permute.xlu0 %2049
      %2051 = vrot.lane.b32.xlu0 %v1584, 64
      %v2052 = vpop.permute.xlu0 %2051
      %2053 = vrot.lane.b32.xlu0 %v1585, 64
      %v2054 = vpop.permute.xlu0 %2053
      %2055 = vrot.lane.b32.xlu0 %v1586, 64
      %v2056 = vpop.permute.xlu0 %2055
      %2057 = vrot.lane.b32.xlu0 %v1587, 64
      %v2058 = vpop.permute.xlu0 %2057
      %2059 = vrot.lane.b32.xlu0 %v1588, 64
      %v2060 = vpop.permute.xlu0 %2059
      %2061 = vrot.lane.b32.xlu0 %v1589, 64
      %v2062 = vpop.permute.xlu0 %2061
      %2063 = vrot.lane.b32.xlu0 %v1590, 64
      %v2064 = vpop.permute.xlu0 %2063
      %2065 = vrot.lane.b32.xlu0 %v1591, 64
      %v2066 = vpop.permute.xlu0 %2065
      %2067 = vrot.lane.b32.xlu0 %v1592, 64
      %v2068 = vpop.permute.xlu0 %2067
      %2069 = vrot.lane.b32.xlu0 %v1593, 64
      %v2070 = vpop.permute.xlu0 %2069
      %2071 = vrot.lane.b32.xlu0 %v1594, 64
      %v2072 = vpop.permute.xlu0 %2071
      %2073 = vrot.lane.b32.xlu0 %v1595, 64
      %v2074 = vpop.permute.xlu0 %2073
      %2075 = vrot.lane.b32.xlu0 %v1596, 64
      %v2076 = vpop.permute.xlu0 %2075
      %vm2109 = vcmask 130048
      %v2110 = vsel %vm2109, %v1082, %v1630
      %v2111 = vsel %vm2109, %v1083, %v1632
      %v2112 = vsel %vm2109, %v1084, %v1634
      %v2113 = vsel %vm2109, %v1085, %v1636
      %v2114 = vsel %vm2109, %v1086, %v1638
      %v2115 = vsel %vm2109, %v1087, %v1640
      %v2116 = vsel %vm2109, %v1088, %v1642
      %v2117 = vsel %vm2109, %v1089, %v1644
      %v2118 = vsel %vm2109, %v1090, %v1646
      %v2119 = vsel %vm2109, %v1091, %v1648
      %v2120 = vsel %vm2109, %v1092, %v1650
      %v2121 = vsel %vm2109, %v1093, %v1652
      %v2122 = vsel %vm2109, %v1094, %v1654
      %v2123 = vsel %vm2109, %v1095, %v1656
      %v2124 = vsel %vm2109, %v1096, %v1658
      %v2125 = vsel %vm2109, %v1097, %v1660
      %v2126 = vsel %vm2109, %v1098, %v1662
      %v2127 = vsel %vm2109, %v1099, %v1664
      %v2128 = vsel %vm2109, %v1100, %v1666
      %v2129 = vsel %vm2109, %v1101, %v1668
      %v2130 = vsel %vm2109, %v1102, %v1670
      %v2131 = vsel %vm2109, %v1103, %v1672
      %v2132 = vsel %vm2109, %v1104, %v1674
      %v2133 = vsel %vm2109, %v1105, %v1676
      %v2134 = vsel %vm2109, %v1106, %v1678
      %v2135 = vsel %vm2109, %v1107, %v1680
      %v2136 = vsel %vm2109, %v1108, %v1682
      %v2137 = vsel %vm2109, %v1109, %v1684
      %v2138 = vsel %vm2109, %v1110, %v1686
      %v2139 = vsel %vm2109, %v1111, %v1688
      %v2140 = vsel %vm2109, %v1112, %v1690
      %v2141 = vsel %vm2109, %v1113, %v1692
      %vm2142 = vcmask 261120
      %v2143 = vsel %vm2142, %v2110, %v1758
      %v2144 = vsel %vm2142, %v2111, %v1760
      %v2145 = vsel %vm2142, %v2112, %v1762
      %v2146 = vsel %vm2142, %v2113, %v1764
      %v2147 = vsel %vm2142, %v2114, %v1766
      %v2148 = vsel %vm2142, %v2115, %v1768
      %v2149 = vsel %vm2142, %v2116, %v1770
      %v2150 = vsel %vm2142, %v2117, %v1772
      %v2151 = vsel %vm2142, %v2118, %v1774
      %v2152 = vsel %vm2142, %v2119, %v1776
      %v2153 = vsel %vm2142, %v2120, %v1778
      %v2154 = vsel %vm2142, %v2121, %v1780
      %v2155 = vsel %vm2142, %v2122, %v1782
      %v2156 = vsel %vm2142, %v2123, %v1784
      %v2157 = vsel %vm2142, %v2124, %v1786
      %v2158 = vsel %vm2142, %v2125, %v1788
      %v2159 = vsel %vm2142, %v2126, %v1790
      %v2160 = vsel %vm2142, %v2127, %v1792
      %v2161 = vsel %vm2142, %v2128, %v1794
      %v2162 = vsel %vm2142, %v2129, %v1796
      %v2163 = vsel %vm2142, %v2130, %v1798
      %v2164 = vsel %vm2142, %v2131, %v1800
      %v2165 = vsel %vm2142, %v2132, %v1802
      %v2166 = vsel %vm2142, %v2133, %v1804
      %v2167 = vsel %vm2142, %v2134, %v1806
      %v2168 = vsel %vm2142, %v2135, %v1808
      %v2169 = vsel %vm2142, %v2136, %v1810
      %v2170 = vsel %vm2142, %v2137, %v1812
      %v2171 = vsel %vm2142, %v2138, %v1814
      %v2172 = vsel %vm2142, %v2139, %v1816
      %v2173 = vsel %vm2142, %v2140, %v1818
      %v2174 = vsel %vm2142, %v2141, %v1820
      %vm2175 = vcmask 392192
      %v2176 = vsel %vm2175, %v2143, %v1886
      %v2177 = vsel %vm2175, %v2144, %v1888
      %v2178 = vsel %vm2175, %v2145, %v1890
      %v2179 = vsel %vm2175, %v2146, %v1892
      %v2180 = vsel %vm2175, %v2147, %v1894
      %v2181 = vsel %vm2175, %v2148, %v1896
      %v2182 = vsel %vm2175, %v2149, %v1898
      %v2183 = vsel %vm2175, %v2150, %v1900
      %v2184 = vsel %vm2175, %v2151, %v1902
      %v2185 = vsel %vm2175, %v2152, %v1904
      %v2186 = vsel %vm2175, %v2153, %v1906
      %v2187 = vsel %vm2175, %v2154, %v1908
      %v2188 = vsel %vm2175, %v2155, %v1910
      %v2189 = vsel %vm2175, %v2156, %v1912
      %v2190 = vsel %vm2175, %v2157, %v1914
      %v2191 = vsel %vm2175, %v2158, %v1916
      %v2192 = vsel %vm2175, %v2159, %v1918
      %v2193 = vsel %vm2175, %v2160, %v1920
      %v2194 = vsel %vm2175, %v2161, %v1922
      %v2195 = vsel %vm2175, %v2162, %v1924
      %v2196 = vsel %vm2175, %v2163, %v1926
      %v2197 = vsel %vm2175, %v2164, %v1928
      %v2198 = vsel %vm2175, %v2165, %v1930
      %v2199 = vsel %vm2175, %v2166, %v1932
      %v2200 = vsel %vm2175, %v2167, %v1934
      %v2201 = vsel %vm2175, %v2168, %v1936
      %v2202 = vsel %vm2175, %v2169, %v1938
      %v2203 = vsel %vm2175, %v2170, %v1940
      %v2204 = vsel %vm2175, %v2171, %v1942
      %v2205 = vsel %vm2175, %v2172, %v1944
      %v2206 = vsel %vm2175, %v2173, %v1946
      %v2207 = vsel %vm2175, %v2174, %v1948
      %vm2208 = vcmask 523264
      %v2209 = vsel %vm2208, %v2176, %v2014
      %v2210 = vsel %vm2208, %v2177, %v2016
      %v2211 = vsel %vm2208, %v2178, %v2018
      %v2212 = vsel %vm2208, %v2179, %v2020
      %v2213 = vsel %vm2208, %v2180, %v2022
      %v2214 = vsel %vm2208, %v2181, %v2024
      %v2215 = vsel %vm2208, %v2182, %v2026
      %v2216 = vsel %vm2208, %v2183, %v2028
      %v2217 = vsel %vm2208, %v2184, %v2030
      %v2218 = vsel %vm2208, %v2185, %v2032
      %v2219 = vsel %vm2208, %v2186, %v2034
      %v2220 = vsel %vm2208, %v2187, %v2036
      %v2221 = vsel %vm2208, %v2188, %v2038
      %v2222 = vsel %vm2208, %v2189, %v2040
      %v2223 = vsel %vm2208, %v2190, %v2042
      %v2224 = vsel %vm2208, %v2191, %v2044
      %v2225 = vsel %vm2208, %v2192, %v2046
      %v2226 = vsel %vm2208, %v2193, %v2048
      %v2227 = vsel %vm2208, %v2194, %v2050
      %v2228 = vsel %vm2208, %v2195, %v2052
      %v2229 = vsel %vm2208, %v2196, %v2054
      %v2230 = vsel %vm2208, %v2197, %v2056
      %v2231 = vsel %vm2208, %v2198, %v2058
      %v2232 = vsel %vm2208, %v2199, %v2060
      %v2233 = vsel %vm2208, %v2200, %v2062
      %v2234 = vsel %vm2208, %v2201, %v2064
      %v2235 = vsel %vm2208, %v2202, %v2066
      %v2236 = vsel %vm2208, %v2203, %v2068
      %v2237 = vsel %vm2208, %v2204, %v2070
      %v2238 = vsel %vm2208, %v2205, %v2072
      %v2239 = vsel %vm2208, %v2206, %v2074
      %v2240 = vsel %vm2208, %v2207, %v2076
      %vm2241 = vcmask 654336
      %v2243 = vsel %vm2241, %v2209, 0
      %v2246 = vsel %vm2241, %v2210, 0
      %v2249 = vsel %vm2241, %v2211, 0
      %v2252 = vsel %vm2241, %v2212, 0
      %v2255 = vsel %vm2241, %v2213, 0
      %v2258 = vsel %vm2241, %v2214, 0
      %v2261 = vsel %vm2241, %v2215, 0
      %v2264 = vsel %vm2241, %v2216, 0
      %v2267 = vsel %vm2241, %v2217, 0
      %v2270 = vsel %vm2241, %v2218, 0
      %v2273 = vsel %vm2241, %v2219, 0
      %v2276 = vsel %vm2241, %v2220, 0
      %v2279 = vsel %vm2241, %v2221, 0
      %v2282 = vsel %vm2241, %v2222, 0
      %v2285 = vsel %vm2241, %v2223, 0
      %v2288 = vsel %vm2241, %v2224, 0
      %v2291 = vsel %vm2241, %v2225, 0
      %v2294 = vsel %vm2241, %v2226, 0
      %v2297 = vsel %vm2241, %v2227, 0
      %v2300 = vsel %vm2241, %v2228, 0
      %v2303 = vsel %vm2241, %v2229, 0
      %v2306 = vsel %vm2241, %v2230, 0
      %v2309 = vsel %vm2241, %v2231, 0
      %v2312 = vsel %vm2241, %v2232, 0
      %v2315 = vsel %vm2241, %v2233, 0
      %v2318 = vsel %vm2241, %v2234, 0
      %v2321 = vsel %vm2241, %v2235, 0
      %v2324 = vsel %vm2241, %v2236, 0
      %v2327 = vsel %vm2241, %v2237, 0
      %v2330 = vsel %vm2241, %v2238, 0
      %v2333 = vsel %vm2241, %v2239, 0
      %v2336 = vsel %vm2241, %v2240, 0
      %2338 = vmatprep.subr.mxu0 0.0
      %2339 = vmatpush1.msra.mxu0 %v943
      %2340 = vmatprep.subr.mxu0 0.0
      %2341 = vmatpush1.msra.mxu0 %v944
      %2342 = vmatprep.subr.mxu0 0.0
      %2343 = vmatpush1.msra.mxu0 %v945
      %2344 = vmatprep.subr.mxu0 0.0
      %2345 = vmatpush1.msra.mxu0 %v946
      %2346 = vmatprep.subr.mxu0 0.0
      %2347 = vmatpush1.msra.mxu0 %v947
      %2348 = vmatprep.subr.mxu0 0.0
      %2349 = vmatpush1.msra.mxu0 %v948
      %2350 = vmatprep.subr.mxu0 0.0
      %2351 = vmatpush1.msra.mxu0 %v949
      %2352 = vmatprep.subr.mxu0 0.0
      %2353 = vmatpush1.msra.mxu0 %v950
      %2354 = vmatprep.subr.mxu0 0.0
      %2355 = vmatpush1.msra.mxu0 %v951
      %2356 = vmatprep.subr.mxu0 0.0
      %2357 = vmatpush1.msra.mxu0 %v952
      %2358 = vmatprep.subr.mxu0 0.0
      %2359 = vmatpush1.msra.mxu0 0.0
      %2360 = vmatprep.subr.mxu0 0.0
      %2361 = vmatpush1.msra.mxu0 0.0
      %2362 = vmatprep.subr.mxu0 0.0
      %2363 = vmatpush1.msra.mxu0 0.0
      %2364 = vmatprep.subr.mxu0 0.0
      %2365 = vmatpush1.msra.mxu0 0.0
      %2366 = vmatprep.subr.mxu0 0.0
      %2367 = vmatpush1.msra.mxu0 0.0
      %2368 = vmatprep.subr.mxu0 0.0
      %2369 = vmatpush1.msra.mxu0 0.0
      %2370 = vmatprep.subr.mxu0 0.0
      %2371 = vmatpush1.msra.mxu0 0.0
      %2372 = vmatprep.subr.mxu0 0.0
      %2373 = vmatpush1.msra.mxu0 0.0
      %2374 = vmatprep.subr.mxu0 0.0
      %2375 = vmatpush1.msra.mxu0 0.0
      %2376 = vmatprep.subr.mxu0 0.0
      %2377 = vmatpush1.msra.mxu0 0.0
      %2378 = vmatprep.subr.mxu0 0.0
      %2379 = vmatpush1.msra.mxu0 0.0
      %2380 = vmatprep.subr.mxu0 0.0
      %2381 = vmatpush1.msra.mxu0 0.0
      %2382 = vmatprep.subr.mxu0 0.0
      %2383 = vmatpush1.msra.mxu0 0.0
      %2384 = vmatprep.subr.mxu0 0.0
      %2385 = vmatpush1.msra.mxu0 0.0
      %2386 = vmatprep.subr.mxu0 0.0
      %2387 = vmatpush1.msra.mxu0 0.0
      %2388 = vmatprep.subr.mxu0 0.0
      %2389 = vmatpush1.msra.mxu0 0.0
      %2390 = vmatprep.subr.mxu0 0.0
      %2391 = vmatpush1.msra.mxu0 0.0
      %2392 = vmatprep.subr.mxu0 0.0
      %2393 = vmatpush1.msra.mxu0 0.0
      %2394 = vmatprep.subr.mxu0 0.0
      %2395 = vmatpush1.msra.mxu0 0.0
      %2396 = vmatprep.subr.mxu0 0.0
      %2397 = vmatpush1.msra.mxu0 0.0
      %2398 = vmatprep.subr.mxu0 0.0
      %2399 = vmatpush1.msra.mxu0 0.0
      %2400 = vmatprep.subr.mxu0 0.0
      %2401 = vmatpush1.msra.mxu0 0.0
      %2402 = vmatprep.mubr.f32.mxu0 0.0
      %2403 = vmatmul.mubr.f32.gmra.mrb[0].mxu0 %v2243
      %v2404 = vpop.f32.mrb[0].mxu0
      %v2405 = vadd.f32 0.0, %v2404
      %v2406 = vpop.f32.mrb[0].mxu0
      %2407 = vmatprep.mubr.f32.mxu0 0.0
      %2408 = vmatmul.mubr.f32.gmra.mrb[0].mxu0 %v2246
      %v2409 = vpop.f32.mrb[0].mxu0
      %v2410 = vadd.f32 0.0, %v2409
      %v2411 = vpop.f32.mrb[0].mxu0
      %2412 = vmatprep.mubr.f32.mxu0 0.0
      %2413 = vmatmul.mubr.f32.gmra.mrb[0].mxu0 %v2249
      %v2414 = vpop.f32.mrb[0].mxu0
      %v2415 = vadd.f32 0.0, %v2414
      %v2416 = vpop.f32.mrb[0].mxu0
      %2417 = vmatprep.mubr.f32.mxu0 0.0
      %2418 = vmatmul.mubr.f32.gmra.mrb[0].mxu0 %v2252
      %v2419 = vpop.f32.mrb[0].mxu0
      %v2420 = vadd.f32 0.0, %v2419
      %v2421 = vpop.f32.mrb[0].mxu0
      %2422 = vmatprep.mubr.f32.mxu0 0.0
      %2423 = vmatmul.mubr.f32.gmra.mrb[0].mxu0 %v2255
      %v2424 = vpop.f32.mrb[0].mxu0
      %v2425 = vadd.f32 0.0, %v2424
      %v2426 = vpop.f32.mrb[0].mxu0
      %2427 = vmatprep.mubr.f32.mxu0 0.0
      %2428 = vmatmul.mubr.f32.gmra.mrb[0].mxu0 %v2258
      %v2429 = vpop.f32.mrb[0].mxu0
      %v2430 = vadd.f32 0.0, %v2429
      %v2431 = vpop.f32.mrb[0].mxu0
      %2432 = vmatprep.mubr.f32.mxu0 0.0
      %2433 = vmatmul.mubr.f32.gmra.mrb[0].mxu0 %v2261
      %v2434 = vpop.f32.mrb[0].mxu0
      %v2435 = vadd.f32 0.0, %v2434
      %v2436 = vpop.f32.mrb[0].mxu0
      %2437 = vmatprep.mubr.f32.mxu0 0.0
      %2438 = vmatmul.mubr.f32.gmra.mrb[0].mxu0 %v2264
      %v2439 = vpop.f32.mrb[0].mxu0
      %v2440 = vadd.f32 0.0, %v2439
      %v2441 = vpop.f32.mrb[0].mxu0
      %2442 = vmatprep.mubr.f32.mxu0 0.0
      %2443 = vmatmul.mubr.f32.gmra.mrb[0].mxu0 %v2267
      %v2444 = vpop.f32.mrb[0].mxu0
      %v2445 = vadd.f32 0.0, %v2444
      %v2446 = vpop.f32.mrb[0].mxu0
      %2447 = vmatprep.mubr.f32.mxu0 0.0
      %2448 = vmatmul.mubr.f32.gmra.mrb[0].mxu0 %v2270
      %v2449 = vpop.f32.mrb[0].mxu0
      %v2450 = vadd.f32 0.0, %v2449
      %v2451 = vpop.f32.mrb[0].mxu0
      %2452 = vmatprep.mubr.f32.mxu0 0.0
      %2453 = vmatmul.mubr.f32.gmra.mrb[0].mxu0 %v2273
      %v2454 = vpop.f32.mrb[0].mxu0
      %v2455 = vadd.f32 0.0, %v2454
      %v2456 = vpop.f32.mrb[0].mxu0
      %2457 = vmatprep.mubr.f32.mxu0 0.0
      %2458 = vmatmul.mubr.f32.gmra.mrb[0].mxu0 %v2276
      %v2459 = vpop.f32.mrb[0].mxu0
      %v2460 = vadd.f32 0.0, %v2459
      %v2461 = vpop.f32.mrb[0].mxu0
      %2462 = vmatprep.mubr.f32.mxu0 0.0
      %2463 = vmatmul.mubr.f32.gmra.mrb[0].mxu0 %v2279
      %v2464 = vpop.f32.mrb[0].mxu0
      %v2465 = vadd.f32 0.0, %v2464
      %v2466 = vpop.f32.mrb[0].mxu0
      %2467 = vmatprep.mubr.f32.mxu0 0.0
      %2468 = vmatmul.mubr.f32.gmra.mrb[0].mxu0 %v2282
      %v2469 = vpop.f32.mrb[0].mxu0
      %v2470 = vadd.f32 0.0, %v2469
      %v2471 = vpop.f32.mrb[0].mxu0
      %2472 = vmatprep.mubr.f32.mxu0 0.0
      %2473 = vmatmul.mubr.f32.gmra.mrb[0].mxu0 %v2285
      %v2474 = vpop.f32.mrb[0].mxu0
      %v2475 = vadd.f32 0.0, %v2474
      %v2476 = vpop.f32.mrb[0].mxu0
      %2477 = vmatprep.mubr.f32.mxu0 0.0
      %2478 = vmatmul.mubr.f32.gmra.mrb[0].mxu0 %v2288
      %v2479 = vpop.f32.mrb[0].mxu0
      %v2480 = vadd.f32 0.0, %v2479
      %v2481 = vpop.f32.mrb[0].mxu0
      %2482 = vmatprep.mubr.f32.mxu0 0.0
      %2483 = vmatmul.mubr.f32.gmra.mrb[0].mxu0 %v2291
      %v2484 = vpop.f32.mrb[0].mxu0
      %v2485 = vadd.f32 0.0, %v2484
      %v2486 = vpop.f32.mrb[0].mxu0
      %2487 = vmatprep.mubr.f32.mxu0 0.0
      %2488 = vmatmul.mubr.f32.gmra.mrb[0].mxu0 %v2294
      %v2489 = vpop.f32.mrb[0].mxu0
      %v2490 = vadd.f32 0.0, %v2489
      %v2491 = vpop.f32.mrb[0].mxu0
      %2492 = vmatprep.mubr.f32.mxu0 0.0
      %2493 = vmatmul.mubr.f32.gmra.mrb[0].mxu0 %v2297
      %v2494 = vpop.f32.mrb[0].mxu0
      %v2495 = vadd.f32 0.0, %v2494
      %v2496 = vpop.f32.mrb[0].mxu0
      %2497 = vmatprep.mubr.f32.mxu0 0.0
      %2498 = vmatmul.mubr.f32.gmra.mrb[0].mxu0 %v2300
      %v2499 = vpop.f32.mrb[0].mxu0
      %v2500 = vadd.f32 0.0, %v2499
      %v2501 = vpop.f32.mrb[0].mxu0
      %2502 = vmatprep.mubr.f32.mxu0 0.0
      %2503 = vmatmul.mubr.f32.gmra.mrb[0].mxu0 %v2303
      %v2504 = vpop.f32.mrb[0].mxu0
      %v2505 = vadd.f32 0.0, %v2504
      %v2506 = vpop.f32.mrb[0].mxu0
      %2507 = vmatprep.mubr.f32.mxu0 0.0
      %2508 = vmatmul.mubr.f32.gmra.mrb[0].mxu0 %v2306
      %v2509 = vpop.f32.mrb[0].mxu0
      %v2510 = vadd.f32 0.0, %v2509
      %v2511 = vpop.f32.mrb[0].mxu0
      %2512 = vmatprep.mubr.f32.mxu0 0.0
      %2513 = vmatmul.mubr.f32.gmra.mrb[0].mxu0 %v2309
      %v2514 = vpop.f32.mrb[0].mxu0
      %v2515 = vadd.f32 0.0, %v2514
      %v2516 = vpop.f32.mrb[0].mxu0
      %2517 = vmatprep.mubr.f32.mxu0 0.0
      %2518 = vmatmul.mubr.f32.gmra.mrb[0].mxu0 %v2312
      %v2519 = vpop.f32.mrb[0].mxu0
      %v2520 = vadd.f32 0.0, %v2519
      %v2521 = vpop.f32.mrb[0].mxu0
      %2522 = vmatprep.mubr.f32.mxu0 0.0
      %2523 = vmatmul.mubr.f32.gmra.mrb[0].mxu0 %v2315
      %v2524 = vpop.f32.mrb[0].mxu0
      %v2525 = vadd.f32 0.0, %v2524
      %v2526 = vpop.f32.mrb[0].mxu0
      %2527 = vmatprep.mubr.f32.mxu0 0.0
      %2528 = vmatmul.mubr.f32.gmra.mrb[0].mxu0 %v2318
      %v2529 = vpop.f32.mrb[0].mxu0
      %v2530 = vadd.f32 0.0, %v2529
      %v2531 = vpop.f32.mrb[0].mxu0
      %2532 = vmatprep.mubr.f32.mxu0 0.0
      %2533 = vmatmul.mubr.f32.gmra.mrb[0].mxu0 %v2321
      %v2534 = vpop.f32.mrb[0].mxu0
      %v2535 = vadd.f32 0.0, %v2534
      %v2536 = vpop.f32.mrb[0].mxu0
      %2537 = vmatprep.mubr.f32.mxu0 0.0
      %2538 = vmatmul.mubr.f32.gmra.mrb[0].mxu0 %v2324
      %v2539 = vpop.f32.mrb[0].mxu0
      %v2540 = vadd.f32 0.0, %v2539
      %v2541 = vpop.f32.mrb[0].mxu0
      %2542 = vmatprep.mubr.f32.mxu0 0.0
      %2543 = vmatmul.mubr.f32.gmra.mrb[0].mxu0 %v2327
      %v2544 = vpop.f32.mrb[0].mxu0
      %v2545 = vadd.f32 0.0, %v2544
      %v2546 = vpop.f32.mrb[0].mxu0
      %2547 = vmatprep.mubr.f32.mxu0 0.0
      %2548 = vmatmul.mubr.f32.gmra.mrb[0].mxu0 %v2330
      %v2549 = vpop.f32.mrb[0].mxu0
      %v2550 = vadd.f32 0.0, %v2549
      %v2551 = vpop.f32.mrb[0].mxu0
      %2552 = vmatprep.mubr.f32.mxu0 0.0
      %2553 = vmatmul.mubr.f32.gmra.mrb[0].mxu0 %v2333
      %v2554 = vpop.f32.mrb[0].mxu0
      %v2555 = vadd.f32 0.0, %v2554
      %v2556 = vpop.f32.mrb[0].mxu0
      %2557 = vmatprep.mubr.f32.mxu0 0.0
      %2558 = vmatmul.mubr.f32.gmra.mrb[0].mxu0 %v2336
      %v2559 = vpop.f32.mrb[0].mxu0
      %v2560 = vadd.f32 0.0, %v2559
      %v2561 = vpop.f32.mrb[0].mxu0
      %2562 = vdwg.mxu0
      %v2563 = vxor.u32 %v2405, 2147483648
      %v2564 = vxor.u32 %v2410, 2147483648
      %v2565 = vxor.u32 %v2415, 2147483648
      %v2566 = vxor.u32 %v2420, 2147483648
      %v2567 = vxor.u32 %v2425, 2147483648
      %v2568 = vxor.u32 %v2430, 2147483648
      %v2569 = vxor.u32 %v2435, 2147483648
      %v2570 = vxor.u32 %v2440, 2147483648
      %v2571 = vxor.u32 %v2445, 2147483648
      %v2572 = vxor.u32 %v2450, 2147483648
      %v2573 = vxor.u32 %v2455, 2147483648
      %v2574 = vxor.u32 %v2460, 2147483648
      %v2575 = vxor.u32 %v2465, 2147483648
      %v2576 = vxor.u32 %v2470, 2147483648
      %v2577 = vxor.u32 %v2475, 2147483648
      %v2578 = vxor.u32 %v2480, 2147483648
      %v2579 = vxor.u32 %v2485, 2147483648
      %v2580 = vxor.u32 %v2490, 2147483648
      %v2581 = vxor.u32 %v2495, 2147483648
      %v2582 = vxor.u32 %v2500, 2147483648
      %v2583 = vxor.u32 %v2505, 2147483648
      %v2584 = vxor.u32 %v2510, 2147483648
      %v2585 = vxor.u32 %v2515, 2147483648
      %v2586 = vxor.u32 %v2520, 2147483648
      %v2587 = vxor.u32 %v2525, 2147483648
      %v2588 = vxor.u32 %v2530, 2147483648
      %v2589 = vxor.u32 %v2535, 2147483648
      %v2590 = vxor.u32 %v2540, 2147483648
      %v2591 = vxor.u32 %v2545, 2147483648
      %v2592 = vxor.u32 %v2550, 2147483648
      %v2593 = vxor.u32 %v2555, 2147483648
      %v2594 = vxor.u32 %v2560, 2147483648
      %v2595 = vmul.f32 %v2563, 1.442695
      %v2596 = vpow.pop %v2595
      %v2597 = vmul.f32 %v2564, 1.442695
      %v2598 = vpow.pop %v2597
      %v2599 = vmul.f32 %v2565, 1.442695
      %v2600 = vpow.pop %v2599
      %v2601 = vmul.f32 %v2566, 1.442695
      %v2602 = vpow.pop %v2601
      %v2603 = vmul.f32 %v2567, 1.442695
      %v2604 = vpow.pop %v2603
      %v2605 = vmul.f32 %v2568, 1.442695
      %v2606 = vpow.pop %v2605
      %v2607 = vmul.f32 %v2569, 1.442695
      %v2608 = vpow.pop %v2607
      %v2609 = vmul.f32 %v2570, 1.442695
      %v2610 = vpow.pop %v2609
      %v2611 = vmul.f32 %v2571, 1.442695
      %v2612 = vpow.pop %v2611
      %v2613 = vmul.f32 %v2572, 1.442695
      %v2614 = vpow.pop %v2613
      %v2615 = vmul.f32 %v2573, 1.442695
      %v2616 = vpow.pop %v2615
      %v2617 = vmul.f32 %v2574, 1.442695
      %v2618 = vpow.pop %v2617
      %v2619 = vmul.f32 %v2575, 1.442695
      %v2620 = vpow.pop %v2619
      %v2621 = vmul.f32 %v2576, 1.442695
      %v2622 = vpow.pop %v2621
      %v2623 = vmul.f32 %v2577, 1.442695
      %v2624 = vpow.pop %v2623
      %v2625 = vmul.f32 %v2578, 1.442695
      %v2626 = vpow.pop %v2625
      %v2627 = vmul.f32 %v2579, 1.442695
      %v2628 = vpow.pop %v2627
      %v2629 = vmul.f32 %v2580, 1.442695
      %v2630 = vpow.pop %v2629
      %v2631 = vmul.f32 %v2581, 1.442695
      %v2632 = vpow.pop %v2631
      %v2633 = vmul.f32 %v2582, 1.442695
      %v2634 = vpow.pop %v2633
      %v2635 = vmul.f32 %v2583, 1.442695
      %v2636 = vpow.pop %v2635
      %v2637 = vmul.f32 %v2584, 1.442695
      %v2638 = vpow.pop %v2637
      %v2639 = vmul.f32 %v2585, 1.442695
      %v2640 = vpow.pop %v2639
      %v2641 = vmul.f32 %v2586, 1.442695
      %v2642 = vpow.pop %v2641
      %v2643 = vmul.f32 %v2587, 1.442695
      %v2644 = vpow.pop %v2643
      %v2645 = vmul.f32 %v2588, 1.442695
      %v2646 = vpow.pop %v2645
      %v2647 = vmul.f32 %v2589, 1.442695
      %v2648 = vpow.pop %v2647
      %v2649 = vmul.f32 %v2590, 1.442695
      %v2650 = vpow.pop %v2649
      %v2651 = vmul.f32 %v2591, 1.442695
      %v2652 = vpow.pop %v2651
      %v2653 = vmul.f32 %v2592, 1.442695
      %v2654 = vpow.pop %v2653
      %v2655 = vmul.f32 %v2593, 1.442695
      %v2656 = vpow.pop %v2655
      %v2657 = vmul.f32 %v2594, 1.442695
      %v2658 = vpow.pop %v2657
      %v2659 = vadd.f32 %v2596, 1.0
      %v2660 = vadd.f32 %v2598, 1.0
      %v2661 = vadd.f32 %v2600, 1.0
      %v2662 = vadd.f32 %v2602, 1.0
      %v2663 = vadd.f32 %v2604, 1.0
      %v2664 = vadd.f32 %v2606, 1.0
      %v2665 = vadd.f32 %v2608, 1.0
      %v2666 = vadd.f32 %v2610, 1.0
      %v2667 = vadd.f32 %v2612, 1.0
      %v2668 = vadd.f32 %v2614, 1.0
      %v2669 = vadd.f32 %v2616, 1.0
      %v2670 = vadd.f32 %v2618, 1.0
      %v2671 = vadd.f32 %v2620, 1.0
      %v2672 = vadd.f32 %v2622, 1.0
      %v2673 = vadd.f32 %v2624, 1.0
      %v2674 = vadd.f32 %v2626, 1.0
      %v2675 = vadd.f32 %v2628, 1.0
      %v2676 = vadd.f32 %v2630, 1.0
      %v2677 = vadd.f32 %v2632, 1.0
      %v2678 = vadd.f32 %v2634, 1.0
      %v2679 = vadd.f32 %v2636, 1.0
      %v2680 = vadd.f32 %v2638, 1.0
      %v2681 = vadd.f32 %v2640, 1.0
      %v2682 = vadd.f32 %v2642, 1.0
      %v2683 = vadd.f32 %v2644, 1.0
      %v2684 = vadd.f32 %v2646, 1.0
      %v2685 = vadd.f32 %v2648, 1.0
      %v2686 = vadd.f32 %v2650, 1.0
      %v2687 = vadd.f32 %v2652, 1.0
      %v2688 = vadd.f32 %v2654, 1.0
      %v2689 = vadd.f32 %v2656, 1.0
      %v2690 = vadd.f32 %v2658, 1.0
      %v2691 = vrcp.pop %v2659
      %v2692 = vmul.f32 1.0, %v2691
      %v2693 = vrcp.pop %v2660
      %v2694 = vmul.f32 1.0, %v2693
      %v2695 = vrcp.pop %v2661
      %v2696 = vmul.f32 1.0, %v2695
      %v2697 = vrcp.pop %v2662
      %v2698 = vmul.f32 1.0, %v2697
      %v2699 = vrcp.pop %v2663
      %v2700 = vmul.f32 1.0, %v2699
      %v2701 = vrcp.pop %v2664
      %v2702 = vmul.f32 1.0, %v2701
      %v2703 = vrcp.pop %v2665
      %v2704 = vmul.f32 1.0, %v2703
      %v2705 = vrcp.pop %v2666
      %v2706 = vmul.f32 1.0, %v2705
      %v2707 = vrcp.pop %v2667
      %v2708 = vmul.f32 1.0, %v2707
      %v2709 = vrcp.pop %v2668
      %v2710 = vmul.f32 1.0, %v2709
      %v2711 = vrcp.pop %v2669
      %v2712 = vmul.f32 1.0, %v2711
      %v2713 = vrcp.pop %v2670
      %v2714 = vmul.f32 1.0, %v2713
      %v2715 = vrcp.pop %v2671
      %v2716 = vmul.f32 1.0, %v2715
      %v2717 = vrcp.pop %v2672
      %v2718 = vmul.f32 1.0, %v2717
      %v2719 = vrcp.pop %v2673
      %v2720 = vmul.f32 1.0, %v2719
      %v2721 = vrcp.pop %v2674
      %v2722 = vmul.f32 1.0, %v2721
      %v2723 = vrcp.pop %v2675
      %v2724 = vmul.f32 1.0, %v2723
      %v2725 = vrcp.pop %v2676
      %v2726 = vmul.f32 1.0, %v2725
      %v2727 = vrcp.pop %v2677
      %v2728 = vmul.f32 1.0, %v2727
      %v2729 = vrcp.pop %v2678
      %v2730 = vmul.f32 1.0, %v2729
      %v2731 = vrcp.pop %v2679
      %v2732 = vmul.f32 1.0, %v2731
      %v2733 = vrcp.pop %v2680
      %v2734 = vmul.f32 1.0, %v2733
      %v2735 = vrcp.pop %v2681
      %v2736 = vmul.f32 1.0, %v2735
      %v2737 = vrcp.pop %v2682
      %v2738 = vmul.f32 1.0, %v2737
      %v2739 = vrcp.pop %v2683
      %v2740 = vmul.f32 1.0, %v2739
      %v2741 = vrcp.pop %v2684
      %v2742 = vmul.f32 1.0, %v2741
      %v2743 = vrcp.pop %v2685
      %v2744 = vmul.f32 1.0, %v2743
      %v2745 = vrcp.pop %v2686
      %v2746 = vmul.f32 1.0, %v2745
      %v2747 = vrcp.pop %v2687
      %v2748 = vmul.f32 1.0, %v2747
      %v2749 = vrcp.pop %v2688
      %v2750 = vmul.f32 1.0, %v2749
      %v2751 = vrcp.pop %v2689
      %v2752 = vmul.f32 1.0, %v2751
      %v2753 = vrcp.pop %v2690
      %v2754 = vmul.f32 1.0, %v2753
      %v2755 = vmul.f32 %v2405, %v2692
      %v2756 = vmul.f32 %v2410, %v2694
      %v2757 = vmul.f32 %v2415, %v2696
      %v2758 = vmul.f32 %v2420, %v2698
      %v2759 = vmul.f32 %v2425, %v2700
      %v2760 = vmul.f32 %v2430, %v2702
      %v2761 = vmul.f32 %v2435, %v2704
      %v2762 = vmul.f32 %v2440, %v2706
      %v2763 = vmul.f32 %v2445, %v2708
      %v2764 = vmul.f32 %v2450, %v2710
      %v2765 = vmul.f32 %v2455, %v2712
      %v2766 = vmul.f32 %v2460, %v2714
      %v2767 = vmul.f32 %v2465, %v2716
      %v2768 = vmul.f32 %v2470, %v2718
      %v2769 = vmul.f32 %v2475, %v2720
      %v2770 = vmul.f32 %v2480, %v2722
      %v2771 = vmul.f32 %v2485, %v2724
      %v2772 = vmul.f32 %v2490, %v2726
      %v2773 = vmul.f32 %v2495, %v2728
      %v2774 = vmul.f32 %v2500, %v2730
      %v2775 = vmul.f32 %v2505, %v2732
      %v2776 = vmul.f32 %v2510, %v2734
      %v2777 = vmul.f32 %v2515, %v2736
      %v2778 = vmul.f32 %v2520, %v2738
      %v2779 = vmul.f32 %v2525, %v2740
      %v2780 = vmul.f32 %v2530, %v2742
      %v2781 = vmul.f32 %v2535, %v2744
      %v2782 = vmul.f32 %v2540, %v2746
      %v2783 = vmul.f32 %v2545, %v2748
      %v2784 = vmul.f32 %v2550, %v2750
      %v2785 = vmul.f32 %v2555, %v2752
      %v2786 = vmul.f32 %v2560, %v2754
      %v2787 = vld [vmem:[%s2] sm:$0xff]
      %v2788 = vld [vmem:[%s2 + $0x8] sm:$0xff]
      %v2789 = vld [vmem:[%s2 + $0x10] sm:$0xff]
      %v2790 = vld [vmem:[%s2 + $0x18] sm:$0xff]
      %v2791 = vld [vmem:[%s2 + $0x20] sm:$0xff]
      %v2792 = vrot.slane %v2755, 6
      %v2793 = vrot.slane %v2756, 6
      %v2794 = vrot.slane %v2757, 6
      %v2795 = vrot.slane %v2758, 6
      %v2796 = vrot.slane %v2759, 6
      %v2797 = vrot.slane %v2760, 6
      %v2798 = vrot.slane %v2761, 6
      %v2799 = vrot.slane %v2762, 6
      %v2800 = vrot.slane %v2763, 6
      %v2801 = vrot.slane %v2764, 6
      %v2802 = vrot.slane %v2765, 6
      %v2803 = vrot.slane %v2766, 6
      %v2804 = vrot.slane %v2767, 6
      %v2805 = vrot.slane %v2768, 6
      %v2806 = vrot.slane %v2769, 6
      %v2807 = vrot.slane %v2770, 6
      %v2808 = vrot.slane %v2771, 6
      %v2809 = vrot.slane %v2772, 6
      %v2810 = vrot.slane %v2773, 6
      %v2811 = vrot.slane %v2774, 6
      %v2812 = vrot.slane %v2775, 6
      %v2813 = vrot.slane %v2776, 6
      %v2814 = vrot.slane %v2777, 6
      %v2815 = vrot.slane %v2778, 6
      %v2816 = vrot.slane %v2779, 6
      %v2817 = vrot.slane %v2780, 6
      %v2818 = vrot.slane %v2781, 6
      %v2819 = vrot.slane %v2782, 6
      %v2820 = vrot.slane %v2783, 6
      %v2821 = vrot.slane %v2784, 6
      %v2822 = vrot.slane %v2785, 6
      %v2823 = vrot.slane %v2786, 6
      %v2824 = vsel %vm985, %v2822, %v2823
      %v2825 = vsel %vm985, %v2821, %v2822
      %v2826 = vsel %vm985, %v2820, %v2821
      %v2827 = vsel %vm985, %v2819, %v2820
      %v2828 = vsel %vm985, %v2818, %v2819
      %v2829 = vsel %vm985, %v2817, %v2818
      %v2830 = vsel %vm985, %v2816, %v2817
      %v2831 = vsel %vm985, %v2815, %v2816
      %v2832 = vsel %vm985, %v2814, %v2815
      %v2833 = vsel %vm985, %v2813, %v2814
      %v2834 = vsel %vm985, %v2812, %v2813
      %v2835 = vsel %vm985, %v2811, %v2812
      %v2836 = vsel %vm985, %v2810, %v2811
      %v2837 = vsel %vm985, %v2809, %v2810
      %v2838 = vsel %vm985, %v2808, %v2809
      %v2839 = vsel %vm985, %v2807, %v2808
      %v2840 = vsel %vm985, %v2806, %v2807
      %v2841 = vsel %vm985, %v2805, %v2806
      %v2842 = vsel %vm985, %v2804, %v2805
      %v2843 = vsel %vm985, %v2803, %v2804
      %v2844 = vsel %vm985, %v2802, %v2803
      %v2845 = vsel %vm985, %v2801, %v2802
      %v2846 = vsel %vm985, %v2800, %v2801
      %v2847 = vsel %vm985, %v2799, %v2800
      %v2848 = vsel %vm985, %v2798, %v2799
      %v2849 = vsel %vm985, %v2797, %v2798
      %v2850 = vsel %vm985, %v2796, %v2797
      %v2851 = vsel %vm985, %v2795, %v2796
      %v2852 = vsel %vm985, %v2794, %v2795
      %v2853 = vsel %vm985, %v2793, %v2794
      %v2854 = vsel %vm985, %v2792, %v2793
      %v2855 = vsel %vm985, %v2823, %v2792
      %v2856 = vsel %vm1050, %v2855, 0.0
      %v2857 = vsel %vm1051, %v2854, 0.0
      %v2858 = vsel %vm1052, %v2853, 0.0
      %v2859 = vsel %vm1053, %v2852, 0.0
      %v2860 = vsel %vm1054, %v2851, 0.0
      %v2861 = vsel %vm1055, %v2850, 0.0
      %v2862 = vsel %vm1056, %v2849, 0.0
      %v2863 = vsel %vm1057, %v2848, 0.0
      %v2864 = vsel %vm1058, %v2847, 0.0
      %v2865 = vsel %vm1059, %v2846, 0.0
      %v2866 = vsel %vm1060, %v2845, 0.0
      %v2867 = vsel %vm1061, %v2844, 0.0
      %v2868 = vsel %vm1062, %v2843, 0.0
      %v2869 = vsel %vm1063, %v2842, 0.0
      %v2870 = vsel %vm1064, %v2841, 0.0
      %v2871 = vsel %vm1065, %v2840, 0.0
      %v2872 = vsel %vm1066, %v2839, 0.0
      %v2873 = vsel %vm1067, %v2838, 0.0
      %v2874 = vsel %vm1068, %v2837, 0.0
      %v2875 = vsel %vm1069, %v2836, 0.0
      %v2876 = vsel %vm1070, %v2835, 0.0
      %v2877 = vsel %vm1071, %v2834, 0.0
      %v2878 = vsel %vm1072, %v2833, 0.0
      %v2879 = vsel %vm1073, %v2832, 0.0
      %v2880 = vsel %vm1074, %v2831, 0.0
      %v2881 = vsel %vm1075, %v2830, 0.0
      %v2882 = vsel %vm1076, %v2829, 0.0
      %v2883 = vsel %vm1077, %v2828, 0.0
      %v2884 = vsel %vm1078, %v2827, 0.0
      %v2885 = vsel %vm1079, %v2826, 0.0
      %v2886 = vsel %vm1080, %v2825, 0.0
      %v2887 = vsel %vm1081, %v2824, 0.0
      %v2888 = vrot.slane %v2755, 7
      %v2889 = vrot.slane %v2756, 7
      %v2890 = vrot.slane %v2757, 7
      %v2891 = vrot.slane %v2758, 7
      %v2892 = vrot.slane %v2759, 7
      %v2893 = vrot.slane %v2760, 7
      %v2894 = vrot.slane %v2761, 7
      %v2895 = vrot.slane %v2762, 7
      %v2896 = vrot.slane %v2763, 7
      %v2897 = vrot.slane %v2764, 7
      %v2898 = vrot.slane %v2765, 7
      %v2899 = vrot.slane %v2766, 7
      %v2900 = vrot.slane %v2767, 7
      %v2901 = vrot.slane %v2768, 7
      %v2902 = vrot.slane %v2769, 7
      %v2903 = vrot.slane %v2770, 7
      %v2904 = vrot.slane %v2771, 7
      %v2905 = vrot.slane %v2772, 7
      %v2906 = vrot.slane %v2773, 7
      %v2907 = vrot.slane %v2774, 7
      %v2908 = vrot.slane %v2775, 7
      %v2909 = vrot.slane %v2776, 7
      %v2910 = vrot.slane %v2777, 7
      %v2911 = vrot.slane %v2778, 7
      %v2912 = vrot.slane %v2779, 7
      %v2913 = vrot.slane %v2780, 7
      %v2914 = vrot.slane %v2781, 7
      %v2915 = vrot.slane %v2782, 7
      %v2916 = vrot.slane %v2783, 7
      %v2917 = vrot.slane %v2784, 7
      %v2918 = vrot.slane %v2785, 7
      %v2919 = vrot.slane %v2786, 7
      %v2920 = vsel %vm1146, %v2918, %v2919
      %v2921 = vsel %vm1146, %v2917, %v2918
      %v2922 = vsel %vm1146, %v2916, %v2917
      %v2923 = vsel %vm1146, %v2915, %v2916
      %v2924 = vsel %vm1146, %v2914, %v2915
      %v2925 = vsel %vm1146, %v2913, %v2914
      %v2926 = vsel %vm1146, %v2912, %v2913
      %v2927 = vsel %vm1146, %v2911, %v2912
      %v2928 = vsel %vm1146, %v2910, %v2911
      %v2929 = vsel %vm1146, %v2909, %v2910
      %v2930 = vsel %vm1146, %v2908, %v2909
      %v2931 = vsel %vm1146, %v2907, %v2908
      %v2932 = vsel %vm1146, %v2906, %v2907
      %v2933 = vsel %vm1146, %v2905, %v2906
      %v2934 = vsel %vm1146, %v2904, %v2905
      %v2935 = vsel %vm1146, %v2903, %v2904
      %v2936 = vsel %vm1146, %v2902, %v2903
      %v2937 = vsel %vm1146, %v2901, %v2902
      %v2938 = vsel %vm1146, %v2900, %v2901
      %v2939 = vsel %vm1146, %v2899, %v2900
      %v2940 = vsel %vm1146, %v2898, %v2899
      %v2941 = vsel %vm1146, %v2897, %v2898
      %v2942 = vsel %vm1146, %v2896, %v2897
      %v2943 = vsel %vm1146, %v2895, %v2896
      %v2944 = vsel %vm1146, %v2894, %v2895
      %v2945 = vsel %vm1146, %v2893, %v2894
      %v2946 = vsel %vm1146, %v2892, %v2893
      %v2947 = vsel %vm1146, %v2891, %v2892
      %v2948 = vsel %vm1146, %v2890, %v2891
      %v2949 = vsel %vm1146, %v2889, %v2890
      %v2950 = vsel %vm1146, %v2888, %v2889
      %v2951 = vsel %vm1146, %v2919, %v2888
      %v2952 = vsel %vm1211, %v2951, 0.0
      %v2953 = vsel %vm1212, %v2950, 0.0
      %v2954 = vsel %vm1213, %v2949, 0.0
      %v2955 = vsel %vm1214, %v2948, 0.0
      %v2956 = vsel %vm1215, %v2947, 0.0
      %v2957 = vsel %vm1216, %v2946, 0.0
      %v2958 = vsel %vm1217, %v2945, 0.0
      %v2959 = vsel %vm1218, %v2944, 0.0
      %v2960 = vsel %vm1219, %v2943, 0.0
      %v2961 = vsel %vm1220, %v2942, 0.0
      %v2962 = vsel %vm1221, %v2941, 0.0
      %v2963 = vsel %vm1222, %v2940, 0.0
      %v2964 = vsel %vm1223, %v2939, 0.0
      %v2965 = vsel %vm1224, %v2938, 0.0
      %v2966 = vsel %vm1225, %v2937, 0.0
      %v2967 = vsel %vm1226, %v2936, 0.0
      %v2968 = vsel %vm1227, %v2935, 0.0
      %v2969 = vsel %vm1228, %v2934, 0.0
      %v2970 = vsel %vm1229, %v2933, 0.0
      %v2971 = vsel %vm1230, %v2932, 0.0
      %v2972 = vsel %vm1231, %v2931, 0.0
      %v2973 = vsel %vm1232, %v2930, 0.0
      %v2974 = vsel %vm1233, %v2929, 0.0
      %v2975 = vsel %vm1234, %v2928, 0.0
      %v2976 = vsel %vm1235, %v2927, 0.0
      %v2977 = vsel %vm1236, %v2926, 0.0
      %v2978 = vsel %vm1237, %v2925, 0.0
      %v2979 = vsel %vm1238, %v2924, 0.0
      %v2980 = vsel %vm1239, %v2923, 0.0
      %v2981 = vsel %vm1240, %v2922, 0.0
      %v2982 = vsel %vm1241, %v2921, 0.0
      %v2983 = vsel %vm1242, %v2920, 0.0
      %v2984 = vrot.slane %v2755, 1
      %v2985 = vrot.slane %v2756, 1
      %v2986 = vrot.slane %v2757, 1
      %v2987 = vrot.slane %v2758, 1
      %v2988 = vrot.slane %v2759, 1
      %v2989 = vrot.slane %v2760, 1
      %v2990 = vrot.slane %v2761, 1
      %v2991 = vrot.slane %v2762, 1
      %v2992 = vrot.slane %v2763, 1
      %v2993 = vrot.slane %v2764, 1
      %v2994 = vrot.slane %v2765, 1
      %v2995 = vrot.slane %v2766, 1
      %v2996 = vrot.slane %v2767, 1
      %v2997 = vrot.slane %v2768, 1
      %v2998 = vrot.slane %v2769, 1
      %v2999 = vrot.slane %v2770, 1
      %v3000 = vrot.slane %v2771, 1
      %v3001 = vrot.slane %v2772, 1
      %v3002 = vrot.slane %v2773, 1
      %v3003 = vrot.slane %v2774, 1
      %v3004 = vrot.slane %v2775, 1
      %v3005 = vrot.slane %v2776, 1
      %v3006 = vrot.slane %v2777, 1
      %v3007 = vrot.slane %v2778, 1
      %v3008 = vrot.slane %v2779, 1
      %v3009 = vrot.slane %v2780, 1
      %v3010 = vrot.slane %v2781, 1
      %v3011 = vrot.slane %v2782, 1
      %v3012 = vrot.slane %v2783, 1
      %v3013 = vrot.slane %v2784, 1
      %v3014 = vrot.slane %v2785, 1
      %v3015 = vrot.slane %v2786, 1
      %v3016 = vsel %vm1307, %v3014, %v3015
      %v3017 = vsel %vm1307, %v3013, %v3014
      %v3018 = vsel %vm1307, %v3012, %v3013
      %v3019 = vsel %vm1307, %v3011, %v3012
      %v3020 = vsel %vm1307, %v3010, %v3011
      %v3021 = vsel %vm1307, %v3009, %v3010
      %v3022 = vsel %vm1307, %v3008, %v3009
      %v3023 = vsel %vm1307, %v3007, %v3008
      %v3024 = vsel %vm1307, %v3006, %v3007
      %v3025 = vsel %vm1307, %v3005, %v3006
      %v3026 = vsel %vm1307, %v3004, %v3005
      %v3027 = vsel %vm1307, %v3003, %v3004
      %v3028 = vsel %vm1307, %v3002, %v3003
      %v3029 = vsel %vm1307, %v3001, %v3002
      %v3030 = vsel %vm1307, %v3000, %v3001
      %v3031 = vsel %vm1307, %v2999, %v3000
      %v3032 = vsel %vm1307, %v2998, %v2999
      %v3033 = vsel %vm1307, %v2997, %v2998
      %v3034 = vsel %vm1307, %v2996, %v2997
      %v3035 = vsel %vm1307, %v2995, %v2996
      %v3036 = vsel %vm1307, %v2994, %v2995
      %v3037 = vsel %vm1307, %v2993, %v2994
      %v3038 = vsel %vm1307, %v2992, %v2993
      %v3039 = vsel %vm1307, %v2991, %v2992
      %v3040 = vsel %vm1307, %v2990, %v2991
      %v3041 = vsel %vm1307, %v2989, %v2990
      %v3042 = vsel %vm1307, %v2988, %v2989
      %v3043 = vsel %vm1307, %v2987, %v2988
      %v3044 = vsel %vm1307, %v2986, %v2987
      %v3045 = vsel %vm1307, %v2985, %v2986
      %v3046 = vsel %vm1307, %v2984, %v2985
      %v3047 = vsel %vm1307, %v3015, %v2984
      %v3048 = vsel %vm1372, %v3046, 0.0
      %v3049 = vsel %vm1373, %v3045, 0.0
      %v3050 = vsel %vm1374, %v3044, 0.0
      %v3051 = vsel %vm1375, %v3043, 0.0
      %v3052 = vsel %vm1376, %v3042, 0.0
      %v3053 = vsel %vm1377, %v3041, 0.0
      %v3054 = vsel %vm1378, %v3040, 0.0
      %v3055 = vsel %vm1379, %v3039, 0.0
      %v3056 = vsel %vm1380, %v3038, 0.0
      %v3057 = vsel %vm1381, %v3037, 0.0
      %v3058 = vsel %vm1382, %v3036, 0.0
      %v3059 = vsel %vm1383, %v3035, 0.0
      %v3060 = vsel %vm1384, %v3034, 0.0
      %v3061 = vsel %vm1385, %v3033, 0.0
      %v3062 = vsel %vm1386, %v3032, 0.0
      %v3063 = vsel %vm1387, %v3031, 0.0
      %v3064 = vsel %vm1388, %v3030, 0.0
      %v3065 = vsel %vm1389, %v3029, 0.0
      %v3066 = vsel %vm1390, %v3028, 0.0
      %v3067 = vsel %vm1391, %v3027, 0.0
      %v3068 = vsel %vm1392, %v3026, 0.0
      %v3069 = vsel %vm1393, %v3025, 0.0
      %v3070 = vsel %vm1394, %v3024, 0.0
      %v3071 = vsel %vm1395, %v3023, 0.0
      %v3072 = vsel %vm1396, %v3022, 0.0
      %v3073 = vsel %vm1397, %v3021, 0.0
      %v3074 = vsel %vm1398, %v3020, 0.0
      %v3075 = vsel %vm1399, %v3019, 0.0
      %v3076 = vsel %vm1400, %v3018, 0.0
      %v3077 = vsel %vm1401, %v3017, 0.0
      %v3078 = vsel %vm1402, %v3016, 0.0
      %v3079 = vsel %vm1403, %v3047, 0.0
      %v3080 = vrot.slane %v2755, 2
      %v3081 = vrot.slane %v2756, 2
      %v3082 = vrot.slane %v2757, 2
      %v3083 = vrot.slane %v2758, 2
      %v3084 = vrot.slane %v2759, 2
      %v3085 = vrot.slane %v2760, 2
      %v3086 = vrot.slane %v2761, 2
      %v3087 = vrot.slane %v2762, 2
      %v3088 = vrot.slane %v2763, 2
      %v3089 = vrot.slane %v2764, 2
      %v3090 = vrot.slane %v2765, 2
      %v3091 = vrot.slane %v2766, 2
      %v3092 = vrot.slane %v2767, 2
      %v3093 = vrot.slane %v2768, 2
      %v3094 = vrot.slane %v2769, 2
      %v3095 = vrot.slane %v2770, 2
      %v3096 = vrot.slane %v2771, 2
      %v3097 = vrot.slane %v2772, 2
      %v3098 = vrot.slane %v2773, 2
      %v3099 = vrot.slane %v2774, 2
      %v3100 = vrot.slane %v2775, 2
      %v3101 = vrot.slane %v2776, 2
      %v3102 = vrot.slane %v2777, 2
      %v3103 = vrot.slane %v2778, 2
      %v3104 = vrot.slane %v2779, 2
      %v3105 = vrot.slane %v2780, 2
      %v3106 = vrot.slane %v2781, 2
      %v3107 = vrot.slane %v2782, 2
      %v3108 = vrot.slane %v2783, 2
      %v3109 = vrot.slane %v2784, 2
      %v3110 = vrot.slane %v2785, 2
      %v3111 = vrot.slane %v2786, 2
      %v3112 = vsel %vm1468, %v3110, %v3111
      %v3113 = vsel %vm1468, %v3109, %v3110
      %v3114 = vsel %vm1468, %v3108, %v3109
      %v3115 = vsel %vm1468, %v3107, %v3108
      %v3116 = vsel %vm1468, %v3106, %v3107
      %v3117 = vsel %vm1468, %v3105, %v3106
      %v3118 = vsel %vm1468, %v3104, %v3105
      %v3119 = vsel %vm1468, %v3103, %v3104
      %v3120 = vsel %vm1468, %v3102, %v3103
      %v3121 = vsel %vm1468, %v3101, %v3102
      %v3122 = vsel %vm1468, %v3100, %v3101
      %v3123 = vsel %vm1468, %v3099, %v3100
      %v3124 = vsel %vm1468, %v3098, %v3099
      %v3125 = vsel %vm1468, %v3097, %v3098
      %v3126 = vsel %vm1468, %v3096, %v3097
      %v3127 = vsel %vm1468, %v3095, %v3096
      %v3128 = vsel %vm1468, %v3094, %v3095
      %v3129 = vsel %vm1468, %v3093, %v3094
      %v3130 = vsel %vm1468, %v3092, %v3093
      %v3131 = vsel %vm1468, %v3091, %v3092
      %v3132 = vsel %vm1468, %v3090, %v3091
      %v3133 = vsel %vm1468, %v3089, %v3090
      %v3134 = vsel %vm1468, %v3088, %v3089
      %v3135 = vsel %vm1468, %v3087, %v3088
      %v3136 = vsel %vm1468, %v3086, %v3087
      %v3137 = vsel %vm1468, %v3085, %v3086
      %v3138 = vsel %vm1468, %v3084, %v3085
      %v3139 = vsel %vm1468, %v3083, %v3084
      %v3140 = vsel %vm1468, %v3082, %v3083
      %v3141 = vsel %vm1468, %v3081, %v3082
      %v3142 = vsel %vm1468, %v3080, %v3081
      %v3143 = vsel %vm1468, %v3111, %v3080
      %v3144 = vsel %vm1533, %v3142, 0.0
      %v3145 = vsel %vm1534, %v3141, 0.0
      %v3146 = vsel %vm1535, %v3140, 0.0
      %v3147 = vsel %vm1536, %v3139, 0.0
      %v3148 = vsel %vm1537, %v3138, 0.0
      %v3149 = vsel %vm1538, %v3137, 0.0
      %v3150 = vsel %vm1539, %v3136, 0.0
      %v3151 = vsel %vm1540, %v3135, 0.0
      %v3152 = vsel %vm1541, %v3134, 0.0
      %v3153 = vsel %vm1542, %v3133, 0.0
      %v3154 = vsel %vm1543, %v3132, 0.0
      %v3155 = vsel %vm1544, %v3131, 0.0
      %v3156 = vsel %vm1545, %v3130, 0.0
      %v3157 = vsel %vm1546, %v3129, 0.0
      %v3158 = vsel %vm1547, %v3128, 0.0
      %v3159 = vsel %vm1548, %v3127, 0.0
      %v3160 = vsel %vm1549, %v3126, 0.0
      %v3161 = vsel %vm1550, %v3125, 0.0
      %v3162 = vsel %vm1551, %v3124, 0.0
      %v3163 = vsel %vm1552, %v3123, 0.0
      %v3164 = vsel %vm1553, %v3122, 0.0
      %v3165 = vsel %vm1554, %v3121, 0.0
      %v3166 = vsel %vm1555, %v3120, 0.0
      %v3167 = vsel %vm1556, %v3119, 0.0
      %v3168 = vsel %vm1557, %v3118, 0.0
      %v3169 = vsel %vm1558, %v3117, 0.0
      %v3170 = vsel %vm1559, %v3116, 0.0
      %v3171 = vsel %vm1560, %v3115, 0.0
      %v3172 = vsel %vm1561, %v3114, 0.0
      %v3173 = vsel %vm1562, %v3113, 0.0
      %v3174 = vsel %vm1563, %v3112, 0.0
      %v3175 = vsel %vm1564, %v3143, 0.0
      %3208 = vrot.lane.b32.xlu0 %v2952, 8
      %v3209 = vpop.permute.xlu0 %3208
      %3210 = vrot.lane.b32.xlu0 %v2953, 8
      %v3211 = vpop.permute.xlu0 %3210
      %3212 = vrot.lane.b32.xlu0 %v2954, 8
      %v3213 = vpop.permute.xlu0 %3212
      %3214 = vrot.lane.b32.xlu0 %v2955, 8
      %v3215 = vpop.permute.xlu0 %3214
      %3216 = vrot.lane.b32.xlu0 %v2956, 8
      %v3217 = vpop.permute.xlu0 %3216
      %3218 = vrot.lane.b32.xlu0 %v2957, 8
      %v3219 = vpop.permute.xlu0 %3218
      %3220 = vrot.lane.b32.xlu0 %v2958, 8
      %v3221 = vpop.permute.xlu0 %3220
      %3222 = vrot.lane.b32.xlu0 %v2959, 8
      %v3223 = vpop.permute.xlu0 %3222
      %3224 = vrot.lane.b32.xlu0 %v2960, 8
      %v3225 = vpop.permute.xlu0 %3224
      %3226 = vrot.lane.b32.xlu0 %v2961, 8
      %v3227 = vpop.permute.xlu0 %3226
      %3228 = vrot.lane.b32.xlu0 %v2962, 8
      %v3229 = vpop.permute.xlu0 %3228
      %3230 = vrot.lane.b32.xlu0 %v2963, 8
      %v3231 = vpop.permute.xlu0 %3230
      %3232 = vrot.lane.b32.xlu0 %v2964, 8
      %v3233 = vpop.permute.xlu0 %3232
      %3234 = vrot.lane.b32.xlu0 %v2965, 8
      %v3235 = vpop.permute.xlu0 %3234
      %3236 = vrot.lane.b32.xlu0 %v2966, 8
      %v3237 = vpop.permute.xlu0 %3236
      %3238 = vrot.lane.b32.xlu0 %v2967, 8
      %v3239 = vpop.permute.xlu0 %3238
      %3240 = vrot.lane.b32.xlu0 %v2968, 8
      %v3241 = vpop.permute.xlu0 %3240
      %3242 = vrot.lane.b32.xlu0 %v2969, 8
      %v3243 = vpop.permute.xlu0 %3242
      %3244 = vrot.lane.b32.xlu0 %v2970, 8
      %v3245 = vpop.permute.xlu0 %3244
      %3246 = vrot.lane.b32.xlu0 %v2971, 8
      %v3247 = vpop.permute.xlu0 %3246
      %3248 = vrot.lane.b32.xlu0 %v2972, 8
      %v3249 = vpop.permute.xlu0 %3248
      %3250 = vrot.lane.b32.xlu0 %v2973, 8
      %v3251 = vpop.permute.xlu0 %3250
      %3252 = vrot.lane.b32.xlu0 %v2974, 8
      %v3253 = vpop.permute.xlu0 %3252
      %3254 = vrot.lane.b32.xlu0 %v2975, 8
      %v3255 = vpop.permute.xlu0 %3254
      %3256 = vrot.lane.b32.xlu0 %v2976, 8
      %v3257 = vpop.permute.xlu0 %3256
      %3258 = vrot.lane.b32.xlu0 %v2977, 8
      %v3259 = vpop.permute.xlu0 %3258
      %3260 = vrot.lane.b32.xlu0 %v2978, 8
      %v3261 = vpop.permute.xlu0 %3260
      %3262 = vrot.lane.b32.xlu0 %v2979, 8
      %v3263 = vpop.permute.xlu0 %3262
      %3264 = vrot.lane.b32.xlu0 %v2980, 8
      %v3265 = vpop.permute.xlu0 %3264
      %3266 = vrot.lane.b32.xlu0 %v2981, 8
      %v3267 = vpop.permute.xlu0 %3266
      %3268 = vrot.lane.b32.xlu0 %v2982, 8
      %v3269 = vpop.permute.xlu0 %3268
      %3270 = vrot.lane.b32.xlu0 %v2983, 8
      %v3271 = vpop.permute.xlu0 %3270
      %3336 = vrot.lane.b32.xlu0 %v2755, 16
      %v3337 = vpop.permute.xlu0 %3336
      %3338 = vrot.lane.b32.xlu0 %v2756, 16
      %v3339 = vpop.permute.xlu0 %3338
      %3340 = vrot.lane.b32.xlu0 %v2757, 16
      %v3341 = vpop.permute.xlu0 %3340
      %3342 = vrot.lane.b32.xlu0 %v2758, 16
      %v3343 = vpop.permute.xlu0 %3342
      %3344 = vrot.lane.b32.xlu0 %v2759, 16
      %v3345 = vpop.permute.xlu0 %3344
      %3346 = vrot.lane.b32.xlu0 %v2760, 16
      %v3347 = vpop.permute.xlu0 %3346
      %3348 = vrot.lane.b32.xlu0 %v2761, 16
      %v3349 = vpop.permute.xlu0 %3348
      %3350 = vrot.lane.b32.xlu0 %v2762, 16
      %v3351 = vpop.permute.xlu0 %3350
      %3352 = vrot.lane.b32.xlu0 %v2763, 16
      %v3353 = vpop.permute.xlu0 %3352
      %3354 = vrot.lane.b32.xlu0 %v2764, 16
      %v3355 = vpop.permute.xlu0 %3354
      %3356 = vrot.lane.b32.xlu0 %v2765, 16
      %v3357 = vpop.permute.xlu0 %3356
      %3358 = vrot.lane.b32.xlu0 %v2766, 16
      %v3359 = vpop.permute.xlu0 %3358
      %3360 = vrot.lane.b32.xlu0 %v2767, 16
      %v3361 = vpop.permute.xlu0 %3360
      %3362 = vrot.lane.b32.xlu0 %v2768, 16
      %v3363 = vpop.permute.xlu0 %3362
      %3364 = vrot.lane.b32.xlu0 %v2769, 16
      %v3365 = vpop.permute.xlu0 %3364
      %3366 = vrot.lane.b32.xlu0 %v2770, 16
      %v3367 = vpop.permute.xlu0 %3366
      %3368 = vrot.lane.b32.xlu0 %v2771, 16
      %v3369 = vpop.permute.xlu0 %3368
      %3370 = vrot.lane.b32.xlu0 %v2772, 16
      %v3371 = vpop.permute.xlu0 %3370
      %3372 = vrot.lane.b32.xlu0 %v2773, 16
      %v3373 = vpop.permute.xlu0 %3372
      %3374 = vrot.lane.b32.xlu0 %v2774, 16
      %v3375 = vpop.permute.xlu0 %3374
      %3376 = vrot.lane.b32.xlu0 %v2775, 16
      %v3377 = vpop.permute.xlu0 %3376
      %3378 = vrot.lane.b32.xlu0 %v2776, 16
      %v3379 = vpop.permute.xlu0 %3378
      %3380 = vrot.lane.b32.xlu0 %v2777, 16
      %v3381 = vpop.permute.xlu0 %3380
      %3382 = vrot.lane.b32.xlu0 %v2778, 16
      %v3383 = vpop.permute.xlu0 %3382
      %3384 = vrot.lane.b32.xlu0 %v2779, 16
      %v3385 = vpop.permute.xlu0 %3384
      %3386 = vrot.lane.b32.xlu0 %v2780, 16
      %v3387 = vpop.permute.xlu0 %3386
      %3388 = vrot.lane.b32.xlu0 %v2781, 16
      %v3389 = vpop.permute.xlu0 %3388
      %3390 = vrot.lane.b32.xlu0 %v2782, 16
      %v3391 = vpop.permute.xlu0 %3390
      %3392 = vrot.lane.b32.xlu0 %v2783, 16
      %v3393 = vpop.permute.xlu0 %3392
      %3394 = vrot.lane.b32.xlu0 %v2784, 16
      %v3395 = vpop.permute.xlu0 %3394
      %3396 = vrot.lane.b32.xlu0 %v2785, 16
      %v3397 = vpop.permute.xlu0 %3396
      %3398 = vrot.lane.b32.xlu0 %v2786, 16
      %v3399 = vpop.permute.xlu0 %3398
      %3464 = vrot.lane.b32.xlu0 %v3048, 24
      %v3465 = vpop.permute.xlu0 %3464
      %3466 = vrot.lane.b32.xlu0 %v3049, 24
      %v3467 = vpop.permute.xlu0 %3466
      %3468 = vrot.lane.b32.xlu0 %v3050, 24
      %v3469 = vpop.permute.xlu0 %3468
      %3470 = vrot.lane.b32.xlu0 %v3051, 24
      %v3471 = vpop.permute.xlu0 %3470
      %3472 = vrot.lane.b32.xlu0 %v3052, 24
      %v3473 = vpop.permute.xlu0 %3472
      %3474 = vrot.lane.b32.xlu0 %v3053, 24
      %v3475 = vpop.permute.xlu0 %3474
      %3476 = vrot.lane.b32.xlu0 %v3054, 24
      %v3477 = vpop.permute.xlu0 %3476
      %3478 = vrot.lane.b32.xlu0 %v3055, 24
      %v3479 = vpop.permute.xlu0 %3478
      %3480 = vrot.lane.b32.xlu0 %v3056, 24
      %v3481 = vpop.permute.xlu0 %3480
      %3482 = vrot.lane.b32.xlu0 %v3057, 24
      %v3483 = vpop.permute.xlu0 %3482
      %3484 = vrot.lane.b32.xlu0 %v3058, 24
      %v3485 = vpop.permute.xlu0 %3484
      %3486 = vrot.lane.b32.xlu0 %v3059, 24
      %v3487 = vpop.permute.xlu0 %3486
      %3488 = vrot.lane.b32.xlu0 %v3060, 24
      %v3489 = vpop.permute.xlu0 %3488
      %3490 = vrot.lane.b32.xlu0 %v3061, 24
      %v3491 = vpop.permute.xlu0 %3490
      %3492 = vrot.lane.b32.xlu0 %v3062, 24
      %v3493 = vpop.permute.xlu0 %3492
      %3494 = vrot.lane.b32.xlu0 %v3063, 24
      %v3495 = vpop.permute.xlu0 %3494
      %3496 = vrot.lane.b32.xlu0 %v3064, 24
      %v3497 = vpop.permute.xlu0 %3496
      %3498 = vrot.lane.b32.xlu0 %v3065, 24
      %v3499 = vpop.permute.xlu0 %3498
      %3500 = vrot.lane.b32.xlu0 %v3066, 24
      %v3501 = vpop.permute.xlu0 %3500
      %3502 = vrot.lane.b32.xlu0 %v3067, 24
      %v3503 = vpop.permute.xlu0 %3502
      %3504 = vrot.lane.b32.xlu0 %v3068, 24
      %v3505 = vpop.permute.xlu0 %3504
      %3506 = vrot.lane.b32.xlu0 %v3069, 24
      %v3507 = vpop.permute.xlu0 %3506
      %3508 = vrot.lane.b32.xlu0 %v3070, 24
      %v3509 = vpop.permute.xlu0 %3508
      %3510 = vrot.lane.b32.xlu0 %v3071, 24
      %v3511 = vpop.permute.xlu0 %3510
      %3512 = vrot.lane.b32.xlu0 %v3072, 24
      %v3513 = vpop.permute.xlu0 %3512
      %3514 = vrot.lane.b32.xlu0 %v3073, 24
      %v3515 = vpop.permute.xlu0 %3514
      %3516 = vrot.lane.b32.xlu0 %v3074, 24
      %v3517 = vpop.permute.xlu0 %3516
      %3518 = vrot.lane.b32.xlu0 %v3075, 24
      %v3519 = vpop.permute.xlu0 %3518
      %3520 = vrot.lane.b32.xlu0 %v3076, 24
      %v3521 = vpop.permute.xlu0 %3520
      %3522 = vrot.lane.b32.xlu0 %v3077, 24
      %v3523 = vpop.permute.xlu0 %3522
      %3524 = vrot.lane.b32.xlu0 %v3078, 24
      %v3525 = vpop.permute.xlu0 %3524
      %3526 = vrot.lane.b32.xlu0 %v3079, 24
      %v3527 = vpop.permute.xlu0 %3526
      %3592 = vrot.lane.b32.xlu0 %v3144, 32
      %v3593 = vpop.permute.xlu0 %3592
      %3594 = vrot.lane.b32.xlu0 %v3145, 32
      %v3595 = vpop.permute.xlu0 %3594
      %3596 = vrot.lane.b32.xlu0 %v3146, 32
      %v3597 = vpop.permute.xlu0 %3596
      %3598 = vrot.lane.b32.xlu0 %v3147, 32
      %v3599 = vpop.permute.xlu0 %3598
      %3600 = vrot.lane.b32.xlu0 %v3148, 32
      %v3601 = vpop.permute.xlu0 %3600
      %3602 = vrot.lane.b32.xlu0 %v3149, 32
      %v3603 = vpop.permute.xlu0 %3602
      %3604 = vrot.lane.b32.xlu0 %v3150, 32
      %v3605 = vpop.permute.xlu0 %3604
      %3606 = vrot.lane.b32.xlu0 %v3151, 32
      %v3607 = vpop.permute.xlu0 %3606
      %3608 = vrot.lane.b32.xlu0 %v3152, 32
      %v3609 = vpop.permute.xlu0 %3608
      %3610 = vrot.lane.b32.xlu0 %v3153, 32
      %v3611 = vpop.permute.xlu0 %3610
      %3612 = vrot.lane.b32.xlu0 %v3154, 32
      %v3613 = vpop.permute.xlu0 %3612
      %3614 = vrot.lane.b32.xlu0 %v3155, 32
      %v3615 = vpop.permute.xlu0 %3614
      %3616 = vrot.lane.b32.xlu0 %v3156, 32
      %v3617 = vpop.permute.xlu0 %3616
      %3618 = vrot.lane.b32.xlu0 %v3157, 32
      %v3619 = vpop.permute.xlu0 %3618
      %3620 = vrot.lane.b32.xlu0 %v3158, 32
      %v3621 = vpop.permute.xlu0 %3620
      %3622 = vrot.lane.b32.xlu0 %v3159, 32
      %v3623 = vpop.permute.xlu0 %3622
      %3624 = vrot.lane.b32.xlu0 %v3160, 32
      %v3625 = vpop.permute.xlu0 %3624
      %3626 = vrot.lane.b32.xlu0 %v3161, 32
      %v3627 = vpop.permute.xlu0 %3626
      %3628 = vrot.lane.b32.xlu0 %v3162, 32
      %v3629 = vpop.permute.xlu0 %3628
      %3630 = vrot.lane.b32.xlu0 %v3163, 32
      %v3631 = vpop.permute.xlu0 %3630
      %3632 = vrot.lane.b32.xlu0 %v3164, 32
      %v3633 = vpop.permute.xlu0 %3632
      %3634 = vrot.lane.b32.xlu0 %v3165, 32
      %v3635 = vpop.permute.xlu0 %3634
      %3636 = vrot.lane.b32.xlu0 %v3166, 32
      %v3637 = vpop.permute.xlu0 %3636
      %3638 = vrot.lane.b32.xlu0 %v3167, 32
      %v3639 = vpop.permute.xlu0 %3638
      %3640 = vrot.lane.b32.xlu0 %v3168, 32
      %v3641 = vpop.permute.xlu0 %3640
      %3642 = vrot.lane.b32.xlu0 %v3169, 32
      %v3643 = vpop.permute.xlu0 %3642
      %3644 = vrot.lane.b32.xlu0 %v3170, 32
      %v3645 = vpop.permute.xlu0 %3644
      %3646 = vrot.lane.b32.xlu0 %v3171, 32
      %v3647 = vpop.permute.xlu0 %3646
      %3648 = vrot.lane.b32.xlu0 %v3172, 32
      %v3649 = vpop.permute.xlu0 %3648
      %3650 = vrot.lane.b32.xlu0 %v3173, 32
      %v3651 = vpop.permute.xlu0 %3650
      %3652 = vrot.lane.b32.xlu0 %v3174, 32
      %v3653 = vpop.permute.xlu0 %3652
      %3654 = vrot.lane.b32.xlu0 %v3175, 32
      %v3655 = vpop.permute.xlu0 %3654
      %vm3688 = vcmask 64512
      %v3689 = vsel %vm3688, %v2856, %v3209
      %v3690 = vsel %vm3688, %v2857, %v3211
      %v3691 = vsel %vm3688, %v2858, %v3213
      %v3692 = vsel %vm3688, %v2859, %v3215
      %v3693 = vsel %vm3688, %v2860, %v3217
      %v3694 = vsel %vm3688, %v2861, %v3219
      %v3695 = vsel %vm3688, %v2862, %v3221
      %v3696 = vsel %vm3688, %v2863, %v3223
      %v3697 = vsel %vm3688, %v2864, %v3225
      %v3698 = vsel %vm3688, %v2865, %v3227
      %v3699 = vsel %vm3688, %v2866, %v3229
      %v3700 = vsel %vm3688, %v2867, %v3231
      %v3701 = vsel %vm3688, %v2868, %v3233
      %v3702 = vsel %vm3688, %v2869, %v3235
      %v3703 = vsel %vm3688, %v2870, %v3237
      %v3704 = vsel %vm3688, %v2871, %v3239
      %v3705 = vsel %vm3688, %v2872, %v3241
      %v3706 = vsel %vm3688, %v2873, %v3243
      %v3707 = vsel %vm3688, %v2874, %v3245
      %v3708 = vsel %vm3688, %v2875, %v3247
      %v3709 = vsel %vm3688, %v2876, %v3249
      %v3710 = vsel %vm3688, %v2877, %v3251
      %v3711 = vsel %vm3688, %v2878, %v3253
      %v3712 = vsel %vm3688, %v2879, %v3255
      %v3713 = vsel %vm3688, %v2880, %v3257
      %v3714 = vsel %vm3688, %v2881, %v3259
      %v3715 = vsel %vm3688, %v2882, %v3261
      %v3716 = vsel %vm3688, %v2883, %v3263
      %v3717 = vsel %vm3688, %v2884, %v3265
      %v3718 = vsel %vm3688, %v2885, %v3267
      %v3719 = vsel %vm3688, %v2886, %v3269
      %v3720 = vsel %vm3688, %v2887, %v3271
      %v3721 = vsel %vm2109, %v3689, %v3337
      %v3722 = vsel %vm2109, %v3690, %v3339
      %v3723 = vsel %vm2109, %v3691, %v3341
      %v3724 = vsel %vm2109, %v3692, %v3343
      %v3725 = vsel %vm2109, %v3693, %v3345
      %v3726 = vsel %vm2109, %v3694, %v3347
      %v3727 = vsel %vm2109, %v3695, %v3349
      %v3728 = vsel %vm2109, %v3696, %v3351
      %v3729 = vsel %vm2109, %v3697, %v3353
      %v3730 = vsel %vm2109, %v3698, %v3355
      %v3731 = vsel %vm2109, %v3699, %v3357
      %v3732 = vsel %vm2109, %v3700, %v3359
      %v3733 = vsel %vm2109, %v3701, %v3361
      %v3734 = vsel %vm2109, %v3702, %v3363
      %v3735 = vsel %vm2109, %v3703, %v3365
      %v3736 = vsel %vm2109, %v3704, %v3367
      %v3737 = vsel %vm2109, %v3705, %v3369
      %v3738 = vsel %vm2109, %v3706, %v3371
      %v3739 = vsel %vm2109, %v3707, %v3373
      %v3740 = vsel %vm2109, %v3708, %v3375
      %v3741 = vsel %vm2109, %v3709, %v3377
      %v3742 = vsel %vm2109, %v3710, %v3379
      %v3743 = vsel %vm2109, %v3711, %v3381
      %v3744 = vsel %vm2109, %v3712, %v3383
      %v3745 = vsel %vm2109, %v3713, %v3385
      %v3746 = vsel %vm2109, %v3714, %v3387
      %v3747 = vsel %vm2109, %v3715, %v3389
      %v3748 = vsel %vm2109, %v3716, %v3391
      %v3749 = vsel %vm2109, %v3717, %v3393
      %v3750 = vsel %vm2109, %v3718, %v3395
      %v3751 = vsel %vm2109, %v3719, %v3397
      %v3752 = vsel %vm2109, %v3720, %v3399
      %vm3753 = vcmask 195584
      %v3754 = vsel %vm3753, %v3721, %v3465
      %v3755 = vsel %vm3753, %v3722, %v3467
      %v3756 = vsel %vm3753, %v3723, %v3469
      %v3757 = vsel %vm3753, %v3724, %v3471
      %v3758 = vsel %vm3753, %v3725, %v3473
      %v3759 = vsel %vm3753, %v3726, %v3475
      %v3760 = vsel %vm3753, %v3727, %v3477
      %v3761 = vsel %vm3753, %v3728, %v3479
      %v3762 = vsel %vm3753, %v3729, %v3481
      %v3763 = vsel %vm3753, %v3730, %v3483
      %v3764 = vsel %vm3753, %v3731, %v3485
      %v3765 = vsel %vm3753, %v3732, %v3487
      %v3766 = vsel %vm3753, %v3733, %v3489
      %v3767 = vsel %vm3753, %v3734, %v3491
      %v3768 = vsel %vm3753, %v3735, %v3493
      %v3769 = vsel %vm3753, %v3736, %v3495
      %v3770 = vsel %vm3753, %v3737, %v3497
      %v3771 = vsel %vm3753, %v3738, %v3499
      %v3772 = vsel %vm3753, %v3739, %v3501
      %v3773 = vsel %vm3753, %v3740, %v3503
      %v3774 = vsel %vm3753, %v3741, %v3505
      %v3775 = vsel %vm3753, %v3742, %v3507
      %v3776 = vsel %vm3753, %v3743, %v3509
      %v3777 = vsel %vm3753, %v3744, %v3511
      %v3778 = vsel %vm3753, %v3745, %v3513
      %v3779 = vsel %vm3753, %v3746, %v3515
      %v3780 = vsel %vm3753, %v3747, %v3517
      %v3781 = vsel %vm3753, %v3748, %v3519
      %v3782 = vsel %vm3753, %v3749, %v3521
      %v3783 = vsel %vm3753, %v3750, %v3523
      %v3784 = vsel %vm3753, %v3751, %v3525
      %v3785 = vsel %vm3753, %v3752, %v3527
      %v3786 = vsel %vm2142, %v3754, %v3593
      %v3787 = vsel %vm2142, %v3755, %v3595
      %v3788 = vsel %vm2142, %v3756, %v3597
      %v3789 = vsel %vm2142, %v3757, %v3599
      %v3790 = vsel %vm2142, %v3758, %v3601
      %v3791 = vsel %vm2142, %v3759, %v3603
      %v3792 = vsel %vm2142, %v3760, %v3605
      %v3793 = vsel %vm2142, %v3761, %v3607
      %v3794 = vsel %vm2142, %v3762, %v3609
      %v3795 = vsel %vm2142, %v3763, %v3611
      %v3796 = vsel %vm2142, %v3764, %v3613
      %v3797 = vsel %vm2142, %v3765, %v3615
      %v3798 = vsel %vm2142, %v3766, %v3617
      %v3799 = vsel %vm2142, %v3767, %v3619
      %v3800 = vsel %vm2142, %v3768, %v3621
      %v3801 = vsel %vm2142, %v3769, %v3623
      %v3802 = vsel %vm2142, %v3770, %v3625
      %v3803 = vsel %vm2142, %v3771, %v3627
      %v3804 = vsel %vm2142, %v3772, %v3629
      %v3805 = vsel %vm2142, %v3773, %v3631
      %v3806 = vsel %vm2142, %v3774, %v3633
      %v3807 = vsel %vm2142, %v3775, %v3635
      %v3808 = vsel %vm2142, %v3776, %v3637
      %v3809 = vsel %vm2142, %v3777, %v3639
      %v3810 = vsel %vm2142, %v3778, %v3641
      %v3811 = vsel %vm2142, %v3779, %v3643
      %v3812 = vsel %vm2142, %v3780, %v3645
      %v3813 = vsel %vm2142, %v3781, %v3647
      %v3814 = vsel %vm2142, %v3782, %v3649
      %v3815 = vsel %vm2142, %v3783, %v3651
      %v3816 = vsel %vm2142, %v3784, %v3653
      %v3817 = vsel %vm2142, %v3785, %v3655
      %vm3818 = vcmask 326656
      %v3820 = vsel %vm3818, %v3786, 0
      %v3823 = vsel %vm3818, %v3787, 0
      %v3826 = vsel %vm3818, %v3788, 0
      %v3829 = vsel %vm3818, %v3789, 0
      %v3832 = vsel %vm3818, %v3790, 0
      %v3835 = vsel %vm3818, %v3791, 0
      %v3838 = vsel %vm3818, %v3792, 0
      %v3841 = vsel %vm3818, %v3793, 0
      %v3844 = vsel %vm3818, %v3794, 0
      %v3847 = vsel %vm3818, %v3795, 0
      %v3850 = vsel %vm3818, %v3796, 0
      %v3853 = vsel %vm3818, %v3797, 0
      %v3856 = vsel %vm3818, %v3798, 0
      %v3859 = vsel %vm3818, %v3799, 0
      %v3862 = vsel %vm3818, %v3800, 0
      %v3865 = vsel %vm3818, %v3801, 0
      %v3868 = vsel %vm3818, %v3802, 0
      %v3871 = vsel %vm3818, %v3803, 0
      %v3874 = vsel %vm3818, %v3804, 0
      %v3877 = vsel %vm3818, %v3805, 0
      %v3880 = vsel %vm3818, %v3806, 0
      %v3883 = vsel %vm3818, %v3807, 0
      %v3886 = vsel %vm3818, %v3808, 0
      %v3889 = vsel %vm3818, %v3809, 0
      %v3892 = vsel %vm3818, %v3810, 0
      %v3895 = vsel %vm3818, %v3811, 0
      %v3898 = vsel %vm3818, %v3812, 0
      %v3901 = vsel %vm3818, %v3813, 0
      %v3904 = vsel %vm3818, %v3814, 0
      %v3907 = vsel %vm3818, %v3815, 0
      %v3910 = vsel %vm3818, %v3816, 0
      %v3913 = vsel %vm3818, %v3817, 0
      %3915 = vmatprep.subr.mxu0 0.0
      %3916 = vmatpush1.msra.mxu0 %v2787
      %3917 = vmatprep.subr.mxu0 0.0
      %3918 = vmatpush1.msra.mxu0 %v2788
      %3919 = vmatprep.subr.mxu0 0.0
      %3920 = vmatpush1.msra.mxu0 %v2789
      %3921 = vmatprep.subr.mxu0 0.0
      %3922 = vmatpush1.msra.mxu0 %v2790
      %3923 = vmatprep.subr.mxu0 0.0
      %3924 = vmatpush1.msra.mxu0 %v2791
      %3925 = vmatprep.subr.mxu0 0.0
      %3926 = vmatpush1.msra.mxu0 0.0
      %3927 = vmatprep.subr.mxu0 0.0
      %3928 = vmatpush1.msra.mxu0 0.0
      %3929 = vmatprep.subr.mxu0 0.0
      %3930 = vmatpush1.msra.mxu0 0.0
      %3931 = vmatprep.subr.mxu0 0.0
      %3932 = vmatpush1.msra.mxu0 0.0
      %3933 = vmatprep.subr.mxu0 0.0
      %3934 = vmatpush1.msra.mxu0 0.0
      %3935 = vmatprep.subr.mxu0 0.0
      %3936 = vmatpush1.msra.mxu0 0.0
      %3937 = vmatprep.subr.mxu0 0.0
      %3938 = vmatpush1.msra.mxu0 0.0
      %3939 = vmatprep.subr.mxu0 0.0
      %3940 = vmatpush1.msra.mxu0 0.0
      %3941 = vmatprep.subr.mxu0 0.0
      %3942 = vmatpush1.msra.mxu0 0.0
      %3943 = vmatprep.subr.mxu0 0.0
      %3944 = vmatpush1.msra.mxu0 0.0
      %3945 = vmatprep.subr.mxu0 0.0
      %3946 = vmatpush1.msra.mxu0 0.0
      %3947 = vmatprep.subr.mxu0 0.0
      %3948 = vmatpush1.msra.mxu0 0.0
      %3949 = vmatprep.subr.mxu0 0.0
      %3950 = vmatpush1.msra.mxu0 0.0
      %3951 = vmatprep.subr.mxu0 0.0
      %3952 = vmatpush1.msra.mxu0 0.0
      %3953 = vmatprep.subr.mxu0 0.0
      %3954 = vmatpush1.msra.mxu0 0.0
      %3955 = vmatprep.subr.mxu0 0.0
      %3956 = vmatpush1.msra.mxu0 0.0
      %3957 = vmatprep.subr.mxu0 0.0
      %3958 = vmatpush1.msra.mxu0 0.0
      %3959 = vmatprep.subr.mxu0 0.0
      %3960 = vmatpush1.msra.mxu0 0.0
      %3961 = vmatprep.subr.mxu0 0.0
      %3962 = vmatpush1.msra.mxu0 0.0
      %3963 = vmatprep.subr.mxu0 0.0
      %3964 = vmatpush1.msra.mxu0 0.0
      %3965 = vmatprep.subr.mxu0 0.0
      %3966 = vmatpush1.msra.mxu0 0.0
      %3967 = vmatprep.subr.mxu0 0.0
      %3968 = vmatpush1.msra.mxu0 0.0
      %3969 = vmatprep.subr.mxu0 0.0
      %3970 = vmatpush1.msra.mxu0 0.0
      %3971 = vmatprep.subr.mxu0 0.0
      %3972 = vmatpush1.msra.mxu0 0.0
      %3973 = vmatprep.subr.mxu0 0.0
      %3974 = vmatpush1.msra.mxu0 0.0
      %3975 = vmatprep.subr.mxu0 0.0
      %3976 = vmatpush1.msra.mxu0 0.0
      %3977 = vmatprep.subr.mxu0 0.0
      %3978 = vmatpush1.msra.mxu0 0.0
      %3979 = vmatprep.mubr.f32.mxu0 0.0
      %3980 = vmatmul.mubr.f32.gmra.mrb[0].mxu0 %v3820
      %v3981 = vpop.f32.mrb[0].mxu0
      %v3982 = vadd.f32 0.0, %v3981
      %v3983 = vpop.f32.mrb[0].mxu0
      %3984 = vmatprep.mubr.f32.mxu0 0.0
      %3985 = vmatmul.mubr.f32.gmra.mrb[0].mxu0 %v3823
      %v3986 = vpop.f32.mrb[0].mxu0
      %v3987 = vadd.f32 0.0, %v3986
      %v3988 = vpop.f32.mrb[0].mxu0
      %3989 = vmatprep.mubr.f32.mxu0 0.0
      %3990 = vmatmul.mubr.f32.gmra.mrb[0].mxu0 %v3826
      %v3991 = vpop.f32.mrb[0].mxu0
      %v3992 = vadd.f32 0.0, %v3991
      %v3993 = vpop.f32.mrb[0].mxu0
      %3994 = vmatprep.mubr.f32.mxu0 0.0
      %3995 = vmatmul.mubr.f32.gmra.mrb[0].mxu0 %v3829
      %v3996 = vpop.f32.mrb[0].mxu0
      %v3997 = vadd.f32 0.0, %v3996
      %v3998 = vpop.f32.mrb[0].mxu0
      %3999 = vmatprep.mubr.f32.mxu0 0.0
      %4000 = vmatmul.mubr.f32.gmra.mrb[0].mxu0 %v3832
      %v4001 = vpop.f32.mrb[0].mxu0
      %v4002 = vadd.f32 0.0, %v4001
      %v4003 = vpop.f32.mrb[0].mxu0
      %4004 = vmatprep.mubr.f32.mxu0 0.0
      %4005 = vmatmul.mubr.f32.gmra.mrb[0].mxu0 %v3835
      %v4006 = vpop.f32.mrb[0].mxu0
      %v4007 = vadd.f32 0.0, %v4006
      %v4008 = vpop.f32.mrb[0].mxu0
      %4009 = vmatprep.mubr.f32.mxu0 0.0
      %4010 = vmatmul.mubr.f32.gmra.mrb[0].mxu0 %v3838
      %v4011 = vpop.f32.mrb[0].mxu0
      %v4012 = vadd.f32 0.0, %v4011
      %v4013 = vpop.f32.mrb[0].mxu0
      %4014 = vmatprep.mubr.f32.mxu0 0.0
      %4015 = vmatmul.mubr.f32.gmra.mrb[0].mxu0 %v3841
      %v4016 = vpop.f32.mrb[0].mxu0
      %v4017 = vadd.f32 0.0, %v4016
      %v4018 = vpop.f32.mrb[0].mxu0
      %4019 = vmatprep.mubr.f32.mxu0 0.0
      %4020 = vmatmul.mubr.f32.gmra.mrb[0].mxu0 %v3844
      %v4021 = vpop.f32.mrb[0].mxu0
      %v4022 = vadd.f32 0.0, %v4021
      %v4023 = vpop.f32.mrb[0].mxu0
      %4024 = vmatprep.mubr.f32.mxu0 0.0
      %4025 = vmatmul.mubr.f32.gmra.mrb[0].mxu0 %v3847
      %v4026 = vpop.f32.mrb[0].mxu0
      %v4027 = vadd.f32 0.0, %v4026
      %v4028 = vpop.f32.mrb[0].mxu0
      %4029 = vmatprep.mubr.f32.mxu0 0.0
      %4030 = vmatmul.mubr.f32.gmra.mrb[0].mxu0 %v3850
      %v4031 = vpop.f32.mrb[0].mxu0
      %v4032 = vadd.f32 0.0, %v4031
      %v4033 = vpop.f32.mrb[0].mxu0
      %4034 = vmatprep.mubr.f32.mxu0 0.0
      %4035 = vmatmul.mubr.f32.gmra.mrb[0].mxu0 %v3853
      %v4036 = vpop.f32.mrb[0].mxu0
      %v4037 = vadd.f32 0.0, %v4036
      %v4038 = vpop.f32.mrb[0].mxu0
      %4039 = vmatprep.mubr.f32.mxu0 0.0
      %4040 = vmatmul.mubr.f32.gmra.mrb[0].mxu0 %v3856
      %v4041 = vpop.f32.mrb[0].mxu0
      %v4042 = vadd.f32 0.0, %v4041
      %v4043 = vpop.f32.mrb[0].mxu0
      %4044 = vmatprep.mubr.f32.mxu0 0.0
      %4045 = vmatmul.mubr.f32.gmra.mrb[0].mxu0 %v3859
      %v4046 = vpop.f32.mrb[0].mxu0
      %v4047 = vadd.f32 0.0, %v4046
      %v4048 = vpop.f32.mrb[0].mxu0
      %4049 = vmatprep.mubr.f32.mxu0 0.0
      %4050 = vmatmul.mubr.f32.gmra.mrb[0].mxu0 %v3862
      %v4051 = vpop.f32.mrb[0].mxu0
      %v4052 = vadd.f32 0.0, %v4051
      %v4053 = vpop.f32.mrb[0].mxu0
      %4054 = vmatprep.mubr.f32.mxu0 0.0
      %4055 = vmatmul.mubr.f32.gmra.mrb[0].mxu0 %v3865
      %v4056 = vpop.f32.mrb[0].mxu0
      %v4057 = vadd.f32 0.0, %v4056
      %v4058 = vpop.f32.mrb[0].mxu0
      %4059 = vmatprep.mubr.f32.mxu0 0.0
      %4060 = vmatmul.mubr.f32.gmra.mrb[0].mxu0 %v3868
      %v4061 = vpop.f32.mrb[0].mxu0
      %v4062 = vadd.f32 0.0, %v4061
      %v4063 = vpop.f32.mrb[0].mxu0
      %4064 = vmatprep.mubr.f32.mxu0 0.0
      %4065 = vmatmul.mubr.f32.gmra.mrb[0].mxu0 %v3871
      %v4066 = vpop.f32.mrb[0].mxu0
      %v4067 = vadd.f32 0.0, %v4066
      %v4068 = vpop.f32.mrb[0].mxu0
      %4069 = vmatprep.mubr.f32.mxu0 0.0
      %4070 = vmatmul.mubr.f32.gmra.mrb[0].mxu0 %v3874
      %v4071 = vpop.f32.mrb[0].mxu0
      %v4072 = vadd.f32 0.0, %v4071
      %v4073 = vpop.f32.mrb[0].mxu0
      %4074 = vmatprep.mubr.f32.mxu0 0.0
      %4075 = vmatmul.mubr.f32.gmra.mrb[0].mxu0 %v3877
      %v4076 = vpop.f32.mrb[0].mxu0
      %v4077 = vadd.f32 0.0, %v4076
      %v4078 = vpop.f32.mrb[0].mxu0
      %4079 = vmatprep.mubr.f32.mxu0 0.0
      %4080 = vmatmul.mubr.f32.gmra.mrb[0].mxu0 %v3880
      %v4081 = vpop.f32.mrb[0].mxu0
      %v4082 = vadd.f32 0.0, %v4081
      %v4083 = vpop.f32.mrb[0].mxu0
      %4084 = vmatprep.mubr.f32.mxu0 0.0
      %4085 = vmatmul.mubr.f32.gmra.mrb[0].mxu0 %v3883
      %v4086 = vpop.f32.mrb[0].mxu0
      %v4087 = vadd.f32 0.0, %v4086
      %v4088 = vpop.f32.mrb[0].mxu0
      %4089 = vmatprep.mubr.f32.mxu0 0.0
      %4090 = vmatmul.mubr.f32.gmra.mrb[0].mxu0 %v3886
      %v4091 = vpop.f32.mrb[0].mxu0
      %v4092 = vadd.f32 0.0, %v4091
      %v4093 = vpop.f32.mrb[0].mxu0
      %4094 = vmatprep.mubr.f32.mxu0 0.0
      %4095 = vmatmul.mubr.f32.gmra.mrb[0].mxu0 %v3889
      %v4096 = vpop.f32.mrb[0].mxu0
      %v4097 = vadd.f32 0.0, %v4096
      %v4098 = vpop.f32.mrb[0].mxu0
      %4099 = vmatprep.mubr.f32.mxu0 0.0
      %4100 = vmatmul.mubr.f32.gmra.mrb[0].mxu0 %v3892
      %v4101 = vpop.f32.mrb[0].mxu0
      %v4102 = vadd.f32 0.0, %v4101
      %v4103 = vpop.f32.mrb[0].mxu0
      %4104 = vmatprep.mubr.f32.mxu0 0.0
      %4105 = vmatmul.mubr.f32.gmra.mrb[0].mxu0 %v3895
      %v4106 = vpop.f32.mrb[0].mxu0
      %v4107 = vadd.f32 0.0, %v4106
      %v4108 = vpop.f32.mrb[0].mxu0
      %4109 = vmatprep.mubr.f32.mxu0 0.0
      %4110 = vmatmul.mubr.f32.gmra.mrb[0].mxu0 %v3898
      %v4111 = vpop.f32.mrb[0].mxu0
      %v4112 = vadd.f32 0.0, %v4111
      %v4113 = vpop.f32.mrb[0].mxu0
      %4114 = vmatprep.mubr.f32.mxu0 0.0
      %4115 = vmatmul.mubr.f32.gmra.mrb[0].mxu0 %v3901
      %v4116 = vpop.f32.mrb[0].mxu0
      %v4117 = vadd.f32 0.0, %v4116
      %v4118 = vpop.f32.mrb[0].mxu0
      %4119 = vmatprep.mubr.f32.mxu0 0.0
      %4120 = vmatmul.mubr.f32.gmra.mrb[0].mxu0 %v3904
      %v4121 = vpop.f32.mrb[0].mxu0
      %v4122 = vadd.f32 0.0, %v4121
      %v4123 = vpop.f32.mrb[0].mxu0
      %4124 = vmatprep.mubr.f32.mxu0 0.0
      %4125 = vmatmul.mubr.f32.gmra.mrb[0].mxu0 %v3907
      %v4126 = vpop.f32.mrb[0].mxu0
      %v4127 = vadd.f32 0.0, %v4126
      %v4128 = vpop.f32.mrb[0].mxu0
      %4129 = vmatprep.mubr.f32.mxu0 0.0
      %4130 = vmatmul.mubr.f32.gmra.mrb[0].mxu0 %v3910
      %v4131 = vpop.f32.mrb[0].mxu0
      %v4132 = vadd.f32 0.0, %v4131
      %v4133 = vpop.f32.mrb[0].mxu0
      %4134 = vmatprep.mubr.f32.mxu0 0.0
      %4135 = vmatmul.mubr.f32.gmra.mrb[0].mxu0 %v3913
      %v4136 = vpop.f32.mrb[0].mxu0
      %v4137 = vadd.f32 0.0, %v4136
      %v4138 = vpop.f32.mrb[0].mxu0
      %4139 = vdwg.mxu0
      %v4140 = vxor.u32 %v3982, 2147483648
      %v4141 = vxor.u32 %v3987, 2147483648
      %v4142 = vxor.u32 %v3992, 2147483648
      %v4143 = vxor.u32 %v3997, 2147483648
      %v4144 = vxor.u32 %v4002, 2147483648
      %v4145 = vxor.u32 %v4007, 2147483648
      %v4146 = vxor.u32 %v4012, 2147483648
      %v4147 = vxor.u32 %v4017, 2147483648
      %v4148 = vxor.u32 %v4022, 2147483648
      %v4149 = vxor.u32 %v4027, 2147483648
      %v4150 = vxor.u32 %v4032, 2147483648
      %v4151 = vxor.u32 %v4037, 2147483648
      %v4152 = vxor.u32 %v4042, 2147483648
      %v4153 = vxor.u32 %v4047, 2147483648
      %v4154 = vxor.u32 %v4052, 2147483648
      %v4155 = vxor.u32 %v4057, 2147483648
      %v4156 = vxor.u32 %v4062, 2147483648
      %v4157 = vxor.u32 %v4067, 2147483648
      %v4158 = vxor.u32 %v4072, 2147483648
      %v4159 = vxor.u32 %v4077, 2147483648
      %v4160 = vxor.u32 %v4082, 2147483648
      %v4161 = vxor.u32 %v4087, 2147483648
      %v4162 = vxor.u32 %v4092, 2147483648
      %v4163 = vxor.u32 %v4097, 2147483648
      %v4164 = vxor.u32 %v4102, 2147483648
      %v4165 = vxor.u32 %v4107, 2147483648
      %v4166 = vxor.u32 %v4112, 2147483648
      %v4167 = vxor.u32 %v4117, 2147483648
      %v4168 = vxor.u32 %v4122, 2147483648
      %v4169 = vxor.u32 %v4127, 2147483648
      %v4170 = vxor.u32 %v4132, 2147483648
      %v4171 = vxor.u32 %v4137, 2147483648
      %v4172 = vmul.f32 %v4140, 1.442695
      %v4173 = vpow.pop %v4172
      %v4174 = vmul.f32 %v4141, 1.442695
      %v4175 = vpow.pop %v4174
      %v4176 = vmul.f32 %v4142, 1.442695
      %v4177 = vpow.pop %v4176
      %v4178 = vmul.f32 %v4143, 1.442695
      %v4179 = vpow.pop %v4178
      %v4180 = vmul.f32 %v4144, 1.442695
      %v4181 = vpow.pop %v4180
      %v4182 = vmul.f32 %v4145, 1.442695
      %v4183 = vpow.pop %v4182
      %v4184 = vmul.f32 %v4146, 1.442695
      %v4185 = vpow.pop %v4184
      %v4186 = vmul.f32 %v4147, 1.442695
      %v4187 = vpow.pop %v4186
      %v4188 = vmul.f32 %v4148, 1.442695
      %v4189 = vpow.pop %v4188
      %v4190 = vmul.f32 %v4149, 1.442695
      %v4191 = vpow.pop %v4190
      %v4192 = vmul.f32 %v4150, 1.442695
      %v4193 = vpow.pop %v4192
      %v4194 = vmul.f32 %v4151, 1.442695
      %v4195 = vpow.pop %v4194
      %v4196 = vmul.f32 %v4152, 1.442695
      %v4197 = vpow.pop %v4196
      %v4198 = vmul.f32 %v4153, 1.442695
      %v4199 = vpow.pop %v4198
      %v4200 = vmul.f32 %v4154, 1.442695
      %v4201 = vpow.pop %v4200
      %v4202 = vmul.f32 %v4155, 1.442695
      %v4203 = vpow.pop %v4202
      %v4204 = vmul.f32 %v4156, 1.442695
      %v4205 = vpow.pop %v4204
      %v4206 = vmul.f32 %v4157, 1.442695
      %v4207 = vpow.pop %v4206
      %v4208 = vmul.f32 %v4158, 1.442695
      %v4209 = vpow.pop %v4208
      %v4210 = vmul.f32 %v4159, 1.442695
      %v4211 = vpow.pop %v4210
      %v4212 = vmul.f32 %v4160, 1.442695
      %v4213 = vpow.pop %v4212
      %v4214 = vmul.f32 %v4161, 1.442695
      %v4215 = vpow.pop %v4214
      %v4216 = vmul.f32 %v4162, 1.442695
      %v4217 = vpow.pop %v4216
      %v4218 = vmul.f32 %v4163, 1.442695
      %v4219 = vpow.pop %v4218
      %v4220 = vmul.f32 %v4164, 1.442695
      %v4221 = vpow.pop %v4220
      %v4222 = vmul.f32 %v4165, 1.442695
      %v4223 = vpow.pop %v4222
      %v4224 = vmul.f32 %v4166, 1.442695
      %v4225 = vpow.pop %v4224
      %v4226 = vmul.f32 %v4167, 1.442695
      %v4227 = vpow.pop %v4226
      %v4228 = vmul.f32 %v4168, 1.442695
      %v4229 = vpow.pop %v4228
      %v4230 = vmul.f32 %v4169, 1.442695
      %v4231 = vpow.pop %v4230
      %v4232 = vmul.f32 %v4170, 1.442695
      %v4233 = vpow.pop %v4232
      %v4234 = vmul.f32 %v4171, 1.442695
      %v4235 = vpow.pop %v4234
      %v4236 = vadd.f32 %v4173, 1.0
      %v4237 = vadd.f32 %v4175, 1.0
      %v4238 = vadd.f32 %v4177, 1.0
      %v4239 = vadd.f32 %v4179, 1.0
      %v4240 = vadd.f32 %v4181, 1.0
      %v4241 = vadd.f32 %v4183, 1.0
      %v4242 = vadd.f32 %v4185, 1.0
      %v4243 = vadd.f32 %v4187, 1.0
      %v4244 = vadd.f32 %v4189, 1.0
      %v4245 = vadd.f32 %v4191, 1.0
      %v4246 = vadd.f32 %v4193, 1.0
      %v4247 = vadd.f32 %v4195, 1.0
      %v4248 = vadd.f32 %v4197, 1.0
      %v4249 = vadd.f32 %v4199, 1.0
      %v4250 = vadd.f32 %v4201, 1.0
      %v4251 = vadd.f32 %v4203, 1.0
      %v4252 = vadd.f32 %v4205, 1.0
      %v4253 = vadd.f32 %v4207, 1.0
      %v4254 = vadd.f32 %v4209, 1.0
      %v4255 = vadd.f32 %v4211, 1.0
      %v4256 = vadd.f32 %v4213, 1.0
      %v4257 = vadd.f32 %v4215, 1.0
      %v4258 = vadd.f32 %v4217, 1.0
      %v4259 = vadd.f32 %v4219, 1.0
      %v4260 = vadd.f32 %v4221, 1.0
      %v4261 = vadd.f32 %v4223, 1.0
      %v4262 = vadd.f32 %v4225, 1.0
      %v4263 = vadd.f32 %v4227, 1.0
      %v4264 = vadd.f32 %v4229, 1.0
      %v4265 = vadd.f32 %v4231, 1.0
      %v4266 = vadd.f32 %v4233, 1.0
      %v4267 = vadd.f32 %v4235, 1.0
      %v4268 = vrcp.pop %v4236
      %v4269 = vmul.f32 1.0, %v4268
      %v4270 = vrcp.pop %v4237
      %v4271 = vmul.f32 1.0, %v4270
      %v4272 = vrcp.pop %v4238
      %v4273 = vmul.f32 1.0, %v4272
      %v4274 = vrcp.pop %v4239
      %v4275 = vmul.f32 1.0, %v4274
      %v4276 = vrcp.pop %v4240
      %v4277 = vmul.f32 1.0, %v4276
      %v4278 = vrcp.pop %v4241
      %v4279 = vmul.f32 1.0, %v4278
      %v4280 = vrcp.pop %v4242
      %v4281 = vmul.f32 1.0, %v4280
      %v4282 = vrcp.pop %v4243
      %v4283 = vmul.f32 1.0, %v4282
      %v4284 = vrcp.pop %v4244
      %v4285 = vmul.f32 1.0, %v4284
      %v4286 = vrcp.pop %v4245
      %v4287 = vmul.f32 1.0, %v4286
      %v4288 = vrcp.pop %v4246
      %v4289 = vmul.f32 1.0, %v4288
      %v4290 = vrcp.pop %v4247
      %v4291 = vmul.f32 1.0, %v4290
      %v4292 = vrcp.pop %v4248
      %v4293 = vmul.f32 1.0, %v4292
      %v4294 = vrcp.pop %v4249
      %v4295 = vmul.f32 1.0, %v4294
      %v4296 = vrcp.pop %v4250
      %v4297 = vmul.f32 1.0, %v4296
      %v4298 = vrcp.pop %v4251
      %v4299 = vmul.f32 1.0, %v4298
      %v4300 = vrcp.pop %v4252
      %v4301 = vmul.f32 1.0, %v4300
      %v4302 = vrcp.pop %v4253
      %v4303 = vmul.f32 1.0, %v4302
      %v4304 = vrcp.pop %v4254
      %v4305 = vmul.f32 1.0, %v4304
      %v4306 = vrcp.pop %v4255
      %v4307 = vmul.f32 1.0, %v4306
      %v4308 = vrcp.pop %v4256
      %v4309 = vmul.f32 1.0, %v4308
      %v4310 = vrcp.pop %v4257
      %v4311 = vmul.f32 1.0, %v4310
      %v4312 = vrcp.pop %v4258
      %v4313 = vmul.f32 1.0, %v4312
      %v4314 = vrcp.pop %v4259
      %v4315 = vmul.f32 1.0, %v4314
      %v4316 = vrcp.pop %v4260
      %v4317 = vmul.f32 1.0, %v4316
      %v4318 = vrcp.pop %v4261
      %v4319 = vmul.f32 1.0, %v4318
      %v4320 = vrcp.pop %v4262
      %v4321 = vmul.f32 1.0, %v4320
      %v4322 = vrcp.pop %v4263
      %v4323 = vmul.f32 1.0, %v4322
      %v4324 = vrcp.pop %v4264
      %v4325 = vmul.f32 1.0, %v4324
      %v4326 = vrcp.pop %v4265
      %v4327 = vmul.f32 1.0, %v4326
      %v4328 = vrcp.pop %v4266
      %v4329 = vmul.f32 1.0, %v4328
      %v4330 = vrcp.pop %v4267
      %v4331 = vmul.f32 1.0, %v4330
      %v4332 = vmul.f32 %v3982, %v4269
      %v4333 = vmul.f32 %v3987, %v4271
      %v4334 = vmul.f32 %v3992, %v4273
      %v4335 = vmul.f32 %v3997, %v4275
      %v4336 = vmul.f32 %v4002, %v4277
      %v4337 = vmul.f32 %v4007, %v4279
      %v4338 = vmul.f32 %v4012, %v4281
      %v4339 = vmul.f32 %v4017, %v4283
      %v4340 = vmul.f32 %v4022, %v4285
      %v4341 = vmul.f32 %v4027, %v4287
      %v4342 = vmul.f32 %v4032, %v4289
      %v4343 = vmul.f32 %v4037, %v4291
      %v4344 = vmul.f32 %v4042, %v4293
      %v4345 = vmul.f32 %v4047, %v4295
      %v4346 = vmul.f32 %v4052, %v4297
      %v4347 = vmul.f32 %v4057, %v4299
      %v4348 = vmul.f32 %v4062, %v4301
      %v4349 = vmul.f32 %v4067, %v4303
      %v4350 = vmul.f32 %v4072, %v4305
      %v4351 = vmul.f32 %v4077, %v4307
      %v4352 = vmul.f32 %v4082, %v4309
      %v4353 = vmul.f32 %v4087, %v4311
      %v4354 = vmul.f32 %v4092, %v4313
      %v4355 = vmul.f32 %v4097, %v4315
      %v4356 = vmul.f32 %v4102, %v4317
      %v4357 = vmul.f32 %v4107, %v4319
      %v4358 = vmul.f32 %v4112, %v4321
      %v4359 = vmul.f32 %v4117, %v4323
      %v4360 = vmul.f32 %v4122, %v4325
      %v4361 = vmul.f32 %v4127, %v4327
      %v4362 = vmul.f32 %v4132, %v4329
      %v4363 = vmul.f32 %v4137, %v4331
      %s4364 = scalar_lea.vmem %s2, 40
      %v4365 = vld [vmem:[%s4364] sm:$0xff]
      %v4366 = vld [vmem:[%s4364 + $0x8] sm:$0xff]
      %v4367 = vld [vmem:[%s4364 + $0x10] sm:$0xff]
      %v4368 = vld [vmem:[%s4364 + $0x18] sm:$0xff]
      %v4369 = vld [vmem:[%s4364 + $0x20] sm:$0xff]
      %v4370 = vrot.slane %v4332, 6
      %v4371 = vrot.slane %v4333, 6
      %v4372 = vrot.slane %v4334, 6
      %v4373 = vrot.slane %v4335, 6
      %v4374 = vrot.slane %v4336, 6
      %v4375 = vrot.slane %v4337, 6
      %v4376 = vrot.slane %v4338, 6
      %v4377 = vrot.slane %v4339, 6
      %v4378 = vrot.slane %v4340, 6
      %v4379 = vrot.slane %v4341, 6
      %v4380 = vrot.slane %v4342, 6
      %v4381 = vrot.slane %v4343, 6
      %v4382 = vrot.slane %v4344, 6
      %v4383 = vrot.slane %v4345, 6
      %v4384 = vrot.slane %v4346, 6
      %v4385 = vrot.slane %v4347, 6
      %v4386 = vrot.slane %v4348, 6
      %v4387 = vrot.slane %v4349, 6
      %v4388 = vrot.slane %v4350, 6
      %v4389 = vrot.slane %v4351, 6
      %v4390 = vrot.slane %v4352, 6
      %v4391 = vrot.slane %v4353, 6
      %v4392 = vrot.slane %v4354, 6
      %v4393 = vrot.slane %v4355, 6
      %v4394 = vrot.slane %v4356, 6
      %v4395 = vrot.slane %v4357, 6
      %v4396 = vrot.slane %v4358, 6
      %v4397 = vrot.slane %v4359, 6
      %v4398 = vrot.slane %v4360, 6
      %v4399 = vrot.slane %v4361, 6
      %v4400 = vrot.slane %v4362, 6
      %v4401 = vrot.slane %v4363, 6
      %v4402 = vsel %vm985, %v4400, %v4401
      %v4403 = vsel %vm985, %v4399, %v4400
      %v4404 = vsel %vm985, %v4398, %v4399
      %v4405 = vsel %vm985, %v4397, %v4398
      %v4406 = vsel %vm985, %v4396, %v4397
      %v4407 = vsel %vm985, %v4395, %v4396
      %v4408 = vsel %vm985, %v4394, %v4395
      %v4409 = vsel %vm985, %v4393, %v4394
      %v4410 = vsel %vm985, %v4392, %v4393
      %v4411 = vsel %vm985, %v4391, %v4392
      %v4412 = vsel %vm985, %v4390, %v4391
      %v4413 = vsel %vm985, %v4389, %v4390
      %v4414 = vsel %vm985, %v4388, %v4389
      %v4415 = vsel %vm985, %v4387, %v4388
      %v4416 = vsel %vm985, %v4386, %v4387
      %v4417 = vsel %vm985, %v4385, %v4386
      %v4418 = vsel %vm985, %v4384, %v4385
      %v4419 = vsel %vm985, %v4383, %v4384
      %v4420 = vsel %vm985, %v4382, %v4383
      %v4421 = vsel %vm985, %v4381, %v4382
      %v4422 = vsel %vm985, %v4380, %v4381
      %v4423 = vsel %vm985, %v4379, %v4380
      %v4424 = vsel %vm985, %v4378, %v4379
      %v4425 = vsel %vm985, %v4377, %v4378
      %v4426 = vsel %vm985, %v4376, %v4377
      %v4427 = vsel %vm985, %v4375, %v4376
      %v4428 = vsel %vm985, %v4374, %v4375
      %v4429 = vsel %vm985, %v4373, %v4374
      %v4430 = vsel %vm985, %v4372, %v4373
      %v4431 = vsel %vm985, %v4371, %v4372
      %v4432 = vsel %vm985, %v4370, %v4371
      %v4433 = vsel %vm985, %v4401, %v4370
      %v4434 = vsel %vm1050, %v4433, 0.0
      %v4435 = vsel %vm1051, %v4432, 0.0
      %v4436 = vsel %vm1052, %v4431, 0.0
      %v4437 = vsel %vm1053, %v4430, 0.0
      %v4438 = vsel %vm1054, %v4429, 0.0
      %v4439 = vsel %vm1055, %v4428, 0.0
      %v4440 = vsel %vm1056, %v4427, 0.0
      %v4441 = vsel %vm1057, %v4426, 0.0
      %v4442 = vsel %vm1058, %v4425, 0.0
      %v4443 = vsel %vm1059, %v4424, 0.0
      %v4444 = vsel %vm1060, %v4423, 0.0
      %v4445 = vsel %vm1061, %v4422, 0.0
      %v4446 = vsel %vm1062, %v4421, 0.0
      %v4447 = vsel %vm1063, %v4420, 0.0
      %v4448 = vsel %vm1064, %v4419, 0.0
      %v4449 = vsel %vm1065, %v4418, 0.0
      %v4450 = vsel %vm1066, %v4417, 0.0
      %v4451 = vsel %vm1067, %v4416, 0.0
      %v4452 = vsel %vm1068, %v4415, 0.0
      %v4453 = vsel %vm1069, %v4414, 0.0
      %v4454 = vsel %vm1070, %v4413, 0.0
      %v4455 = vsel %vm1071, %v4412, 0.0
      %v4456 = vsel %vm1072, %v4411, 0.0
      %v4457 = vsel %vm1073, %v4410, 0.0
      %v4458 = vsel %vm1074, %v4409, 0.0
      %v4459 = vsel %vm1075, %v4408, 0.0
      %v4460 = vsel %vm1076, %v4407, 0.0
      %v4461 = vsel %vm1077, %v4406, 0.0
      %v4462 = vsel %vm1078, %v4405, 0.0
      %v4463 = vsel %vm1079, %v4404, 0.0
      %v4464 = vsel %vm1080, %v4403, 0.0
      %v4465 = vsel %vm1081, %v4402, 0.0
      %v4466 = vrot.slane %v4332, 7
      %v4467 = vrot.slane %v4333, 7
      %v4468 = vrot.slane %v4334, 7
      %v4469 = vrot.slane %v4335, 7
      %v4470 = vrot.slane %v4336, 7
      %v4471 = vrot.slane %v4337, 7
      %v4472 = vrot.slane %v4338, 7
      %v4473 = vrot.slane %v4339, 7
      %v4474 = vrot.slane %v4340, 7
      %v4475 = vrot.slane %v4341, 7
      %v4476 = vrot.slane %v4342, 7
      %v4477 = vrot.slane %v4343, 7
      %v4478 = vrot.slane %v4344, 7
      %v4479 = vrot.slane %v4345, 7
      %v4480 = vrot.slane %v4346, 7
      %v4481 = vrot.slane %v4347, 7
      %v4482 = vrot.slane %v4348, 7
      %v4483 = vrot.slane %v4349, 7
      %v4484 = vrot.slane %v4350, 7
      %v4485 = vrot.slane %v4351, 7
      %v4486 = vrot.slane %v4352, 7
      %v4487 = vrot.slane %v4353, 7
      %v4488 = vrot.slane %v4354, 7
      %v4489 = vrot.slane %v4355, 7
      %v4490 = vrot.slane %v4356, 7
      %v4491 = vrot.slane %v4357, 7
      %v4492 = vrot.slane %v4358, 7
      %v4493 = vrot.slane %v4359, 7
      %v4494 = vrot.slane %v4360, 7
      %v4495 = vrot.slane %v4361, 7
      %v4496 = vrot.slane %v4362, 7
      %v4497 = vrot.slane %v4363, 7
      %v4498 = vsel %vm1146, %v4496, %v4497
      %v4499 = vsel %vm1146, %v4495, %v4496
      %v4500 = vsel %vm1146, %v4494, %v4495
      %v4501 = vsel %vm1146, %v4493, %v4494
      %v4502 = vsel %vm1146, %v4492, %v4493
      %v4503 = vsel %vm1146, %v4491, %v4492
      %v4504 = vsel %vm1146, %v4490, %v4491
      %v4505 = vsel %vm1146, %v4489, %v4490
      %v4506 = vsel %vm1146, %v4488, %v4489
      %v4507 = vsel %vm1146, %v4487, %v4488
      %v4508 = vsel %vm1146, %v4486, %v4487
      %v4509 = vsel %vm1146, %v4485, %v4486
      %v4510 = vsel %vm1146, %v4484, %v4485
      %v4511 = vsel %vm1146, %v4483, %v4484
      %v4512 = vsel %vm1146, %v4482, %v4483
      %v4513 = vsel %vm1146, %v4481, %v4482
      %v4514 = vsel %vm1146, %v4480, %v4481
      %v4515 = vsel %vm1146, %v4479, %v4480
      %v4516 = vsel %vm1146, %v4478, %v4479
      %v4517 = vsel %vm1146, %v4477, %v4478
      %v4518 = vsel %vm1146, %v4476, %v4477
      %v4519 = vsel %vm1146, %v4475, %v4476
      %v4520 = vsel %vm1146, %v4474, %v4475
      %v4521 = vsel %vm1146, %v4473, %v4474
      %v4522 = vsel %vm1146, %v4472, %v4473
      %v4523 = vsel %vm1146, %v4471, %v4472
      %v4524 = vsel %vm1146, %v4470, %v4471
      %v4525 = vsel %vm1146, %v4469, %v4470
      %v4526 = vsel %vm1146, %v4468, %v4469
      %v4527 = vsel %vm1146, %v4467, %v4468
      %v4528 = vsel %vm1146, %v4466, %v4467
      %v4529 = vsel %vm1146, %v4497, %v4466
      %v4530 = vsel %vm1211, %v4529, 0.0
      %v4531 = vsel %vm1212, %v4528, 0.0
      %v4532 = vsel %vm1213, %v4527, 0.0
      %v4533 = vsel %vm1214, %v4526, 0.0
      %v4534 = vsel %vm1215, %v4525, 0.0
      %v4535 = vsel %vm1216, %v4524, 0.0
      %v4536 = vsel %vm1217, %v4523, 0.0
      %v4537 = vsel %vm1218, %v4522, 0.0
      %v4538 = vsel %vm1219, %v4521, 0.0
      %v4539 = vsel %vm1220, %v4520, 0.0
      %v4540 = vsel %vm1221, %v4519, 0.0
      %v4541 = vsel %vm1222, %v4518, 0.0
      %v4542 = vsel %vm1223, %v4517, 0.0
      %v4543 = vsel %vm1224, %v4516, 0.0
      %v4544 = vsel %vm1225, %v4515, 0.0
      %v4545 = vsel %vm1226, %v4514, 0.0
      %v4546 = vsel %vm1227, %v4513, 0.0
      %v4547 = vsel %vm1228, %v4512, 0.0
      %v4548 = vsel %vm1229, %v4511, 0.0
      %v4549 = vsel %vm1230, %v4510, 0.0
      %v4550 = vsel %vm1231, %v4509, 0.0
      %v4551 = vsel %vm1232, %v4508, 0.0
      %v4552 = vsel %vm1233, %v4507, 0.0
      %v4553 = vsel %vm1234, %v4506, 0.0
      %v4554 = vsel %vm1235, %v4505, 0.0
      %v4555 = vsel %vm1236, %v4504, 0.0
      %v4556 = vsel %vm1237, %v4503, 0.0
      %v4557 = vsel %vm1238, %v4502, 0.0
      %v4558 = vsel %vm1239, %v4501, 0.0
      %v4559 = vsel %vm1240, %v4500, 0.0
      %v4560 = vsel %vm1241, %v4499, 0.0
      %v4561 = vsel %vm1242, %v4498, 0.0
      %v4562 = vrot.slane %v4332, 1
      %v4563 = vrot.slane %v4333, 1
      %v4564 = vrot.slane %v4334, 1
      %v4565 = vrot.slane %v4335, 1
      %v4566 = vrot.slane %v4336, 1
      %v4567 = vrot.slane %v4337, 1
      %v4568 = vrot.slane %v4338, 1
      %v4569 = vrot.slane %v4339, 1
      %v4570 = vrot.slane %v4340, 1
      %v4571 = vrot.slane %v4341, 1
      %v4572 = vrot.slane %v4342, 1
      %v4573 = vrot.slane %v4343, 1
      %v4574 = vrot.slane %v4344, 1
      %v4575 = vrot.slane %v4345, 1
      %v4576 = vrot.slane %v4346, 1
      %v4577 = vrot.slane %v4347, 1
      %v4578 = vrot.slane %v4348, 1
      %v4579 = vrot.slane %v4349, 1
      %v4580 = vrot.slane %v4350, 1
      %v4581 = vrot.slane %v4351, 1
      %v4582 = vrot.slane %v4352, 1
      %v4583 = vrot.slane %v4353, 1
      %v4584 = vrot.slane %v4354, 1
      %v4585 = vrot.slane %v4355, 1
      %v4586 = vrot.slane %v4356, 1
      %v4587 = vrot.slane %v4357, 1
      %v4588 = vrot.slane %v4358, 1
      %v4589 = vrot.slane %v4359, 1
      %v4590 = vrot.slane %v4360, 1
      %v4591 = vrot.slane %v4361, 1
      %v4592 = vrot.slane %v4362, 1
      %v4593 = vrot.slane %v4363, 1
      %v4594 = vsel %vm1307, %v4592, %v4593
      %v4595 = vsel %vm1307, %v4591, %v4592
      %v4596 = vsel %vm1307, %v4590, %v4591
      %v4597 = vsel %vm1307, %v4589, %v4590
      %v4598 = vsel %vm1307, %v4588, %v4589
      %v4599 = vsel %vm1307, %v4587, %v4588
      %v4600 = vsel %vm1307, %v4586, %v4587
      %v4601 = vsel %vm1307, %v4585, %v4586
      %v4602 = vsel %vm1307, %v4584, %v4585
      %v4603 = vsel %vm1307, %v4583, %v4584
      %v4604 = vsel %vm1307, %v4582, %v4583
      %v4605 = vsel %vm1307, %v4581, %v4582
      %v4606 = vsel %vm1307, %v4580, %v4581
      %v4607 = vsel %vm1307, %v4579, %v4580
      %v4608 = vsel %vm1307, %v4578, %v4579
      %v4609 = vsel %vm1307, %v4577, %v4578
      %v4610 = vsel %vm1307, %v4576, %v4577
      %v4611 = vsel %vm1307, %v4575, %v4576
      %v4612 = vsel %vm1307, %v4574, %v4575
      %v4613 = vsel %vm1307, %v4573, %v4574
      %v4614 = vsel %vm1307, %v4572, %v4573
      %v4615 = vsel %vm1307, %v4571, %v4572
      %v4616 = vsel %vm1307, %v4570, %v4571
      %v4617 = vsel %vm1307, %v4569, %v4570
      %v4618 = vsel %vm1307, %v4568, %v4569
      %v4619 = vsel %vm1307, %v4567, %v4568
      %v4620 = vsel %vm1307, %v4566, %v4567
      %v4621 = vsel %vm1307, %v4565, %v4566
      %v4622 = vsel %vm1307, %v4564, %v4565
      %v4623 = vsel %vm1307, %v4563, %v4564
      %v4624 = vsel %vm1307, %v4562, %v4563
      %v4625 = vsel %vm1307, %v4593, %v4562
      %v4626 = vsel %vm1372, %v4624, 0.0
      %v4627 = vsel %vm1373, %v4623, 0.0
      %v4628 = vsel %vm1374, %v4622, 0.0
      %v4629 = vsel %vm1375, %v4621, 0.0
      %v4630 = vsel %vm1376, %v4620, 0.0
      %v4631 = vsel %vm1377, %v4619, 0.0
      %v4632 = vsel %vm1378, %v4618, 0.0
      %v4633 = vsel %vm1379, %v4617, 0.0
      %v4634 = vsel %vm1380, %v4616, 0.0
      %v4635 = vsel %vm1381, %v4615, 0.0
      %v4636 = vsel %vm1382, %v4614, 0.0
      %v4637 = vsel %vm1383, %v4613, 0.0
      %v4638 = vsel %vm1384, %v4612, 0.0
      %v4639 = vsel %vm1385, %v4611, 0.0
      %v4640 = vsel %vm1386, %v4610, 0.0
      %v4641 = vsel %vm1387, %v4609, 0.0
      %v4642 = vsel %vm1388, %v4608, 0.0
      %v4643 = vsel %vm1389, %v4607, 0.0
      %v4644 = vsel %vm1390, %v4606, 0.0
      %v4645 = vsel %vm1391, %v4605, 0.0
      %v4646 = vsel %vm1392, %v4604, 0.0
      %v4647 = vsel %vm1393, %v4603, 0.0
      %v4648 = vsel %vm1394, %v4602, 0.0
      %v4649 = vsel %vm1395, %v4601, 0.0
      %v4650 = vsel %vm1396, %v4600, 0.0
      %v4651 = vsel %vm1397, %v4599, 0.0
      %v4652 = vsel %vm1398, %v4598, 0.0
      %v4653 = vsel %vm1399, %v4597, 0.0
      %v4654 = vsel %vm1400, %v4596, 0.0
      %v4655 = vsel %vm1401, %v4595, 0.0
      %v4656 = vsel %vm1402, %v4594, 0.0
      %v4657 = vsel %vm1403, %v4625, 0.0
      %v4658 = vrot.slane %v4332, 2
      %v4659 = vrot.slane %v4333, 2
      %v4660 = vrot.slane %v4334, 2
      %v4661 = vrot.slane %v4335, 2
      %v4662 = vrot.slane %v4336, 2
      %v4663 = vrot.slane %v4337, 2
      %v4664 = vrot.slane %v4338, 2
      %v4665 = vrot.slane %v4339, 2
      %v4666 = vrot.slane %v4340, 2
      %v4667 = vrot.slane %v4341, 2
      %v4668 = vrot.slane %v4342, 2
      %v4669 = vrot.slane %v4343, 2
      %v4670 = vrot.slane %v4344, 2
      %v4671 = vrot.slane %v4345, 2
      %v4672 = vrot.slane %v4346, 2
      %v4673 = vrot.slane %v4347, 2
      %v4674 = vrot.slane %v4348, 2
      %v4675 = vrot.slane %v4349, 2
      %v4676 = vrot.slane %v4350, 2
      %v4677 = vrot.slane %v4351, 2
      %v4678 = vrot.slane %v4352, 2
      %v4679 = vrot.slane %v4353, 2
      %v4680 = vrot.slane %v4354, 2
      %v4681 = vrot.slane %v4355, 2
      %v4682 = vrot.slane %v4356, 2
      %v4683 = vrot.slane %v4357, 2
      %v4684 = vrot.slane %v4358, 2
      %v4685 = vrot.slane %v4359, 2
      %v4686 = vrot.slane %v4360, 2
      %v4687 = vrot.slane %v4361, 2
      %v4688 = vrot.slane %v4362, 2
      %v4689 = vrot.slane %v4363, 2
      %v4690 = vsel %vm1468, %v4688, %v4689
      %v4691 = vsel %vm1468, %v4687, %v4688
      %v4692 = vsel %vm1468, %v4686, %v4687
      %v4693 = vsel %vm1468, %v4685, %v4686
      %v4694 = vsel %vm1468, %v4684, %v4685
      %v4695 = vsel %vm1468, %v4683, %v4684
      %v4696 = vsel %vm1468, %v4682, %v4683
      %v4697 = vsel %vm1468, %v4681, %v4682
      %v4698 = vsel %vm1468, %v4680, %v4681
      %v4699 = vsel %vm1468, %v4679, %v4680
      %v4700 = vsel %vm1468, %v4678, %v4679
      %v4701 = vsel %vm1468, %v4677, %v4678
      %v4702 = vsel %vm1468, %v4676, %v4677
      %v4703 = vsel %vm1468, %v4675, %v4676
      %v4704 = vsel %vm1468, %v4674, %v4675
      %v4705 = vsel %vm1468, %v4673, %v4674
      %v4706 = vsel %vm1468, %v4672, %v4673
      %v4707 = vsel %vm1468, %v4671, %v4672
      %v4708 = vsel %vm1468, %v4670, %v4671
      %v4709 = vsel %vm1468, %v4669, %v4670
      %v4710 = vsel %vm1468, %v4668, %v4669
      %v4711 = vsel %vm1468, %v4667, %v4668
      %v4712 = vsel %vm1468, %v4666, %v4667
      %v4713 = vsel %vm1468, %v4665, %v4666
      %v4714 = vsel %vm1468, %v4664, %v4665
      %v4715 = vsel %vm1468, %v4663, %v4664
      %v4716 = vsel %vm1468, %v4662, %v4663
      %v4717 = vsel %vm1468, %v4661, %v4662
      %v4718 = vsel %vm1468, %v4660, %v4661
      %v4719 = vsel %vm1468, %v4659, %v4660
      %v4720 = vsel %vm1468, %v4658, %v4659
      %v4721 = vsel %vm1468, %v4689, %v4658
      %v4722 = vsel %vm1533, %v4720, 0.0
      %v4723 = vsel %vm1534, %v4719, 0.0
      %v4724 = vsel %vm1535, %v4718, 0.0
      %v4725 = vsel %vm1536, %v4717, 0.0
      %v4726 = vsel %vm1537, %v4716, 0.0
      %v4727 = vsel %vm1538, %v4715, 0.0
      %v4728 = vsel %vm1539, %v4714, 0.0
      %v4729 = vsel %vm1540, %v4713, 0.0
      %v4730 = vsel %vm1541, %v4712, 0.0
      %v4731 = vsel %vm1542, %v4711, 0.0
      %v4732 = vsel %vm1543, %v4710, 0.0
      %v4733 = vsel %vm1544, %v4709, 0.0
      %v4734 = vsel %vm1545, %v4708, 0.0
      %v4735 = vsel %vm1546, %v4707, 0.0
      %v4736 = vsel %vm1547, %v4706, 0.0
      %v4737 = vsel %vm1548, %v4705, 0.0
      %v4738 = vsel %vm1549, %v4704, 0.0
      %v4739 = vsel %vm1550, %v4703, 0.0
      %v4740 = vsel %vm1551, %v4702, 0.0
      %v4741 = vsel %vm1552, %v4701, 0.0
      %v4742 = vsel %vm1553, %v4700, 0.0
      %v4743 = vsel %vm1554, %v4699, 0.0
      %v4744 = vsel %vm1555, %v4698, 0.0
      %v4745 = vsel %vm1556, %v4697, 0.0
      %v4746 = vsel %vm1557, %v4696, 0.0
      %v4747 = vsel %vm1558, %v4695, 0.0
      %v4748 = vsel %vm1559, %v4694, 0.0
      %v4749 = vsel %vm1560, %v4693, 0.0
      %v4750 = vsel %vm1561, %v4692, 0.0
      %v4751 = vsel %vm1562, %v4691, 0.0
      %v4752 = vsel %vm1563, %v4690, 0.0
      %v4753 = vsel %vm1564, %v4721, 0.0
      %4786 = vrot.lane.b32.xlu0 %v4530, 8
      %v4787 = vpop.permute.xlu0 %4786
      %4788 = vrot.lane.b32.xlu0 %v4531, 8
      %v4789 = vpop.permute.xlu0 %4788
      %4790 = vrot.lane.b32.xlu0 %v4532, 8
      %v4791 = vpop.permute.xlu0 %4790
      %4792 = vrot.lane.b32.xlu0 %v4533, 8
      %v4793 = vpop.permute.xlu0 %4792
      %4794 = vrot.lane.b32.xlu0 %v4534, 8
      %v4795 = vpop.permute.xlu0 %4794
      %4796 = vrot.lane.b32.xlu0 %v4535, 8
      %v4797 = vpop.permute.xlu0 %4796
      %4798 = vrot.lane.b32.xlu0 %v4536, 8
      %v4799 = vpop.permute.xlu0 %4798
      %4800 = vrot.lane.b32.xlu0 %v4537, 8
      %v4801 = vpop.permute.xlu0 %4800
      %4802 = vrot.lane.b32.xlu0 %v4538, 8
      %v4803 = vpop.permute.xlu0 %4802
      %4804 = vrot.lane.b32.xlu0 %v4539, 8
      %v4805 = vpop.permute.xlu0 %4804
      %4806 = vrot.lane.b32.xlu0 %v4540, 8
      %v4807 = vpop.permute.xlu0 %4806
      %4808 = vrot.lane.b32.xlu0 %v4541, 8
      %v4809 = vpop.permute.xlu0 %4808
      %4810 = vrot.lane.b32.xlu0 %v4542, 8
      %v4811 = vpop.permute.xlu0 %4810
      %4812 = vrot.lane.b32.xlu0 %v4543, 8
      %v4813 = vpop.permute.xlu0 %4812
      %4814 = vrot.lane.b32.xlu0 %v4544, 8
      %v4815 = vpop.permute.xlu0 %4814
      %4816 = vrot.lane.b32.xlu0 %v4545, 8
      %v4817 = vpop.permute.xlu0 %4816
      %4818 = vrot.lane.b32.xlu0 %v4546, 8
      %v4819 = vpop.permute.xlu0 %4818
      %4820 = vrot.lane.b32.xlu0 %v4547, 8
      %v4821 = vpop.permute.xlu0 %4820
      %4822 = vrot.lane.b32.xlu0 %v4548, 8
      %v4823 = vpop.permute.xlu0 %4822
      %4824 = vrot.lane.b32.xlu0 %v4549, 8
      %v4825 = vpop.permute.xlu0 %4824
      %4826 = vrot.lane.b32.xlu0 %v4550, 8
      %v4827 = vpop.permute.xlu0 %4826
      %4828 = vrot.lane.b32.xlu0 %v4551, 8
      %v4829 = vpop.permute.xlu0 %4828
      %4830 = vrot.lane.b32.xlu0 %v4552, 8
      %v4831 = vpop.permute.xlu0 %4830
      %4832 = vrot.lane.b32.xlu0 %v4553, 8
      %v4833 = vpop.permute.xlu0 %4832
      %4834 = vrot.lane.b32.xlu0 %v4554, 8
      %v4835 = vpop.permute.xlu0 %4834
      %4836 = vrot.lane.b32.xlu0 %v4555, 8
      %v4837 = vpop.permute.xlu0 %4836
      %4838 = vrot.lane.b32.xlu0 %v4556, 8
      %v4839 = vpop.permute.xlu0 %4838
      %4840 = vrot.lane.b32.xlu0 %v4557, 8
      %v4841 = vpop.permute.xlu0 %4840
      %4842 = vrot.lane.b32.xlu0 %v4558, 8
      %v4843 = vpop.permute.xlu0 %4842
      %4844 = vrot.lane.b32.xlu0 %v4559, 8
      %v4845 = vpop.permute.xlu0 %4844
      %4846 = vrot.lane.b32.xlu0 %v4560, 8
      %v4847 = vpop.permute.xlu0 %4846
      %4848 = vrot.lane.b32.xlu0 %v4561, 8
      %v4849 = vpop.permute.xlu0 %4848
      %4914 = vrot.lane.b32.xlu0 %v4332, 16
      %v4915 = vpop.permute.xlu0 %4914
      %4916 = vrot.lane.b32.xlu0 %v4333, 16
      %v4917 = vpop.permute.xlu0 %4916
      %4918 = vrot.lane.b32.xlu0 %v4334, 16
      %v4919 = vpop.permute.xlu0 %4918
      %4920 = vrot.lane.b32.xlu0 %v4335, 16
      %v4921 = vpop.permute.xlu0 %4920
      %4922 = vrot.lane.b32.xlu0 %v4336, 16
      %v4923 = vpop.permute.xlu0 %4922
      %4924 = vrot.lane.b32.xlu0 %v4337, 16
      %v4925 = vpop.permute.xlu0 %4924
      %4926 = vrot.lane.b32.xlu0 %v4338, 16
      %v4927 = vpop.permute.xlu0 %4926
      %4928 = vrot.lane.b32.xlu0 %v4339, 16
      %v4929 = vpop.permute.xlu0 %4928
      %4930 = vrot.lane.b32.xlu0 %v4340, 16
      %v4931 = vpop.permute.xlu0 %4930
      %4932 = vrot.lane.b32.xlu0 %v4341, 16
      %v4933 = vpop.permute.xlu0 %4932
      %4934 = vrot.lane.b32.xlu0 %v4342, 16
      %v4935 = vpop.permute.xlu0 %4934
      %4936 = vrot.lane.b32.xlu0 %v4343, 16
      %v4937 = vpop.permute.xlu0 %4936
      %4938 = vrot.lane.b32.xlu0 %v4344, 16
      %v4939 = vpop.permute.xlu0 %4938
      %4940 = vrot.lane.b32.xlu0 %v4345, 16
      %v4941 = vpop.permute.xlu0 %4940
      %4942 = vrot.lane.b32.xlu0 %v4346, 16
      %v4943 = vpop.permute.xlu0 %4942
      %4944 = vrot.lane.b32.xlu0 %v4347, 16
      %v4945 = vpop.permute.xlu0 %4944
      %4946 = vrot.lane.b32.xlu0 %v4348, 16
      %v4947 = vpop.permute.xlu0 %4946
      %4948 = vrot.lane.b32.xlu0 %v4349, 16
      %v4949 = vpop.permute.xlu0 %4948
      %4950 = vrot.lane.b32.xlu0 %v4350, 16
      %v4951 = vpop.permute.xlu0 %4950
      %4952 = vrot.lane.b32.xlu0 %v4351, 16
      %v4953 = vpop.permute.xlu0 %4952
      %4954 = vrot.lane.b32.xlu0 %v4352, 16
      %v4955 = vpop.permute.xlu0 %4954
      %4956 = vrot.lane.b32.xlu0 %v4353, 16
      %v4957 = vpop.permute.xlu0 %4956
      %4958 = vrot.lane.b32.xlu0 %v4354, 16
      %v4959 = vpop.permute.xlu0 %4958
      %4960 = vrot.lane.b32.xlu0 %v4355, 16
      %v4961 = vpop.permute.xlu0 %4960
      %4962 = vrot.lane.b32.xlu0 %v4356, 16
      %v4963 = vpop.permute.xlu0 %4962
      %4964 = vrot.lane.b32.xlu0 %v4357, 16
      %v4965 = vpop.permute.xlu0 %4964
      %4966 = vrot.lane.b32.xlu0 %v4358, 16
      %v4967 = vpop.permute.xlu0 %4966
      %4968 = vrot.lane.b32.xlu0 %v4359, 16
      %v4969 = vpop.permute.xlu0 %4968
      %4970 = vrot.lane.b32.xlu0 %v4360, 16
      %v4971 = vpop.permute.xlu0 %4970
      %4972 = vrot.lane.b32.xlu0 %v4361, 16
      %v4973 = vpop.permute.xlu0 %4972
      %4974 = vrot.lane.b32.xlu0 %v4362, 16
      %v4975 = vpop.permute.xlu0 %4974
      %4976 = vrot.lane.b32.xlu0 %v4363, 16
      %v4977 = vpop.permute.xlu0 %4976
      %5042 = vrot.lane.b32.xlu0 %v4626, 24
      %v5043 = vpop.permute.xlu0 %5042
      %5044 = vrot.lane.b32.xlu0 %v4627, 24
      %v5045 = vpop.permute.xlu0 %5044
      %5046 = vrot.lane.b32.xlu0 %v4628, 24
      %v5047 = vpop.permute.xlu0 %5046
      %5048 = vrot.lane.b32.xlu0 %v4629, 24
      %v5049 = vpop.permute.xlu0 %5048
      %5050 = vrot.lane.b32.xlu0 %v4630, 24
      %v5051 = vpop.permute.xlu0 %5050
      %5052 = vrot.lane.b32.xlu0 %v4631, 24
      %v5053 = vpop.permute.xlu0 %5052
      %5054 = vrot.lane.b32.xlu0 %v4632, 24
      %v5055 = vpop.permute.xlu0 %5054
      %5056 = vrot.lane.b32.xlu0 %v4633, 24
      %v5057 = vpop.permute.xlu0 %5056
      %5058 = vrot.lane.b32.xlu0 %v4634, 24
      %v5059 = vpop.permute.xlu0 %5058
      %5060 = vrot.lane.b32.xlu0 %v4635, 24
      %v5061 = vpop.permute.xlu0 %5060
      %5062 = vrot.lane.b32.xlu0 %v4636, 24
      %v5063 = vpop.permute.xlu0 %5062
      %5064 = vrot.lane.b32.xlu0 %v4637, 24
      %v5065 = vpop.permute.xlu0 %5064
      %5066 = vrot.lane.b32.xlu0 %v4638, 24
      %v5067 = vpop.permute.xlu0 %5066
      %5068 = vrot.lane.b32.xlu0 %v4639, 24
      %v5069 = vpop.permute.xlu0 %5068
      %5070 = vrot.lane.b32.xlu0 %v4640, 24
      %v5071 = vpop.permute.xlu0 %5070
      %5072 = vrot.lane.b32.xlu0 %v4641, 24
      %v5073 = vpop.permute.xlu0 %5072
      %5074 = vrot.lane.b32.xlu0 %v4642, 24
      %v5075 = vpop.permute.xlu0 %5074
      %5076 = vrot.lane.b32.xlu0 %v4643, 24
      %v5077 = vpop.permute.xlu0 %5076
      %5078 = vrot.lane.b32.xlu0 %v4644, 24
      %v5079 = vpop.permute.xlu0 %5078
      %5080 = vrot.lane.b32.xlu0 %v4645, 24
      %v5081 = vpop.permute.xlu0 %5080
      %5082 = vrot.lane.b32.xlu0 %v4646, 24
      %v5083 = vpop.permute.xlu0 %5082
      %5084 = vrot.lane.b32.xlu0 %v4647, 24
      %v5085 = vpop.permute.xlu0 %5084
      %5086 = vrot.lane.b32.xlu0 %v4648, 24
      %v5087 = vpop.permute.xlu0 %5086
      %5088 = vrot.lane.b32.xlu0 %v4649, 24
      %v5089 = vpop.permute.xlu0 %5088
      %5090 = vrot.lane.b32.xlu0 %v4650, 24
      %v5091 = vpop.permute.xlu0 %5090
      %5092 = vrot.lane.b32.xlu0 %v4651, 24
      %v5093 = vpop.permute.xlu0 %5092
      %5094 = vrot.lane.b32.xlu0 %v4652, 24
      %v5095 = vpop.permute.xlu0 %5094
      %5096 = vrot.lane.b32.xlu0 %v4653, 24
      %v5097 = vpop.permute.xlu0 %5096
      %5098 = vrot.lane.b32.xlu0 %v4654, 24
      %v5099 = vpop.permute.xlu0 %5098
      %5100 = vrot.lane.b32.xlu0 %v4655, 24
      %v5101 = vpop.permute.xlu0 %5100
      %5102 = vrot.lane.b32.xlu0 %v4656, 24
      %v5103 = vpop.permute.xlu0 %5102
      %5104 = vrot.lane.b32.xlu0 %v4657, 24
      %v5105 = vpop.permute.xlu0 %5104
      %5170 = vrot.lane.b32.xlu0 %v4722, 32
      %v5171 = vpop.permute.xlu0 %5170
      %5172 = vrot.lane.b32.xlu0 %v4723, 32
      %v5173 = vpop.permute.xlu0 %5172
      %5174 = vrot.lane.b32.xlu0 %v4724, 32
      %v5175 = vpop.permute.xlu0 %5174
      %5176 = vrot.lane.b32.xlu0 %v4725, 32
      %v5177 = vpop.permute.xlu0 %5176
      %5178 = vrot.lane.b32.xlu0 %v4726, 32
      %v5179 = vpop.permute.xlu0 %5178
      %5180 = vrot.lane.b32.xlu0 %v4727, 32
      %v5181 = vpop.permute.xlu0 %5180
      %5182 = vrot.lane.b32.xlu0 %v4728, 32
      %v5183 = vpop.permute.xlu0 %5182
      %5184 = vrot.lane.b32.xlu0 %v4729, 32
      %v5185 = vpop.permute.xlu0 %5184
      %5186 = vrot.lane.b32.xlu0 %v4730, 32
      %v5187 = vpop.permute.xlu0 %5186
      %5188 = vrot.lane.b32.xlu0 %v4731, 32
      %v5189 = vpop.permute.xlu0 %5188
      %5190 = vrot.lane.b32.xlu0 %v4732, 32
      %v5191 = vpop.permute.xlu0 %5190
      %5192 = vrot.lane.b32.xlu0 %v4733, 32
      %v5193 = vpop.permute.xlu0 %5192
      %5194 = vrot.lane.b32.xlu0 %v4734, 32
      %v5195 = vpop.permute.xlu0 %5194
      %5196 = vrot.lane.b32.xlu0 %v4735, 32
      %v5197 = vpop.permute.xlu0 %5196
      %5198 = vrot.lane.b32.xlu0 %v4736, 32
      %v5199 = vpop.permute.xlu0 %5198
      %5200 = vrot.lane.b32.xlu0 %v4737, 32
      %v5201 = vpop.permute.xlu0 %5200
      %5202 = vrot.lane.b32.xlu0 %v4738, 32
      %v5203 = vpop.permute.xlu0 %5202
      %5204 = vrot.lane.b32.xlu0 %v4739, 32
      %v5205 = vpop.permute.xlu0 %5204
      %5206 = vrot.lane.b32.xlu0 %v4740, 32
      %v5207 = vpop.permute.xlu0 %5206
      %5208 = vrot.lane.b32.xlu0 %v4741, 32
      %v5209 = vpop.permute.xlu0 %5208
      %5210 = vrot.lane.b32.xlu0 %v4742, 32
      %v5211 = vpop.permute.xlu0 %5210
      %5212 = vrot.lane.b32.xlu0 %v4743, 32
      %v5213 = vpop.permute.xlu0 %5212
      %5214 = vrot.lane.b32.xlu0 %v4744, 32
      %v5215 = vpop.permute.xlu0 %5214
      %5216 = vrot.lane.b32.xlu0 %v4745, 32
      %v5217 = vpop.permute.xlu0 %5216
      %5218 = vrot.lane.b32.xlu0 %v4746, 32
      %v5219 = vpop.permute.xlu0 %5218
      %5220 = vrot.lane.b32.xlu0 %v4747, 32
      %v5221 = vpop.permute.xlu0 %5220
      %5222 = vrot.lane.b32.xlu0 %v4748, 32
      %v5223 = vpop.permute.xlu0 %5222
      %5224 = vrot.lane.b32.xlu0 %v4749, 32
      %v5225 = vpop.permute.xlu0 %5224
      %5226 = vrot.lane.b32.xlu0 %v4750, 32
      %v5227 = vpop.permute.xlu0 %5226
      %5228 = vrot.lane.b32.xlu0 %v4751, 32
      %v5229 = vpop.permute.xlu0 %5228
      %5230 = vrot.lane.b32.xlu0 %v4752, 32
      %v5231 = vpop.permute.xlu0 %5230
      %5232 = vrot.lane.b32.xlu0 %v4753, 32
      %v5233 = vpop.permute.xlu0 %5232
      %v5266 = vsel %vm3688, %v4434, %v4787
      %v5267 = vsel %vm3688, %v4435, %v4789
      %v5268 = vsel %vm3688, %v4436, %v4791
      %v5269 = vsel %vm3688, %v4437, %v4793
      %v5270 = vsel %vm3688, %v4438, %v4795
      %v5271 = vsel %vm3688, %v4439, %v4797
      %v5272 = vsel %vm3688, %v4440, %v4799
      %v5273 = vsel %vm3688, %v4441, %v4801
      %v5274 = vsel %vm3688, %v4442, %v4803
      %v5275 = vsel %vm3688, %v4443, %v4805
      %v5276 = vsel %vm3688, %v4444, %v4807
      %v5277 = vsel %vm3688, %v4445, %v4809
      %v5278 = vsel %vm3688, %v4446, %v4811
      %v5279 = vsel %vm3688, %v4447, %v4813
      %v5280 = vsel %vm3688, %v4448, %v4815
      %v5281 = vsel %vm3688, %v4449, %v4817
      %v5282 = vsel %vm3688, %v4450, %v4819
      %v5283 = vsel %vm3688, %v4451, %v4821
      %v5284 = vsel %vm3688, %v4452, %v4823
      %v5285 = vsel %vm3688, %v4453, %v4825
      %v5286 = vsel %vm3688, %v4454, %v4827
      %v5287 = vsel %vm3688, %v4455, %v4829
      %v5288 = vsel %vm3688, %v4456, %v4831
      %v5289 = vsel %vm3688, %v4457, %v4833
      %v5290 = vsel %vm3688, %v4458, %v4835
      %v5291 = vsel %vm3688, %v4459, %v4837
      %v5292 = vsel %vm3688, %v4460, %v4839
      %v5293 = vsel %vm3688, %v4461, %v4841
      %v5294 = vsel %vm3688, %v4462, %v4843
      %v5295 = vsel %vm3688, %v4463, %v4845
      %v5296 = vsel %vm3688, %v4464, %v4847
      %v5297 = vsel %vm3688, %v4465, %v4849
      %v5298 = vsel %vm2109, %v5266, %v4915
      %v5299 = vsel %vm2109, %v5267, %v4917
      %v5300 = vsel %vm2109, %v5268, %v4919
      %v5301 = vsel %vm2109, %v5269, %v4921
      %v5302 = vsel %vm2109, %v5270, %v4923
      %v5303 = vsel %vm2109, %v5271, %v4925
      %v5304 = vsel %vm2109, %v5272, %v4927
      %v5305 = vsel %vm2109, %v5273, %v4929
      %v5306 = vsel %vm2109, %v5274, %v4931
      %v5307 = vsel %vm2109, %v5275, %v4933
      %v5308 = vsel %vm2109, %v5276, %v4935
      %v5309 = vsel %vm2109, %v5277, %v4937
      %v5310 = vsel %vm2109, %v5278, %v4939
      %v5311 = vsel %vm2109, %v5279, %v4941
      %v5312 = vsel %vm2109, %v5280, %v4943
      %v5313 = vsel %vm2109, %v5281, %v4945
      %v5314 = vsel %vm2109, %v5282, %v4947
      %v5315 = vsel %vm2109, %v5283, %v4949
      %v5316 = vsel %vm2109, %v5284, %v4951
      %v5317 = vsel %vm2109, %v5285, %v4953
      %v5318 = vsel %vm2109, %v5286, %v4955
      %v5319 = vsel %vm2109, %v5287, %v4957
      %v5320 = vsel %vm2109, %v5288, %v4959
      %v5321 = vsel %vm2109, %v5289, %v4961
      %v5322 = vsel %vm2109, %v5290, %v4963
      %v5323 = vsel %vm2109, %v5291, %v4965
      %v5324 = vsel %vm2109, %v5292, %v4967
      %v5325 = vsel %vm2109, %v5293, %v4969
      %v5326 = vsel %vm2109, %v5294, %v4971
      %v5327 = vsel %vm2109, %v5295, %v4973
      %v5328 = vsel %vm2109, %v5296, %v4975
      %v5329 = vsel %vm2109, %v5297, %v4977
      %v5330 = vsel %vm3753, %v5298, %v5043
      %v5331 = vsel %vm3753, %v5299, %v5045
      %v5332 = vsel %vm3753, %v5300, %v5047
      %v5333 = vsel %vm3753, %v5301, %v5049
      %v5334 = vsel %vm3753, %v5302, %v5051
      %v5335 = vsel %vm3753, %v5303, %v5053
      %v5336 = vsel %vm3753, %v5304, %v5055
      %v5337 = vsel %vm3753, %v5305, %v5057
      %v5338 = vsel %vm3753, %v5306, %v5059
      %v5339 = vsel %vm3753, %v5307, %v5061
      %v5340 = vsel %vm3753, %v5308, %v5063
      %v5341 = vsel %vm3753, %v5309, %v5065
      %v5342 = vsel %vm3753, %v5310, %v5067
      %v5343 = vsel %vm3753, %v5311, %v5069
      %v5344 = vsel %vm3753, %v5312, %v5071
      %v5345 = vsel %vm3753, %v5313, %v5073
      %v5346 = vsel %vm3753, %v5314, %v5075
      %v5347 = vsel %vm3753, %v5315, %v5077
      %v5348 = vsel %vm3753, %v5316, %v5079
      %v5349 = vsel %vm3753, %v5317, %v5081
      %v5350 = vsel %vm3753, %v5318, %v5083
      %v5351 = vsel %vm3753, %v5319, %v5085
      %v5352 = vsel %vm3753, %v5320, %v5087
      %v5353 = vsel %vm3753, %v5321, %v5089
      %v5354 = vsel %vm3753, %v5322, %v5091
      %v5355 = vsel %vm3753, %v5323, %v5093
      %v5356 = vsel %vm3753, %v5324, %v5095
      %v5357 = vsel %vm3753, %v5325, %v5097
      %v5358 = vsel %vm3753, %v5326, %v5099
      %v5359 = vsel %vm3753, %v5327, %v5101
      %v5360 = vsel %vm3753, %v5328, %v5103
      %v5361 = vsel %vm3753, %v5329, %v5105
      %v5362 = vsel %vm2142, %v5330, %v5171
      %v5363 = vsel %vm2142, %v5331, %v5173
      %v5364 = vsel %vm2142, %v5332, %v5175
      %v5365 = vsel %vm2142, %v5333, %v5177
      %v5366 = vsel %vm2142, %v5334, %v5179
      %v5367 = vsel %vm2142, %v5335, %v5181
      %v5368 = vsel %vm2142, %v5336, %v5183
      %v5369 = vsel %vm2142, %v5337, %v5185
      %v5370 = vsel %vm2142, %v5338, %v5187
      %v5371 = vsel %vm2142, %v5339, %v5189
      %v5372 = vsel %vm2142, %v5340, %v5191
      %v5373 = vsel %vm2142, %v5341, %v5193
      %v5374 = vsel %vm2142, %v5342, %v5195
      %v5375 = vsel %vm2142, %v5343, %v5197
      %v5376 = vsel %vm2142, %v5344, %v5199
      %v5377 = vsel %vm2142, %v5345, %v5201
      %v5378 = vsel %vm2142, %v5346, %v5203
      %v5379 = vsel %vm2142, %v5347, %v5205
      %v5380 = vsel %vm2142, %v5348, %v5207
      %v5381 = vsel %vm2142, %v5349, %v5209
      %v5382 = vsel %vm2142, %v5350, %v5211
      %v5383 = vsel %vm2142, %v5351, %v5213
      %v5384 = vsel %vm2142, %v5352, %v5215
      %v5385 = vsel %vm2142, %v5353, %v5217
      %v5386 = vsel %vm2142, %v5354, %v5219
      %v5387 = vsel %vm2142, %v5355, %v5221
      %v5388 = vsel %vm2142, %v5356, %v5223
      %v5389 = vsel %vm2142, %v5357, %v5225
      %v5390 = vsel %vm2142, %v5358, %v5227
      %v5391 = vsel %vm2142, %v5359, %v5229
      %v5392 = vsel %vm2142, %v5360, %v5231
      %v5393 = vsel %vm2142, %v5361, %v5233
      %v5395 = vsel %vm3818, %v5362, 0
      %v5398 = vsel %vm3818, %v5363, 0
      %v5401 = vsel %vm3818, %v5364, 0
      %v5404 = vsel %vm3818, %v5365, 0
      %v5407 = vsel %vm3818, %v5366, 0
      %v5410 = vsel %vm3818, %v5367, 0
      %v5413 = vsel %vm3818, %v5368, 0
      %v5416 = vsel %vm3818, %v5369, 0
      %v5419 = vsel %vm3818, %v5370, 0
      %v5422 = vsel %vm3818, %v5371, 0
      %v5425 = vsel %vm3818, %v5372, 0
      %v5428 = vsel %vm3818, %v5373, 0
      %v5431 = vsel %vm3818, %v5374, 0
      %v5434 = vsel %vm3818, %v5375, 0
      %v5437 = vsel %vm3818, %v5376, 0
      %v5440 = vsel %vm3818, %v5377, 0
      %v5443 = vsel %vm3818, %v5378, 0
      %v5446 = vsel %vm3818, %v5379, 0
      %v5449 = vsel %vm3818, %v5380, 0
      %v5452 = vsel %vm3818, %v5381, 0
      %v5455 = vsel %vm3818, %v5382, 0
      %v5458 = vsel %vm3818, %v5383, 0
      %v5461 = vsel %vm3818, %v5384, 0
      %v5464 = vsel %vm3818, %v5385, 0
      %v5467 = vsel %vm3818, %v5386, 0
      %v5470 = vsel %vm3818, %v5387, 0
      %v5473 = vsel %vm3818, %v5388, 0
      %v5476 = vsel %vm3818, %v5389, 0
      %v5479 = vsel %vm3818, %v5390, 0
      %v5482 = vsel %vm3818, %v5391, 0
      %v5485 = vsel %vm3818, %v5392, 0
      %v5488 = vsel %vm3818, %v5393, 0
      %5490 = vmatprep.subr.mxu0 0.0
      %5491 = vmatpush1.msra.mxu0 %v4365
      %5492 = vmatprep.subr.mxu0 0.0
      %5493 = vmatpush1.msra.mxu0 %v4366
      %5494 = vmatprep.subr.mxu0 0.0
      %5495 = vmatpush1.msra.mxu0 %v4367
      %5496 = vmatprep.subr.mxu0 0.0
      %5497 = vmatpush1.msra.mxu0 %v4368
      %5498 = vmatprep.subr.mxu0 0.0
      %5499 = vmatpush1.msra.mxu0 %v4369
      %5500 = vmatprep.subr.mxu0 0.0
      %5501 = vmatpush1.msra.mxu0 0.0
      %5502 = vmatprep.subr.mxu0 0.0
      %5503 = vmatpush1.msra.mxu0 0.0
      %5504 = vmatprep.subr.mxu0 0.0
      %5505 = vmatpush1.msra.mxu0 0.0
      %5506 = vmatprep.subr.mxu0 0.0
      %5507 = vmatpush1.msra.mxu0 0.0
      %5508 = vmatprep.subr.mxu0 0.0
      %5509 = vmatpush1.msra.mxu0 0.0
      %5510 = vmatprep.subr.mxu0 0.0
      %5511 = vmatpush1.msra.mxu0 0.0
      %5512 = vmatprep.subr.mxu0 0.0
      %5513 = vmatpush1.msra.mxu0 0.0
      %5514 = vmatprep.subr.mxu0 0.0
      %5515 = vmatpush1.msra.mxu0 0.0
      %5516 = vmatprep.subr.mxu0 0.0
      %5517 = vmatpush1.msra.mxu0 0.0
      %5518 = vmatprep.subr.mxu0 0.0
      %5519 = vmatpush1.msra.mxu0 0.0
      %5520 = vmatprep.subr.mxu0 0.0
      %5521 = vmatpush1.msra.mxu0 0.0
      %5522 = vmatprep.subr.mxu0 0.0
      %5523 = vmatpush1.msra.mxu0 0.0
      %5524 = vmatprep.subr.mxu0 0.0
      %5525 = vmatpush1.msra.mxu0 0.0
      %5526 = vmatprep.subr.mxu0 0.0
      %5527 = vmatpush1.msra.mxu0 0.0
      %5528 = vmatprep.subr.mxu0 0.0
      %5529 = vmatpush1.msra.mxu0 0.0
      %5530 = vmatprep.subr.mxu0 0.0
      %5531 = vmatpush1.msra.mxu0 0.0
      %5532 = vmatprep.subr.mxu0 0.0
      %5533 = vmatpush1.msra.mxu0 0.0
      %5534 = vmatprep.subr.mxu0 0.0
      %5535 = vmatpush1.msra.mxu0 0.0
      %5536 = vmatprep.subr.mxu0 0.0
      %5537 = vmatpush1.msra.mxu0 0.0
      %5538 = vmatprep.subr.mxu0 0.0
      %5539 = vmatpush1.msra.mxu0 0.0
      %5540 = vmatprep.subr.mxu0 0.0
      %5541 = vmatpush1.msra.mxu0 0.0
      %5542 = vmatprep.subr.mxu0 0.0
      %5543 = vmatpush1.msra.mxu0 0.0
      %5544 = vmatprep.subr.mxu0 0.0
      %5545 = vmatpush1.msra.mxu0 0.0
      %5546 = vmatprep.subr.mxu0 0.0
      %5547 = vmatpush1.msra.mxu0 0.0
      %5548 = vmatprep.subr.mxu0 0.0
      %5549 = vmatpush1.msra.mxu0 0.0
      %5550 = vmatprep.subr.mxu0 0.0
      %5551 = vmatpush1.msra.mxu0 0.0
      %5552 = vmatprep.subr.mxu0 0.0
      %5553 = vmatpush1.msra.mxu0 0.0
      %5554 = vmatprep.mubr.f32.mxu0 0.0
      %5555 = vmatmul.mubr.f32.gmra.mrb[0].mxu0 %v5395
      %v5556 = vpop.f32.mrb[0].mxu0
      %v5557 = vadd.f32 0.0, %v5556
      %v5558 = vpop.f32.mrb[0].mxu0
      %5559 = vmatprep.mubr.f32.mxu0 0.0
      %5560 = vmatmul.mubr.f32.gmra.mrb[0].mxu0 %v5398
      %v5561 = vpop.f32.mrb[0].mxu0
      %v5562 = vadd.f32 0.0, %v5561
      %v5563 = vpop.f32.mrb[0].mxu0
      %5564 = vmatprep.mubr.f32.mxu0 0.0
      %5565 = vmatmul.mubr.f32.gmra.mrb[0].mxu0 %v5401
      %v5566 = vpop.f32.mrb[0].mxu0
      %v5567 = vadd.f32 0.0, %v5566
      %v5568 = vpop.f32.mrb[0].mxu0
      %5569 = vmatprep.mubr.f32.mxu0 0.0
      %5570 = vmatmul.mubr.f32.gmra.mrb[0].mxu0 %v5404
      %v5571 = vpop.f32.mrb[0].mxu0
      %v5572 = vadd.f32 0.0, %v5571
      %v5573 = vpop.f32.mrb[0].mxu0
      %5574 = vmatprep.mubr.f32.mxu0 0.0
      %5575 = vmatmul.mubr.f32.gmra.mrb[0].mxu0 %v5407
      %v5576 = vpop.f32.mrb[0].mxu0
      %v5577 = vadd.f32 0.0, %v5576
      %v5578 = vpop.f32.mrb[0].mxu0
      %5579 = vmatprep.mubr.f32.mxu0 0.0
      %5580 = vmatmul.mubr.f32.gmra.mrb[0].mxu0 %v5410
      %v5581 = vpop.f32.mrb[0].mxu0
      %v5582 = vadd.f32 0.0, %v5581
      %v5583 = vpop.f32.mrb[0].mxu0
      %5584 = vmatprep.mubr.f32.mxu0 0.0
      %5585 = vmatmul.mubr.f32.gmra.mrb[0].mxu0 %v5413
      %v5586 = vpop.f32.mrb[0].mxu0
      %v5587 = vadd.f32 0.0, %v5586
      %v5588 = vpop.f32.mrb[0].mxu0
      %5589 = vmatprep.mubr.f32.mxu0 0.0
      %5590 = vmatmul.mubr.f32.gmra.mrb[0].mxu0 %v5416
      %v5591 = vpop.f32.mrb[0].mxu0
      %v5592 = vadd.f32 0.0, %v5591
      %v5593 = vpop.f32.mrb[0].mxu0
      %5594 = vmatprep.mubr.f32.mxu0 0.0
      %5595 = vmatmul.mubr.f32.gmra.mrb[0].mxu0 %v5419
      %v5596 = vpop.f32.mrb[0].mxu0
      %v5597 = vadd.f32 0.0, %v5596
      %v5598 = vpop.f32.mrb[0].mxu0
      %5599 = vmatprep.mubr.f32.mxu0 0.0
      %5600 = vmatmul.mubr.f32.gmra.mrb[0].mxu0 %v5422
      %v5601 = vpop.f32.mrb[0].mxu0
      %v5602 = vadd.f32 0.0, %v5601
      %v5603 = vpop.f32.mrb[0].mxu0
      %5604 = vmatprep.mubr.f32.mxu0 0.0
      %5605 = vmatmul.mubr.f32.gmra.mrb[0].mxu0 %v5425
      %v5606 = vpop.f32.mrb[0].mxu0
      %v5607 = vadd.f32 0.0, %v5606
      %v5608 = vpop.f32.mrb[0].mxu0
      %5609 = vmatprep.mubr.f32.mxu0 0.0
      %5610 = vmatmul.mubr.f32.gmra.mrb[0].mxu0 %v5428
      %v5611 = vpop.f32.mrb[0].mxu0
      %v5612 = vadd.f32 0.0, %v5611
      %v5613 = vpop.f32.mrb[0].mxu0
      %5614 = vmatprep.mubr.f32.mxu0 0.0
      %5615 = vmatmul.mubr.f32.gmra.mrb[0].mxu0 %v5431
      %v5616 = vpop.f32.mrb[0].mxu0
      %v5617 = vadd.f32 0.0, %v5616
      %v5618 = vpop.f32.mrb[0].mxu0
      %5619 = vmatprep.mubr.f32.mxu0 0.0
      %5620 = vmatmul.mubr.f32.gmra.mrb[0].mxu0 %v5434
      %v5621 = vpop.f32.mrb[0].mxu0
      %v5622 = vadd.f32 0.0, %v5621
      %v5623 = vpop.f32.mrb[0].mxu0
      %5624 = vmatprep.mubr.f32.mxu0 0.0
      %5625 = vmatmul.mubr.f32.gmra.mrb[0].mxu0 %v5437
      %v5626 = vpop.f32.mrb[0].mxu0
      %v5627 = vadd.f32 0.0, %v5626
      %v5628 = vpop.f32.mrb[0].mxu0
      %5629 = vmatprep.mubr.f32.mxu0 0.0
      %5630 = vmatmul.mubr.f32.gmra.mrb[0].mxu0 %v5440
      %v5631 = vpop.f32.mrb[0].mxu0
      %v5632 = vadd.f32 0.0, %v5631
      %v5633 = vpop.f32.mrb[0].mxu0
      %5634 = vmatprep.mubr.f32.mxu0 0.0
      %5635 = vmatmul.mubr.f32.gmra.mrb[0].mxu0 %v5443
      %v5636 = vpop.f32.mrb[0].mxu0
      %v5637 = vadd.f32 0.0, %v5636
      %v5638 = vpop.f32.mrb[0].mxu0
      %5639 = vmatprep.mubr.f32.mxu0 0.0
      %5640 = vmatmul.mubr.f32.gmra.mrb[0].mxu0 %v5446
      %v5641 = vpop.f32.mrb[0].mxu0
      %v5642 = vadd.f32 0.0, %v5641
      %v5643 = vpop.f32.mrb[0].mxu0
      %5644 = vmatprep.mubr.f32.mxu0 0.0
      %5645 = vmatmul.mubr.f32.gmra.mrb[0].mxu0 %v5449
      %v5646 = vpop.f32.mrb[0].mxu0
      %v5647 = vadd.f32 0.0, %v5646
      %v5648 = vpop.f32.mrb[0].mxu0
      %5649 = vmatprep.mubr.f32.mxu0 0.0
      %5650 = vmatmul.mubr.f32.gmra.mrb[0].mxu0 %v5452
      %v5651 = vpop.f32.mrb[0].mxu0
      %v5652 = vadd.f32 0.0, %v5651
      %v5653 = vpop.f32.mrb[0].mxu0
      %5654 = vmatprep.mubr.f32.mxu0 0.0
      %5655 = vmatmul.mubr.f32.gmra.mrb[0].mxu0 %v5455
      %v5656 = vpop.f32.mrb[0].mxu0
      %v5657 = vadd.f32 0.0, %v5656
      %v5658 = vpop.f32.mrb[0].mxu0
      %5659 = vmatprep.mubr.f32.mxu0 0.0
      %5660 = vmatmul.mubr.f32.gmra.mrb[0].mxu0 %v5458
      %v5661 = vpop.f32.mrb[0].mxu0
      %v5662 = vadd.f32 0.0, %v5661
      %v5663 = vpop.f32.mrb[0].mxu0
      %5664 = vmatprep.mubr.f32.mxu0 0.0
      %5665 = vmatmul.mubr.f32.gmra.mrb[0].mxu0 %v5461
      %v5666 = vpop.f32.mrb[0].mxu0
      %v5667 = vadd.f32 0.0, %v5666
      %v5668 = vpop.f32.mrb[0].mxu0
      %5669 = vmatprep.mubr.f32.mxu0 0.0
      %5670 = vmatmul.mubr.f32.gmra.mrb[0].mxu0 %v5464
      %v5671 = vpop.f32.mrb[0].mxu0
      %v5672 = vadd.f32 0.0, %v5671
      %v5673 = vpop.f32.mrb[0].mxu0
      %5674 = vmatprep.mubr.f32.mxu0 0.0
      %5675 = vmatmul.mubr.f32.gmra.mrb[0].mxu0 %v5467
      %v5676 = vpop.f32.mrb[0].mxu0
      %v5677 = vadd.f32 0.0, %v5676
      %v5678 = vpop.f32.mrb[0].mxu0
      %5679 = vmatprep.mubr.f32.mxu0 0.0
      %5680 = vmatmul.mubr.f32.gmra.mrb[0].mxu0 %v5470
      %v5681 = vpop.f32.mrb[0].mxu0
      %v5682 = vadd.f32 0.0, %v5681
      %v5683 = vpop.f32.mrb[0].mxu0
      %5684 = vmatprep.mubr.f32.mxu0 0.0
      %5685 = vmatmul.mubr.f32.gmra.mrb[0].mxu0 %v5473
      %v5686 = vpop.f32.mrb[0].mxu0
      %v5687 = vadd.f32 0.0, %v5686
      %v5688 = vpop.f32.mrb[0].mxu0
      %5689 = vmatprep.mubr.f32.mxu0 0.0
      %5690 = vmatmul.mubr.f32.gmra.mrb[0].mxu0 %v5476
      %v5691 = vpop.f32.mrb[0].mxu0
      %v5692 = vadd.f32 0.0, %v5691
      %v5693 = vpop.f32.mrb[0].mxu0
      %5694 = vmatprep.mubr.f32.mxu0 0.0
      %5695 = vmatmul.mubr.f32.gmra.mrb[0].mxu0 %v5479
      %v5696 = vpop.f32.mrb[0].mxu0
      %v5697 = vadd.f32 0.0, %v5696
      %v5698 = vpop.f32.mrb[0].mxu0
      %5699 = vmatprep.mubr.f32.mxu0 0.0
      %5700 = vmatmul.mubr.f32.gmra.mrb[0].mxu0 %v5482
      %v5701 = vpop.f32.mrb[0].mxu0
      %v5702 = vadd.f32 0.0, %v5701
      %v5703 = vpop.f32.mrb[0].mxu0
      %5704 = vmatprep.mubr.f32.mxu0 0.0
      %5705 = vmatmul.mubr.f32.gmra.mrb[0].mxu0 %v5485
      %v5706 = vpop.f32.mrb[0].mxu0
      %v5707 = vadd.f32 0.0, %v5706
      %v5708 = vpop.f32.mrb[0].mxu0
      %5709 = vmatprep.mubr.f32.mxu0 0.0
      %5710 = vmatmul.mubr.f32.gmra.mrb[0].mxu0 %v5488
      %v5711 = vpop.f32.mrb[0].mxu0
      %v5712 = vadd.f32 0.0, %v5711
      %v5713 = vpop.f32.mrb[0].mxu0
      %5714 = vdwg.mxu0
      %v5715 = vxor.u32 %v5557, 2147483648
      %v5716 = vxor.u32 %v5562, 2147483648
      %v5717 = vxor.u32 %v5567, 2147483648
      %v5718 = vxor.u32 %v5572, 2147483648
      %v5719 = vxor.u32 %v5577, 2147483648
      %v5720 = vxor.u32 %v5582, 2147483648
      %v5721 = vxor.u32 %v5587, 2147483648
      %v5722 = vxor.u32 %v5592, 2147483648
      %v5723 = vxor.u32 %v5597, 2147483648
      %v5724 = vxor.u32 %v5602, 2147483648
      %v5725 = vxor.u32 %v5607, 2147483648
      %v5726 = vxor.u32 %v5612, 2147483648
      %v5727 = vxor.u32 %v5617, 2147483648
      %v5728 = vxor.u32 %v5622, 2147483648
      %v5729 = vxor.u32 %v5627, 2147483648
      %v5730 = vxor.u32 %v5632, 2147483648
      %v5731 = vxor.u32 %v5637, 2147483648
      %v5732 = vxor.u32 %v5642, 2147483648
      %v5733 = vxor.u32 %v5647, 2147483648
      %v5734 = vxor.u32 %v5652, 2147483648
      %v5735 = vxor.u32 %v5657, 2147483648
      %v5736 = vxor.u32 %v5662, 2147483648
      %v5737 = vxor.u32 %v5667, 2147483648
      %v5738 = vxor.u32 %v5672, 2147483648
      %v5739 = vxor.u32 %v5677, 2147483648
      %v5740 = vxor.u32 %v5682, 2147483648
      %v5741 = vxor.u32 %v5687, 2147483648
      %v5742 = vxor.u32 %v5692, 2147483648
      %v5743 = vxor.u32 %v5697, 2147483648
      %v5744 = vxor.u32 %v5702, 2147483648
      %v5745 = vxor.u32 %v5707, 2147483648
      %v5746 = vxor.u32 %v5712, 2147483648
      %v5747 = vmul.f32 %v5715, 1.442695
      %v5748 = vpow.pop %v5747
      %v5749 = vmul.f32 %v5716, 1.442695
      %v5750 = vpow.pop %v5749
      %v5751 = vmul.f32 %v5717, 1.442695
      %v5752 = vpow.pop %v5751
      %v5753 = vmul.f32 %v5718, 1.442695
      %v5754 = vpow.pop %v5753
      %v5755 = vmul.f32 %v5719, 1.442695
      %v5756 = vpow.pop %v5755
      %v5757 = vmul.f32 %v5720, 1.442695
      %v5758 = vpow.pop %v5757
      %v5759 = vmul.f32 %v5721, 1.442695
      %v5760 = vpow.pop %v5759
      %v5761 = vmul.f32 %v5722, 1.442695
      %v5762 = vpow.pop %v5761
      %v5763 = vmul.f32 %v5723, 1.442695
      %v5764 = vpow.pop %v5763
      %v5765 = vmul.f32 %v5724, 1.442695
      %v5766 = vpow.pop %v5765
      %v5767 = vmul.f32 %v5725, 1.442695
      %v5768 = vpow.pop %v5767
      %v5769 = vmul.f32 %v5726, 1.442695
      %v5770 = vpow.pop %v5769
      %v5771 = vmul.f32 %v5727, 1.442695
      %v5772 = vpow.pop %v5771
      %v5773 = vmul.f32 %v5728, 1.442695
      %v5774 = vpow.pop %v5773
      %v5775 = vmul.f32 %v5729, 1.442695
      %v5776 = vpow.pop %v5775
      %v5777 = vmul.f32 %v5730, 1.442695
      %v5778 = vpow.pop %v5777
      %v5779 = vmul.f32 %v5731, 1.442695
      %v5780 = vpow.pop %v5779
      %v5781 = vmul.f32 %v5732, 1.442695
      %v5782 = vpow.pop %v5781
      %v5783 = vmul.f32 %v5733, 1.442695
      %v5784 = vpow.pop %v5783
      %v5785 = vmul.f32 %v5734, 1.442695
      %v5786 = vpow.pop %v5785
      %v5787 = vmul.f32 %v5735, 1.442695
      %v5788 = vpow.pop %v5787
      %v5789 = vmul.f32 %v5736, 1.442695
      %v5790 = vpow.pop %v5789
      %v5791 = vmul.f32 %v5737, 1.442695
      %v5792 = vpow.pop %v5791
      %v5793 = vmul.f32 %v5738, 1.442695
      %v5794 = vpow.pop %v5793
      %v5795 = vmul.f32 %v5739, 1.442695
      %v5796 = vpow.pop %v5795
      %v5797 = vmul.f32 %v5740, 1.442695
      %v5798 = vpow.pop %v5797
      %v5799 = vmul.f32 %v5741, 1.442695
      %v5800 = vpow.pop %v5799
      %v5801 = vmul.f32 %v5742, 1.442695
      %v5802 = vpow.pop %v5801
      %v5803 = vmul.f32 %v5743, 1.442695
      %v5804 = vpow.pop %v5803
      %v5805 = vmul.f32 %v5744, 1.442695
      %v5806 = vpow.pop %v5805
      %v5807 = vmul.f32 %v5745, 1.442695
      %v5808 = vpow.pop %v5807
      %v5809 = vmul.f32 %v5746, 1.442695
      %v5810 = vpow.pop %v5809
      %v5811 = vadd.f32 %v5748, 1.0
      %v5812 = vadd.f32 %v5750, 1.0
      %v5813 = vadd.f32 %v5752, 1.0
      %v5814 = vadd.f32 %v5754, 1.0
      %v5815 = vadd.f32 %v5756, 1.0
      %v5816 = vadd.f32 %v5758, 1.0
      %v5817 = vadd.f32 %v5760, 1.0
      %v5818 = vadd.f32 %v5762, 1.0
      %v5819 = vadd.f32 %v5764, 1.0
      %v5820 = vadd.f32 %v5766, 1.0
      %v5821 = vadd.f32 %v5768, 1.0
      %v5822 = vadd.f32 %v5770, 1.0
      %v5823 = vadd.f32 %v5772, 1.0
      %v5824 = vadd.f32 %v5774, 1.0
      %v5825 = vadd.f32 %v5776, 1.0
      %v5826 = vadd.f32 %v5778, 1.0
      %v5827 = vadd.f32 %v5780, 1.0
      %v5828 = vadd.f32 %v5782, 1.0
      %v5829 = vadd.f32 %v5784, 1.0
      %v5830 = vadd.f32 %v5786, 1.0
      %v5831 = vadd.f32 %v5788, 1.0
      %v5832 = vadd.f32 %v5790, 1.0
      %v5833 = vadd.f32 %v5792, 1.0
      %v5834 = vadd.f32 %v5794, 1.0
      %v5835 = vadd.f32 %v5796, 1.0
      %v5836 = vadd.f32 %v5798, 1.0
      %v5837 = vadd.f32 %v5800, 1.0
      %v5838 = vadd.f32 %v5802, 1.0
      %v5839 = vadd.f32 %v5804, 1.0
      %v5840 = vadd.f32 %v5806, 1.0
      %v5841 = vadd.f32 %v5808, 1.0
      %v5842 = vadd.f32 %v5810, 1.0
      %v5843 = vrcp.pop %v5811
      %v5844 = vmul.f32 1.0, %v5843
      %v5845 = vrcp.pop %v5812
      %v5846 = vmul.f32 1.0, %v5845
      %v5847 = vrcp.pop %v5813
      %v5848 = vmul.f32 1.0, %v5847
      %v5849 = vrcp.pop %v5814
      %v5850 = vmul.f32 1.0, %v5849
      %v5851 = vrcp.pop %v5815
      %v5852 = vmul.f32 1.0, %v5851
      %v5853 = vrcp.pop %v5816
      %v5854 = vmul.f32 1.0, %v5853
      %v5855 = vrcp.pop %v5817
      %v5856 = vmul.f32 1.0, %v5855
      %v5857 = vrcp.pop %v5818
      %v5858 = vmul.f32 1.0, %v5857
      %v5859 = vrcp.pop %v5819
      %v5860 = vmul.f32 1.0, %v5859
      %v5861 = vrcp.pop %v5820
      %v5862 = vmul.f32 1.0, %v5861
      %v5863 = vrcp.pop %v5821
      %v5864 = vmul.f32 1.0, %v5863
      %v5865 = vrcp.pop %v5822
      %v5866 = vmul.f32 1.0, %v5865
      %v5867 = vrcp.pop %v5823
      %v5868 = vmul.f32 1.0, %v5867
      %v5869 = vrcp.pop %v5824
      %v5870 = vmul.f32 1.0, %v5869
      %v5871 = vrcp.pop %v5825
      %v5872 = vmul.f32 1.0, %v5871
      %v5873 = vrcp.pop %v5826
      %v5874 = vmul.f32 1.0, %v5873
      %v5875 = vrcp.pop %v5827
      %v5876 = vmul.f32 1.0, %v5875
      %v5877 = vrcp.pop %v5828
      %v5878 = vmul.f32 1.0, %v5877
      %v5879 = vrcp.pop %v5829
      %v5880 = vmul.f32 1.0, %v5879
      %v5881 = vrcp.pop %v5830
      %v5882 = vmul.f32 1.0, %v5881
      %v5883 = vrcp.pop %v5831
      %v5884 = vmul.f32 1.0, %v5883
      %v5885 = vrcp.pop %v5832
      %v5886 = vmul.f32 1.0, %v5885
      %v5887 = vrcp.pop %v5833
      %v5888 = vmul.f32 1.0, %v5887
      %v5889 = vrcp.pop %v5834
      %v5890 = vmul.f32 1.0, %v5889
      %v5891 = vrcp.pop %v5835
      %v5892 = vmul.f32 1.0, %v5891
      %v5893 = vrcp.pop %v5836
      %v5894 = vmul.f32 1.0, %v5893
      %v5895 = vrcp.pop %v5837
      %v5896 = vmul.f32 1.0, %v5895
      %v5897 = vrcp.pop %v5838
      %v5898 = vmul.f32 1.0, %v5897
      %v5899 = vrcp.pop %v5839
      %v5900 = vmul.f32 1.0, %v5899
      %v5901 = vrcp.pop %v5840
      %v5902 = vmul.f32 1.0, %v5901
      %v5903 = vrcp.pop %v5841
      %v5904 = vmul.f32 1.0, %v5903
      %v5905 = vrcp.pop %v5842
      %v5906 = vmul.f32 1.0, %v5905
      %v5907 = vmul.f32 %v5557, %v5844
      %v5908 = vmul.f32 %v5562, %v5846
      %v5909 = vmul.f32 %v5567, %v5848
      %v5910 = vmul.f32 %v5572, %v5850
      %v5911 = vmul.f32 %v5577, %v5852
      %v5912 = vmul.f32 %v5582, %v5854
      %v5913 = vmul.f32 %v5587, %v5856
      %v5914 = vmul.f32 %v5592, %v5858
      %v5915 = vmul.f32 %v5597, %v5860
      %v5916 = vmul.f32 %v5602, %v5862
      %v5917 = vmul.f32 %v5607, %v5864
      %v5918 = vmul.f32 %v5612, %v5866
      %v5919 = vmul.f32 %v5617, %v5868
      %v5920 = vmul.f32 %v5622, %v5870
      %v5921 = vmul.f32 %v5627, %v5872
      %v5922 = vmul.f32 %v5632, %v5874
      %v5923 = vmul.f32 %v5637, %v5876
      %v5924 = vmul.f32 %v5642, %v5878
      %v5925 = vmul.f32 %v5647, %v5880
      %v5926 = vmul.f32 %v5652, %v5882
      %v5927 = vmul.f32 %v5657, %v5884
      %v5928 = vmul.f32 %v5662, %v5886
      %v5929 = vmul.f32 %v5667, %v5888
      %v5930 = vmul.f32 %v5672, %v5890
      %v5931 = vmul.f32 %v5677, %v5892
      %v5932 = vmul.f32 %v5682, %v5894
      %v5933 = vmul.f32 %v5687, %v5896
      %v5934 = vmul.f32 %v5692, %v5898
      %v5935 = vmul.f32 %v5697, %v5900
      %v5936 = vmul.f32 %v5702, %v5902
      %v5937 = vmul.f32 %v5707, %v5904
      %v5938 = vmul.f32 %v5712, %v5906
      %s5939 = scalar_lea.vmem %s2, 80
      %v5940 = vld [vmem:[%s5939] sm:$0xff]
      %v5941 = vld [vmem:[%s5939 + $0x8] sm:$0xff]
      %v5942 = vld [vmem:[%s5939 + $0x10] sm:$0xff]
      %v5943 = vld [vmem:[%s5939 + $0x18] sm:$0xff]
      %v5944 = vld [vmem:[%s5939 + $0x20] sm:$0xff]
      %v5945 = vrot.slane %v5907, 6
      %v5946 = vrot.slane %v5908, 6
      %v5947 = vrot.slane %v5909, 6
      %v5948 = vrot.slane %v5910, 6
      %v5949 = vrot.slane %v5911, 6
      %v5950 = vrot.slane %v5912, 6
      %v5951 = vrot.slane %v5913, 6
      %v5952 = vrot.slane %v5914, 6
      %v5953 = vrot.slane %v5915, 6
      %v5954 = vrot.slane %v5916, 6
      %v5955 = vrot.slane %v5917, 6
      %v5956 = vrot.slane %v5918, 6
      %v5957 = vrot.slane %v5919, 6
      %v5958 = vrot.slane %v5920, 6
      %v5959 = vrot.slane %v5921, 6
      %v5960 = vrot.slane %v5922, 6
      %v5961 = vrot.slane %v5923, 6
      %v5962 = vrot.slane %v5924, 6
      %v5963 = vrot.slane %v5925, 6
      %v5964 = vrot.slane %v5926, 6
      %v5965 = vrot.slane %v5927, 6
      %v5966 = vrot.slane %v5928, 6
      %v5967 = vrot.slane %v5929, 6
      %v5968 = vrot.slane %v5930, 6
      %v5969 = vrot.slane %v5931, 6
      %v5970 = vrot.slane %v5932, 6
      %v5971 = vrot.slane %v5933, 6
      %v5972 = vrot.slane %v5934, 6
      %v5973 = vrot.slane %v5935, 6
      %v5974 = vrot.slane %v5936, 6
      %v5975 = vrot.slane %v5937, 6
      %v5976 = vrot.slane %v5938, 6
      %v5977 = vsel %vm985, %v5975, %v5976
      %v5978 = vsel %vm985, %v5974, %v5975
      %v5979 = vsel %vm985, %v5973, %v5974
      %v5980 = vsel %vm985, %v5972, %v5973
      %v5981 = vsel %vm985, %v5971, %v5972
      %v5982 = vsel %vm985, %v5970, %v5971
      %v5983 = vsel %vm985, %v5969, %v5970
      %v5984 = vsel %vm985, %v5968, %v5969
      %v5985 = vsel %vm985, %v5967, %v5968
      %v5986 = vsel %vm985, %v5966, %v5967
      %v5987 = vsel %vm985, %v5965, %v5966
      %v5988 = vsel %vm985, %v5964, %v5965
      %v5989 = vsel %vm985, %v5963, %v5964
      %v5990 = vsel %vm985, %v5962, %v5963
      %v5991 = vsel %vm985, %v5961, %v5962
      %v5992 = vsel %vm985, %v5960, %v5961
      %v5993 = vsel %vm985, %v5959, %v5960
      %v5994 = vsel %vm985, %v5958, %v5959
      %v5995 = vsel %vm985, %v5957, %v5958
      %v5996 = vsel %vm985, %v5956, %v5957
      %v5997 = vsel %vm985, %v5955, %v5956
      %v5998 = vsel %vm985, %v5954, %v5955
      %v5999 = vsel %vm985, %v5953, %v5954
      %v6000 = vsel %vm985, %v5952, %v5953
      %v6001 = vsel %vm985, %v5951, %v5952
      %v6002 = vsel %vm985, %v5950, %v5951
      %v6003 = vsel %vm985, %v5949, %v5950
      %v6004 = vsel %vm985, %v5948, %v5949
      %v6005 = vsel %vm985, %v5947, %v5948
      %v6006 = vsel %vm985, %v5946, %v5947
      %v6007 = vsel %vm985, %v5945, %v5946
      %v6008 = vsel %vm985, %v5976, %v5945
      %v6009 = vsel %vm1050, %v6008, 0.0
      %v6010 = vsel %vm1051, %v6007, 0.0
      %v6011 = vsel %vm1052, %v6006, 0.0
      %v6012 = vsel %vm1053, %v6005, 0.0
      %v6013 = vsel %vm1054, %v6004, 0.0
      %v6014 = vsel %vm1055, %v6003, 0.0
      %v6015 = vsel %vm1056, %v6002, 0.0
      %v6016 = vsel %vm1057, %v6001, 0.0
      %v6017 = vsel %vm1058, %v6000, 0.0
      %v6018 = vsel %vm1059, %v5999, 0.0
      %v6019 = vsel %vm1060, %v5998, 0.0
      %v6020 = vsel %vm1061, %v5997, 0.0
      %v6021 = vsel %vm1062, %v5996, 0.0
      %v6022 = vsel %vm1063, %v5995, 0.0
      %v6023 = vsel %vm1064, %v5994, 0.0
      %v6024 = vsel %vm1065, %v5993, 0.0
      %v6025 = vsel %vm1066, %v5992, 0.0
      %v6026 = vsel %vm1067, %v5991, 0.0
      %v6027 = vsel %vm1068, %v5990, 0.0
      %v6028 = vsel %vm1069, %v5989, 0.0
      %v6029 = vsel %vm1070, %v5988, 0.0
      %v6030 = vsel %vm1071, %v5987, 0.0
      %v6031 = vsel %vm1072, %v5986, 0.0
      %v6032 = vsel %vm1073, %v5985, 0.0
      %v6033 = vsel %vm1074, %v5984, 0.0
      %v6034 = vsel %vm1075, %v5983, 0.0
      %v6035 = vsel %vm1076, %v5982, 0.0
      %v6036 = vsel %vm1077, %v5981, 0.0
      %v6037 = vsel %vm1078, %v5980, 0.0
      %v6038 = vsel %vm1079, %v5979, 0.0
      %v6039 = vsel %vm1080, %v5978, 0.0
      %v6040 = vsel %vm1081, %v5977, 0.0
      %v6041 = vrot.slane %v5907, 7
      %v6042 = vrot.slane %v5908, 7
      %v6043 = vrot.slane %v5909, 7
      %v6044 = vrot.slane %v5910, 7
      %v6045 = vrot.slane %v5911, 7
      %v6046 = vrot.slane %v5912, 7
      %v6047 = vrot.slane %v5913, 7
      %v6048 = vrot.slane %v5914, 7
      %v6049 = vrot.slane %v5915, 7
      %v6050 = vrot.slane %v5916, 7
      %v6051 = vrot.slane %v5917, 7
      %v6052 = vrot.slane %v5918, 7
      %v6053 = vrot.slane %v5919, 7
      %v6054 = vrot.slane %v5920, 7
      %v6055 = vrot.slane %v5921, 7
      %v6056 = vrot.slane %v5922, 7
      %v6057 = vrot.slane %v5923, 7
      %v6058 = vrot.slane %v5924, 7
      %v6059 = vrot.slane %v5925, 7
      %v6060 = vrot.slane %v5926, 7
      %v6061 = vrot.slane %v5927, 7
      %v6062 = vrot.slane %v5928, 7
      %v6063 = vrot.slane %v5929, 7
      %v6064 = vrot.slane %v5930, 7
      %v6065 = vrot.slane %v5931, 7
      %v6066 = vrot.slane %v5932, 7
      %v6067 = vrot.slane %v5933, 7
      %v6068 = vrot.slane %v5934, 7
      %v6069 = vrot.slane %v5935, 7
      %v6070 = vrot.slane %v5936, 7
      %v6071 = vrot.slane %v5937, 7
      %v6072 = vrot.slane %v5938, 7
      %v6073 = vsel %vm1146, %v6071, %v6072
      %v6074 = vsel %vm1146, %v6070, %v6071
      %v6075 = vsel %vm1146, %v6069, %v6070
      %v6076 = vsel %vm1146, %v6068, %v6069
      %v6077 = vsel %vm1146, %v6067, %v6068
      %v6078 = vsel %vm1146, %v6066, %v6067
      %v6079 = vsel %vm1146, %v6065, %v6066
      %v6080 = vsel %vm1146, %v6064, %v6065
      %v6081 = vsel %vm1146, %v6063, %v6064
      %v6082 = vsel %vm1146, %v6062, %v6063
      %v6083 = vsel %vm1146, %v6061, %v6062
      %v6084 = vsel %vm1146, %v6060, %v6061
      %v6085 = vsel %vm1146, %v6059, %v6060
      %v6086 = vsel %vm1146, %v6058, %v6059
      %v6087 = vsel %vm1146, %v6057, %v6058
      %v6088 = vsel %vm1146, %v6056, %v6057
      %v6089 = vsel %vm1146, %v6055, %v6056
      %v6090 = vsel %vm1146, %v6054, %v6055
      %v6091 = vsel %vm1146, %v6053, %v6054
      %v6092 = vsel %vm1146, %v6052, %v6053
      %v6093 = vsel %vm1146, %v6051, %v6052
      %v6094 = vsel %vm1146, %v6050, %v6051
      %v6095 = vsel %vm1146, %v6049, %v6050
      %v6096 = vsel %vm1146, %v6048, %v6049
      %v6097 = vsel %vm1146, %v6047, %v6048
      %v6098 = vsel %vm1146, %v6046, %v6047
      %v6099 = vsel %vm1146, %v6045, %v6046
      %v6100 = vsel %vm1146, %v6044, %v6045
      %v6101 = vsel %vm1146, %v6043, %v6044
      %v6102 = vsel %vm1146, %v6042, %v6043
      %v6103 = vsel %vm1146, %v6041, %v6042
      %v6104 = vsel %vm1146, %v6072, %v6041
      %v6105 = vsel %vm1211, %v6104, 0.0
      %v6106 = vsel %vm1212, %v6103, 0.0
      %v6107 = vsel %vm1213, %v6102, 0.0
      %v6108 = vsel %vm1214, %v6101, 0.0
      %v6109 = vsel %vm1215, %v6100, 0.0
      %v6110 = vsel %vm1216, %v6099, 0.0
      %v6111 = vsel %vm1217, %v6098, 0.0
      %v6112 = vsel %vm1218, %v6097, 0.0
      %v6113 = vsel %vm1219, %v6096, 0.0
      %v6114 = vsel %vm1220, %v6095, 0.0
      %v6115 = vsel %vm1221, %v6094, 0.0
      %v6116 = vsel %vm1222, %v6093, 0.0
      %v6117 = vsel %vm1223, %v6092, 0.0
      %v6118 = vsel %vm1224, %v6091, 0.0
      %v6119 = vsel %vm1225, %v6090, 0.0
      %v6120 = vsel %vm1226, %v6089, 0.0
      %v6121 = vsel %vm1227, %v6088, 0.0
      %v6122 = vsel %vm1228, %v6087, 0.0
      %v6123 = vsel %vm1229, %v6086, 0.0
      %v6124 = vsel %vm1230, %v6085, 0.0
      %v6125 = vsel %vm1231, %v6084, 0.0
      %v6126 = vsel %vm1232, %v6083, 0.0
      %v6127 = vsel %vm1233, %v6082, 0.0
      %v6128 = vsel %vm1234, %v6081, 0.0
      %v6129 = vsel %vm1235, %v6080, 0.0
      %v6130 = vsel %vm1236, %v6079, 0.0
      %v6131 = vsel %vm1237, %v6078, 0.0
      %v6132 = vsel %vm1238, %v6077, 0.0
      %v6133 = vsel %vm1239, %v6076, 0.0
      %v6134 = vsel %vm1240, %v6075, 0.0
      %v6135 = vsel %vm1241, %v6074, 0.0
      %v6136 = vsel %vm1242, %v6073, 0.0
      %v6137 = vrot.slane %v5907, 1
      %v6138 = vrot.slane %v5908, 1
      %v6139 = vrot.slane %v5909, 1
      %v6140 = vrot.slane %v5910, 1
      %v6141 = vrot.slane %v5911, 1
      %v6142 = vrot.slane %v5912, 1
      %v6143 = vrot.slane %v5913, 1
      %v6144 = vrot.slane %v5914, 1
      %v6145 = vrot.slane %v5915, 1
      %v6146 = vrot.slane %v5916, 1
      %v6147 = vrot.slane %v5917, 1
      %v6148 = vrot.slane %v5918, 1
      %v6149 = vrot.slane %v5919, 1
      %v6150 = vrot.slane %v5920, 1
      %v6151 = vrot.slane %v5921, 1
      %v6152 = vrot.slane %v5922, 1
      %v6153 = vrot.slane %v5923, 1
      %v6154 = vrot.slane %v5924, 1
      %v6155 = vrot.slane %v5925, 1
      %v6156 = vrot.slane %v5926, 1
      %v6157 = vrot.slane %v5927, 1
      %v6158 = vrot.slane %v5928, 1
      %v6159 = vrot.slane %v5929, 1
      %v6160 = vrot.slane %v5930, 1
      %v6161 = vrot.slane %v5931, 1
      %v6162 = vrot.slane %v5932, 1
      %v6163 = vrot.slane %v5933, 1
      %v6164 = vrot.slane %v5934, 1
      %v6165 = vrot.slane %v5935, 1
      %v6166 = vrot.slane %v5936, 1
      %v6167 = vrot.slane %v5937, 1
      %v6168 = vrot.slane %v5938, 1
      %v6169 = vsel %vm1307, %v6167, %v6168
      %v6170 = vsel %vm1307, %v6166, %v6167
      %v6171 = vsel %vm1307, %v6165, %v6166
      %v6172 = vsel %vm1307, %v6164, %v6165
      %v6173 = vsel %vm1307, %v6163, %v6164
      %v6174 = vsel %vm1307, %v6162, %v6163
      %v6175 = vsel %vm1307, %v6161, %v6162
      %v6176 = vsel %vm1307, %v6160, %v6161
      %v6177 = vsel %vm1307, %v6159, %v6160
      %v6178 = vsel %vm1307, %v6158, %v6159
      %v6179 = vsel %vm1307, %v6157, %v6158
      %v6180 = vsel %vm1307, %v6156, %v6157
      %v6181 = vsel %vm1307, %v6155, %v6156
      %v6182 = vsel %vm1307, %v6154, %v6155
      %v6183 = vsel %vm1307, %v6153, %v6154
      %v6184 = vsel %vm1307, %v6152, %v6153
      %v6185 = vsel %vm1307, %v6151, %v6152
      %v6186 = vsel %vm1307, %v6150, %v6151
      %v6187 = vsel %vm1307, %v6149, %v6150
      %v6188 = vsel %vm1307, %v6148, %v6149
      %v6189 = vsel %vm1307, %v6147, %v6148
      %v6190 = vsel %vm1307, %v6146, %v6147
      %v6191 = vsel %vm1307, %v6145, %v6146
      %v6192 = vsel %vm1307, %v6144, %v6145
      %v6193 = vsel %vm1307, %v6143, %v6144
      %v6194 = vsel %vm1307, %v6142, %v6143
      %v6195 = vsel %vm1307, %v6141, %v6142
      %v6196 = vsel %vm1307, %v6140, %v6141
      %v6197 = vsel %vm1307, %v6139, %v6140
      %v6198 = vsel %vm1307, %v6138, %v6139
      %v6199 = vsel %vm1307, %v6137, %v6138
      %v6200 = vsel %vm1307, %v6168, %v6137
      %v6201 = vsel %vm1372, %v6199, 0.0
      %v6202 = vsel %vm1373, %v6198, 0.0
      %v6203 = vsel %vm1374, %v6197, 0.0
      %v6204 = vsel %vm1375, %v6196, 0.0
      %v6205 = vsel %vm1376, %v6195, 0.0
      %v6206 = vsel %vm1377, %v6194, 0.0
      %v6207 = vsel %vm1378, %v6193, 0.0
      %v6208 = vsel %vm1379, %v6192, 0.0
      %v6209 = vsel %vm1380, %v6191, 0.0
      %v6210 = vsel %vm1381, %v6190, 0.0
      %v6211 = vsel %vm1382, %v6189, 0.0
      %v6212 = vsel %vm1383, %v6188, 0.0
      %v6213 = vsel %vm1384, %v6187, 0.0
      %v6214 = vsel %vm1385, %v6186, 0.0
      %v6215 = vsel %vm1386, %v6185, 0.0
      %v6216 = vsel %vm1387, %v6184, 0.0
      %v6217 = vsel %vm1388, %v6183, 0.0
      %v6218 = vsel %vm1389, %v6182, 0.0
      %v6219 = vsel %vm1390, %v6181, 0.0
      %v6220 = vsel %vm1391, %v6180, 0.0
      %v6221 = vsel %vm1392, %v6179, 0.0
      %v6222 = vsel %vm1393, %v6178, 0.0
      %v6223 = vsel %vm1394, %v6177, 0.0
      %v6224 = vsel %vm1395, %v6176, 0.0
      %v6225 = vsel %vm1396, %v6175, 0.0
      %v6226 = vsel %vm1397, %v6174, 0.0
      %v6227 = vsel %vm1398, %v6173, 0.0
      %v6228 = vsel %vm1399, %v6172, 0.0
      %v6229 = vsel %vm1400, %v6171, 0.0
      %v6230 = vsel %vm1401, %v6170, 0.0
      %v6231 = vsel %vm1402, %v6169, 0.0
      %v6232 = vsel %vm1403, %v6200, 0.0
      %v6233 = vrot.slane %v5907, 2
      %v6234 = vrot.slane %v5908, 2
      %v6235 = vrot.slane %v5909, 2
      %v6236 = vrot.slane %v5910, 2
      %v6237 = vrot.slane %v5911, 2
      %v6238 = vrot.slane %v5912, 2
      %v6239 = vrot.slane %v5913, 2
      %v6240 = vrot.slane %v5914, 2
      %v6241 = vrot.slane %v5915, 2
      %v6242 = vrot.slane %v5916, 2
      %v6243 = vrot.slane %v5917, 2
      %v6244 = vrot.slane %v5918, 2
      %v6245 = vrot.slane %v5919, 2
      %v6246 = vrot.slane %v5920, 2
      %v6247 = vrot.slane %v5921, 2
      %v6248 = vrot.slane %v5922, 2
      %v6249 = vrot.slane %v5923, 2
      %v6250 = vrot.slane %v5924, 2
      %v6251 = vrot.slane %v5925, 2
      %v6252 = vrot.slane %v5926, 2
      %v6253 = vrot.slane %v5927, 2
      %v6254 = vrot.slane %v5928, 2
      %v6255 = vrot.slane %v5929, 2
      %v6256 = vrot.slane %v5930, 2
      %v6257 = vrot.slane %v5931, 2
      %v6258 = vrot.slane %v5932, 2
      %v6259 = vrot.slane %v5933, 2
      %v6260 = vrot.slane %v5934, 2
      %v6261 = vrot.slane %v5935, 2
      %v6262 = vrot.slane %v5936, 2
      %v6263 = vrot.slane %v5937, 2
      %v6264 = vrot.slane %v5938, 2
      %v6265 = vsel %vm1468, %v6263, %v6264
      %v6266 = vsel %vm1468, %v6262, %v6263
      %v6267 = vsel %vm1468, %v6261, %v6262
      %v6268 = vsel %vm1468, %v6260, %v6261
      %v6269 = vsel %vm1468, %v6259, %v6260
      %v6270 = vsel %vm1468, %v6258, %v6259
      %v6271 = vsel %vm1468, %v6257, %v6258
      %v6272 = vsel %vm1468, %v6256, %v6257
      %v6273 = vsel %vm1468, %v6255, %v6256
      %v6274 = vsel %vm1468, %v6254, %v6255
      %v6275 = vsel %vm1468, %v6253, %v6254
      %v6276 = vsel %vm1468, %v6252, %v6253
      %v6277 = vsel %vm1468, %v6251, %v6252
      %v6278 = vsel %vm1468, %v6250, %v6251
      %v6279 = vsel %vm1468, %v6249, %v6250
      %v6280 = vsel %vm1468, %v6248, %v6249
      %v6281 = vsel %vm1468, %v6247, %v6248
      %v6282 = vsel %vm1468, %v6246, %v6247
      %v6283 = vsel %vm1468, %v6245, %v6246
      %v6284 = vsel %vm1468, %v6244, %v6245
      %v6285 = vsel %vm1468, %v6243, %v6244
      %v6286 = vsel %vm1468, %v6242, %v6243
      %v6287 = vsel %vm1468, %v6241, %v6242
      %v6288 = vsel %vm1468, %v6240, %v6241
      %v6289 = vsel %vm1468, %v6239, %v6240
      %v6290 = vsel %vm1468, %v6238, %v6239
      %v6291 = vsel %vm1468, %v6237, %v6238
      %v6292 = vsel %vm1468, %v6236, %v6237
      %v6293 = vsel %vm1468, %v6235, %v6236
      %v6294 = vsel %vm1468, %v6234, %v6235
      %v6295 = vsel %vm1468, %v6233, %v6234
      %v6296 = vsel %vm1468, %v6264, %v6233
      %v6297 = vsel %vm1533, %v6295, 0.0
      %v6298 = vsel %vm1534, %v6294, 0.0
      %v6299 = vsel %vm1535, %v6293, 0.0
      %v6300 = vsel %vm1536, %v6292, 0.0
      %v6301 = vsel %vm1537, %v6291, 0.0
      %v6302 = vsel %vm1538, %v6290, 0.0
      %v6303 = vsel %vm1539, %v6289, 0.0
      %v6304 = vsel %vm1540, %v6288, 0.0
      %v6305 = vsel %vm1541, %v6287, 0.0
      %v6306 = vsel %vm1542, %v6286, 0.0
      %v6307 = vsel %vm1543, %v6285, 0.0
      %v6308 = vsel %vm1544, %v6284, 0.0
      %v6309 = vsel %vm1545, %v6283, 0.0
      %v6310 = vsel %vm1546, %v6282, 0.0
      %v6311 = vsel %vm1547, %v6281, 0.0
      %v6312 = vsel %vm1548, %v6280, 0.0
      %v6313 = vsel %vm1549, %v6279, 0.0
      %v6314 = vsel %vm1550, %v6278, 0.0
      %v6315 = vsel %vm1551, %v6277, 0.0
      %v6316 = vsel %vm1552, %v6276, 0.0
      %v6317 = vsel %vm1553, %v6275, 0.0
      %v6318 = vsel %vm1554, %v6274, 0.0
      %v6319 = vsel %vm1555, %v6273, 0.0
      %v6320 = vsel %vm1556, %v6272, 0.0
      %v6321 = vsel %vm1557, %v6271, 0.0
      %v6322 = vsel %vm1558, %v6270, 0.0
      %v6323 = vsel %vm1559, %v6269, 0.0
      %v6324 = vsel %vm1560, %v6268, 0.0
      %v6325 = vsel %vm1561, %v6267, 0.0
      %v6326 = vsel %vm1562, %v6266, 0.0
      %v6327 = vsel %vm1563, %v6265, 0.0
      %v6328 = vsel %vm1564, %v6296, 0.0
      %6361 = vrot.lane.b32.xlu0 %v6105, 8
      %v6362 = vpop.permute.xlu0 %6361
      %6363 = vrot.lane.b32.xlu0 %v6106, 8
      %v6364 = vpop.permute.xlu0 %6363
      %6365 = vrot.lane.b32.xlu0 %v6107, 8
      %v6366 = vpop.permute.xlu0 %6365
      %6367 = vrot.lane.b32.xlu0 %v6108, 8
      %v6368 = vpop.permute.xlu0 %6367
      %6369 = vrot.lane.b32.xlu0 %v6109, 8
      %v6370 = vpop.permute.xlu0 %6369
      %6371 = vrot.lane.b32.xlu0 %v6110, 8
      %v6372 = vpop.permute.xlu0 %6371
      %6373 = vrot.lane.b32.xlu0 %v6111, 8
      %v6374 = vpop.permute.xlu0 %6373
      %6375 = vrot.lane.b32.xlu0 %v6112, 8
      %v6376 = vpop.permute.xlu0 %6375
      %6377 = vrot.lane.b32.xlu0 %v6113, 8
      %v6378 = vpop.permute.xlu0 %6377
      %6379 = vrot.lane.b32.xlu0 %v6114, 8
      %v6380 = vpop.permute.xlu0 %6379
      %6381 = vrot.lane.b32.xlu0 %v6115, 8
      %v6382 = vpop.permute.xlu0 %6381
      %6383 = vrot.lane.b32.xlu0 %v6116, 8
      %v6384 = vpop.permute.xlu0 %6383
      %6385 = vrot.lane.b32.xlu0 %v6117, 8
      %v6386 = vpop.permute.xlu0 %6385
      %6387 = vrot.lane.b32.xlu0 %v6118, 8
      %v6388 = vpop.permute.xlu0 %6387
      %6389 = vrot.lane.b32.xlu0 %v6119, 8
      %v6390 = vpop.permute.xlu0 %6389
      %6391 = vrot.lane.b32.xlu0 %v6120, 8
      %v6392 = vpop.permute.xlu0 %6391
      %6393 = vrot.lane.b32.xlu0 %v6121, 8
      %v6394 = vpop.permute.xlu0 %6393
      %6395 = vrot.lane.b32.xlu0 %v6122, 8
      %v6396 = vpop.permute.xlu0 %6395
      %6397 = vrot.lane.b32.xlu0 %v6123, 8
      %v6398 = vpop.permute.xlu0 %6397
      %6399 = vrot.lane.b32.xlu0 %v6124, 8
      %v6400 = vpop.permute.xlu0 %6399
      %6401 = vrot.lane.b32.xlu0 %v6125, 8
      %v6402 = vpop.permute.xlu0 %6401
      %6403 = vrot.lane.b32.xlu0 %v6126, 8
      %v6404 = vpop.permute.xlu0 %6403
      %6405 = vrot.lane.b32.xlu0 %v6127, 8
      %v6406 = vpop.permute.xlu0 %6405
      %6407 = vrot.lane.b32.xlu0 %v6128, 8
      %v6408 = vpop.permute.xlu0 %6407
      %6409 = vrot.lane.b32.xlu0 %v6129, 8
      %v6410 = vpop.permute.xlu0 %6409
      %6411 = vrot.lane.b32.xlu0 %v6130, 8
      %v6412 = vpop.permute.xlu0 %6411
      %6413 = vrot.lane.b32.xlu0 %v6131, 8
      %v6414 = vpop.permute.xlu0 %6413
      %6415 = vrot.lane.b32.xlu0 %v6132, 8
      %v6416 = vpop.permute.xlu0 %6415
      %6417 = vrot.lane.b32.xlu0 %v6133, 8
      %v6418 = vpop.permute.xlu0 %6417
      %6419 = vrot.lane.b32.xlu0 %v6134, 8
      %v6420 = vpop.permute.xlu0 %6419
      %6421 = vrot.lane.b32.xlu0 %v6135, 8
      %v6422 = vpop.permute.xlu0 %6421
      %6423 = vrot.lane.b32.xlu0 %v6136, 8
      %v6424 = vpop.permute.xlu0 %6423
      %6489 = vrot.lane.b32.xlu0 %v5907, 16
      %v6490 = vpop.permute.xlu0 %6489
      %6491 = vrot.lane.b32.xlu0 %v5908, 16
      %v6492 = vpop.permute.xlu0 %6491
      %6493 = vrot.lane.b32.xlu0 %v5909, 16
      %v6494 = vpop.permute.xlu0 %6493
      %6495 = vrot.lane.b32.xlu0 %v5910, 16
      %v6496 = vpop.permute.xlu0 %6495
      %6497 = vrot.lane.b32.xlu0 %v5911, 16
      %v6498 = vpop.permute.xlu0 %6497
      %6499 = vrot.lane.b32.xlu0 %v5912, 16
      %v6500 = vpop.permute.xlu0 %6499
      %6501 = vrot.lane.b32.xlu0 %v5913, 16
      %v6502 = vpop.permute.xlu0 %6501
      %6503 = vrot.lane.b32.xlu0 %v5914, 16
      %v6504 = vpop.permute.xlu0 %6503
      %6505 = vrot.lane.b32.xlu0 %v5915, 16
      %v6506 = vpop.permute.xlu0 %6505
      %6507 = vrot.lane.b32.xlu0 %v5916, 16
      %v6508 = vpop.permute.xlu0 %6507
      %6509 = vrot.lane.b32.xlu0 %v5917, 16
      %v6510 = vpop.permute.xlu0 %6509
      %6511 = vrot.lane.b32.xlu0 %v5918, 16
      %v6512 = vpop.permute.xlu0 %6511
      %6513 = vrot.lane.b32.xlu0 %v5919, 16
      %v6514 = vpop.permute.xlu0 %6513
      %6515 = vrot.lane.b32.xlu0 %v5920, 16
      %v6516 = vpop.permute.xlu0 %6515
      %6517 = vrot.lane.b32.xlu0 %v5921, 16
      %v6518 = vpop.permute.xlu0 %6517
      %6519 = vrot.lane.b32.xlu0 %v5922, 16
      %v6520 = vpop.permute.xlu0 %6519
      %6521 = vrot.lane.b32.xlu0 %v5923, 16
      %v6522 = vpop.permute.xlu0 %6521
      %6523 = vrot.lane.b32.xlu0 %v5924, 16
      %v6524 = vpop.permute.xlu0 %6523
      %6525 = vrot.lane.b32.xlu0 %v5925, 16
      %v6526 = vpop.permute.xlu0 %6525
      %6527 = vrot.lane.b32.xlu0 %v5926, 16
      %v6528 = vpop.permute.xlu0 %6527
      %6529 = vrot.lane.b32.xlu0 %v5927, 16
      %v6530 = vpop.permute.xlu0 %6529
      %6531 = vrot.lane.b32.xlu0 %v5928, 16
      %v6532 = vpop.permute.xlu0 %6531
      %6533 = vrot.lane.b32.xlu0 %v5929, 16
      %v6534 = vpop.permute.xlu0 %6533
      %6535 = vrot.lane.b32.xlu0 %v5930, 16
      %v6536 = vpop.permute.xlu0 %6535
      %6537 = vrot.lane.b32.xlu0 %v5931, 16
      %v6538 = vpop.permute.xlu0 %6537
      %6539 = vrot.lane.b32.xlu0 %v5932, 16
      %v6540 = vpop.permute.xlu0 %6539
      %6541 = vrot.lane.b32.xlu0 %v5933, 16
      %v6542 = vpop.permute.xlu0 %6541
      %6543 = vrot.lane.b32.xlu0 %v5934, 16
      %v6544 = vpop.permute.xlu0 %6543
      %6545 = vrot.lane.b32.xlu0 %v5935, 16
      %v6546 = vpop.permute.xlu0 %6545
      %6547 = vrot.lane.b32.xlu0 %v5936, 16
      %v6548 = vpop.permute.xlu0 %6547
      %6549 = vrot.lane.b32.xlu0 %v5937, 16
      %v6550 = vpop.permute.xlu0 %6549
      %6551 = vrot.lane.b32.xlu0 %v5938, 16
      %v6552 = vpop.permute.xlu0 %6551
      %6617 = vrot.lane.b32.xlu0 %v6201, 24
      %v6618 = vpop.permute.xlu0 %6617
      %6619 = vrot.lane.b32.xlu0 %v6202, 24
      %v6620 = vpop.permute.xlu0 %6619
      %6621 = vrot.lane.b32.xlu0 %v6203, 24
      %v6622 = vpop.permute.xlu0 %6621
      %6623 = vrot.lane.b32.xlu0 %v6204, 24
      %v6624 = vpop.permute.xlu0 %6623
      %6625 = vrot.lane.b32.xlu0 %v6205, 24
      %v6626 = vpop.permute.xlu0 %6625
      %6627 = vrot.lane.b32.xlu0 %v6206, 24
      %v6628 = vpop.permute.xlu0 %6627
      %6629 = vrot.lane.b32.xlu0 %v6207, 24
      %v6630 = vpop.permute.xlu0 %6629
      %6631 = vrot.lane.b32.xlu0 %v6208, 24
      %v6632 = vpop.permute.xlu0 %6631
      %6633 = vrot.lane.b32.xlu0 %v6209, 24
      %v6634 = vpop.permute.xlu0 %6633
      %6635 = vrot.lane.b32.xlu0 %v6210, 24
      %v6636 = vpop.permute.xlu0 %6635
      %6637 = vrot.lane.b32.xlu0 %v6211, 24
      %v6638 = vpop.permute.xlu0 %6637
      %6639 = vrot.lane.b32.xlu0 %v6212, 24
      %v6640 = vpop.permute.xlu0 %6639
      %6641 = vrot.lane.b32.xlu0 %v6213, 24
      %v6642 = vpop.permute.xlu0 %6641
      %6643 = vrot.lane.b32.xlu0 %v6214, 24
      %v6644 = vpop.permute.xlu0 %6643
      %6645 = vrot.lane.b32.xlu0 %v6215, 24
      %v6646 = vpop.permute.xlu0 %6645
      %6647 = vrot.lane.b32.xlu0 %v6216, 24
      %v6648 = vpop.permute.xlu0 %6647
      %6649 = vrot.lane.b32.xlu0 %v6217, 24
      %v6650 = vpop.permute.xlu0 %6649
      %6651 = vrot.lane.b32.xlu0 %v6218, 24
      %v6652 = vpop.permute.xlu0 %6651
      %6653 = vrot.lane.b32.xlu0 %v6219, 24
      %v6654 = vpop.permute.xlu0 %6653
      %6655 = vrot.lane.b32.xlu0 %v6220, 24
      %v6656 = vpop.permute.xlu0 %6655
      %6657 = vrot.lane.b32.xlu0 %v6221, 24
      %v6658 = vpop.permute.xlu0 %6657
      %6659 = vrot.lane.b32.xlu0 %v6222, 24
      %v6660 = vpop.permute.xlu0 %6659
      %6661 = vrot.lane.b32.xlu0 %v6223, 24
      %v6662 = vpop.permute.xlu0 %6661
      %6663 = vrot.lane.b32.xlu0 %v6224, 24
      %v6664 = vpop.permute.xlu0 %6663
      %6665 = vrot.lane.b32.xlu0 %v6225, 24
      %v6666 = vpop.permute.xlu0 %6665
      %6667 = vrot.lane.b32.xlu0 %v6226, 24
      %v6668 = vpop.permute.xlu0 %6667
      %6669 = vrot.lane.b32.xlu0 %v6227, 24
      %v6670 = vpop.permute.xlu0 %6669
      %6671 = vrot.lane.b32.xlu0 %v6228, 24
      %v6672 = vpop.permute.xlu0 %6671
      %6673 = vrot.lane.b32.xlu0 %v6229, 24
      %v6674 = vpop.permute.xlu0 %6673
      %6675 = vrot.lane.b32.xlu0 %v6230, 24
      %v6676 = vpop.permute.xlu0 %6675
      %6677 = vrot.lane.b32.xlu0 %v6231, 24
      %v6678 = vpop.permute.xlu0 %6677
      %6679 = vrot.lane.b32.xlu0 %v6232, 24
      %v6680 = vpop.permute.xlu0 %6679
      %6745 = vrot.lane.b32.xlu0 %v6297, 32
      %v6746 = vpop.permute.xlu0 %6745
      %6747 = vrot.lane.b32.xlu0 %v6298, 32
      %v6748 = vpop.permute.xlu0 %6747
      %6749 = vrot.lane.b32.xlu0 %v6299, 32
      %v6750 = vpop.permute.xlu0 %6749
      %6751 = vrot.lane.b32.xlu0 %v6300, 32
      %v6752 = vpop.permute.xlu0 %6751
      %6753 = vrot.lane.b32.xlu0 %v6301, 32
      %v6754 = vpop.permute.xlu0 %6753
      %6755 = vrot.lane.b32.xlu0 %v6302, 32
      %v6756 = vpop.permute.xlu0 %6755
      %6757 = vrot.lane.b32.xlu0 %v6303, 32
      %v6758 = vpop.permute.xlu0 %6757
      %6759 = vrot.lane.b32.xlu0 %v6304, 32
      %v6760 = vpop.permute.xlu0 %6759
      %6761 = vrot.lane.b32.xlu0 %v6305, 32
      %v6762 = vpop.permute.xlu0 %6761
      %6763 = vrot.lane.b32.xlu0 %v6306, 32
      %v6764 = vpop.permute.xlu0 %6763
      %6765 = vrot.lane.b32.xlu0 %v6307, 32
      %v6766 = vpop.permute.xlu0 %6765
      %6767 = vrot.lane.b32.xlu0 %v6308, 32
      %v6768 = vpop.permute.xlu0 %6767
      %6769 = vrot.lane.b32.xlu0 %v6309, 32
      %v6770 = vpop.permute.xlu0 %6769
      %6771 = vrot.lane.b32.xlu0 %v6310, 32
      %v6772 = vpop.permute.xlu0 %6771
      %6773 = vrot.lane.b32.xlu0 %v6311, 32
      %v6774 = vpop.permute.xlu0 %6773
      %6775 = vrot.lane.b32.xlu0 %v6312, 32
      %v6776 = vpop.permute.xlu0 %6775
      %6777 = vrot.lane.b32.xlu0 %v6313, 32
      %v6778 = vpop.permute.xlu0 %6777
      %6779 = vrot.lane.b32.xlu0 %v6314, 32
      %v6780 = vpop.permute.xlu0 %6779
      %6781 = vrot.lane.b32.xlu0 %v6315, 32
      %v6782 = vpop.permute.xlu0 %6781
      %6783 = vrot.lane.b32.xlu0 %v6316, 32
      %v6784 = vpop.permute.xlu0 %6783
      %6785 = vrot.lane.b32.xlu0 %v6317, 32
      %v6786 = vpop.permute.xlu0 %6785
      %6787 = vrot.lane.b32.xlu0 %v6318, 32
      %v6788 = vpop.permute.xlu0 %6787
      %6789 = vrot.lane.b32.xlu0 %v6319, 32
      %v6790 = vpop.permute.xlu0 %6789
      %6791 = vrot.lane.b32.xlu0 %v6320, 32
      %v6792 = vpop.permute.xlu0 %6791
      %6793 = vrot.lane.b32.xlu0 %v6321, 32
      %v6794 = vpop.permute.xlu0 %6793
      %6795 = vrot.lane.b32.xlu0 %v6322, 32
      %v6796 = vpop.permute.xlu0 %6795
      %6797 = vrot.lane.b32.xlu0 %v6323, 32
      %v6798 = vpop.permute.xlu0 %6797
      %6799 = vrot.lane.b32.xlu0 %v6324, 32
      %v6800 = vpop.permute.xlu0 %6799
      %6801 = vrot.lane.b32.xlu0 %v6325, 32
      %v6802 = vpop.permute.xlu0 %6801
      %6803 = vrot.lane.b32.xlu0 %v6326, 32
      %v6804 = vpop.permute.xlu0 %6803
      %6805 = vrot.lane.b32.xlu0 %v6327, 32
      %v6806 = vpop.permute.xlu0 %6805
      %6807 = vrot.lane.b32.xlu0 %v6328, 32
      %v6808 = vpop.permute.xlu0 %6807
      %v6841 = vsel %vm3688, %v6009, %v6362
      %v6842 = vsel %vm3688, %v6010, %v6364
      %v6843 = vsel %vm3688, %v6011, %v6366
      %v6844 = vsel %vm3688, %v6012, %v6368
      %v6845 = vsel %vm3688, %v6013, %v6370
      %v6846 = vsel %vm3688, %v6014, %v6372
      %v6847 = vsel %vm3688, %v6015, %v6374
      %v6848 = vsel %vm3688, %v6016, %v6376
      %v6849 = vsel %vm3688, %v6017, %v6378
      %v6850 = vsel %vm3688, %v6018, %v6380
      %v6851 = vsel %vm3688, %v6019, %v6382
      %v6852 = vsel %vm3688, %v6020, %v6384
      %v6853 = vsel %vm3688, %v6021, %v6386
      %v6854 = vsel %vm3688, %v6022, %v6388
      %v6855 = vsel %vm3688, %v6023, %v6390
      %v6856 = vsel %vm3688, %v6024, %v6392
      %v6857 = vsel %vm3688, %v6025, %v6394
      %v6858 = vsel %vm3688, %v6026, %v6396
      %v6859 = vsel %vm3688, %v6027, %v6398
      %v6860 = vsel %vm3688, %v6028, %v6400
      %v6861 = vsel %vm3688, %v6029, %v6402
      %v6862 = vsel %vm3688, %v6030, %v6404
      %v6863 = vsel %vm3688, %v6031, %v6406
      %v6864 = vsel %vm3688, %v6032, %v6408
      %v6865 = vsel %vm3688, %v6033, %v6410
      %v6866 = vsel %vm3688, %v6034, %v6412
      %v6867 = vsel %vm3688, %v6035, %v6414
      %v6868 = vsel %vm3688, %v6036, %v6416
      %v6869 = vsel %vm3688, %v6037, %v6418
      %v6870 = vsel %vm3688, %v6038, %v6420
      %v6871 = vsel %vm3688, %v6039, %v6422
      %v6872 = vsel %vm3688, %v6040, %v6424
      %v6873 = vsel %vm2109, %v6841, %v6490
      %v6874 = vsel %vm2109, %v6842, %v6492
      %v6875 = vsel %vm2109, %v6843, %v6494
      %v6876 = vsel %vm2109, %v6844, %v6496
      %v6877 = vsel %vm2109, %v6845, %v6498
      %v6878 = vsel %vm2109, %v6846, %v6500
      %v6879 = vsel %vm2109, %v6847, %v6502
      %v6880 = vsel %vm2109, %v6848, %v6504
      %v6881 = vsel %vm2109, %v6849, %v6506
      %v6882 = vsel %vm2109, %v6850, %v6508
      %v6883 = vsel %vm2109, %v6851, %v6510
      %v6884 = vsel %vm2109, %v6852, %v6512
      %v6885 = vsel %vm2109, %v6853, %v6514
      %v6886 = vsel %vm2109, %v6854, %v6516
      %v6887 = vsel %vm2109, %v6855, %v6518
      %v6888 = vsel %vm2109, %v6856, %v6520
      %v6889 = vsel %vm2109, %v6857, %v6522
      %v6890 = vsel %vm2109, %v6858, %v6524
      %v6891 = vsel %vm2109, %v6859, %v6526
      %v6892 = vsel %vm2109, %v6860, %v6528
      %v6893 = vsel %vm2109, %v6861, %v6530
      %v6894 = vsel %vm2109, %v6862, %v6532
      %v6895 = vsel %vm2109, %v6863, %v6534
      %v6896 = vsel %vm2109, %v6864, %v6536
      %v6897 = vsel %vm2109, %v6865, %v6538
      %v6898 = vsel %vm2109, %v6866, %v6540
      %v6899 = vsel %vm2109, %v6867, %v6542
      %v6900 = vsel %vm2109, %v6868, %v6544
      %v6901 = vsel %vm2109, %v6869, %v6546
      %v6902 = vsel %vm2109, %v6870, %v6548
      %v6903 = vsel %vm2109, %v6871, %v6550
      %v6904 = vsel %vm2109, %v6872, %v6552
      %v6905 = vsel %vm3753, %v6873, %v6618
      %v6906 = vsel %vm3753, %v6874, %v6620
      %v6907 = vsel %vm3753, %v6875, %v6622
      %v6908 = vsel %vm3753, %v6876, %v6624
      %v6909 = vsel %vm3753, %v6877, %v6626
      %v6910 = vsel %vm3753, %v6878, %v6628
      %v6911 = vsel %vm3753, %v6879, %v6630
      %v6912 = vsel %vm3753, %v6880, %v6632
      %v6913 = vsel %vm3753, %v6881, %v6634
      %v6914 = vsel %vm3753, %v6882, %v6636
      %v6915 = vsel %vm3753, %v6883, %v6638
      %v6916 = vsel %vm3753, %v6884, %v6640
      %v6917 = vsel %vm3753, %v6885, %v6642
      %v6918 = vsel %vm3753, %v6886, %v6644
      %v6919 = vsel %vm3753, %v6887, %v6646
      %v6920 = vsel %vm3753, %v6888, %v6648
      %v6921 = vsel %vm3753, %v6889, %v6650
      %v6922 = vsel %vm3753, %v6890, %v6652
      %v6923 = vsel %vm3753, %v6891, %v6654
      %v6924 = vsel %vm3753, %v6892, %v6656
      %v6925 = vsel %vm3753, %v6893, %v6658
      %v6926 = vsel %vm3753, %v6894, %v6660
      %v6927 = vsel %vm3753, %v6895, %v6662
      %v6928 = vsel %vm3753, %v6896, %v6664
      %v6929 = vsel %vm3753, %v6897, %v6666
      %v6930 = vsel %vm3753, %v6898, %v6668
      %v6931 = vsel %vm3753, %v6899, %v6670
      %v6932 = vsel %vm3753, %v6900, %v6672
      %v6933 = vsel %vm3753, %v6901, %v6674
      %v6934 = vsel %vm3753, %v6902, %v6676
      %v6935 = vsel %vm3753, %v6903, %v6678
      %v6936 = vsel %vm3753, %v6904, %v6680
      %v6937 = vsel %vm2142, %v6905, %v6746
      %v6938 = vsel %vm2142, %v6906, %v6748
      %v6939 = vsel %vm2142, %v6907, %v6750
      %v6940 = vsel %vm2142, %v6908, %v6752
      %v6941 = vsel %vm2142, %v6909, %v6754
      %v6942 = vsel %vm2142, %v6910, %v6756
      %v6943 = vsel %vm2142, %v6911, %v6758
      %v6944 = vsel %vm2142, %v6912, %v6760
      %v6945 = vsel %vm2142, %v6913, %v6762
      %v6946 = vsel %vm2142, %v6914, %v6764
      %v6947 = vsel %vm2142, %v6915, %v6766
      %v6948 = vsel %vm2142, %v6916, %v6768
      %v6949 = vsel %vm2142, %v6917, %v6770
      %v6950 = vsel %vm2142, %v6918, %v6772
      %v6951 = vsel %vm2142, %v6919, %v6774
      %v6952 = vsel %vm2142, %v6920, %v6776
      %v6953 = vsel %vm2142, %v6921, %v6778
      %v6954 = vsel %vm2142, %v6922, %v6780
      %v6955 = vsel %vm2142, %v6923, %v6782
      %v6956 = vsel %vm2142, %v6924, %v6784
      %v6957 = vsel %vm2142, %v6925, %v6786
      %v6958 = vsel %vm2142, %v6926, %v6788
      %v6959 = vsel %vm2142, %v6927, %v6790
      %v6960 = vsel %vm2142, %v6928, %v6792
      %v6961 = vsel %vm2142, %v6929, %v6794
      %v6962 = vsel %vm2142, %v6930, %v6796
      %v6963 = vsel %vm2142, %v6931, %v6798
      %v6964 = vsel %vm2142, %v6932, %v6800
      %v6965 = vsel %vm2142, %v6933, %v6802
      %v6966 = vsel %vm2142, %v6934, %v6804
      %v6967 = vsel %vm2142, %v6935, %v6806
      %v6968 = vsel %vm2142, %v6936, %v6808
      %v6970 = vsel %vm3818, %v6937, 0
      %v6973 = vsel %vm3818, %v6938, 0
      %v6976 = vsel %vm3818, %v6939, 0
      %v6979 = vsel %vm3818, %v6940, 0
      %v6982 = vsel %vm3818, %v6941, 0
      %v6985 = vsel %vm3818, %v6942, 0
      %v6988 = vsel %vm3818, %v6943, 0
      %v6991 = vsel %vm3818, %v6944, 0
      %v6994 = vsel %vm3818, %v6945, 0
      %v6997 = vsel %vm3818, %v6946, 0
      %v7000 = vsel %vm3818, %v6947, 0
      %v7003 = vsel %vm3818, %v6948, 0
      %v7006 = vsel %vm3818, %v6949, 0
      %v7009 = vsel %vm3818, %v6950, 0
      %v7012 = vsel %vm3818, %v6951, 0
      %v7015 = vsel %vm3818, %v6952, 0
      %v7018 = vsel %vm3818, %v6953, 0
      %v7021 = vsel %vm3818, %v6954, 0
      %v7024 = vsel %vm3818, %v6955, 0
      %v7027 = vsel %vm3818, %v6956, 0
      %v7030 = vsel %vm3818, %v6957, 0
      %v7033 = vsel %vm3818, %v6958, 0
      %v7036 = vsel %vm3818, %v6959, 0
      %v7039 = vsel %vm3818, %v6960, 0
      %v7042 = vsel %vm3818, %v6961, 0
      %v7045 = vsel %vm3818, %v6962, 0
      %v7048 = vsel %vm3818, %v6963, 0
      %v7051 = vsel %vm3818, %v6964, 0
      %v7054 = vsel %vm3818, %v6965, 0
      %v7057 = vsel %vm3818, %v6966, 0
      %v7060 = vsel %vm3818, %v6967, 0
      %v7063 = vsel %vm3818, %v6968, 0
      %7065 = vmatprep.subr.mxu0 0.0
      %7066 = vmatpush1.msra.mxu0 %v5940
      %7067 = vmatprep.subr.mxu0 0.0
      %7068 = vmatpush1.msra.mxu0 %v5941
      %7069 = vmatprep.subr.mxu0 0.0
      %7070 = vmatpush1.msra.mxu0 %v5942
      %7071 = vmatprep.subr.mxu0 0.0
      %7072 = vmatpush1.msra.mxu0 %v5943
      %7073 = vmatprep.subr.mxu0 0.0
      %7074 = vmatpush1.msra.mxu0 %v5944
      %7075 = vmatprep.subr.mxu0 0.0
      %7076 = vmatpush1.msra.mxu0 0.0
      %7077 = vmatprep.subr.mxu0 0.0
      %7078 = vmatpush1.msra.mxu0 0.0
      %7079 = vmatprep.subr.mxu0 0.0
      %7080 = vmatpush1.msra.mxu0 0.0
      %7081 = vmatprep.subr.mxu0 0.0
      %7082 = vmatpush1.msra.mxu0 0.0
      %7083 = vmatprep.subr.mxu0 0.0
      %7084 = vmatpush1.msra.mxu0 0.0
      %7085 = vmatprep.subr.mxu0 0.0
      %7086 = vmatpush1.msra.mxu0 0.0
      %7087 = vmatprep.subr.mxu0 0.0
      %7088 = vmatpush1.msra.mxu0 0.0
      %7089 = vmatprep.subr.mxu0 0.0
      %7090 = vmatpush1.msra.mxu0 0.0
      %7091 = vmatprep.subr.mxu0 0.0
      %7092 = vmatpush1.msra.mxu0 0.0
      %7093 = vmatprep.subr.mxu0 0.0
      %7094 = vmatpush1.msra.mxu0 0.0
      %7095 = vmatprep.subr.mxu0 0.0
      %7096 = vmatpush1.msra.mxu0 0.0
      %7097 = vmatprep.subr.mxu0 0.0
      %7098 = vmatpush1.msra.mxu0 0.0
      %7099 = vmatprep.subr.mxu0 0.0
      %7100 = vmatpush1.msra.mxu0 0.0
      %7101 = vmatprep.subr.mxu0 0.0
      %7102 = vmatpush1.msra.mxu0 0.0
      %7103 = vmatprep.subr.mxu0 0.0
      %7104 = vmatpush1.msra.mxu0 0.0
      %7105 = vmatprep.subr.mxu0 0.0
      %7106 = vmatpush1.msra.mxu0 0.0
      %7107 = vmatprep.subr.mxu0 0.0
      %7108 = vmatpush1.msra.mxu0 0.0
      %7109 = vmatprep.subr.mxu0 0.0
      %7110 = vmatpush1.msra.mxu0 0.0
      %7111 = vmatprep.subr.mxu0 0.0
      %7112 = vmatpush1.msra.mxu0 0.0
      %7113 = vmatprep.subr.mxu0 0.0
      %7114 = vmatpush1.msra.mxu0 0.0
      %7115 = vmatprep.subr.mxu0 0.0
      %7116 = vmatpush1.msra.mxu0 0.0
      %7117 = vmatprep.subr.mxu0 0.0
      %7118 = vmatpush1.msra.mxu0 0.0
      %7119 = vmatprep.subr.mxu0 0.0
      %7120 = vmatpush1.msra.mxu0 0.0
      %7121 = vmatprep.subr.mxu0 0.0
      %7122 = vmatpush1.msra.mxu0 0.0
      %7123 = vmatprep.subr.mxu0 0.0
      %7124 = vmatpush1.msra.mxu0 0.0
      %7125 = vmatprep.subr.mxu0 0.0
      %7126 = vmatpush1.msra.mxu0 0.0
      %7127 = vmatprep.subr.mxu0 0.0
      %7128 = vmatpush1.msra.mxu0 0.0
      %7129 = vmatprep.mubr.f32.mxu0 0.0
      %7130 = vmatmul.mubr.f32.gmra.mrb[0].mxu0 %v6970
      %v7131 = vpop.f32.mrb[0].mxu0
      %v7132 = vadd.f32 0.0, %v7131
      %v7133 = vpop.f32.mrb[0].mxu0
      %7134 = vmatprep.mubr.f32.mxu0 0.0
      %7135 = vmatmul.mubr.f32.gmra.mrb[0].mxu0 %v6973
      %v7136 = vpop.f32.mrb[0].mxu0
      %v7137 = vadd.f32 0.0, %v7136
      %v7138 = vpop.f32.mrb[0].mxu0
      %7139 = vmatprep.mubr.f32.mxu0 0.0
      %7140 = vmatmul.mubr.f32.gmra.mrb[0].mxu0 %v6976
      %v7141 = vpop.f32.mrb[0].mxu0
      %v7142 = vadd.f32 0.0, %v7141
      %v7143 = vpop.f32.mrb[0].mxu0
      %7144 = vmatprep.mubr.f32.mxu0 0.0
      %7145 = vmatmul.mubr.f32.gmra.mrb[0].mxu0 %v6979
      %v7146 = vpop.f32.mrb[0].mxu0
      %v7147 = vadd.f32 0.0, %v7146
      %v7148 = vpop.f32.mrb[0].mxu0
      %7149 = vmatprep.mubr.f32.mxu0 0.0
      %7150 = vmatmul.mubr.f32.gmra.mrb[0].mxu0 %v6982
      %v7151 = vpop.f32.mrb[0].mxu0
      %v7152 = vadd.f32 0.0, %v7151
      %v7153 = vpop.f32.mrb[0].mxu0
      %7154 = vmatprep.mubr.f32.mxu0 0.0
      %7155 = vmatmul.mubr.f32.gmra.mrb[0].mxu0 %v6985
      %v7156 = vpop.f32.mrb[0].mxu0
      %v7157 = vadd.f32 0.0, %v7156
      %v7158 = vpop.f32.mrb[0].mxu0
      %7159 = vmatprep.mubr.f32.mxu0 0.0
      %7160 = vmatmul.mubr.f32.gmra.mrb[0].mxu0 %v6988
      %v7161 = vpop.f32.mrb[0].mxu0
      %v7162 = vadd.f32 0.0, %v7161
      %v7163 = vpop.f32.mrb[0].mxu0
      %7164 = vmatprep.mubr.f32.mxu0 0.0
      %7165 = vmatmul.mubr.f32.gmra.mrb[0].mxu0 %v6991
      %v7166 = vpop.f32.mrb[0].mxu0
      %v7167 = vadd.f32 0.0, %v7166
      %v7168 = vpop.f32.mrb[0].mxu0
      %7169 = vmatprep.mubr.f32.mxu0 0.0
      %7170 = vmatmul.mubr.f32.gmra.mrb[0].mxu0 %v6994
      %v7171 = vpop.f32.mrb[0].mxu0
      %v7172 = vadd.f32 0.0, %v7171
      %v7173 = vpop.f32.mrb[0].mxu0
      %7174 = vmatprep.mubr.f32.mxu0 0.0
      %7175 = vmatmul.mubr.f32.gmra.mrb[0].mxu0 %v6997
      %v7176 = vpop.f32.mrb[0].mxu0
      %v7177 = vadd.f32 0.0, %v7176
      %v7178 = vpop.f32.mrb[0].mxu0
      %7179 = vmatprep.mubr.f32.mxu0 0.0
      %7180 = vmatmul.mubr.f32.gmra.mrb[0].mxu0 %v7000
      %v7181 = vpop.f32.mrb[0].mxu0
      %v7182 = vadd.f32 0.0, %v7181
      %v7183 = vpop.f32.mrb[0].mxu0
      %7184 = vmatprep.mubr.f32.mxu0 0.0
      %7185 = vmatmul.mubr.f32.gmra.mrb[0].mxu0 %v7003
      %v7186 = vpop.f32.mrb[0].mxu0
      %v7187 = vadd.f32 0.0, %v7186
      %v7188 = vpop.f32.mrb[0].mxu0
      %7189 = vmatprep.mubr.f32.mxu0 0.0
      %7190 = vmatmul.mubr.f32.gmra.mrb[0].mxu0 %v7006
      %v7191 = vpop.f32.mrb[0].mxu0
      %v7192 = vadd.f32 0.0, %v7191
      %v7193 = vpop.f32.mrb[0].mxu0
      %7194 = vmatprep.mubr.f32.mxu0 0.0
      %7195 = vmatmul.mubr.f32.gmra.mrb[0].mxu0 %v7009
      %v7196 = vpop.f32.mrb[0].mxu0
      %v7197 = vadd.f32 0.0, %v7196
      %v7198 = vpop.f32.mrb[0].mxu0
      %7199 = vmatprep.mubr.f32.mxu0 0.0
      %7200 = vmatmul.mubr.f32.gmra.mrb[0].mxu0 %v7012
      %v7201 = vpop.f32.mrb[0].mxu0
      %v7202 = vadd.f32 0.0, %v7201
      %v7203 = vpop.f32.mrb[0].mxu0
      %7204 = vmatprep.mubr.f32.mxu0 0.0
      %7205 = vmatmul.mubr.f32.gmra.mrb[0].mxu0 %v7015
      %v7206 = vpop.f32.mrb[0].mxu0
      %v7207 = vadd.f32 0.0, %v7206
      %v7208 = vpop.f32.mrb[0].mxu0
      %7209 = vmatprep.mubr.f32.mxu0 0.0
      %7210 = vmatmul.mubr.f32.gmra.mrb[0].mxu0 %v7018
      %v7211 = vpop.f32.mrb[0].mxu0
      %v7212 = vadd.f32 0.0, %v7211
      %v7213 = vpop.f32.mrb[0].mxu0
      %7214 = vmatprep.mubr.f32.mxu0 0.0
      %7215 = vmatmul.mubr.f32.gmra.mrb[0].mxu0 %v7021
      %v7216 = vpop.f32.mrb[0].mxu0
      %v7217 = vadd.f32 0.0, %v7216
      %v7218 = vpop.f32.mrb[0].mxu0
      %7219 = vmatprep.mubr.f32.mxu0 0.0
      %7220 = vmatmul.mubr.f32.gmra.mrb[0].mxu0 %v7024
      %v7221 = vpop.f32.mrb[0].mxu0
      %v7222 = vadd.f32 0.0, %v7221
      %v7223 = vpop.f32.mrb[0].mxu0
      %7224 = vmatprep.mubr.f32.mxu0 0.0
      %7225 = vmatmul.mubr.f32.gmra.mrb[0].mxu0 %v7027
      %v7226 = vpop.f32.mrb[0].mxu0
      %v7227 = vadd.f32 0.0, %v7226
      %v7228 = vpop.f32.mrb[0].mxu0
      %7229 = vmatprep.mubr.f32.mxu0 0.0
      %7230 = vmatmul.mubr.f32.gmra.mrb[0].mxu0 %v7030
      %v7231 = vpop.f32.mrb[0].mxu0
      %v7232 = vadd.f32 0.0, %v7231
      %v7233 = vpop.f32.mrb[0].mxu0
      %7234 = vmatprep.mubr.f32.mxu0 0.0
      %7235 = vmatmul.mubr.f32.gmra.mrb[0].mxu0 %v7033
      %v7236 = vpop.f32.mrb[0].mxu0
      %v7237 = vadd.f32 0.0, %v7236
      %v7238 = vpop.f32.mrb[0].mxu0
      %7239 = vmatprep.mubr.f32.mxu0 0.0
      %7240 = vmatmul.mubr.f32.gmra.mrb[0].mxu0 %v7036
      %v7241 = vpop.f32.mrb[0].mxu0
      %v7242 = vadd.f32 0.0, %v7241
      %v7243 = vpop.f32.mrb[0].mxu0
      %7244 = vmatprep.mubr.f32.mxu0 0.0
      %7245 = vmatmul.mubr.f32.gmra.mrb[0].mxu0 %v7039
      %v7246 = vpop.f32.mrb[0].mxu0
      %v7247 = vadd.f32 0.0, %v7246
      %v7248 = vpop.f32.mrb[0].mxu0
      %7249 = vmatprep.mubr.f32.mxu0 0.0
      %7250 = vmatmul.mubr.f32.gmra.mrb[0].mxu0 %v7042
      %v7251 = vpop.f32.mrb[0].mxu0
      %v7252 = vadd.f32 0.0, %v7251
      %v7253 = vpop.f32.mrb[0].mxu0
      %7254 = vmatprep.mubr.f32.mxu0 0.0
      %7255 = vmatmul.mubr.f32.gmra.mrb[0].mxu0 %v7045
      %v7256 = vpop.f32.mrb[0].mxu0
      %v7257 = vadd.f32 0.0, %v7256
      %v7258 = vpop.f32.mrb[0].mxu0
      %7259 = vmatprep.mubr.f32.mxu0 0.0
      %7260 = vmatmul.mubr.f32.gmra.mrb[0].mxu0 %v7048
      %v7261 = vpop.f32.mrb[0].mxu0
      %v7262 = vadd.f32 0.0, %v7261
      %v7263 = vpop.f32.mrb[0].mxu0
      %7264 = vmatprep.mubr.f32.mxu0 0.0
      %7265 = vmatmul.mubr.f32.gmra.mrb[0].mxu0 %v7051
      %v7266 = vpop.f32.mrb[0].mxu0
      %v7267 = vadd.f32 0.0, %v7266
      %v7268 = vpop.f32.mrb[0].mxu0
      %7269 = vmatprep.mubr.f32.mxu0 0.0
      %7270 = vmatmul.mubr.f32.gmra.mrb[0].mxu0 %v7054
      %v7271 = vpop.f32.mrb[0].mxu0
      %v7272 = vadd.f32 0.0, %v7271
      %v7273 = vpop.f32.mrb[0].mxu0
      %7274 = vmatprep.mubr.f32.mxu0 0.0
      %7275 = vmatmul.mubr.f32.gmra.mrb[0].mxu0 %v7057
      %v7276 = vpop.f32.mrb[0].mxu0
      %v7277 = vadd.f32 0.0, %v7276
      %v7278 = vpop.f32.mrb[0].mxu0
      %7279 = vmatprep.mubr.f32.mxu0 0.0
      %7280 = vmatmul.mubr.f32.gmra.mrb[0].mxu0 %v7060
      %v7281 = vpop.f32.mrb[0].mxu0
      %v7282 = vadd.f32 0.0, %v7281
      %v7283 = vpop.f32.mrb[0].mxu0
      %7284 = vmatprep.mubr.f32.mxu0 0.0
      %7285 = vmatmul.mubr.f32.gmra.mrb[0].mxu0 %v7063
      %v7286 = vpop.f32.mrb[0].mxu0
      %v7287 = vadd.f32 0.0, %v7286
      %v7288 = vpop.f32.mrb[0].mxu0
      %7289 = vdwg.mxu0
      %v7290 = vxor.u32 %v7132, 2147483648
      %v7291 = vxor.u32 %v7137, 2147483648
      %v7292 = vxor.u32 %v7142, 2147483648
      %v7293 = vxor.u32 %v7147, 2147483648
      %v7294 = vxor.u32 %v7152, 2147483648
      %v7295 = vxor.u32 %v7157, 2147483648
      %v7296 = vxor.u32 %v7162, 2147483648
      %v7297 = vxor.u32 %v7167, 2147483648
      %v7298 = vxor.u32 %v7172, 2147483648
      %v7299 = vxor.u32 %v7177, 2147483648
      %v7300 = vxor.u32 %v7182, 2147483648
      %v7301 = vxor.u32 %v7187, 2147483648
      %v7302 = vxor.u32 %v7192, 2147483648
      %v7303 = vxor.u32 %v7197, 2147483648
      %v7304 = vxor.u32 %v7202, 2147483648
      %v7305 = vxor.u32 %v7207, 2147483648
      %v7306 = vxor.u32 %v7212, 2147483648
      %v7307 = vxor.u32 %v7217, 2147483648
      %v7308 = vxor.u32 %v7222, 2147483648
      %v7309 = vxor.u32 %v7227, 2147483648
      %v7310 = vxor.u32 %v7232, 2147483648
      %v7311 = vxor.u32 %v7237, 2147483648
      %v7312 = vxor.u32 %v7242, 2147483648
      %v7313 = vxor.u32 %v7247, 2147483648
      %v7314 = vxor.u32 %v7252, 2147483648
      %v7315 = vxor.u32 %v7257, 2147483648
      %v7316 = vxor.u32 %v7262, 2147483648
      %v7317 = vxor.u32 %v7267, 2147483648
      %v7318 = vxor.u32 %v7272, 2147483648
      %v7319 = vxor.u32 %v7277, 2147483648
      %v7320 = vxor.u32 %v7282, 2147483648
      %v7321 = vxor.u32 %v7287, 2147483648
      %v7322 = vmul.f32 %v7290, 1.442695
      %v7323 = vpow.pop %v7322
      %v7324 = vmul.f32 %v7291, 1.442695
      %v7325 = vpow.pop %v7324
      %v7326 = vmul.f32 %v7292, 1.442695
      %v7327 = vpow.pop %v7326
      %v7328 = vmul.f32 %v7293, 1.442695
      %v7329 = vpow.pop %v7328
      %v7330 = vmul.f32 %v7294, 1.442695
      %v7331 = vpow.pop %v7330
      %v7332 = vmul.f32 %v7295, 1.442695
      %v7333 = vpow.pop %v7332
      %v7334 = vmul.f32 %v7296, 1.442695
      %v7335 = vpow.pop %v7334
      %v7336 = vmul.f32 %v7297, 1.442695
      %v7337 = vpow.pop %v7336
      %v7338 = vmul.f32 %v7298, 1.442695
      %v7339 = vpow.pop %v7338
      %v7340 = vmul.f32 %v7299, 1.442695
      %v7341 = vpow.pop %v7340
      %v7342 = vmul.f32 %v7300, 1.442695
      %v7343 = vpow.pop %v7342
      %v7344 = vmul.f32 %v7301, 1.442695
      %v7345 = vpow.pop %v7344
      %v7346 = vmul.f32 %v7302, 1.442695
      %v7347 = vpow.pop %v7346
      %v7348 = vmul.f32 %v7303, 1.442695
      %v7349 = vpow.pop %v7348
      %v7350 = vmul.f32 %v7304, 1.442695
      %v7351 = vpow.pop %v7350
      %v7352 = vmul.f32 %v7305, 1.442695
      %v7353 = vpow.pop %v7352
      %v7354 = vmul.f32 %v7306, 1.442695
      %v7355 = vpow.pop %v7354
      %v7356 = vmul.f32 %v7307, 1.442695
      %v7357 = vpow.pop %v7356
      %v7358 = vmul.f32 %v7308, 1.442695
      %v7359 = vpow.pop %v7358
      %v7360 = vmul.f32 %v7309, 1.442695
      %v7361 = vpow.pop %v7360
      %v7362 = vmul.f32 %v7310, 1.442695
      %v7363 = vpow.pop %v7362
      %v7364 = vmul.f32 %v7311, 1.442695
      %v7365 = vpow.pop %v7364
      %v7366 = vmul.f32 %v7312, 1.442695
      %v7367 = vpow.pop %v7366
      %v7368 = vmul.f32 %v7313, 1.442695
      %v7369 = vpow.pop %v7368
      %v7370 = vmul.f32 %v7314, 1.442695
      %v7371 = vpow.pop %v7370
      %v7372 = vmul.f32 %v7315, 1.442695
      %v7373 = vpow.pop %v7372
      %v7374 = vmul.f32 %v7316, 1.442695
      %v7375 = vpow.pop %v7374
      %v7376 = vmul.f32 %v7317, 1.442695
      %v7377 = vpow.pop %v7376
      %v7378 = vmul.f32 %v7318, 1.442695
      %v7379 = vpow.pop %v7378
      %v7380 = vmul.f32 %v7319, 1.442695
      %v7381 = vpow.pop %v7380
      %v7382 = vmul.f32 %v7320, 1.442695
      %v7383 = vpow.pop %v7382
      %v7384 = vmul.f32 %v7321, 1.442695
      %v7385 = vpow.pop %v7384
      %v7386 = vadd.f32 %v7323, 1.0
      %v7387 = vadd.f32 %v7325, 1.0
      %v7388 = vadd.f32 %v7327, 1.0
      %v7389 = vadd.f32 %v7329, 1.0
      %v7390 = vadd.f32 %v7331, 1.0
      %v7391 = vadd.f32 %v7333, 1.0
      %v7392 = vadd.f32 %v7335, 1.0
      %v7393 = vadd.f32 %v7337, 1.0
      %v7394 = vadd.f32 %v7339, 1.0
      %v7395 = vadd.f32 %v7341, 1.0
      %v7396 = vadd.f32 %v7343, 1.0
      %v7397 = vadd.f32 %v7345, 1.0
      %v7398 = vadd.f32 %v7347, 1.0
      %v7399 = vadd.f32 %v7349, 1.0
      %v7400 = vadd.f32 %v7351, 1.0
      %v7401 = vadd.f32 %v7353, 1.0
      %v7402 = vadd.f32 %v7355, 1.0
      %v7403 = vadd.f32 %v7357, 1.0
      %v7404 = vadd.f32 %v7359, 1.0
      %v7405 = vadd.f32 %v7361, 1.0
      %v7406 = vadd.f32 %v7363, 1.0
      %v7407 = vadd.f32 %v7365, 1.0
      %v7408 = vadd.f32 %v7367, 1.0
      %v7409 = vadd.f32 %v7369, 1.0
      %v7410 = vadd.f32 %v7371, 1.0
      %v7411 = vadd.f32 %v7373, 1.0
      %v7412 = vadd.f32 %v7375, 1.0
      %v7413 = vadd.f32 %v7377, 1.0
      %v7414 = vadd.f32 %v7379, 1.0
      %v7415 = vadd.f32 %v7381, 1.0
      %v7416 = vadd.f32 %v7383, 1.0
      %v7417 = vadd.f32 %v7385, 1.0
      %v7418 = vrcp.pop %v7386
      %v7419 = vmul.f32 1.0, %v7418
      %v7420 = vrcp.pop %v7387
      %v7421 = vmul.f32 1.0, %v7420
      %v7422 = vrcp.pop %v7388
      %v7423 = vmul.f32 1.0, %v7422
      %v7424 = vrcp.pop %v7389
      %v7425 = vmul.f32 1.0, %v7424
      %v7426 = vrcp.pop %v7390
      %v7427 = vmul.f32 1.0, %v7426
      %v7428 = vrcp.pop %v7391
      %v7429 = vmul.f32 1.0, %v7428
      %v7430 = vrcp.pop %v7392
      %v7431 = vmul.f32 1.0, %v7430
      %v7432 = vrcp.pop %v7393
      %v7433 = vmul.f32 1.0, %v7432
      %v7434 = vrcp.pop %v7394
      %v7435 = vmul.f32 1.0, %v7434
      %v7436 = vrcp.pop %v7395
      %v7437 = vmul.f32 1.0, %v7436
      %v7438 = vrcp.pop %v7396
      %v7439 = vmul.f32 1.0, %v7438
      %v7440 = vrcp.pop %v7397
      %v7441 = vmul.f32 1.0, %v7440
      %v7442 = vrcp.pop %v7398
      %v7443 = vmul.f32 1.0, %v7442
      %v7444 = vrcp.pop %v7399
      %v7445 = vmul.f32 1.0, %v7444
      %v7446 = vrcp.pop %v7400
      %v7447 = vmul.f32 1.0, %v7446
      %v7448 = vrcp.pop %v7401
      %v7449 = vmul.f32 1.0, %v7448
      %v7450 = vrcp.pop %v7402
      %v7451 = vmul.f32 1.0, %v7450
      %v7452 = vrcp.pop %v7403
      %v7453 = vmul.f32 1.0, %v7452
      %v7454 = vrcp.pop %v7404
      %v7455 = vmul.f32 1.0, %v7454
      %v7456 = vrcp.pop %v7405
      %v7457 = vmul.f32 1.0, %v7456
      %v7458 = vrcp.pop %v7406
      %v7459 = vmul.f32 1.0, %v7458
      %v7460 = vrcp.pop %v7407
      %v7461 = vmul.f32 1.0, %v7460
      %v7462 = vrcp.pop %v7408
      %v7463 = vmul.f32 1.0, %v7462
      %v7464 = vrcp.pop %v7409
      %v7465 = vmul.f32 1.0, %v7464
      %v7466 = vrcp.pop %v7410
      %v7467 = vmul.f32 1.0, %v7466
      %v7468 = vrcp.pop %v7411
      %v7469 = vmul.f32 1.0, %v7468
      %v7470 = vrcp.pop %v7412
      %v7471 = vmul.f32 1.0, %v7470
      %v7472 = vrcp.pop %v7413
      %v7473 = vmul.f32 1.0, %v7472
      %v7474 = vrcp.pop %v7414
      %v7475 = vmul.f32 1.0, %v7474
      %v7476 = vrcp.pop %v7415
      %v7477 = vmul.f32 1.0, %v7476
      %v7478 = vrcp.pop %v7416
      %v7479 = vmul.f32 1.0, %v7478
      %v7480 = vrcp.pop %v7417
      %v7481 = vmul.f32 1.0, %v7480
      %7482 = vxpose.xlu0.b32.start [1/16] %v7419, 128
      %7483 = vxpose.xlu0.b32.cont [2/16] %v7421, 128
      %7484 = vxpose.xlu0.b32.cont [3/16] %v7423, 128
      %7485 = vxpose.xlu0.b32.cont [4/16] %v7425, 128
      %7486 = vxpose.xlu0.b32.cont [5/16] %v7427, 128
      %7487 = vxpose.xlu0.b32.cont [6/16] %v7429, 128
      %7488 = vxpose.xlu0.b32.cont [7/16] %v7431, 128
      %7489 = vxpose.xlu0.b32.cont [8/16] %v7433, 128
      %7490 = vxpose.xlu0.b32.cont [9/16] 0.0, 128
      %7491 = vxpose.xlu0.b32.cont [10/16] 0.0, 128
      %7492 = vxpose.xlu0.b32.cont [11/16] 0.0, 128
      %7493 = vxpose.xlu0.b32.cont [12/16] 0.0, 128
      %7494 = vxpose.xlu0.b32.cont [13/16] 0.0, 128
      %7495 = vxpose.xlu0.b32.cont [14/16] 0.0, 128
      %7496 = vxpose.xlu0.b32.cont [15/16] 0.0, 128
      %7497 = vxpose.xlu0.b32.end [16/16] 0.0, 128
      %v7498 = vpop.trf.xlu0
      %v7499 = vpop.trf.xlu0
      %v7500 = vpop.trf.xlu0
      %v7501 = vpop.trf.xlu0
      %v7502 = vpop.trf.xlu0
      %v7503 = vpop.trf.xlu0
      %v7504 = vpop.trf.xlu0
      %v7505 = vpop.trf.xlu0
      %v7506 = vpop.trf.xlu0
      %v7507 = vpop.trf.xlu0
      %v7508 = vpop.trf.xlu0
      %v7509 = vpop.trf.xlu0
      %v7510 = vpop.trf.xlu0
      %v7511 = vpop.trf.xlu0
      %v7512 = vpop.trf.xlu0
      %v7513 = vpop.trf.xlu0
      %v7515 = vsel %vm2208, %v7498, 0
      %7517 = vmatprep.subr.mxu0 0.0
      %7518 = vmatpush1.msra.mxu0 %v174
      %7519 = vmatprep.subr.mxu0 0.0
      %7520 = vmatpush1.msra.mxu0 %v175
      %7521 = vmatprep.subr.mxu0 0.0
      %7522 = vmatpush1.msra.mxu0 %v176
      %7523 = vmatprep.subr.mxu0 0.0
      %7524 = vmatpush1.msra.mxu0 %v177
      %7525 = vmatprep.subr.mxu0 0.0
      %7526 = vmatpush1.msra.mxu0 %v178
      %7527 = vmatprep.subr.mxu0 0.0
      %7528 = vmatpush1.msra.mxu0 %v179
      %7529 = vmatprep.subr.mxu0 0.0
      %7530 = vmatpush1.msra.mxu0 %v180
      %7531 = vmatprep.subr.mxu0 0.0
      %7532 = vmatpush1.msra.mxu0 %v181
      %7533 = vmatprep.subr.mxu0 0.0
      %7534 = vmatpush1.msra.mxu0 0.0
      %7535 = vmatprep.subr.mxu0 0.0
      %7536 = vmatpush1.msra.mxu0 0.0
      %7537 = vmatprep.subr.mxu0 0.0
      %7538 = vmatpush1.msra.mxu0 0.0
      %7539 = vmatprep.subr.mxu0 0.0
      %7540 = vmatpush1.msra.mxu0 0.0
      %7541 = vmatprep.subr.mxu0 0.0
      %7542 = vmatpush1.msra.mxu0 0.0
      %7543 = vmatprep.subr.mxu0 0.0
      %7544 = vmatpush1.msra.mxu0 0.0
      %7545 = vmatprep.subr.mxu0 0.0
      %7546 = vmatpush1.msra.mxu0 0.0
      %7547 = vmatprep.subr.mxu0 0.0
      %7548 = vmatpush1.msra.mxu0 0.0
      %7549 = vmatprep.subr.mxu0 0.0
      %7550 = vmatpush1.msra.mxu0 0.0
      %7551 = vmatprep.subr.mxu0 0.0
      %7552 = vmatpush1.msra.mxu0 0.0
      %7553 = vmatprep.subr.mxu0 0.0
      %7554 = vmatpush1.msra.mxu0 0.0
      %7555 = vmatprep.subr.mxu0 0.0
      %7556 = vmatpush1.msra.mxu0 0.0
      %7557 = vmatprep.subr.mxu0 0.0
      %7558 = vmatpush1.msra.mxu0 0.0
      %7559 = vmatprep.subr.mxu0 0.0
      %7560 = vmatpush1.msra.mxu0 0.0
      %7561 = vmatprep.subr.mxu0 0.0
      %7562 = vmatpush1.msra.mxu0 0.0
      %7563 = vmatprep.subr.mxu0 0.0
      %7564 = vmatpush1.msra.mxu0 0.0
      %7565 = vmatprep.subr.mxu0 0.0
      %7566 = vmatpush1.msra.mxu0 0.0
      %7567 = vmatprep.subr.mxu0 0.0
      %7568 = vmatpush1.msra.mxu0 0.0
      %7569 = vmatprep.subr.mxu0 0.0
      %7570 = vmatpush1.msra.mxu0 0.0
      %7571 = vmatprep.subr.mxu0 0.0
      %7572 = vmatpush1.msra.mxu0 0.0
      %7573 = vmatprep.subr.mxu0 0.0
      %7574 = vmatpush1.msra.mxu0 0.0
      %7575 = vmatprep.subr.mxu0 0.0
      %7576 = vmatpush1.msra.mxu0 0.0
      %7577 = vmatprep.subr.mxu0 0.0
      %7578 = vmatpush1.msra.mxu0 0.0
      %7579 = vmatprep.subr.mxu0 0.0
      %7580 = vmatpush1.msra.mxu0 0.0
      %7581 = vmatprep.mubr.f32.mxu0 0.0
      %7582 = vmatmul.mubr.f32.gmra.mrb[0].mxu0 %v7515
      %v7583 = vpop.f32.mrb[0].mxu0
      %v7584 = vadd.f32 0.0, %v7583
      %v7585 = vpop.f32.mrb[0].mxu0
      %7586 = vdwg.mxu0
      %7587 = vxpose.xlu0.b32.start [1/16] %v7435, 128
      %7588 = vxpose.xlu0.b32.cont [2/16] %v7437, 128
      %7589 = vxpose.xlu0.b32.cont [3/16] %v7439, 128
      %7590 = vxpose.xlu0.b32.cont [4/16] %v7441, 128
      %7591 = vxpose.xlu0.b32.cont [5/16] %v7443, 128
      %7592 = vxpose.xlu0.b32.cont [6/16] %v7445, 128
      %7593 = vxpose.xlu0.b32.cont [7/16] %v7447, 128
      %7594 = vxpose.xlu0.b32.cont [8/16] %v7449, 128
      %7595 = vxpose.xlu0.b32.cont [9/16] 0.0, 128
      %7596 = vxpose.xlu0.b32.cont [10/16] 0.0, 128
      %7597 = vxpose.xlu0.b32.cont [11/16] 0.0, 128
      %7598 = vxpose.xlu0.b32.cont [12/16] 0.0, 128
      %7599 = vxpose.xlu0.b32.cont [13/16] 0.0, 128
      %7600 = vxpose.xlu0.b32.cont [14/16] 0.0, 128
      %7601 = vxpose.xlu0.b32.cont [15/16] 0.0, 128
      %7602 = vxpose.xlu0.b32.end [16/16] 0.0, 128
      %v7603 = vpop.trf.xlu0
      %v7604 = vpop.trf.xlu0
      %v7605 = vpop.trf.xlu0
      %v7606 = vpop.trf.xlu0
      %v7607 = vpop.trf.xlu0
      %v7608 = vpop.trf.xlu0
      %v7609 = vpop.trf.xlu0
      %v7610 = vpop.trf.xlu0
      %v7611 = vpop.trf.xlu0
      %v7612 = vpop.trf.xlu0
      %v7613 = vpop.trf.xlu0
      %v7614 = vpop.trf.xlu0
      %v7615 = vpop.trf.xlu0
      %v7616 = vpop.trf.xlu0
      %v7617 = vpop.trf.xlu0
      %v7618 = vpop.trf.xlu0
      %v7620 = vsel %vm2208, %v7603, 0
      %7622 = vmatprep.subr.mxu0 0.0
      %7623 = vmatpush1.msra.mxu0 %v182
      %7624 = vmatprep.subr.mxu0 0.0
      %7625 = vmatpush1.msra.mxu0 %v183
      %7626 = vmatprep.subr.mxu0 0.0
      %7627 = vmatpush1.msra.mxu0 %v184
      %7628 = vmatprep.subr.mxu0 0.0
      %7629 = vmatpush1.msra.mxu0 %v185
      %7630 = vmatprep.subr.mxu0 0.0
      %7631 = vmatpush1.msra.mxu0 %v186
      %7632 = vmatprep.subr.mxu0 0.0
      %7633 = vmatpush1.msra.mxu0 %v187
      %7634 = vmatprep.subr.mxu0 0.0
      %7635 = vmatpush1.msra.mxu0 %v188
      %7636 = vmatprep.subr.mxu0 0.0
      %7637 = vmatpush1.msra.mxu0 %v189
      %7638 = vmatprep.subr.mxu0 0.0
      %7639 = vmatpush1.msra.mxu0 0.0
      %7640 = vmatprep.subr.mxu0 0.0
      %7641 = vmatpush1.msra.mxu0 0.0
      %7642 = vmatprep.subr.mxu0 0.0
      %7643 = vmatpush1.msra.mxu0 0.0
      %7644 = vmatprep.subr.mxu0 0.0
      %7645 = vmatpush1.msra.mxu0 0.0
      %7646 = vmatprep.subr.mxu0 0.0
      %7647 = vmatpush1.msra.mxu0 0.0
      %7648 = vmatprep.subr.mxu0 0.0
      %7649 = vmatpush1.msra.mxu0 0.0
      %7650 = vmatprep.subr.mxu0 0.0
      %7651 = vmatpush1.msra.mxu0 0.0
      %7652 = vmatprep.subr.mxu0 0.0
      %7653 = vmatpush1.msra.mxu0 0.0
      %7654 = vmatprep.subr.mxu0 0.0
      %7655 = vmatpush1.msra.mxu0 0.0
      %7656 = vmatprep.subr.mxu0 0.0
      %7657 = vmatpush1.msra.mxu0 0.0
      %7658 = vmatprep.subr.mxu0 0.0
      %7659 = vmatpush1.msra.mxu0 0.0
      %7660 = vmatprep.subr.mxu0 0.0
      %7661 = vmatpush1.msra.mxu0 0.0
      %7662 = vmatprep.subr.mxu0 0.0
      %7663 = vmatpush1.msra.mxu0 0.0
      %7664 = vmatprep.subr.mxu0 0.0
      %7665 = vmatpush1.msra.mxu0 0.0
      %7666 = vmatprep.subr.mxu0 0.0
      %7667 = vmatpush1.msra.mxu0 0.0
      %7668 = vmatprep.subr.mxu0 0.0
      %7669 = vmatpush1.msra.mxu0 0.0
      %7670 = vmatprep.subr.mxu0 0.0
      %7671 = vmatpush1.msra.mxu0 0.0
      %7672 = vmatprep.subr.mxu0 0.0
      %7673 = vmatpush1.msra.mxu0 0.0
      %7674 = vmatprep.subr.mxu0 0.0
      %7675 = vmatpush1.msra.mxu0 0.0
      %7676 = vmatprep.subr.mxu0 0.0
      %7677 = vmatpush1.msra.mxu0 0.0
      %7678 = vmatprep.subr.mxu0 0.0
      %7679 = vmatpush1.msra.mxu0 0.0
      %7680 = vmatprep.subr.mxu0 0.0
      %7681 = vmatpush1.msra.mxu0 0.0
      %7682 = vmatprep.subr.mxu0 0.0
      %7683 = vmatpush1.msra.mxu0 0.0
      %7684 = vmatprep.subr.mxu0 0.0
      %7685 = vmatpush1.msra.mxu0 0.0
      %7686 = vmatprep.mubr.f32.mxu0 0.0
      %7687 = vmatmul.mubr.f32.gmra.mrb[0].mxu0 %v7620
      %v7688 = vpop.f32.mrb[0].mxu0
      %v7689 = vadd.f32 0.0, %v7688
      %v7690 = vpop.f32.mrb[0].mxu0
      %7691 = vdwg.mxu0
      %7692 = vxpose.xlu0.b32.start [1/16] %v7451, 128
      %7693 = vxpose.xlu0.b32.cont [2/16] %v7453, 128
      %7694 = vxpose.xlu0.b32.cont [3/16] %v7455, 128
      %7695 = vxpose.xlu0.b32.cont [4/16] %v7457, 128
      %7696 = vxpose.xlu0.b32.cont [5/16] %v7459, 128
      %7697 = vxpose.xlu0.b32.cont [6/16] %v7461, 128
      %7698 = vxpose.xlu0.b32.cont [7/16] %v7463, 128
      %7699 = vxpose.xlu0.b32.cont [8/16] %v7465, 128
      %7700 = vxpose.xlu0.b32.cont [9/16] 0.0, 128
      %7701 = vxpose.xlu0.b32.cont [10/16] 0.0, 128
      %7702 = vxpose.xlu0.b32.cont [11/16] 0.0, 128
      %7703 = vxpose.xlu0.b32.cont [12/16] 0.0, 128
      %7704 = vxpose.xlu0.b32.cont [13/16] 0.0, 128
      %7705 = vxpose.xlu0.b32.cont [14/16] 0.0, 128
      %7706 = vxpose.xlu0.b32.cont [15/16] 0.0, 128
      %7707 = vxpose.xlu0.b32.end [16/16] 0.0, 128
      %v7708 = vpop.trf.xlu0
      %v7709 = vpop.trf.xlu0
      %v7710 = vpop.trf.xlu0
      %v7711 = vpop.trf.xlu0
      %v7712 = vpop.trf.xlu0
      %v7713 = vpop.trf.xlu0
      %v7714 = vpop.trf.xlu0
      %v7715 = vpop.trf.xlu0
      %v7716 = vpop.trf.xlu0
      %v7717 = vpop.trf.xlu0
      %v7718 = vpop.trf.xlu0
      %v7719 = vpop.trf.xlu0
      %v7720 = vpop.trf.xlu0
      %v7721 = vpop.trf.xlu0
      %v7722 = vpop.trf.xlu0
      %v7723 = vpop.trf.xlu0
      %v7725 = vsel %vm2208, %v7708, 0
      %7727 = vmatprep.subr.mxu0 0.0
      %7728 = vmatpush1.msra.mxu0 %v190
      %7729 = vmatprep.subr.mxu0 0.0
      %7730 = vmatpush1.msra.mxu0 %v191
      %7731 = vmatprep.subr.mxu0 0.0
      %7732 = vmatpush1.msra.mxu0 %v192
      %7733 = vmatprep.subr.mxu0 0.0
      %7734 = vmatpush1.msra.mxu0 %v193
      %7735 = vmatprep.subr.mxu0 0.0
      %7736 = vmatpush1.msra.mxu0 %v194
      %7737 = vmatprep.subr.mxu0 0.0
      %7738 = vmatpush1.msra.mxu0 %v195
      %7739 = vmatprep.subr.mxu0 0.0
      %7740 = vmatpush1.msra.mxu0 %v196
      %7741 = vmatprep.subr.mxu0 0.0
      %7742 = vmatpush1.msra.mxu0 %v197
      %7743 = vmatprep.subr.mxu0 0.0
      %7744 = vmatpush1.msra.mxu0 0.0
      %7745 = vmatprep.subr.mxu0 0.0
      %7746 = vmatpush1.msra.mxu0 0.0
      %7747 = vmatprep.subr.mxu0 0.0
      %7748 = vmatpush1.msra.mxu0 0.0
      %7749 = vmatprep.subr.mxu0 0.0
      %7750 = vmatpush1.msra.mxu0 0.0
      %7751 = vmatprep.subr.mxu0 0.0
      %7752 = vmatpush1.msra.mxu0 0.0
      %7753 = vmatprep.subr.mxu0 0.0
      %7754 = vmatpush1.msra.mxu0 0.0
      %7755 = vmatprep.subr.mxu0 0.0
      %7756 = vmatpush1.msra.mxu0 0.0
      %7757 = vmatprep.subr.mxu0 0.0
      %7758 = vmatpush1.msra.mxu0 0.0
      %7759 = vmatprep.subr.mxu0 0.0
      %7760 = vmatpush1.msra.mxu0 0.0
      %7761 = vmatprep.subr.mxu0 0.0
      %7762 = vmatpush1.msra.mxu0 0.0
      %7763 = vmatprep.subr.mxu0 0.0
      %7764 = vmatpush1.msra.mxu0 0.0
      %7765 = vmatprep.subr.mxu0 0.0
      %7766 = vmatpush1.msra.mxu0 0.0
      %7767 = vmatprep.subr.mxu0 0.0
      %7768 = vmatpush1.msra.mxu0 0.0
      %7769 = vmatprep.subr.mxu0 0.0
      %7770 = vmatpush1.msra.mxu0 0.0
      %7771 = vmatprep.subr.mxu0 0.0
      %7772 = vmatpush1.msra.mxu0 0.0
      %7773 = vmatprep.subr.mxu0 0.0
      %7774 = vmatpush1.msra.mxu0 0.0
      %7775 = vmatprep.subr.mxu0 0.0
      %7776 = vmatpush1.msra.mxu0 0.0
      %7777 = vmatprep.subr.mxu0 0.0
      %7778 = vmatpush1.msra.mxu0 0.0
      %7779 = vmatprep.subr.mxu0 0.0
      %7780 = vmatpush1.msra.mxu0 0.0
      %7781 = vmatprep.subr.mxu0 0.0
      %7782 = vmatpush1.msra.mxu0 0.0
      %7783 = vmatprep.subr.mxu0 0.0
      %7784 = vmatpush1.msra.mxu0 0.0
      %7785 = vmatprep.subr.mxu0 0.0
      %7786 = vmatpush1.msra.mxu0 0.0
      %7787 = vmatprep.subr.mxu0 0.0
      %7788 = vmatpush1.msra.mxu0 0.0
      %7789 = vmatprep.subr.mxu0 0.0
      %7790 = vmatpush1.msra.mxu0 0.0
      %7791 = vmatprep.mubr.f32.mxu0 0.0
      %7792 = vmatmul.mubr.f32.gmra.mrb[0].mxu0 %v7725
      %v7793 = vpop.f32.mrb[0].mxu0
      %v7794 = vadd.f32 0.0, %v7793
      %v7795 = vpop.f32.mrb[0].mxu0
      %7796 = vdwg.mxu0
      %7797 = vxpose.xlu0.b32.start [1/16] %v7467, 128
      %7798 = vxpose.xlu0.b32.cont [2/16] %v7469, 128
      %7799 = vxpose.xlu0.b32.cont [3/16] %v7471, 128
      %7800 = vxpose.xlu0.b32.cont [4/16] %v7473, 128
      %7801 = vxpose.xlu0.b32.cont [5/16] %v7475, 128
      %7802 = vxpose.xlu0.b32.cont [6/16] %v7477, 128
      %7803 = vxpose.xlu0.b32.cont [7/16] %v7479, 128
      %7804 = vxpose.xlu0.b32.cont [8/16] %v7481, 128
      %7805 = vxpose.xlu0.b32.cont [9/16] 0.0, 128
      %7806 = vxpose.xlu0.b32.cont [10/16] 0.0, 128
      %7807 = vxpose.xlu0.b32.cont [11/16] 0.0, 128
      %7808 = vxpose.xlu0.b32.cont [12/16] 0.0, 128
      %7809 = vxpose.xlu0.b32.cont [13/16] 0.0, 128
      %7810 = vxpose.xlu0.b32.cont [14/16] 0.0, 128
      %7811 = vxpose.xlu0.b32.cont [15/16] 0.0, 128
      %7812 = vxpose.xlu0.b32.end [16/16] 0.0, 128
      %v7813 = vpop.trf.xlu0
      %v7814 = vpop.trf.xlu0
      %v7815 = vpop.trf.xlu0
      %v7816 = vpop.trf.xlu0
      %v7817 = vpop.trf.xlu0
      %v7818 = vpop.trf.xlu0
      %v7819 = vpop.trf.xlu0
      %v7820 = vpop.trf.xlu0
      %v7821 = vpop.trf.xlu0
      %v7822 = vpop.trf.xlu0
      %v7823 = vpop.trf.xlu0
      %v7824 = vpop.trf.xlu0
      %v7825 = vpop.trf.xlu0
      %v7826 = vpop.trf.xlu0
      %v7827 = vpop.trf.xlu0
      %v7828 = vpop.trf.xlu0
      %v7830 = vsel %vm2208, %v7813, 0
      %7832 = vmatprep.subr.mxu0 0.0
      %7833 = vmatpush1.msra.mxu0 %v198
      %7834 = vmatprep.subr.mxu0 0.0
      %7835 = vmatpush1.msra.mxu0 %v199
      %7836 = vmatprep.subr.mxu0 0.0
      %7837 = vmatpush1.msra.mxu0 %v200
      %7838 = vmatprep.subr.mxu0 0.0
      %7839 = vmatpush1.msra.mxu0 %v201
      %7840 = vmatprep.subr.mxu0 0.0
      %7841 = vmatpush1.msra.mxu0 %v202
      %7842 = vmatprep.subr.mxu0 0.0
      %7843 = vmatpush1.msra.mxu0 %v203
      %7844 = vmatprep.subr.mxu0 0.0
      %7845 = vmatpush1.msra.mxu0 %v204
      %7846 = vmatprep.subr.mxu0 0.0
      %7847 = vmatpush1.msra.mxu0 %v205
      %7848 = vmatprep.subr.mxu0 0.0
      %7849 = vmatpush1.msra.mxu0 0.0
      %7850 = vmatprep.subr.mxu0 0.0
      %7851 = vmatpush1.msra.mxu0 0.0
      %7852 = vmatprep.subr.mxu0 0.0
      %7853 = vmatpush1.msra.mxu0 0.0
      %7854 = vmatprep.subr.mxu0 0.0
      %7855 = vmatpush1.msra.mxu0 0.0
      %7856 = vmatprep.subr.mxu0 0.0
      %7857 = vmatpush1.msra.mxu0 0.0
      %7858 = vmatprep.subr.mxu0 0.0
      %7859 = vmatpush1.msra.mxu0 0.0
      %7860 = vmatprep.subr.mxu0 0.0
      %7861 = vmatpush1.msra.mxu0 0.0
      %7862 = vmatprep.subr.mxu0 0.0
      %7863 = vmatpush1.msra.mxu0 0.0
      %7864 = vmatprep.subr.mxu0 0.0
      %7865 = vmatpush1.msra.mxu0 0.0
      %7866 = vmatprep.subr.mxu0 0.0
      %7867 = vmatpush1.msra.mxu0 0.0
      %7868 = vmatprep.subr.mxu0 0.0
      %7869 = vmatpush1.msra.mxu0 0.0
      %7870 = vmatprep.subr.mxu0 0.0
      %7871 = vmatpush1.msra.mxu0 0.0
      %7872 = vmatprep.subr.mxu0 0.0
      %7873 = vmatpush1.msra.mxu0 0.0
      %7874 = vmatprep.subr.mxu0 0.0
      %7875 = vmatpush1.msra.mxu0 0.0
      %7876 = vmatprep.subr.mxu0 0.0
      %7877 = vmatpush1.msra.mxu0 0.0
      %7878 = vmatprep.subr.mxu0 0.0
      %7879 = vmatpush1.msra.mxu0 0.0
      %7880 = vmatprep.subr.mxu0 0.0
      %7881 = vmatpush1.msra.mxu0 0.0
      %7882 = vmatprep.subr.mxu0 0.0
      %7883 = vmatpush1.msra.mxu0 0.0
      %7884 = vmatprep.subr.mxu0 0.0
      %7885 = vmatpush1.msra.mxu0 0.0
      %7886 = vmatprep.subr.mxu0 0.0
      %7887 = vmatpush1.msra.mxu0 0.0
      %7888 = vmatprep.subr.mxu0 0.0
      %7889 = vmatpush1.msra.mxu0 0.0
      %7890 = vmatprep.subr.mxu0 0.0
      %7891 = vmatpush1.msra.mxu0 0.0
      %7892 = vmatprep.subr.mxu0 0.0
      %7893 = vmatpush1.msra.mxu0 0.0
      %7894 = vmatprep.subr.mxu0 0.0
      %7895 = vmatpush1.msra.mxu0 0.0
      %7896 = vmatprep.mubr.f32.mxu0 0.0
      %7897 = vmatmul.mubr.f32.gmra.mrb[0].mxu0 %v7830
      %v7898 = vpop.f32.mrb[0].mxu0
      %v7899 = vadd.f32 0.0, %v7898
      %v7900 = vpop.f32.mrb[0].mxu0
      %7901 = vdwg.mxu0
      %v7902 = vmul.f32 %v7584, 0.015625
      %v7903 = vmul.f32 %v7689, 0.015625
      %v7904 = vmul.f32 %v7794, 0.015625
      %v7905 = vmul.f32 %v7899, 0.015625
      %v7906 = vcombine.low %v7902, %v7904
      %v7907 = vcombine.high %v7902, %v7904
      %v7909 = vunpack.c.l.s4 1983009808
      %v7910 = vunpack.c.0.s8 %v7909
      %v7911 = vlaneseq
      %v7912 = vshrl.u32 %v7911, 7
      %v7913 = vsub.s32 %v7910, %v7912
      %v7914 = vrot.slane %v7906, %v7913
      %v7916 = vunpack.c.l.s4 1983009808
      %v7917 = vunpack.c.0.s8 %v7916
      %v7918 = vlaneseq
      %v7919 = vshrl.u32 %v7918, 7
      %v7920 = vsub.s32 %v7917, %v7919
      %v7921 = vrot.slane %v7907, %v7920
      %v7922 = vcombine.low %v7903, %v7905
      %v7923 = vcombine.high %v7903, %v7905
      %v7925 = vunpack.c.l.s4 1983009808
      %v7926 = vunpack.c.0.s8 %v7925
      %v7927 = vlaneseq
      %v7928 = vshrl.u32 %v7927, 7
      %v7929 = vsub.s32 %v7926, %v7928
      %v7930 = vrot.slane %v7922, %v7929
      %v7932 = vunpack.c.l.s4 1983009808
      %v7933 = vunpack.c.0.s8 %v7932
      %v7934 = vlaneseq
      %v7935 = vshrl.u32 %v7934, 7
      %v7936 = vsub.s32 %v7933, %v7935
      %v7937 = vrot.slane %v7923, %v7936
      %v7938 = vcombine.low %v7914, %v7930
      %v7939 = vcombine.high %v7914, %v7930
      %v7941 = vunpack.c.l.s4 1934713408
      %v7942 = vunpack.c.0.s8 %v7941
      %v7943 = vlaneseq
      %v7944 = vshrl.u32 %v7943, 7
      %v7945 = vsub.s32 %v7942, %v7944
      %v7946 = vrot.slane %v7938, %v7945
      %v7948 = vunpack.c.l.s4 1934713408
      %v7949 = vunpack.c.0.s8 %v7948
      %v7950 = vlaneseq
      %v7951 = vshrl.u32 %v7950, 7
      %v7952 = vsub.s32 %v7949, %v7951
      %v7953 = vrot.slane %v7939, %v7952
      %v7954 = vcombine.low %v7921, %v7937
      %v7955 = vcombine.high %v7921, %v7937
      %v7957 = vunpack.c.l.s4 1934713408
      %v7958 = vunpack.c.0.s8 %v7957
      %v7959 = vlaneseq
      %v7960 = vshrl.u32 %v7959, 7
      %v7961 = vsub.s32 %v7958, %v7960
      %v7962 = vrot.slane %v7954, %v7961
      %v7964 = vunpack.c.l.s4 1934713408
      %v7965 = vunpack.c.0.s8 %v7964
      %v7966 = vlaneseq
      %v7967 = vshrl.u32 %v7966, 7
      %v7968 = vsub.s32 %v7965, %v7967
      %v7969 = vrot.slane %v7955, %v7968
      %v7970 = vcombine.high %v7946, 0.0
      %v7971 = vcombine.high %v7953, 0.0
      %v7972 = vcombine.high %v7962, 0.0
      %v7973 = vcombine.high %v7969, 0.0
      %7975 = vrot.lane.b32.xlu0 %v7970, 16
      %v7976 = vpop.permute.xlu0 %7975
      %7979 = vrot.lane.b32.xlu0 %v7953, 32
      %v7980 = vpop.permute.xlu0 %7979
      %7983 = vrot.lane.b32.xlu0 %v7971, 48
      %v7984 = vpop.permute.xlu0 %7983
      %7987 = vrot.lane.b32.xlu0 %v7962, 64
      %v7988 = vpop.permute.xlu0 %7987
      %7991 = vrot.lane.b32.xlu0 %v7972, 80
      %v7992 = vpop.permute.xlu0 %7991
      %7995 = vrot.lane.b32.xlu0 %v7969, 96
      %v7996 = vpop.permute.xlu0 %7995
      %7999 = vrot.lane.b32.xlu0 %v7973, 112
      %v8000 = vpop.permute.xlu0 %7999
      %v8002 = vsel %vm2109, %v7946, %v7976
      %v8003 = vsel %vm2142, %v8002, %v7980
      %v8004 = vsel %vm2175, %v8003, %v7984
      %v8005 = vsel %vm2208, %v8004, %v7988
      %v8006 = vsel %vm2241, %v8005, %v7992
      %vm8007 = vcmask 785408
      %v8008 = vsel %vm8007, %v8006, %v7996
      %vm8009 = vcmask 916480
      %v8010 = vsel %vm8009, %v8008, %v8000
      %8011 = vst [vmem:[%s173] sm:$0xf] %v8010
      %p8012 = scmp.lt.s32.totalorder %s14, 1
      %s8013 = scalar_select %p8012, %s14, 1
      %s8014 = smul.addr %s8013, 4
      %s8015 = scalar_lea.vmem %s3, %s8014
      // Predicated region
      $region33: #{token_learner_1d.1} parent=31 // pred_check
        %p8016 = pneg %p100
      $region34: #{token_learner_1d.1} parent=31 // pred_check_branch
        %8018 = sbr.rel (%p8016) target = $region36
      $region35: #{token_learner_1d.1} parent=31 // pred_region
        _
      $region36: #{token_learner_1d.1} parent=31 // pred_fallthru
        _
    $region32: #{token_learner_1d.1} parent=5 // pred_fallthru
      _
    %p8019 = scmp.le.s32.totalorder 2, %s9
    // Predicated region
    $region37: #{token_learner_1d.1} parent=5 // pred_check
      %p8020 = pneg %p8019
    $region38: #{token_learner_1d.1} parent=5 // pred_check_branch
      %8022 = sbr.rel (%p8020) target = $region40
    $region39: #{token_learner_1d.1} parent=5 // pred_region
      %s8023 = ssub.s32 %s9, 2
      // Predicated region
      $region41: #{token_learner_1d.1} parent=39 // pred_check
        %p8024 = pneg %p106
      $region42: #{token_learner_1d.1} parent=39 // pred_check_branch
        %8026 = sbr.rel (%p8024) target = $region44
      $region43: #{token_learner_1d.1} parent=39 // pred_region
        %p8027 = scmp.lt.s32.totalorder %s15, 1
        %s8028 = scalar_select %p8027, %s15, 1
        %s8029 = smul.addr %s8028, 4
        %s8030 = scalar_lea.vmem %s3, %s8029
      $region44: #{token_learner_1d.1} parent=39 // pred_fallthru
        _
    $region40: #{token_learner_1d.1} parent=5 // pred_fallthru
      _
  $region6: #{token_learner_1d.1} parent=0 // loop_footer
    %s13 = sadd.s32 1, %s9
  $region7: #{token_learner_1d.1} parent=0 // loop_footer_branch
    %8 = sbr.rel target = $region3
  $region8: #{token_learner_1d.1} parent=0 // loop_exit
    _

</llo_original>
